<compile_context>
chip_gen: v6e
topology: v6e:2x2x1
jax: 0.10.0
libtpu: 0.0.40
codegen_flags: <defaults>
</compile_context>

<pallas_src>
import math

import jax
import jax.numpy as jnp
from jax.experimental import pallas as pl

# ----------------------------- configuration --------------------------------
RES = 32             # input_resolution
PATCH = 16           # patch_size
WIDTH = 32           # transformer hidden size
LAYERS = 4           # residual attention blocks
HEADS = 4            # attention heads (head_dim = 8)
OUT_DIM = 16         # output_dim
SPATIAL = RES // PATCH            # 2
HW = SPATIAL * SPATIAL            # 4 patch tokens
SEQ = HW + 1                      # 5 tokens (cls + patches)
PD = 3 * PATCH * PATCH            # 768 flattened patch dim
HEAD_DIM = WIDTH // HEADS         # 8
OUT_INDICES = (1, 3)
PRIOR_INDICES = (1,)
REPLACE_INDICES = (2,)
N_OUT = len(OUT_INDICES)
N_PRIOR = len(PRIOR_INDICES)
COSINE_EPS = 1e-7
LN_EPS = 1e-5
ATTN_SCALE = 1.0 / math.sqrt(HEAD_DIM)
NEG_BIG = -1e30
PACK_LANES = (N_OUT + 2) * WIDTH          # 128 : feat0 | feat1 | glob | prior


def _ln(v, g, b):
    mu = jnp.mean(v, axis=-1, keepdims=True)
    vc = v - mu
    var = jnp.mean(vc * vc, axis=-1, keepdims=True)
    return vc * jax.lax.rsqrt(var + LN_EPS) * g + b


# ----------------------------- fused Pallas kernel ---------------------------
def _vit_kernel(
    # ---- inputs -------------------------------------------------------------
    patches_ref,                  # (B*SEQ, PD)  cls rows are zero
    conv_w_ref,                   # (PD, WIDTH)
    pos_ref,                      # (B*SEQ, WIDTH) cls rows already = pos[0]+2*cls_emb
    ln_pre_g_ref, ln_pre_b_ref,   # (1, WIDTH)
    text_cls_full_ref,            # (B*SEQ, OUT_DIM)  row b*SEQ+s = text_cls[b]
    text_w_ref,                   # (OUT_DIM, WIDTH)
    text_b_ref,                   # (1, WIDTH)
    cls_mask_ref,                 # (B*SEQ, WIDTH) 1.0 on cls rows
    tile_ref,                     # (HEADS*B*SEQ, B*SEQ)     row replication
    hmask_ref,                    # (HEADS*B*SEQ, WIDTH)     per-head channel mask
    collapse_ref,                 # (B*SEQ, HEADS*B*SEQ)     = tile^T
    att_bias_ref,                 # (HEADS*B*SEQ, B*SEQ)     0 same-batch, -1e30 cross
    maskw_ref,                    # (B, B*SEQ)  support mask / area at patch cols
    pr_valid_ref,                 # (B, B*SEQ)  1.0 at own-batch patch cols
    ln1_g_ref, ln1_b_ref,         # (LAYERS, 1, WIDTH)
    w_q_ref, b_q_ref,             # (LAYERS, WIDTH, WIDTH), (LAYERS, 1, WIDTH)
    w_k_ref, b_k_ref,
    w_v_ref, b_v_ref,
    w_out_ref, b_out_ref,
    ln2_g_ref, ln2_b_ref,
    w_fc_ref, b_fc_ref,           # (LAYERS, WIDTH, 4W), (LAYERS, 1, 4W)
    w_proj_ref, b_proj_ref,       # (LAYERS, 4W, WIDTH), (LAYERS, 1, WIDTH)
    ln_post_g_ref, ln_post_b_ref,  # (1, WIDTH)
    proj_pad_ref,                 # (WIDTH, WIDTH)  cols >= OUT_DIM are zero
    # ---- output -------------------------------------------------------------
    packed_ref,                   # (B*SEQ, 128) lane-dense packed slab
):
    f32 = jnp.float32
    BL = patches_ref.shape[0]
    B = BL // SEQ

    # ---- patch embedding + positional embedding + ln_pre (one batched matmul)
    # (cls rows: zero patch row + pos row = pos[0] + 2*class_embedding, matching
    #  the reference, which adds class_embedding both as the token and into pos.)
    x = jnp.dot(patches_ref[...], conv_w_ref[...],
                preferred_element_type=f32) + pos_ref[...]
    x = _ln(x, ln_pre_g_ref[...], ln_pre_b_ref[...])

    # ---- text cls projection (batched, hoisted out of the layer loop) --------
    ts_full = jnp.dot(text_cls_full_ref[...], text_w_ref[...],
                      preferred_element_type=f32) + text_b_ref[...]     # (BL, W)
    cls_m = cls_mask_ref[...]

    tile_m = tile_ref[...]
    hmask = hmask_ref[...]
    collapse_m = collapse_ref[...]
    att_bias = att_bias_ref[...]

    feat_snaps = []
    prior_val = None

    # ---- transformer layers (unrolled; whole batch + all heads per issue) ----
    for i in range(LAYERS):
        # replace class token with projected text cls (before the block)
        if i in REPLACE_INDICES:
            x = x + cls_m * (ts_full - x)

        # --- multi-head self-attention via block-diagonal (heads-on-sublanes) ---
        h = _ln(x, ln1_g_ref[i], ln1_b_ref[i])                          # (BL, W)
        h_t = jnp.dot(tile_m, h, preferred_element_type=f32)            # (H*BL, W)
        qbd = (jnp.dot(h_t, w_q_ref[i], preferred_element_type=f32)
               + b_q_ref[i]) * hmask                                    # (H*BL, W)
        k = jnp.dot(h, w_k_ref[i], preferred_element_type=f32) + b_k_ref[i]
        v = jnp.dot(h, w_v_ref[i], preferred_element_type=f32) + b_v_ref[i]

        # per-head scores: qbd keeps only head-hh channels per row block, so the
        # full-C contraction equals the per-head (dh) contraction.
        s = jax.lax.dot_general(qbd, k, (((1,), (1,)), ((), ())),
                                preferred_element_type=f32) * ATTN_SCALE
        s = s + att_bias                                                # mask cross-batch
        s = s - jnp.max(s, axis=-1, keepdims=True)
        p = jnp.exp(s)
        p = p / jnp.sum(p, axis=-1, keepdims=True)                      # (H*BL, BL)

        ctx = jnp.dot(p, v, preferred_element_type=f32) * hmask         # (H*BL, W)
        attn = jnp.dot(collapse_m, ctx, preferred_element_type=f32)     # (BL, W)
        x = x + jnp.dot(attn, w_out_ref[i],
                        preferred_element_type=f32) + b_out_ref[i]

        # --- MLP with QuickGELU ---
        h2 = _ln(x, ln2_g_ref[i], ln2_b_ref[i])
        m = jnp.dot(h2, w_fc_ref[i], preferred_element_type=f32) + b_fc_ref[i]
        m = m * (1.0 / (1.0 + jnp.exp(-1.702 * m)))
        x = x + jnp.dot(m, w_proj_ref[i],
                        preferred_element_type=f32) + b_proj_ref[i]

        # --- multi-scale feature snapshot (full seq; wrapper drops cls rows) ---
        if i in OUT_INDICES:
            feat_snaps.append(x)

        # --- prior mask: Weighted_GAP + cosine similarity (batched over B) ----
        if i in PRIOR_INDICES:
            # maskw already holds mask / (sum(mask)+0.0005) at own-batch patch cols
            aux = jnp.dot(maskw_ref[...], x, preferred_element_type=f32)   # (B, W)
            numer = jax.lax.dot_general(aux, x, (((1,), (1,)), ((), ())),
                                        preferred_element_type=f32)        # (B, BL)
            x_sq = jax.lax.dot_general(jnp.ones((1, WIDTH), f32), x * x,
                                       (((1,), (1,)), ((), ())),
                                       preferred_element_type=f32)         # (1, BL)
            aux_norm = jnp.sqrt(jnp.sum(aux * aux, axis=-1, keepdims=True))  # (B, 1)
            sim = numer / (jnp.sqrt(x_sq) * aux_norm + COSINE_EPS)         # (B, BL)
            valid = pr_valid_ref[...] > 0.5
            smax = jnp.max(jnp.where(valid, sim, NEG_BIG), axis=-1, keepdims=True)
            smin = jnp.min(jnp.where(valid, sim, -NEG_BIG), axis=-1, keepdims=True)
            prior_val = (sim - smin) / (smax - smin + COSINE_EPS)          # (B, BL)

    # ---- get_embeddings epilogue: ln_post + proj + L2 norm (all rows batched;
    #      wrapper keeps only the cls rows).  proj is zero-padded to WIDTH cols
    #      so the row norm over 32 lanes equals the norm over the real OUT_DIM.
    g = _ln(x, ln_post_g_ref[...], ln_post_b_ref[...])
    gp = jnp.dot(g, proj_pad_ref[...], preferred_element_type=f32)      # (BL, W)
    gn = jnp.sqrt(jnp.sum(gp * gp, axis=-1, keepdims=True))             # no eps (matches ref)
    glob_all = gp / gn

    # ---- single lane-dense (BL, 128) store ------------------------------------
    pc = jnp.concatenate(
        [prior_val, jnp.zeros((B, WIDTH - BL), f32)], axis=1)           # (B, W)
    pc = jnp.concatenate(
        [pc, jnp.zeros((BL - B, WIDTH), f32)], axis=0)                  # (BL, W)
    packed = jnp.concatenate(feat_snaps + [glob_all, pc], axis=1)       # (BL, 128)
    packed_ref[...] = packed


# ----------------------------- plain-JAX glue ---------------------------------
def resize_bilinear_align_corners(img, out_h, out_w):
    # F.interpolate(..., mode='bilinear', align_corners=True) for NCHW input.
    B, C, Hm, Wm = img.shape
    if out_h > 1:
        ys = jnp.arange(out_h, dtype=jnp.float32) * (Hm - 1) / (out_h - 1)
    else:
        ys = jnp.zeros((1,), jnp.float32)
    if out_w > 1:
        xs = jnp.arange(out_w, dtype=jnp.float32) * (Wm - 1) / (out_w - 1)
    else:
        xs = jnp.zeros((1,), jnp.float32)
    y0 = jnp.floor(ys).astype(jnp.int32)
    y1 = jnp.minimum(y0 + 1, Hm - 1)
    wy = (ys - y0.astype(jnp.float32))[None, None, :, None]
    x0 = jnp.floor(xs).astype(jnp.int32)
    x1 = jnp.minimum(x0 + 1, Wm - 1)
    wx = (xs - x0.astype(jnp.float32))[None, None, None, :]
    r0 = img[:, :, y0, :]
    r1 = img[:, :, y1, :]
    a = r0[:, :, :, x0]
    b = r0[:, :, :, x1]
    c = r1[:, :, :, x0]
    d = r1[:, :, :, x1]
    return a * (1 - wy) * (1 - wx) + b * (1 - wy) * wx + c * wy * (1 - wx) + d * wy * wx


def _make_pos_add(params):
    # Positional embedding fed to the kernel: row 0 = pos[0] + 2*cls_emb (the
    # reference adds class_embedding both as the cls token and into cls_pos),
    # rows 1.. = bilinear-resized spatial positions (identity at this config).
    pos = params["pos_emb"]
    cls_row = pos[0:1] + 2.0 * params["cls_emb"][None, :]
    sp = pos[1:].reshape(1, SPATIAL, SPATIAL, WIDTH).transpose(0, 3, 1, 2)
    # TODO(synk): F.interpolate default is align_corners=False; jax.image.resize
    # bilinear matches closely and is an exact identity for 2x2 -> 2x2 here.
    sp = jax.image.resize(sp, (1, WIDTH, SPATIAL, SPATIAL), method="bilinear")
    sp = sp.reshape(WIDTH, HW).T
    return jnp.concatenate([cls_row, sp], axis=0)                      # (SEQ, WIDTH)


# ----------------------------- parameters ------------------------------------
def init_params(key):
    scale = WIDTH ** -0.5
    keys = iter(jax.random.split(key, 16))
    nk = lambda: next(keys)
    params = {
        "conv1_w": 0.02 * jax.random.normal(nk(), (WIDTH, 3, PATCH, PATCH), jnp.float32),
        "cls_emb": scale * jax.random.normal(nk(), (WIDTH,), jnp.float32),
        "pos_emb": scale * jax.random.normal(nk(), (SEQ, WIDTH), jnp.float32),
        "ln_pre_g": jnp.ones((WIDTH,), jnp.float32),
        "ln_pre_b": jnp.zeros((WIDTH,), jnp.float32),
        "text_w": 0.02 * jax.random.normal(nk(), (OUT_DIM, WIDTH), jnp.float32),
        "text_b": jnp.zeros((WIDTH,), jnp.float32),
        "ln_post_g": jnp.ones((WIDTH,), jnp.float32),
        "ln_post_b": jnp.zeros((WIDTH,), jnp.float32),
        "proj": scale * jax.random.normal(nk(), (WIDTH, OUT_DIM), jnp.float32),
        "layers": [],
    }
    for i in range(LAYERS):
        lk = jax.random.split(jax.random.fold_in(key, 100 + i), 4)
        params["layers"].append(
            {
                "ln1_g": jnp.ones((WIDTH,), jnp.float32),
                "ln1_b": jnp.zeros((WIDTH,), jnp.float32),
                "w_qkv": 0.02 * jax.random.normal(lk[0], (WIDTH, 3 * WIDTH), jnp.float32),
                "b_qkv": jnp.zeros((3 * WIDTH,), jnp.float32),
                "w_out": 0.02 * jax.random.normal(lk[1], (WIDTH, WIDTH), jnp.float32),
                "b_out": jnp.zeros((WIDTH,), jnp.float32),
                "ln2_g": jnp.ones((WIDTH,), jnp.float32),
                "ln2_b": jnp.zeros((WIDTH,), jnp.float32),
                "w_fc": 0.02 * jax.random.normal(lk[2], (WIDTH, 4 * WIDTH), jnp.float32),
                "b_fc": jnp.zeros((4 * WIDTH,), jnp.float32),
                "w_proj": 0.02 * jax.random.normal(lk[3], (4 * WIDTH, WIDTH), jnp.float32),
                "b_proj": jnp.zeros((WIDTH,), jnp.float32),
            }
        )
    return params


# ----------------------------- forward ---------------------------------------
def forward(params, x_img, text_cls, x_m):
    f32 = jnp.float32
    B = x_img.shape[0]
    H = W = SPATIAL
    BL = B * SEQ

    # conv1 (kernel == stride, no bias) as a patch gather; zero rows for cls slots.
    patches = x_img.reshape(B, 3, H, PATCH, W, PATCH)
    patches = patches.transpose(0, 2, 4, 1, 3, 5).reshape(B, HW, PD)
    patches = jnp.concatenate([jnp.zeros((B, 1, PD), f32), patches], axis=1)
    patches = patches.reshape(BL, PD)
    conv_w = params["conv1_w"].reshape(WIDTH, PD).T                    # (PD, WIDTH)

    pos_full = jnp.tile(_make_pos_add(params), (B, 1))                 # (BL, WIDTH)

    # support mask (training-mode path): 255 -> 0, bilinear align_corners=True
    x_mp = jnp.where(x_m == 255.0, 0.0, x_m).astype(f32)[:, None]
    x_mp = resize_bilinear_align_corners(x_mp, H, W)
    mask = x_mp.reshape(B, HW)                                         # (B, HW)

    # ---- static helper matrices (all tiny) -----------------------------------
    col = jnp.arange(BL)
    col_b = col // SEQ
    col_s = col % SEQ
    in_batch = (col_b[None, :] == jnp.arange(B)[:, None])              # (B, BL)
    is_patch = (col_s[None, :] >= 1)

    area = jnp.sum(mask, axis=1, keepdims=True) + 0.0005               # (B, 1)
    mask_pad = jnp.concatenate([jnp.zeros((B, 1), f32), mask], axis=1)  # (B, SEQ)
    maskw = jnp.tile(mask_pad, (1, B)) * in_batch.astype(f32) / area   # (B, BL)
    pr_valid = (in_batch & is_patch).astype(f32)                       # (B, BL)

    cls_rows = (col_s == 0).astype(f32)[:, None]
    cls_mask = jnp.tile(cls_rows, (1, WIDTH))                          # (BL, WIDTH)

    rows = jnp.arange(HEADS * BL)
    hh_of_row = rows // BL
    r_of_row = rows % BL
    tile_m = (r_of_row[:, None] == col[None, :]).astype(f32)           # (H*BL, BL)
    collapse_m = tile_m.T                                              # (BL, H*BL)
    head_of_ch = jnp.arange(WIDTH) // HEAD_DIM
    hmask = (head_of_ch[None, :] == hh_of_row[:, None]).astype(f32)    # (H*BL, WIDTH)
    qbatch = r_of_row // SEQ
    att_bias = jnp.where(qbatch[:, None] == col_b[None, :], 0.0, NEG_BIG).astype(f32)

    text_cls_full = jnp.repeat(text_cls.astype(f32), SEQ, axis=0)      # (BL, OUT_DIM)
    proj_pad = jnp.concatenate(
        [params["proj"], jnp.zeros((WIDTH, WIDTH - OUT_DIM), f32)], axis=1)  # (W, W)

    # ---- stacked per-layer weights (w_qkv split into q/k/v in the wrapper) ----
    def stack(name):
        return jnp.stack([params["layers"][l][name] for l in range(LAYERS)])

    ln1_g = stack("ln1_g")[:, None, :]
    ln1_b = stack("ln1_b")[:, None, :]
    w_qkv = stack("w_qkv")
    b_qkv = stack("b_qkv")
    w_q, w_k, w_v = (w_qkv[:, :, :WIDTH], w_qkv[:, :, WIDTH:2 * WIDTH],
                     w_qkv[:, :, 2 * WIDTH:])
    b_q = b_qkv[:, None, :WIDTH]
    b_k = b_qkv[:, None, WIDTH:2 * WIDTH]
    b_v = b_qkv[:, None, 2 * WIDTH:]
    w_out = stack("w_out")
    b_out = stack("b_out")[:, None, :]
    ln2_g = stack("ln2_g")[:, None, :]
    ln2_b = stack("ln2_b")[:, None, :]
    w_fc = stack("w_fc")
    b_fc = stack("b_fc")[:, None, :]
    w_proj = stack("w_proj")
    b_proj = stack("b_proj")[:, None, :]

    packed = pl.pallas_call(
        _vit_kernel,
        out_shape=jax.ShapeDtypeStruct((BL, PACK_LANES), jnp.float32),
    )(
        patches, conv_w, pos_full,
        params["ln_pre_g"].reshape(1, WIDTH), params["ln_pre_b"].reshape(1, WIDTH),
        text_cls_full, params["text_w"], params["text_b"].reshape(1, WIDTH),
        cls_mask, tile_m, hmask, collapse_m, att_bias,
        maskw, pr_valid,
        ln1_g, ln1_b, w_q, b_q, w_k, b_k, w_v, b_v, w_out, b_out,
        ln2_g, ln2_b, w_fc, b_fc, w_proj, b_proj,
        params["ln_post_g"].reshape(1, WIDTH), params["ln_post_b"].reshape(1, WIDTH),
        proj_pad,
    )

    # ---- unpack the lane-dense slab (cheap XLA slices, once) ------------------
    features = []
    for j in range(N_OUT):
        f = packed[:, j * WIDTH:(j + 1) * WIDTH].reshape(B, SEQ, WIDTH)[:, 1:, :]
        features.append(f.transpose(0, 2, 1).reshape(B, WIDTH, H, W))
    glob = packed[0::SEQ, N_OUT * WIDTH:N_OUT * WIDTH + OUT_DIM]       # (B, OUT_DIM)
    prior_block = packed[:B, (N_OUT + 1) * WIDTH:(N_OUT + 1) * WIDTH + BL]  # (B, BL)
    idx = jnp.arange(B)[:, None] * SEQ + 1 + jnp.arange(HW)[None, :]
    prior = jnp.take_along_axis(prior_block, idx, axis=1).reshape(B, 1, H, W)
    prior_list = [prior]
    # (visual_embedding only appended when len(out_indices)==1; here it is 2,
    #  so it is dropped, matching the reference.)
    return [features, prior_list, glob]


# ----------------------------- main -------------------------------------------
if __name__ == "__main__":
    key = jax.random.PRNGKey(0)
    kp, kx, kt, km = jax.random.split(key, 4)

    params = init_params(kp)

    x_img = jax.random.normal(kx, (2, 3, RES, RES), jnp.float32)
    text_cls = jax.random.normal(kt, (2, OUT_DIM), jnp.float32)
    x_m = (jax.random.uniform(km, (2, RES, RES)) > 0.5).astype(jnp.float32)
    x_m = x_m.at[:, :4, :4].set(255.0)  # some "ignore" pixels

    fwd = jax.jit(forward)
    outs = fwd(params, x_img, text_cls, x_m)
    jax.block_until_ready(outs)

    feats, priors, glob = outs
    assert len(feats) == N_OUT and feats[0].shape == (2, WIDTH, SPATIAL, SPATIAL)
    assert len(priors) == N_PRIOR and priors[0].shape == (2, 1, SPATIAL, SPATIAL)
    assert glob.shape == (2, OUT_DIM)
    print("KERNEL_OK")
</pallas_src>

<mosaic_0001>
module attributes {stable_mosaic.version = 11 : i64} {
  func.func @_vit_kernel(%arg0: memref<10x768xf32, #tpu.memory_space<vmem>>, %arg1: memref<768x32xf32, #tpu.memory_space<vmem>>, %arg2: memref<10x32xf32, #tpu.memory_space<vmem>>, %arg3: memref<1x32xf32, #tpu.memory_space<vmem>>, %arg4: memref<1x32xf32, #tpu.memory_space<vmem>>, %arg5: memref<10x16xf32, #tpu.memory_space<vmem>>, %arg6: memref<16x32xf32, #tpu.memory_space<vmem>>, %arg7: memref<1x32xf32, #tpu.memory_space<vmem>>, %arg8: memref<10x32xf32, #tpu.memory_space<vmem>>, %arg9: memref<40x10xf32, #tpu.memory_space<vmem>>, %arg10: memref<40x32xf32, #tpu.memory_space<vmem>>, %arg11: memref<10x40xf32, #tpu.memory_space<vmem>>, %arg12: memref<40x10xf32, #tpu.memory_space<vmem>>, %arg13: memref<2x10xf32, #tpu.memory_space<vmem>>, %arg14: memref<2x10xf32, #tpu.memory_space<vmem>>, %arg15: memref<4x1x32xf32, #tpu.memory_space<vmem>>, %arg16: memref<4x1x32xf32, #tpu.memory_space<vmem>>, %arg17: memref<4x32x32xf32, #tpu.memory_space<vmem>>, %arg18: memref<4x1x32xf32, #tpu.memory_space<vmem>>, %arg19: memref<4x32x32xf32, #tpu.memory_space<vmem>>, %arg20: memref<4x1x32xf32, #tpu.memory_space<vmem>>, %arg21: memref<4x32x32xf32, #tpu.memory_space<vmem>>, %arg22: memref<4x1x32xf32, #tpu.memory_space<vmem>>, %arg23: memref<4x32x32xf32, #tpu.memory_space<vmem>>, %arg24: memref<4x1x32xf32, #tpu.memory_space<vmem>>, %arg25: memref<4x1x32xf32, #tpu.memory_space<vmem>>, %arg26: memref<4x1x32xf32, #tpu.memory_space<vmem>>, %arg27: memref<4x32x128xf32, #tpu.memory_space<vmem>>, %arg28: memref<4x1x128xf32, #tpu.memory_space<vmem>>, %arg29: memref<4x128x32xf32, #tpu.memory_space<vmem>>, %arg30: memref<4x1x32xf32, #tpu.memory_space<vmem>>, %arg31: memref<1x32xf32, #tpu.memory_space<vmem>>, %arg32: memref<1x32xf32, #tpu.memory_space<vmem>>, %arg33: memref<32x32xf32, #tpu.memory_space<vmem>>, %arg34: memref<10x128xf32, #tpu.memory_space<vmem>>) attributes {dimension_semantics = [], scalar_prefetch = 0 : i64, scratch_operands = 0 : i64, tpu.core_type = #tpu.core_type<tc>} {
    %c0 = arith.constant 0 : index
    %c0_0 = arith.constant 0 : index
    %0 = vector.load %arg0[%c0, %c0_0] : memref<10x768xf32, #tpu.memory_space<vmem>>, vector<10x768xf32>
    %c0_1 = arith.constant 0 : index
    %c0_2 = arith.constant 0 : index
    %1 = vector.load %arg1[%c0_1, %c0_2] : memref<768x32xf32, #tpu.memory_space<vmem>>, vector<768x32xf32>
    %cst = arith.constant dense<0.000000e+00> : vector<10x32xf32>
    %2 = tpu.matmul %0, %1, %cst {dimension_numbers = #tpu.dot_dimension_numbers<[1], [0], [0], [1], [0, 0, 1, 1], [], []>} : vector<10x768xf32>, vector<768x32xf32>, vector<10x32xf32> -> vector<10x32xf32>
    %c0_3 = arith.constant 0 : index
    %c0_4 = arith.constant 0 : index
    %3 = vector.load %arg2[%c0_3, %c0_4] : memref<10x32xf32, #tpu.memory_space<vmem>>, vector<10x32xf32>
    %4 = arith.addf %2, %3 : vector<10x32xf32>
    %c0_5 = arith.constant 0 : index
    %c0_6 = arith.constant 0 : index
    %5 = vector.load %arg3[%c0_5, %c0_6] : memref<1x32xf32, #tpu.memory_space<vmem>>, vector<1x32xf32>
    %c0_7 = arith.constant 0 : index
    %c0_8 = arith.constant 0 : index
    %6 = vector.load %arg4[%c0_7, %c0_8] : memref<1x32xf32, #tpu.memory_space<vmem>>, vector<1x32xf32>
    %cst_9 = arith.constant dense<0.000000e+00> : vector<10xf32>
    %7 = vector.multi_reduction <add>, %4, %cst_9 [1] : vector<10x32xf32> to vector<10xf32>
    %8 = vector.shape_cast %7 : vector<10xf32> to vector<10x1xf32>
    %cst_10 = arith.constant 3.200000e+01 : f32
    %9 = vector.broadcast %cst_10 : f32 to vector<10x1xf32>
    %10 = arith.divf %8, %9 : vector<10x1xf32>
    %11 = vector.broadcast %10 : vector<10x1xf32> to vector<10x32xf32>
    %12 = arith.subf %4, %11 : vector<10x32xf32>
    %13 = arith.mulf %12, %12 : vector<10x32xf32>
    %cst_11 = arith.constant dense<0.000000e+00> : vector<10xf32>
    %14 = vector.multi_reduction <add>, %13, %cst_11 [1] : vector<10x32xf32> to vector<10xf32>
    %15 = vector.shape_cast %14 : vector<10xf32> to vector<10x1xf32>
    %cst_12 = arith.constant 3.200000e+01 : f32
    %16 = vector.broadcast %cst_12 : f32 to vector<10x1xf32>
    %17 = arith.divf %15, %16 : vector<10x1xf32>
    %cst_13 = arith.constant 9.99999974E-6 : f32
    %18 = vector.broadcast %cst_13 : f32 to vector<10x1xf32>
    %19 = arith.addf %17, %18 : vector<10x1xf32>
    %20 = math.rsqrt %19 : vector<10x1xf32>
    %21 = vector.broadcast %20 : vector<10x1xf32> to vector<10x32xf32>
    %22 = arith.mulf %12, %21 : vector<10x32xf32>
    %23 = vector.broadcast %5 : vector<1x32xf32> to vector<10x32xf32>
    %24 = arith.mulf %22, %23 : vector<10x32xf32>
    %25 = vector.broadcast %6 : vector<1x32xf32> to vector<10x32xf32>
    %26 = arith.addf %24, %25 : vector<10x32xf32>
    %c0_14 = arith.constant 0 : index
    %c0_15 = arith.constant 0 : index
    %27 = vector.load %arg5[%c0_14, %c0_15] : memref<10x16xf32, #tpu.memory_space<vmem>>, vector<10x16xf32>
    %c0_16 = arith.constant 0 : index
    %c0_17 = arith.constant 0 : index
    %28 = vector.load %arg6[%c0_16, %c0_17] : memref<16x32xf32, #tpu.memory_space<vmem>>, vector<16x32xf32>
    %cst_18 = arith.constant dense<0.000000e+00> : vector<10x32xf32>
    %29 = tpu.matmul %27, %28, %cst_18 {dimension_numbers = #tpu.dot_dimension_numbers<[1], [0], [0], [1], [0, 0, 1, 1], [], []>} : vector<10x16xf32>, vector<16x32xf32>, vector<10x32xf32> -> vector<10x32xf32>
    %c0_19 = arith.constant 0 : index
    %c0_20 = arith.constant 0 : index
    %30 = vector.load %arg7[%c0_19, %c0_20] : memref<1x32xf32, #tpu.memory_space<vmem>>, vector<1x32xf32>
    %31 = vector.broadcast %30 : vector<1x32xf32> to vector<10x32xf32>
    %32 = arith.addf %29, %31 : vector<10x32xf32>
    %c0_21 = arith.constant 0 : index
    %c0_22 = arith.constant 0 : index
    %33 = vector.load %arg8[%c0_21, %c0_22] : memref<10x32xf32, #tpu.memory_space<vmem>>, vector<10x32xf32>
    %c0_23 = arith.constant 0 : index
    %c0_24 = arith.constant 0 : index
    %34 = vector.load %arg9[%c0_23, %c0_24] : memref<40x10xf32, #tpu.memory_space<vmem>>, vector<40x10xf32>
    %c0_25 = arith.constant 0 : index
    %c0_26 = arith.constant 0 : index
    %35 = vector.load %arg10[%c0_25, %c0_26] : memref<40x32xf32, #tpu.memory_space<vmem>>, vector<40x32xf32>
    %c0_27 = arith.constant 0 : index
    %c0_28 = arith.constant 0 : index
    %36 = vector.load %arg11[%c0_27, %c0_28] : memref<10x40xf32, #tpu.memory_space<vmem>>, vector<10x40xf32>
    %c0_29 = arith.constant 0 : index
    %c0_30 = arith.constant 0 : index
    %37 = vector.load %arg12[%c0_29, %c0_30] : memref<40x10xf32, #tpu.memory_space<vmem>>, vector<40x10xf32>
    %c0_31 = arith.constant 0 : index
    %c0_32 = arith.constant 0 : index
    %c0_33 = arith.constant 0 : index
    %38 = vector.load %arg15[%c0_31, %c0_32, %c0_33] : memref<4x1x32xf32, #tpu.memory_space<vmem>>, vector<1x1x32xf32>
    %39 = vector.shape_cast %38 : vector<1x1x32xf32> to vector<1x32xf32>
    %c0_34 = arith.constant 0 : index
    %c0_35 = arith.constant 0 : index
    %c0_36 = arith.constant 0 : index
    %40 = vector.load %arg16[%c0_34, %c0_35, %c0_36] : memref<4x1x32xf32, #tpu.memory_space<vmem>>, vector<1x1x32xf32>
    %41 = vector.shape_cast %40 : vector<1x1x32xf32> to vector<1x32xf32>
    %cst_37 = arith.constant dense<0.000000e+00> : vector<10xf32>
    %42 = vector.multi_reduction <add>, %26, %cst_37 [1] : vector<10x32xf32> to vector<10xf32>
    %43 = vector.shape_cast %42 : vector<10xf32> to vector<10x1xf32>
    %cst_38 = arith.constant 3.200000e+01 : f32
    %44 = vector.broadcast %cst_38 : f32 to vector<10x1xf32>
    %45 = arith.divf %43, %44 : vector<10x1xf32>
    %46 = vector.broadcast %45 : vector<10x1xf32> to vector<10x32xf32>
    %47 = arith.subf %26, %46 : vector<10x32xf32>
    %48 = arith.mulf %47, %47 : vector<10x32xf32>
    %cst_39 = arith.constant dense<0.000000e+00> : vector<10xf32>
    %49 = vector.multi_reduction <add>, %48, %cst_39 [1] : vector<10x32xf32> to vector<10xf32>
    %50 = vector.shape_cast %49 : vector<10xf32> to vector<10x1xf32>
    %cst_40 = arith.constant 3.200000e+01 : f32
    %51 = vector.broadcast %cst_40 : f32 to vector<10x1xf32>
    %52 = arith.divf %50, %51 : vector<10x1xf32>
    %cst_41 = arith.constant 9.99999974E-6 : f32
    %53 = vector.broadcast %cst_41 : f32 to vector<10x1xf32>
    %54 = arith.addf %52, %53 : vector<10x1xf32>
    %55 = math.rsqrt %54 : vector<10x1xf32>
    %56 = vector.broadcast %55 : vector<10x1xf32> to vector<10x32xf32>
    %57 = arith.mulf %47, %56 : vector<10x32xf32>
    %58 = vector.broadcast %39 : vector<1x32xf32> to vector<10x32xf32>
    %59 = arith.mulf %57, %58 : vector<10x32xf32>
    %60 = vector.broadcast %41 : vector<1x32xf32> to vector<10x32xf32>
    %61 = arith.addf %59, %60 : vector<10x32xf32>
    %cst_42 = arith.constant dense<0.000000e+00> : vector<40x32xf32>
    %62 = tpu.matmul %34, %61, %cst_42 {dimension_numbers = #tpu.dot_dimension_numbers<[1], [0], [0], [1], [0, 0, 1, 1], [], []>} : vector<40x10xf32>, vector<10x32xf32>, vector<40x32xf32> -> vector<40x32xf32>
    %c0_43 = arith.constant 0 : index
    %c0_44 = arith.constant 0 : index
    %c0_45 = arith.constant 0 : index
    %63 = vector.load %arg17[%c0_43, %c0_44, %c0_45] : memref<4x32x32xf32, #tpu.memory_space<vmem>>, vector<1x32x32xf32>
    %64 = vector.shape_cast %63 : vector<1x32x32xf32> to vector<32x32xf32>
    %cst_46 = arith.constant dense<0.000000e+00> : vector<40x32xf32>
    %65 = tpu.matmul %62, %64, %cst_46 {dimension_numbers = #tpu.dot_dimension_numbers<[1], [0], [0], [1], [0, 0, 1, 1], [], []>} : vector<40x32xf32>, vector<32x32xf32>, vector<40x32xf32> -> vector<40x32xf32>
    %c0_47 = arith.constant 0 : index
    %c0_48 = arith.constant 0 : index
    %c0_49 = arith.constant 0 : index
    %66 = vector.load %arg18[%c0_47, %c0_48, %c0_49] : memref<4x1x32xf32, #tpu.memory_space<vmem>>, vector<1x1x32xf32>
    %67 = vector.shape_cast %66 : vector<1x1x32xf32> to vector<1x32xf32>
    %68 = vector.broadcast %67 : vector<1x32xf32> to vector<40x32xf32>
    %69 = arith.addf %65, %68 : vector<40x32xf32>
    %70 = arith.mulf %69, %35 : vector<40x32xf32>
    %c0_50 = arith.constant 0 : index
    %c0_51 = arith.constant 0 : index
    %c0_52 = arith.constant 0 : index
    %71 = vector.load %arg19[%c0_50, %c0_51, %c0_52] : memref<4x32x32xf32, #tpu.memory_space<vmem>>, vector<1x32x32xf32>
    %72 = vector.shape_cast %71 : vector<1x32x32xf32> to vector<32x32xf32>
    %cst_53 = arith.constant dense<0.000000e+00> : vector<10x32xf32>
    %73 = tpu.matmul %61, %72, %cst_53 {dimension_numbers = #tpu.dot_dimension_numbers<[1], [0], [0], [1], [0, 0, 1, 1], [], []>} : vector<10x32xf32>, vector<32x32xf32>, vector<10x32xf32> -> vector<10x32xf32>
    %c0_54 = arith.constant 0 : index
    %c0_55 = arith.constant 0 : index
    %c0_56 = arith.constant 0 : index
    %74 = vector.load %arg20[%c0_54, %c0_55, %c0_56] : memref<4x1x32xf32, #tpu.memory_space<vmem>>, vector<1x1x32xf32>
    %75 = vector.shape_cast %74 : vector<1x1x32xf32> to vector<1x32xf32>
    %76 = vector.broadcast %75 : vector<1x32xf32> to vector<10x32xf32>
    %77 = arith.addf %73, %76 : vector<10x32xf32>
    %c0_57 = arith.constant 0 : index
    %c0_58 = arith.constant 0 : index
    %c0_59 = arith.constant 0 : index
    %78 = vector.load %arg21[%c0_57, %c0_58, %c0_59] : memref<4x32x32xf32, #tpu.memory_space<vmem>>, vector<1x32x32xf32>
    %79 = vector.shape_cast %78 : vector<1x32x32xf32> to vector<32x32xf32>
    %cst_60 = arith.constant dense<0.000000e+00> : vector<10x32xf32>
    %80 = tpu.matmul %61, %79, %cst_60 {dimension_numbers = #tpu.dot_dimension_numbers<[1], [0], [0], [1], [0, 0, 1, 1], [], []>} : vector<10x32xf32>, vector<32x32xf32>, vector<10x32xf32> -> vector<10x32xf32>
    %c0_61 = arith.constant 0 : index
    %c0_62 = arith.constant 0 : index
    %c0_63 = arith.constant 0 : index
    %81 = vector.load %arg22[%c0_61, %c0_62, %c0_63] : memref<4x1x32xf32, #tpu.memory_space<vmem>>, vector<1x1x32xf32>
    %82 = vector.shape_cast %81 : vector<1x1x32xf32> to vector<1x32xf32>
    %83 = vector.broadcast %82 : vector<1x32xf32> to vector<10x32xf32>
    %84 = arith.addf %80, %83 : vector<10x32xf32>
    %cst_64 = arith.constant dense<0.000000e+00> : vector<40x10xf32>
    %85 = tpu.matmul %70, %77, %cst_64 {dimension_numbers = #tpu.dot_dimension_numbers<[1], [1], [0], [0], [0, 0, 1, 0], [], []>} : vector<40x32xf32>, vector<10x32xf32>, vector<40x10xf32> -> vector<40x10xf32>
    %cst_65 = arith.constant 0.353553385 : f32
    %86 = vector.broadcast %cst_65 : f32 to vector<40x10xf32>
    %87 = arith.mulf %85, %86 : vector<40x10xf32>
    %88 = arith.addf %87, %37 : vector<40x10xf32>
    %cst_66 = arith.constant dense<0xFF800000> : vector<40xf32>
    %89 = vector.multi_reduction <maximumf>, %88, %cst_66 [1] : vector<40x10xf32> to vector<40xf32>
    %90 = vector.shape_cast %89 : vector<40xf32> to vector<40x1xf32>
    %91 = vector.broadcast %90 : vector<40x1xf32> to vector<40x10xf32>
    %92 = arith.subf %88, %91 : vector<40x10xf32>
    %93 = math.exp %92 : vector<40x10xf32>
    %cst_67 = arith.constant dense<0.000000e+00> : vector<40xf32>
    %94 = vector.multi_reduction <add>, %93, %cst_67 [1] : vector<40x10xf32> to vector<40xf32>
    %95 = vector.shape_cast %94 : vector<40xf32> to vector<40x1xf32>
    %96 = vector.broadcast %95 : vector<40x1xf32> to vector<40x10xf32>
    %97 = arith.divf %93, %96 : vector<40x10xf32>
    %cst_68 = arith.constant dense<0.000000e+00> : vector<40x32xf32>
    %98 = tpu.matmul %97, %84, %cst_68 {dimension_numbers = #tpu.dot_dimension_numbers<[1], [0], [0], [1], [0, 0, 1, 1], [], []>} : vector<40x10xf32>, vector<10x32xf32>, vector<40x32xf32> -> vector<40x32xf32>
    %99 = arith.mulf %98, %35 : vector<40x32xf32>
    %cst_69 = arith.constant dense<0.000000e+00> : vector<10x32xf32>
    %100 = tpu.matmul %36, %99, %cst_69 {dimension_numbers = #tpu.dot_dimension_numbers<[1], [0], [0], [1], [0, 0, 1, 1], [], []>} : vector<10x40xf32>, vector<40x32xf32>, vector<10x32xf32> -> vector<10x32xf32>
    %c0_70 = arith.constant 0 : index
    %c0_71 = arith.constant 0 : index
    %c0_72 = arith.constant 0 : index
    %101 = vector.load %arg23[%c0_70, %c0_71, %c0_72] : memref<4x32x32xf32, #tpu.memory_space<vmem>>, vector<1x32x32xf32>
    %102 = vector.shape_cast %101 : vector<1x32x32xf32> to vector<32x32xf32>
    %cst_73 = arith.constant dense<0.000000e+00> : vector<10x32xf32>
    %103 = tpu.matmul %100, %102, %cst_73 {dimension_numbers = #tpu.dot_dimension_numbers<[1], [0], [0], [1], [0, 0, 1, 1], [], []>} : vector<10x32xf32>, vector<32x32xf32>, vector<10x32xf32> -> vector<10x32xf32>
    %104 = arith.addf %26, %103 : vector<10x32xf32>
    %c0_74 = arith.constant 0 : index
    %c0_75 = arith.constant 0 : index
    %c0_76 = arith.constant 0 : index
    %105 = vector.load %arg24[%c0_74, %c0_75, %c0_76] : memref<4x1x32xf32, #tpu.memory_space<vmem>>, vector<1x1x32xf32>
    %106 = vector.shape_cast %105 : vector<1x1x32xf32> to vector<1x32xf32>
    %107 = vector.broadcast %106 : vector<1x32xf32> to vector<10x32xf32>
    %108 = arith.addf %104, %107 : vector<10x32xf32>
    %c0_77 = arith.constant 0 : index
    %c0_78 = arith.constant 0 : index
    %c0_79 = arith.constant 0 : index
    %109 = vector.load %arg25[%c0_77, %c0_78, %c0_79] : memref<4x1x32xf32, #tpu.memory_space<vmem>>, vector<1x1x32xf32>
    %110 = vector.shape_cast %109 : vector<1x1x32xf32> to vector<1x32xf32>
    %c0_80 = arith.constant 0 : index
    %c0_81 = arith.constant 0 : index
    %c0_82 = arith.constant 0 : index
    %111 = vector.load %arg26[%c0_80, %c0_81, %c0_82] : memref<4x1x32xf32, #tpu.memory_space<vmem>>, vector<1x1x32xf32>
    %112 = vector.shape_cast %111 : vector<1x1x32xf32> to vector<1x32xf32>
    %cst_83 = arith.constant dense<0.000000e+00> : vector<10xf32>
    %113 = vector.multi_reduction <add>, %108, %cst_83 [1] : vector<10x32xf32> to vector<10xf32>
    %114 = vector.shape_cast %113 : vector<10xf32> to vector<10x1xf32>
    %cst_84 = arith.constant 3.200000e+01 : f32
    %115 = vector.broadcast %cst_84 : f32 to vector<10x1xf32>
    %116 = arith.divf %114, %115 : vector<10x1xf32>
    %117 = vector.broadcast %116 : vector<10x1xf32> to vector<10x32xf32>
    %118 = arith.subf %108, %117 : vector<10x32xf32>
    %119 = arith.mulf %118, %118 : vector<10x32xf32>
    %cst_85 = arith.constant dense<0.000000e+00> : vector<10xf32>
    %120 = vector.multi_reduction <add>, %119, %cst_85 [1] : vector<10x32xf32> to vector<10xf32>
    %121 = vector.shape_cast %120 : vector<10xf32> to vector<10x1xf32>
    %cst_86 = arith.constant 3.200000e+01 : f32
    %122 = vector.broadcast %cst_86 : f32 to vector<10x1xf32>
    %123 = arith.divf %121, %122 : vector<10x1xf32>
    %cst_87 = arith.constant 9.99999974E-6 : f32
    %124 = vector.broadcast %cst_87 : f32 to vector<10x1xf32>
    %125 = arith.addf %123, %124 : vector<10x1xf32>
    %126 = math.rsqrt %125 : vector<10x1xf32>
    %127 = vector.broadcast %126 : vector<10x1xf32> to vector<10x32xf32>
    %128 = arith.mulf %118, %127 : vector<10x32xf32>
    %129 = vector.broadcast %110 : vector<1x32xf32> to vector<10x32xf32>
    %130 = arith.mulf %128, %129 : vector<10x32xf32>
    %131 = vector.broadcast %112 : vector<1x32xf32> to vector<10x32xf32>
    %132 = arith.addf %130, %131 : vector<10x32xf32>
    %c0_88 = arith.constant 0 : index
    %c0_89 = arith.constant 0 : index
    %c0_90 = arith.constant 0 : index
    %133 = vector.load %arg27[%c0_88, %c0_89, %c0_90] : memref<4x32x128xf32, #tpu.memory_space<vmem>>, vector<1x32x128xf32>
    %134 = vector.shape_cast %133 : vector<1x32x128xf32> to vector<32x128xf32>
    %cst_91 = arith.constant dense<0.000000e+00> : vector<10x128xf32>
    %135 = tpu.matmul %132, %134, %cst_91 {dimension_numbers = #tpu.dot_dimension_numbers<[1], [0], [0], [1], [0, 0, 1, 1], [], []>} : vector<10x32xf32>, vector<32x128xf32>, vector<10x128xf32> -> vector<10x128xf32>
    %c0_92 = arith.constant 0 : index
    %c0_93 = arith.constant 0 : index
    %c0_94 = arith.constant 0 : index
    %136 = vector.load %arg28[%c0_92, %c0_93, %c0_94] : memref<4x1x128xf32, #tpu.memory_space<vmem>>, vector<1x1x128xf32>
    %137 = vector.shape_cast %136 : vector<1x1x128xf32> to vector<1x128xf32>
    %138 = vector.broadcast %137 : vector<1x128xf32> to vector<10x128xf32>
    %139 = arith.addf %135, %138 : vector<10x128xf32>
    %cst_95 = arith.constant -1.702000e+00 : f32
    %140 = vector.broadcast %cst_95 : f32 to vector<10x128xf32>
    %141 = arith.mulf %140, %139 : vector<10x128xf32>
    %142 = math.exp %141 : vector<10x128xf32>
    %cst_96 = arith.constant 1.000000e+00 : f32
    %143 = vector.broadcast %cst_96 : f32 to vector<10x128xf32>
    %144 = arith.addf %143, %142 : vector<10x128xf32>
    %cst_97 = arith.constant 1.000000e+00 : f32
    %145 = vector.broadcast %cst_97 : f32 to vector<10x128xf32>
    %146 = arith.divf %145, %144 : vector<10x128xf32>
    %147 = arith.mulf %139, %146 : vector<10x128xf32>
    %c0_98 = arith.constant 0 : index
    %c0_99 = arith.constant 0 : index
    %c0_100 = arith.constant 0 : index
    %148 = vector.load %arg29[%c0_98, %c0_99, %c0_100] : memref<4x128x32xf32, #tpu.memory_space<vmem>>, vector<1x128x32xf32>
    %149 = vector.shape_cast %148 : vector<1x128x32xf32> to vector<128x32xf32>
    %cst_101 = arith.constant dense<0.000000e+00> : vector<10x32xf32>
    %150 = tpu.matmul %147, %149, %cst_101 {dimension_numbers = #tpu.dot_dimension_numbers<[1], [0], [0], [1], [0, 0, 1, 1], [], []>} : vector<10x128xf32>, vector<128x32xf32>, vector<10x32xf32> -> vector<10x32xf32>
    %151 = arith.addf %108, %150 : vector<10x32xf32>
    %c0_102 = arith.constant 0 : index
    %c0_103 = arith.constant 0 : index
    %c0_104 = arith.constant 0 : index
    %152 = vector.load %arg30[%c0_102, %c0_103, %c0_104] : memref<4x1x32xf32, #tpu.memory_space<vmem>>, vector<1x1x32xf32>
    %153 = vector.shape_cast %152 : vector<1x1x32xf32> to vector<1x32xf32>
    %154 = vector.broadcast %153 : vector<1x32xf32> to vector<10x32xf32>
    %155 = arith.addf %151, %154 : vector<10x32xf32>
    %c1 = arith.constant 1 : index
    %c0_105 = arith.constant 0 : index
    %c0_106 = arith.constant 0 : index
    %156 = vector.load %arg15[%c1, %c0_105, %c0_106] : memref<4x1x32xf32, #tpu.memory_space<vmem>>, vector<1x1x32xf32>
    %157 = vector.shape_cast %156 : vector<1x1x32xf32> to vector<1x32xf32>
    %c1_107 = arith.constant 1 : index
    %c0_108 = arith.constant 0 : index
    %c0_109 = arith.constant 0 : index
    %158 = vector.load %arg16[%c1_107, %c0_108, %c0_109] : memref<4x1x32xf32, #tpu.memory_space<vmem>>, vector<1x1x32xf32>
    %159 = vector.shape_cast %158 : vector<1x1x32xf32> to vector<1x32xf32>
    %cst_110 = arith.constant dense<0.000000e+00> : vector<10xf32>
    %160 = vector.multi_reduction <add>, %155, %cst_110 [1] : vector<10x32xf32> to vector<10xf32>
    %161 = vector.shape_cast %160 : vector<10xf32> to vector<10x1xf32>
    %cst_111 = arith.constant 3.200000e+01 : f32
    %162 = vector.broadcast %cst_111 : f32 to vector<10x1xf32>
    %163 = arith.divf %161, %162 : vector<10x1xf32>
    %164 = vector.broadcast %163 : vector<10x1xf32> to vector<10x32xf32>
    %165 = arith.subf %155, %164 : vector<10x32xf32>
    %166 = arith.mulf %165, %165 : vector<10x32xf32>
    %cst_112 = arith.constant dense<0.000000e+00> : vector<10xf32>
    %167 = vector.multi_reduction <add>, %166, %cst_112 [1] : vector<10x32xf32> to vector<10xf32>
    %168 = vector.shape_cast %167 : vector<10xf32> to vector<10x1xf32>
    %cst_113 = arith.constant 3.200000e+01 : f32
    %169 = vector.broadcast %cst_113 : f32 to vector<10x1xf32>
    %170 = arith.divf %168, %169 : vector<10x1xf32>
    %cst_114 = arith.constant 9.99999974E-6 : f32
    %171 = vector.broadcast %cst_114 : f32 to vector<10x1xf32>
    %172 = arith.addf %170, %171 : vector<10x1xf32>
    %173 = math.rsqrt %172 : vector<10x1xf32>
    %174 = vector.broadcast %173 : vector<10x1xf32> to vector<10x32xf32>
    %175 = arith.mulf %165, %174 : vector<10x32xf32>
    %176 = vector.broadcast %157 : vector<1x32xf32> to vector<10x32xf32>
    %177 = arith.mulf %175, %176 : vector<10x32xf32>
    %178 = vector.broadcast %159 : vector<1x32xf32> to vector<10x32xf32>
    %179 = arith.addf %177, %178 : vector<10x32xf32>
    %cst_115 = arith.constant dense<0.000000e+00> : vector<40x32xf32>
    %180 = tpu.matmul %34, %179, %cst_115 {dimension_numbers = #tpu.dot_dimension_numbers<[1], [0], [0], [1], [0, 0, 1, 1], [], []>} : vector<40x10xf32>, vector<10x32xf32>, vector<40x32xf32> -> vector<40x32xf32>
    %c1_116 = arith.constant 1 : index
    %c0_117 = arith.constant 0 : index
    %c0_118 = arith.constant 0 : index
    %181 = vector.load %arg17[%c1_116, %c0_117, %c0_118] : memref<4x32x32xf32, #tpu.memory_space<vmem>>, vector<1x32x32xf32>
    %182 = vector.shape_cast %181 : vector<1x32x32xf32> to vector<32x32xf32>
    %cst_119 = arith.constant dense<0.000000e+00> : vector<40x32xf32>
    %183 = tpu.matmul %180, %182, %cst_119 {dimension_numbers = #tpu.dot_dimension_numbers<[1], [0], [0], [1], [0, 0, 1, 1], [], []>} : vector<40x32xf32>, vector<32x32xf32>, vector<40x32xf32> -> vector<40x32xf32>
    %c1_120 = arith.constant 1 : index
    %c0_121 = arith.constant 0 : index
    %c0_122 = arith.constant 0 : index
    %184 = vector.load %arg18[%c1_120, %c0_121, %c0_122] : memref<4x1x32xf32, #tpu.memory_space<vmem>>, vector<1x1x32xf32>
    %185 = vector.shape_cast %184 : vector<1x1x32xf32> to vector<1x32xf32>
    %186 = vector.broadcast %185 : vector<1x32xf32> to vector<40x32xf32>
    %187 = arith.addf %183, %186 : vector<40x32xf32>
    %188 = arith.mulf %187, %35 : vector<40x32xf32>
    %c1_123 = arith.constant 1 : index
    %c0_124 = arith.constant 0 : index
    %c0_125 = arith.constant 0 : index
    %189 = vector.load %arg19[%c1_123, %c0_124, %c0_125] : memref<4x32x32xf32, #tpu.memory_space<vmem>>, vector<1x32x32xf32>
    %190 = vector.shape_cast %189 : vector<1x32x32xf32> to vector<32x32xf32>
    %cst_126 = arith.constant dense<0.000000e+00> : vector<10x32xf32>
    %191 = tpu.matmul %179, %190, %cst_126 {dimension_numbers = #tpu.dot_dimension_numbers<[1], [0], [0], [1], [0, 0, 1, 1], [], []>} : vector<10x32xf32>, vector<32x32xf32>, vector<10x32xf32> -> vector<10x32xf32>
    %c1_127 = arith.constant 1 : index
    %c0_128 = arith.constant 0 : index
    %c0_129 = arith.constant 0 : index
    %192 = vector.load %arg20[%c1_127, %c0_128, %c0_129] : memref<4x1x32xf32, #tpu.memory_space<vmem>>, vector<1x1x32xf32>
    %193 = vector.shape_cast %192 : vector<1x1x32xf32> to vector<1x32xf32>
    %194 = vector.broadcast %193 : vector<1x32xf32> to vector<10x32xf32>
    %195 = arith.addf %191, %194 : vector<10x32xf32>
    %c1_130 = arith.constant 1 : index
    %c0_131 = arith.constant 0 : index
    %c0_132 = arith.constant 0 : index
    %196 = vector.load %arg21[%c1_130, %c0_131, %c0_132] : memref<4x32x32xf32, #tpu.memory_space<vmem>>, vector<1x32x32xf32>
    %197 = vector.shape_cast %196 : vector<1x32x32xf32> to vector<32x32xf32>
    %cst_133 = arith.constant dense<0.000000e+00> : vector<10x32xf32>
    %198 = tpu.matmul %179, %197, %cst_133 {dimension_numbers = #tpu.dot_dimension_numbers<[1], [0], [0], [1], [0, 0, 1, 1], [], []>} : vector<10x32xf32>, vector<32x32xf32>, vector<10x32xf32> -> vector<10x32xf32>
    %c1_134 = arith.constant 1 : index
    %c0_135 = arith.constant 0 : index
    %c0_136 = arith.constant 0 : index
    %199 = vector.load %arg22[%c1_134, %c0_135, %c0_136] : memref<4x1x32xf32, #tpu.memory_space<vmem>>, vector<1x1x32xf32>
    %200 = vector.shape_cast %199 : vector<1x1x32xf32> to vector<1x32xf32>
    %201 = vector.broadcast %200 : vector<1x32xf32> to vector<10x32xf32>
    %202 = arith.addf %198, %201 : vector<10x32xf32>
    %cst_137 = arith.constant dense<0.000000e+00> : vector<40x10xf32>
    %203 = tpu.matmul %188, %195, %cst_137 {dimension_numbers = #tpu.dot_dimension_numbers<[1], [1], [0], [0], [0, 0, 1, 0], [], []>} : vector<40x32xf32>, vector<10x32xf32>, vector<40x10xf32> -> vector<40x10xf32>
    %cst_138 = arith.constant 0.353553385 : f32
    %204 = vector.broadcast %cst_138 : f32 to vector<40x10xf32>
    %205 = arith.mulf %203, %204 : vector<40x10xf32>
    %206 = arith.addf %205, %37 : vector<40x10xf32>
    %cst_139 = arith.constant dense<0xFF800000> : vector<40xf32>
    %207 = vector.multi_reduction <maximumf>, %206, %cst_139 [1] : vector<40x10xf32> to vector<40xf32>
    %208 = vector.shape_cast %207 : vector<40xf32> to vector<40x1xf32>
    %209 = vector.broadcast %208 : vector<40x1xf32> to vector<40x10xf32>
    %210 = arith.subf %206, %209 : vector<40x10xf32>
    %211 = math.exp %210 : vector<40x10xf32>
    %cst_140 = arith.constant dense<0.000000e+00> : vector<40xf32>
    %212 = vector.multi_reduction <add>, %211, %cst_140 [1] : vector<40x10xf32> to vector<40xf32>
    %213 = vector.shape_cast %212 : vector<40xf32> to vector<40x1xf32>
    %214 = vector.broadcast %213 : vector<40x1xf32> to vector<40x10xf32>
    %215 = arith.divf %211, %214 : vector<40x10xf32>
    %cst_141 = arith.constant dense<0.000000e+00> : vector<40x32xf32>
    %216 = tpu.matmul %215, %202, %cst_141 {dimension_numbers = #tpu.dot_dimension_numbers<[1], [0], [0], [1], [0, 0, 1, 1], [], []>} : vector<40x10xf32>, vector<10x32xf32>, vector<40x32xf32> -> vector<40x32xf32>
    %217 = arith.mulf %216, %35 : vector<40x32xf32>
    %cst_142 = arith.constant dense<0.000000e+00> : vector<10x32xf32>
    %218 = tpu.matmul %36, %217, %cst_142 {dimension_numbers = #tpu.dot_dimension_numbers<[1], [0], [0], [1], [0, 0, 1, 1], [], []>} : vector<10x40xf32>, vector<40x32xf32>, vector<10x32xf32> -> vector<10x32xf32>
    %c1_143 = arith.constant 1 : index
    %c0_144 = arith.constant 0 : index
    %c0_145 = arith.constant 0 : index
    %219 = vector.load %arg23[%c1_143, %c0_144, %c0_145] : memref<4x32x32xf32, #tpu.memory_space<vmem>>, vector<1x32x32xf32>
    %220 = vector.shape_cast %219 : vector<1x32x32xf32> to vector<32x32xf32>
    %cst_146 = arith.constant dense<0.000000e+00> : vector<10x32xf32>
    %221 = tpu.matmul %218, %220, %cst_146 {dimension_numbers = #tpu.dot_dimension_numbers<[1], [0], [0], [1], [0, 0, 1, 1], [], []>} : vector<10x32xf32>, vector<32x32xf32>, vector<10x32xf32> -> vector<10x32xf32>
    %222 = arith.addf %155, %221 : vector<10x32xf32>
    %c1_147 = arith.constant 1 : index
    %c0_148 = arith.constant 0 : index
    %c0_149 = arith.constant 0 : index
    %223 = vector.load %arg24[%c1_147, %c0_148, %c0_149] : memref<4x1x32xf32, #tpu.memory_space<vmem>>, vector<1x1x32xf32>
    %224 = vector.shape_cast %223 : vector<1x1x32xf32> to vector<1x32xf32>
    %225 = vector.broadcast %224 : vector<1x32xf32> to vector<10x32xf32>
    %226 = arith.addf %222, %225 : vector<10x32xf32>
    %c1_150 = arith.constant 1 : index
    %c0_151 = arith.constant 0 : index
    %c0_152 = arith.constant 0 : index
    %227 = vector.load %arg25[%c1_150, %c0_151, %c0_152] : memref<4x1x32xf32, #tpu.memory_space<vmem>>, vector<1x1x32xf32>
    %228 = vector.shape_cast %227 : vector<1x1x32xf32> to vector<1x32xf32>
    %c1_153 = arith.constant 1 : index
    %c0_154 = arith.constant 0 : index
    %c0_155 = arith.constant 0 : index
    %229 = vector.load %arg26[%c1_153, %c0_154, %c0_155] : memref<4x1x32xf32, #tpu.memory_space<vmem>>, vector<1x1x32xf32>
    %230 = vector.shape_cast %229 : vector<1x1x32xf32> to vector<1x32xf32>
    %cst_156 = arith.constant dense<0.000000e+00> : vector<10xf32>
    %231 = vector.multi_reduction <add>, %226, %cst_156 [1] : vector<10x32xf32> to vector<10xf32>
    %232 = vector.shape_cast %231 : vector<10xf32> to vector<10x1xf32>
    %cst_157 = arith.constant 3.200000e+01 : f32
    %233 = vector.broadcast %cst_157 : f32 to vector<10x1xf32>
    %234 = arith.divf %232, %233 : vector<10x1xf32>
    %235 = vector.broadcast %234 : vector<10x1xf32> to vector<10x32xf32>
    %236 = arith.subf %226, %235 : vector<10x32xf32>
    %237 = arith.mulf %236, %236 : vector<10x32xf32>
    %cst_158 = arith.constant dense<0.000000e+00> : vector<10xf32>
    %238 = vector.multi_reduction <add>, %237, %cst_158 [1] : vector<10x32xf32> to vector<10xf32>
    %239 = vector.shape_cast %238 : vector<10xf32> to vector<10x1xf32>
    %cst_159 = arith.constant 3.200000e+01 : f32
    %240 = vector.broadcast %cst_159 : f32 to vector<10x1xf32>
    %241 = arith.divf %239, %240 : vector<10x1xf32>
    %cst_160 = arith.constant 9.99999974E-6 : f32
    %242 = vector.broadcast %cst_160 : f32 to vector<10x1xf32>
    %243 = arith.addf %241, %242 : vector<10x1xf32>
    %244 = math.rsqrt %243 : vector<10x1xf32>
    %245 = vector.broadcast %244 : vector<10x1xf32> to vector<10x32xf32>
    %246 = arith.mulf %236, %245 : vector<10x32xf32>
    %247 = vector.broadcast %228 : vector<1x32xf32> to vector<10x32xf32>
    %248 = arith.mulf %246, %247 : vector<10x32xf32>
    %249 = vector.broadcast %230 : vector<1x32xf32> to vector<10x32xf32>
    %250 = arith.addf %248, %249 : vector<10x32xf32>
    %c1_161 = arith.constant 1 : index
    %c0_162 = arith.constant 0 : index
    %c0_163 = arith.constant 0 : index
    %251 = vector.load %arg27[%c1_161, %c0_162, %c0_163] : memref<4x32x128xf32, #tpu.memory_space<vmem>>, vector<1x32x128xf32>
    %252 = vector.shape_cast %251 : vector<1x32x128xf32> to vector<32x128xf32>
    %cst_164 = arith.constant dense<0.000000e+00> : vector<10x128xf32>
    %253 = tpu.matmul %250, %252, %cst_164 {dimension_numbers = #tpu.dot_dimension_numbers<[1], [0], [0], [1], [0, 0, 1, 1], [], []>} : vector<10x32xf32>, vector<32x128xf32>, vector<10x128xf32> -> vector<10x128xf32>
    %c1_165 = arith.constant 1 : index
    %c0_166 = arith.constant 0 : index
    %c0_167 = arith.constant 0 : index
    %254 = vector.load %arg28[%c1_165, %c0_166, %c0_167] : memref<4x1x128xf32, #tpu.memory_space<vmem>>, vector<1x1x128xf32>
    %255 = vector.shape_cast %254 : vector<1x1x128xf32> to vector<1x128xf32>
    %256 = vector.broadcast %255 : vector<1x128xf32> to vector<10x128xf32>
    %257 = arith.addf %253, %256 : vector<10x128xf32>
    %cst_168 = arith.constant -1.702000e+00 : f32
    %258 = vector.broadcast %cst_168 : f32 to vector<10x128xf32>
    %259 = arith.mulf %258, %257 : vector<10x128xf32>
    %260 = math.exp %259 : vector<10x128xf32>
    %cst_169 = arith.constant 1.000000e+00 : f32
    %261 = vector.broadcast %cst_169 : f32 to vector<10x128xf32>
    %262 = arith.addf %261, %260 : vector<10x128xf32>
    %cst_170 = arith.constant 1.000000e+00 : f32
    %263 = vector.broadcast %cst_170 : f32 to vector<10x128xf32>
    %264 = arith.divf %263, %262 : vector<10x128xf32>
    %265 = arith.mulf %257, %264 : vector<10x128xf32>
    %c1_171 = arith.constant 1 : index
    %c0_172 = arith.constant 0 : index
    %c0_173 = arith.constant 0 : index
    %266 = vector.load %arg29[%c1_171, %c0_172, %c0_173] : memref<4x128x32xf32, #tpu.memory_space<vmem>>, vector<1x128x32xf32>
    %267 = vector.shape_cast %266 : vector<1x128x32xf32> to vector<128x32xf32>
    %cst_174 = arith.constant dense<0.000000e+00> : vector<10x32xf32>
    %268 = tpu.matmul %265, %267, %cst_174 {dimension_numbers = #tpu.dot_dimension_numbers<[1], [0], [0], [1], [0, 0, 1, 1], [], []>} : vector<10x128xf32>, vector<128x32xf32>, vector<10x32xf32> -> vector<10x32xf32>
    %269 = arith.addf %226, %268 : vector<10x32xf32>
    %c1_175 = arith.constant 1 : index
    %c0_176 = arith.constant 0 : index
    %c0_177 = arith.constant 0 : index
    %270 = vector.load %arg30[%c1_175, %c0_176, %c0_177] : memref<4x1x32xf32, #tpu.memory_space<vmem>>, vector<1x1x32xf32>
    %271 = vector.shape_cast %270 : vector<1x1x32xf32> to vector<1x32xf32>
    %272 = vector.broadcast %271 : vector<1x32xf32> to vector<10x32xf32>
    %273 = arith.addf %269, %272 : vector<10x32xf32>
    %c0_178 = arith.constant 0 : index
    %c0_179 = arith.constant 0 : index
    %274 = vector.load %arg13[%c0_178, %c0_179] : memref<2x10xf32, #tpu.memory_space<vmem>>, vector<2x10xf32>
    %cst_180 = arith.constant dense<0.000000e+00> : vector<2x32xf32>
    %275 = tpu.matmul %274, %273, %cst_180 {dimension_numbers = #tpu.dot_dimension_numbers<[1], [0], [0], [1], [0, 0, 1, 1], [], []>} : vector<2x10xf32>, vector<10x32xf32>, vector<2x32xf32> -> vector<2x32xf32>
    %cst_181 = arith.constant dense<0.000000e+00> : vector<2x10xf32>
    %276 = tpu.matmul %275, %273, %cst_181 {dimension_numbers = #tpu.dot_dimension_numbers<[1], [1], [0], [0], [0, 0, 1, 0], [], []>} : vector<2x32xf32>, vector<10x32xf32>, vector<2x10xf32> -> vector<2x10xf32>
    %cst_182 = arith.constant 1.000000e+00 : f32
    %277 = vector.broadcast %cst_182 : f32 to vector<1x32xf32>
    %278 = arith.mulf %273, %273 : vector<10x32xf32>
    %cst_183 = arith.constant dense<0.000000e+00> : vector<1x10xf32>
    %279 = tpu.matmul %277, %278, %cst_183 {dimension_numbers = #tpu.dot_dimension_numbers<[1], [1], [0], [0], [0, 0, 1, 0], [], []>} : vector<1x32xf32>, vector<10x32xf32>, vector<1x10xf32> -> vector<1x10xf32>
    %280 = arith.mulf %275, %275 : vector<2x32xf32>
    %cst_184 = arith.constant dense<0.000000e+00> : vector<2xf32>
    %281 = vector.multi_reduction <add>, %280, %cst_184 [1] : vector<2x32xf32> to vector<2xf32>
    %282 = vector.shape_cast %281 : vector<2xf32> to vector<2x1xf32>
    %283 = math.sqrt %282 : vector<2x1xf32>
    %284 = math.sqrt %279 : vector<1x10xf32>
    %285 = vector.broadcast %284 : vector<1x10xf32> to vector<2x10xf32>
    %286 = vector.broadcast %283 : vector<2x1xf32> to vector<2x10xf32>
    %287 = arith.mulf %285, %286 : vector<2x10xf32>
    %cst_185 = arith.constant 1.000000e-07 : f32
    %288 = vector.broadcast %cst_185 : f32 to vector<2x10xf32>
    %289 = arith.addf %287, %288 : vector<2x10xf32>
    %290 = arith.divf %276, %289 : vector<2x10xf32>
    %c0_186 = arith.constant 0 : index
    %c0_187 = arith.constant 0 : index
    %291 = vector.load %arg14[%c0_186, %c0_187] : memref<2x10xf32, #tpu.memory_space<vmem>>, vector<2x10xf32>
    %cst_188 = arith.constant 5.000000e-01 : f32
    %292 = vector.broadcast %cst_188 : f32 to vector<2x10xf32>
    %293 = arith.cmpf ogt, %291, %292 : vector<2x10xf32>
    %cst_189 = arith.constant -1.000000e+30 : f32
    %294 = vector.broadcast %cst_189 : f32 to vector<2x10xf32>
    %295 = arith.select %293, %290, %294 : vector<2x10xi1>, vector<2x10xf32>
    %cst_190 = arith.constant dense<0xFF800000> : vector<2xf32>
    %296 = vector.multi_reduction <maximumf>, %295, %cst_190 [1] : vector<2x10xf32> to vector<2xf32>
    %297 = vector.shape_cast %296 : vector<2xf32> to vector<2x1xf32>
    %cst_191 = arith.constant 1.000000e+30 : f32
    %298 = vector.broadcast %cst_191 : f32 to vector<2x10xf32>
    %299 = arith.select %293, %290, %298 : vector<2x10xi1>, vector<2x10xf32>
    %cst_192 = arith.constant dense<0x7F800000> : vector<2xf32>
    %300 = vector.multi_reduction <minimumf>, %299, %cst_192 [1] : vector<2x10xf32> to vector<2xf32>
    %301 = vector.shape_cast %300 : vector<2xf32> to vector<2x1xf32>
    %302 = vector.broadcast %301 : vector<2x1xf32> to vector<2x10xf32>
    %303 = arith.subf %290, %302 : vector<2x10xf32>
    %304 = arith.subf %297, %301 : vector<2x1xf32>
    %cst_193 = arith.constant 1.000000e-07 : f32
    %305 = vector.broadcast %cst_193 : f32 to vector<2x1xf32>
    %306 = arith.addf %304, %305 : vector<2x1xf32>
    %307 = vector.broadcast %306 : vector<2x1xf32> to vector<2x10xf32>
    %308 = arith.divf %303, %307 : vector<2x10xf32>
    %309 = arith.subf %32, %273 : vector<10x32xf32>
    %310 = arith.mulf %33, %309 : vector<10x32xf32>
    %311 = arith.addf %273, %310 : vector<10x32xf32>
    %c2 = arith.constant 2 : index
    %c0_194 = arith.constant 0 : index
    %c0_195 = arith.constant 0 : index
    %312 = vector.load %arg15[%c2, %c0_194, %c0_195] : memref<4x1x32xf32, #tpu.memory_space<vmem>>, vector<1x1x32xf32>
    %313 = vector.shape_cast %312 : vector<1x1x32xf32> to vector<1x32xf32>
    %c2_196 = arith.constant 2 : index
    %c0_197 = arith.constant 0 : index
    %c0_198 = arith.constant 0 : index
    %314 = vector.load %arg16[%c2_196, %c0_197, %c0_198] : memref<4x1x32xf32, #tpu.memory_space<vmem>>, vector<1x1x32xf32>
    %315 = vector.shape_cast %314 : vector<1x1x32xf32> to vector<1x32xf32>
    %cst_199 = arith.constant dense<0.000000e+00> : vector<10xf32>
    %316 = vector.multi_reduction <add>, %311, %cst_199 [1] : vector<10x32xf32> to vector<10xf32>
    %317 = vector.shape_cast %316 : vector<10xf32> to vector<10x1xf32>
    %cst_200 = arith.constant 3.200000e+01 : f32
    %318 = vector.broadcast %cst_200 : f32 to vector<10x1xf32>
    %319 = arith.divf %317, %318 : vector<10x1xf32>
    %320 = vector.broadcast %319 : vector<10x1xf32> to vector<10x32xf32>
    %321 = arith.subf %311, %320 : vector<10x32xf32>
    %322 = arith.mulf %321, %321 : vector<10x32xf32>
    %cst_201 = arith.constant dense<0.000000e+00> : vector<10xf32>
    %323 = vector.multi_reduction <add>, %322, %cst_201 [1] : vector<10x32xf32> to vector<10xf32>
    %324 = vector.shape_cast %323 : vector<10xf32> to vector<10x1xf32>
    %cst_202 = arith.constant 3.200000e+01 : f32
    %325 = vector.broadcast %cst_202 : f32 to vector<10x1xf32>
    %326 = arith.divf %324, %325 : vector<10x1xf32>
    %cst_203 = arith.constant 9.99999974E-6 : f32
    %327 = vector.broadcast %cst_203 : f32 to vector<10x1xf32>
    %328 = arith.addf %326, %327 : vector<10x1xf32>
    %329 = math.rsqrt %328 : vector<10x1xf32>
    %330 = vector.broadcast %329 : vector<10x1xf32> to vector<10x32xf32>
    %331 = arith.mulf %321, %330 : vector<10x32xf32>
    %332 = vector.broadcast %313 : vector<1x32xf32> to vector<10x32xf32>
    %333 = arith.mulf %331, %332 : vector<10x32xf32>
    %334 = vector.broadcast %315 : vector<1x32xf32> to vector<10x32xf32>
    %335 = arith.addf %333, %334 : vector<10x32xf32>
    %cst_204 = arith.constant dense<0.000000e+00> : vector<40x32xf32>
    %336 = tpu.matmul %34, %335, %cst_204 {dimension_numbers = #tpu.dot_dimension_numbers<[1], [0], [0], [1], [0, 0, 1, 1], [], []>} : vector<40x10xf32>, vector<10x32xf32>, vector<40x32xf32> -> vector<40x32xf32>
    %c2_205 = arith.constant 2 : index
    %c0_206 = arith.constant 0 : index
    %c0_207 = arith.constant 0 : index
    %337 = vector.load %arg17[%c2_205, %c0_206, %c0_207] : memref<4x32x32xf32, #tpu.memory_space<vmem>>, vector<1x32x32xf32>
    %338 = vector.shape_cast %337 : vector<1x32x32xf32> to vector<32x32xf32>
    %cst_208 = arith.constant dense<0.000000e+00> : vector<40x32xf32>
    %339 = tpu.matmul %336, %338, %cst_208 {dimension_numbers = #tpu.dot_dimension_numbers<[1], [0], [0], [1], [0, 0, 1, 1], [], []>} : vector<40x32xf32>, vector<32x32xf32>, vector<40x32xf32> -> vector<40x32xf32>
    %c2_209 = arith.constant 2 : index
    %c0_210 = arith.constant 0 : index
    %c0_211 = arith.constant 0 : index
    %340 = vector.load %arg18[%c2_209, %c0_210, %c0_211] : memref<4x1x32xf32, #tpu.memory_space<vmem>>, vector<1x1x32xf32>
    %341 = vector.shape_cast %340 : vector<1x1x32xf32> to vector<1x32xf32>
    %342 = vector.broadcast %341 : vector<1x32xf32> to vector<40x32xf32>
    %343 = arith.addf %339, %342 : vector<40x32xf32>
    %344 = arith.mulf %343, %35 : vector<40x32xf32>
    %c2_212 = arith.constant 2 : index
    %c0_213 = arith.constant 0 : index
    %c0_214 = arith.constant 0 : index
    %345 = vector.load %arg19[%c2_212, %c0_213, %c0_214] : memref<4x32x32xf32, #tpu.memory_space<vmem>>, vector<1x32x32xf32>
    %346 = vector.shape_cast %345 : vector<1x32x32xf32> to vector<32x32xf32>
    %cst_215 = arith.constant dense<0.000000e+00> : vector<10x32xf32>
    %347 = tpu.matmul %335, %346, %cst_215 {dimension_numbers = #tpu.dot_dimension_numbers<[1], [0], [0], [1], [0, 0, 1, 1], [], []>} : vector<10x32xf32>, vector<32x32xf32>, vector<10x32xf32> -> vector<10x32xf32>
    %c2_216 = arith.constant 2 : index
    %c0_217 = arith.constant 0 : index
    %c0_218 = arith.constant 0 : index
    %348 = vector.load %arg20[%c2_216, %c0_217, %c0_218] : memref<4x1x32xf32, #tpu.memory_space<vmem>>, vector<1x1x32xf32>
    %349 = vector.shape_cast %348 : vector<1x1x32xf32> to vector<1x32xf32>
    %350 = vector.broadcast %349 : vector<1x32xf32> to vector<10x32xf32>
    %351 = arith.addf %347, %350 : vector<10x32xf32>
    %c2_219 = arith.constant 2 : index
    %c0_220 = arith.constant 0 : index
    %c0_221 = arith.constant 0 : index
    %352 = vector.load %arg21[%c2_219, %c0_220, %c0_221] : memref<4x32x32xf32, #tpu.memory_space<vmem>>, vector<1x32x32xf32>
    %353 = vector.shape_cast %352 : vector<1x32x32xf32> to vector<32x32xf32>
    %cst_222 = arith.constant dense<0.000000e+00> : vector<10x32xf32>
    %354 = tpu.matmul %335, %353, %cst_222 {dimension_numbers = #tpu.dot_dimension_numbers<[1], [0], [0], [1], [0, 0, 1, 1], [], []>} : vector<10x32xf32>, vector<32x32xf32>, vector<10x32xf32> -> vector<10x32xf32>
    %c2_223 = arith.constant 2 : index
    %c0_224 = arith.constant 0 : index
    %c0_225 = arith.constant 0 : index
    %355 = vector.load %arg22[%c2_223, %c0_224, %c0_225] : memref<4x1x32xf32, #tpu.memory_space<vmem>>, vector<1x1x32xf32>
    %356 = vector.shape_cast %355 : vector<1x1x32xf32> to vector<1x32xf32>
    %357 = vector.broadcast %356 : vector<1x32xf32> to vector<10x32xf32>
    %358 = arith.addf %354, %357 : vector<10x32xf32>
    %cst_226 = arith.constant dense<0.000000e+00> : vector<40x10xf32>
    %359 = tpu.matmul %344, %351, %cst_226 {dimension_numbers = #tpu.dot_dimension_numbers<[1], [1], [0], [0], [0, 0, 1, 0], [], []>} : vector<40x32xf32>, vector<10x32xf32>, vector<40x10xf32> -> vector<40x10xf32>
    %cst_227 = arith.constant 0.353553385 : f32
    %360 = vector.broadcast %cst_227 : f32 to vector<40x10xf32>
    %361 = arith.mulf %359, %360 : vector<40x10xf32>
    %362 = arith.addf %361, %37 : vector<40x10xf32>
    %cst_228 = arith.constant dense<0xFF800000> : vector<40xf32>
    %363 = vector.multi_reduction <maximumf>, %362, %cst_228 [1] : vector<40x10xf32> to vector<40xf32>
    %364 = vector.shape_cast %363 : vector<40xf32> to vector<40x1xf32>
    %365 = vector.broadcast %364 : vector<40x1xf32> to vector<40x10xf32>
    %366 = arith.subf %362, %365 : vector<40x10xf32>
    %367 = math.exp %366 : vector<40x10xf32>
    %cst_229 = arith.constant dense<0.000000e+00> : vector<40xf32>
    %368 = vector.multi_reduction <add>, %367, %cst_229 [1] : vector<40x10xf32> to vector<40xf32>
    %369 = vector.shape_cast %368 : vector<40xf32> to vector<40x1xf32>
    %370 = vector.broadcast %369 : vector<40x1xf32> to vector<40x10xf32>
    %371 = arith.divf %367, %370 : vector<40x10xf32>
    %cst_230 = arith.constant dense<0.000000e+00> : vector<40x32xf32>
    %372 = tpu.matmul %371, %358, %cst_230 {dimension_numbers = #tpu.dot_dimension_numbers<[1], [0], [0], [1], [0, 0, 1, 1], [], []>} : vector<40x10xf32>, vector<10x32xf32>, vector<40x32xf32> -> vector<40x32xf32>
    %373 = arith.mulf %372, %35 : vector<40x32xf32>
    %cst_231 = arith.constant dense<0.000000e+00> : vector<10x32xf32>
    %374 = tpu.matmul %36, %373, %cst_231 {dimension_numbers = #tpu.dot_dimension_numbers<[1], [0], [0], [1], [0, 0, 1, 1], [], []>} : vector<10x40xf32>, vector<40x32xf32>, vector<10x32xf32> -> vector<10x32xf32>
    %c2_232 = arith.constant 2 : index
    %c0_233 = arith.constant 0 : index
    %c0_234 = arith.constant 0 : index
    %375 = vector.load %arg23[%c2_232, %c0_233, %c0_234] : memref<4x32x32xf32, #tpu.memory_space<vmem>>, vector<1x32x32xf32>
    %376 = vector.shape_cast %375 : vector<1x32x32xf32> to vector<32x32xf32>
    %cst_235 = arith.constant dense<0.000000e+00> : vector<10x32xf32>
    %377 = tpu.matmul %374, %376, %cst_235 {dimension_numbers = #tpu.dot_dimension_numbers<[1], [0], [0], [1], [0, 0, 1, 1], [], []>} : vector<10x32xf32>, vector<32x32xf32>, vector<10x32xf32> -> vector<10x32xf32>
    %378 = arith.addf %311, %377 : vector<10x32xf32>
    %c2_236 = arith.constant 2 : index
    %c0_237 = arith.constant 0 : index
    %c0_238 = arith.constant 0 : index
    %379 = vector.load %arg24[%c2_236, %c0_237, %c0_238] : memref<4x1x32xf32, #tpu.memory_space<vmem>>, vector<1x1x32xf32>
    %380 = vector.shape_cast %379 : vector<1x1x32xf32> to vector<1x32xf32>
    %381 = vector.broadcast %380 : vector<1x32xf32> to vector<10x32xf32>
    %382 = arith.addf %378, %381 : vector<10x32xf32>
    %c2_239 = arith.constant 2 : index
    %c0_240 = arith.constant 0 : index
    %c0_241 = arith.constant 0 : index
    %383 = vector.load %arg25[%c2_239, %c0_240, %c0_241] : memref<4x1x32xf32, #tpu.memory_space<vmem>>, vector<1x1x32xf32>
    %384 = vector.shape_cast %383 : vector<1x1x32xf32> to vector<1x32xf32>
    %c2_242 = arith.constant 2 : index
    %c0_243 = arith.constant 0 : index
    %c0_244 = arith.constant 0 : index
    %385 = vector.load %arg26[%c2_242, %c0_243, %c0_244] : memref<4x1x32xf32, #tpu.memory_space<vmem>>, vector<1x1x32xf32>
    %386 = vector.shape_cast %385 : vector<1x1x32xf32> to vector<1x32xf32>
    %cst_245 = arith.constant dense<0.000000e+00> : vector<10xf32>
    %387 = vector.multi_reduction <add>, %382, %cst_245 [1] : vector<10x32xf32> to vector<10xf32>
    %388 = vector.shape_cast %387 : vector<10xf32> to vector<10x1xf32>
    %cst_246 = arith.constant 3.200000e+01 : f32
    %389 = vector.broadcast %cst_246 : f32 to vector<10x1xf32>
    %390 = arith.divf %388, %389 : vector<10x1xf32>
    %391 = vector.broadcast %390 : vector<10x1xf32> to vector<10x32xf32>
    %392 = arith.subf %382, %391 : vector<10x32xf32>
    %393 = arith.mulf %392, %392 : vector<10x32xf32>
    %cst_247 = arith.constant dense<0.000000e+00> : vector<10xf32>
    %394 = vector.multi_reduction <add>, %393, %cst_247 [1] : vector<10x32xf32> to vector<10xf32>
    %395 = vector.shape_cast %394 : vector<10xf32> to vector<10x1xf32>
    %cst_248 = arith.constant 3.200000e+01 : f32
    %396 = vector.broadcast %cst_248 : f32 to vector<10x1xf32>
    %397 = arith.divf %395, %396 : vector<10x1xf32>
    %cst_249 = arith.constant 9.99999974E-6 : f32
    %398 = vector.broadcast %cst_249 : f32 to vector<10x1xf32>
    %399 = arith.addf %397, %398 : vector<10x1xf32>
    %400 = math.rsqrt %399 : vector<10x1xf32>
    %401 = vector.broadcast %400 : vector<10x1xf32> to vector<10x32xf32>
    %402 = arith.mulf %392, %401 : vector<10x32xf32>
    %403 = vector.broadcast %384 : vector<1x32xf32> to vector<10x32xf32>
    %404 = arith.mulf %402, %403 : vector<10x32xf32>
    %405 = vector.broadcast %386 : vector<1x32xf32> to vector<10x32xf32>
    %406 = arith.addf %404, %405 : vector<10x32xf32>
    %c2_250 = arith.constant 2 : index
    %c0_251 = arith.constant 0 : index
    %c0_252 = arith.constant 0 : index
    %407 = vector.load %arg27[%c2_250, %c0_251, %c0_252] : memref<4x32x128xf32, #tpu.memory_space<vmem>>, vector<1x32x128xf32>
    %408 = vector.shape_cast %407 : vector<1x32x128xf32> to vector<32x128xf32>
    %cst_253 = arith.constant dense<0.000000e+00> : vector<10x128xf32>
    %409 = tpu.matmul %406, %408, %cst_253 {dimension_numbers = #tpu.dot_dimension_numbers<[1], [0], [0], [1], [0, 0, 1, 1], [], []>} : vector<10x32xf32>, vector<32x128xf32>, vector<10x128xf32> -> vector<10x128xf32>
    %c2_254 = arith.constant 2 : index
    %c0_255 = arith.constant 0 : index
    %c0_256 = arith.constant 0 : index
    %410 = vector.load %arg28[%c2_254, %c0_255, %c0_256] : memref<4x1x128xf32, #tpu.memory_space<vmem>>, vector<1x1x128xf32>
    %411 = vector.shape_cast %410 : vector<1x1x128xf32> to vector<1x128xf32>
    %412 = vector.broadcast %411 : vector<1x128xf32> to vector<10x128xf32>
    %413 = arith.addf %409, %412 : vector<10x128xf32>
    %cst_257 = arith.constant -1.702000e+00 : f32
    %414 = vector.broadcast %cst_257 : f32 to vector<10x128xf32>
    %415 = arith.mulf %414, %413 : vector<10x128xf32>
    %416 = math.exp %415 : vector<10x128xf32>
    %cst_258 = arith.constant 1.000000e+00 : f32
    %417 = vector.broadcast %cst_258 : f32 to vector<10x128xf32>
    %418 = arith.addf %417, %416 : vector<10x128xf32>
    %cst_259 = arith.constant 1.000000e+00 : f32
    %419 = vector.broadcast %cst_259 : f32 to vector<10x128xf32>
    %420 = arith.divf %419, %418 : vector<10x128xf32>
    %421 = arith.mulf %413, %420 : vector<10x128xf32>
    %c2_260 = arith.constant 2 : index
    %c0_261 = arith.constant 0 : index
    %c0_262 = arith.constant 0 : index
    %422 = vector.load %arg29[%c2_260, %c0_261, %c0_262] : memref<4x128x32xf32, #tpu.memory_space<vmem>>, vector<1x128x32xf32>
    %423 = vector.shape_cast %422 : vector<1x128x32xf32> to vector<128x32xf32>
    %cst_263 = arith.constant dense<0.000000e+00> : vector<10x32xf32>
    %424 = tpu.matmul %421, %423, %cst_263 {dimension_numbers = #tpu.dot_dimension_numbers<[1], [0], [0], [1], [0, 0, 1, 1], [], []>} : vector<10x128xf32>, vector<128x32xf32>, vector<10x32xf32> -> vector<10x32xf32>
    %425 = arith.addf %382, %424 : vector<10x32xf32>
    %c2_264 = arith.constant 2 : index
    %c0_265 = arith.constant 0 : index
    %c0_266 = arith.constant 0 : index
    %426 = vector.load %arg30[%c2_264, %c0_265, %c0_266] : memref<4x1x32xf32, #tpu.memory_space<vmem>>, vector<1x1x32xf32>
    %427 = vector.shape_cast %426 : vector<1x1x32xf32> to vector<1x32xf32>
    %428 = vector.broadcast %427 : vector<1x32xf32> to vector<10x32xf32>
    %429 = arith.addf %425, %428 : vector<10x32xf32>
    %c3 = arith.constant 3 : index
    %c0_267 = arith.constant 0 : index
    %c0_268 = arith.constant 0 : index
    %430 = vector.load %arg15[%c3, %c0_267, %c0_268] : memref<4x1x32xf32, #tpu.memory_space<vmem>>, vector<1x1x32xf32>
    %431 = vector.shape_cast %430 : vector<1x1x32xf32> to vector<1x32xf32>
    %c3_269 = arith.constant 3 : index
    %c0_270 = arith.constant 0 : index
    %c0_271 = arith.constant 0 : index
    %432 = vector.load %arg16[%c3_269, %c0_270, %c0_271] : memref<4x1x32xf32, #tpu.memory_space<vmem>>, vector<1x1x32xf32>
    %433 = vector.shape_cast %432 : vector<1x1x32xf32> to vector<1x32xf32>
    %cst_272 = arith.constant dense<0.000000e+00> : vector<10xf32>
    %434 = vector.multi_reduction <add>, %429, %cst_272 [1] : vector<10x32xf32> to vector<10xf32>
    %435 = vector.shape_cast %434 : vector<10xf32> to vector<10x1xf32>
    %cst_273 = arith.constant 3.200000e+01 : f32
    %436 = vector.broadcast %cst_273 : f32 to vector<10x1xf32>
    %437 = arith.divf %435, %436 : vector<10x1xf32>
    %438 = vector.broadcast %437 : vector<10x1xf32> to vector<10x32xf32>
    %439 = arith.subf %429, %438 : vector<10x32xf32>
    %440 = arith.mulf %439, %439 : vector<10x32xf32>
    %cst_274 = arith.constant dense<0.000000e+00> : vector<10xf32>
    %441 = vector.multi_reduction <add>, %440, %cst_274 [1] : vector<10x32xf32> to vector<10xf32>
    %442 = vector.shape_cast %441 : vector<10xf32> to vector<10x1xf32>
    %cst_275 = arith.constant 3.200000e+01 : f32
    %443 = vector.broadcast %cst_275 : f32 to vector<10x1xf32>
    %444 = arith.divf %442, %443 : vector<10x1xf32>
    %cst_276 = arith.constant 9.99999974E-6 : f32
    %445 = vector.broadcast %cst_276 : f32 to vector<10x1xf32>
    %446 = arith.addf %444, %445 : vector<10x1xf32>
    %447 = math.rsqrt %446 : vector<10x1xf32>
    %448 = vector.broadcast %447 : vector<10x1xf32> to vector<10x32xf32>
    %449 = arith.mulf %439, %448 : vector<10x32xf32>
    %450 = vector.broadcast %431 : vector<1x32xf32> to vector<10x32xf32>
    %451 = arith.mulf %449, %450 : vector<10x32xf32>
    %452 = vector.broadcast %433 : vector<1x32xf32> to vector<10x32xf32>
    %453 = arith.addf %451, %452 : vector<10x32xf32>
    %cst_277 = arith.constant dense<0.000000e+00> : vector<40x32xf32>
    %454 = tpu.matmul %34, %453, %cst_277 {dimension_numbers = #tpu.dot_dimension_numbers<[1], [0], [0], [1], [0, 0, 1, 1], [], []>} : vector<40x10xf32>, vector<10x32xf32>, vector<40x32xf32> -> vector<40x32xf32>
    %c3_278 = arith.constant 3 : index
    %c0_279 = arith.constant 0 : index
    %c0_280 = arith.constant 0 : index
    %455 = vector.load %arg17[%c3_278, %c0_279, %c0_280] : memref<4x32x32xf32, #tpu.memory_space<vmem>>, vector<1x32x32xf32>
    %456 = vector.shape_cast %455 : vector<1x32x32xf32> to vector<32x32xf32>
    %cst_281 = arith.constant dense<0.000000e+00> : vector<40x32xf32>
    %457 = tpu.matmul %454, %456, %cst_281 {dimension_numbers = #tpu.dot_dimension_numbers<[1], [0], [0], [1], [0, 0, 1, 1], [], []>} : vector<40x32xf32>, vector<32x32xf32>, vector<40x32xf32> -> vector<40x32xf32>
    %c3_282 = arith.constant 3 : index
    %c0_283 = arith.constant 0 : index
    %c0_284 = arith.constant 0 : index
    %458 = vector.load %arg18[%c3_282, %c0_283, %c0_284] : memref<4x1x32xf32, #tpu.memory_space<vmem>>, vector<1x1x32xf32>
    %459 = vector.shape_cast %458 : vector<1x1x32xf32> to vector<1x32xf32>
    %460 = vector.broadcast %459 : vector<1x32xf32> to vector<40x32xf32>
    %461 = arith.addf %457, %460 : vector<40x32xf32>
    %462 = arith.mulf %461, %35 : vector<40x32xf32>
    %c3_285 = arith.constant 3 : index
    %c0_286 = arith.constant 0 : index
    %c0_287 = arith.constant 0 : index
    %463 = vector.load %arg19[%c3_285, %c0_286, %c0_287] : memref<4x32x32xf32, #tpu.memory_space<vmem>>, vector<1x32x32xf32>
    %464 = vector.shape_cast %463 : vector<1x32x32xf32> to vector<32x32xf32>
    %cst_288 = arith.constant dense<0.000000e+00> : vector<10x32xf32>
    %465 = tpu.matmul %453, %464, %cst_288 {dimension_numbers = #tpu.dot_dimension_numbers<[1], [0], [0], [1], [0, 0, 1, 1], [], []>} : vector<10x32xf32>, vector<32x32xf32>, vector<10x32xf32> -> vector<10x32xf32>
    %c3_289 = arith.constant 3 : index
    %c0_290 = arith.constant 0 : index
    %c0_291 = arith.constant 0 : index
    %466 = vector.load %arg20[%c3_289, %c0_290, %c0_291] : memref<4x1x32xf32, #tpu.memory_space<vmem>>, vector<1x1x32xf32>
    %467 = vector.shape_cast %466 : vector<1x1x32xf32> to vector<1x32xf32>
    %468 = vector.broadcast %467 : vector<1x32xf32> to vector<10x32xf32>
    %469 = arith.addf %465, %468 : vector<10x32xf32>
    %c3_292 = arith.constant 3 : index
    %c0_293 = arith.constant 0 : index
    %c0_294 = arith.constant 0 : index
    %470 = vector.load %arg21[%c3_292, %c0_293, %c0_294] : memref<4x32x32xf32, #tpu.memory_space<vmem>>, vector<1x32x32xf32>
    %471 = vector.shape_cast %470 : vector<1x32x32xf32> to vector<32x32xf32>
    %cst_295 = arith.constant dense<0.000000e+00> : vector<10x32xf32>
    %472 = tpu.matmul %453, %471, %cst_295 {dimension_numbers = #tpu.dot_dimension_numbers<[1], [0], [0], [1], [0, 0, 1, 1], [], []>} : vector<10x32xf32>, vector<32x32xf32>, vector<10x32xf32> -> vector<10x32xf32>
    %c3_296 = arith.constant 3 : index
    %c0_297 = arith.constant 0 : index
    %c0_298 = arith.constant 0 : index
    %473 = vector.load %arg22[%c3_296, %c0_297, %c0_298] : memref<4x1x32xf32, #tpu.memory_space<vmem>>, vector<1x1x32xf32>
    %474 = vector.shape_cast %473 : vector<1x1x32xf32> to vector<1x32xf32>
    %475 = vector.broadcast %474 : vector<1x32xf32> to vector<10x32xf32>
    %476 = arith.addf %472, %475 : vector<10x32xf32>
    %cst_299 = arith.constant dense<0.000000e+00> : vector<40x10xf32>
    %477 = tpu.matmul %462, %469, %cst_299 {dimension_numbers = #tpu.dot_dimension_numbers<[1], [1], [0], [0], [0, 0, 1, 0], [], []>} : vector<40x32xf32>, vector<10x32xf32>, vector<40x10xf32> -> vector<40x10xf32>
    %cst_300 = arith.constant 0.353553385 : f32
    %478 = vector.broadcast %cst_300 : f32 to vector<40x10xf32>
    %479 = arith.mulf %477, %478 : vector<40x10xf32>
    %480 = arith.addf %479, %37 : vector<40x10xf32>
    %cst_301 = arith.constant dense<0xFF800000> : vector<40xf32>
    %481 = vector.multi_reduction <maximumf>, %480, %cst_301 [1] : vector<40x10xf32> to vector<40xf32>
    %482 = vector.shape_cast %481 : vector<40xf32> to vector<40x1xf32>
    %483 = vector.broadcast %482 : vector<40x1xf32> to vector<40x10xf32>
    %484 = arith.subf %480, %483 : vector<40x10xf32>
    %485 = math.exp %484 : vector<40x10xf32>
    %cst_302 = arith.constant dense<0.000000e+00> : vector<40xf32>
    %486 = vector.multi_reduction <add>, %485, %cst_302 [1] : vector<40x10xf32> to vector<40xf32>
    %487 = vector.shape_cast %486 : vector<40xf32> to vector<40x1xf32>
    %488 = vector.broadcast %487 : vector<40x1xf32> to vector<40x10xf32>
    %489 = arith.divf %485, %488 : vector<40x10xf32>
    %cst_303 = arith.constant dense<0.000000e+00> : vector<40x32xf32>
    %490 = tpu.matmul %489, %476, %cst_303 {dimension_numbers = #tpu.dot_dimension_numbers<[1], [0], [0], [1], [0, 0, 1, 1], [], []>} : vector<40x10xf32>, vector<10x32xf32>, vector<40x32xf32> -> vector<40x32xf32>
    %491 = arith.mulf %490, %35 : vector<40x32xf32>
    %cst_304 = arith.constant dense<0.000000e+00> : vector<10x32xf32>
    %492 = tpu.matmul %36, %491, %cst_304 {dimension_numbers = #tpu.dot_dimension_numbers<[1], [0], [0], [1], [0, 0, 1, 1], [], []>} : vector<10x40xf32>, vector<40x32xf32>, vector<10x32xf32> -> vector<10x32xf32>
    %c3_305 = arith.constant 3 : index
    %c0_306 = arith.constant 0 : index
    %c0_307 = arith.constant 0 : index
    %493 = vector.load %arg23[%c3_305, %c0_306, %c0_307] : memref<4x32x32xf32, #tpu.memory_space<vmem>>, vector<1x32x32xf32>
    %494 = vector.shape_cast %493 : vector<1x32x32xf32> to vector<32x32xf32>
    %cst_308 = arith.constant dense<0.000000e+00> : vector<10x32xf32>
    %495 = tpu.matmul %492, %494, %cst_308 {dimension_numbers = #tpu.dot_dimension_numbers<[1], [0], [0], [1], [0, 0, 1, 1], [], []>} : vector<10x32xf32>, vector<32x32xf32>, vector<10x32xf32> -> vector<10x32xf32>
    %496 = arith.addf %429, %495 : vector<10x32xf32>
    %c3_309 = arith.constant 3 : index
    %c0_310 = arith.constant 0 : index
    %c0_311 = arith.constant 0 : index
    %497 = vector.load %arg24[%c3_309, %c0_310, %c0_311] : memref<4x1x32xf32, #tpu.memory_space<vmem>>, vector<1x1x32xf32>
    %498 = vector.shape_cast %497 : vector<1x1x32xf32> to vector<1x32xf32>
    %499 = vector.broadcast %498 : vector<1x32xf32> to vector<10x32xf32>
    %500 = arith.addf %496, %499 : vector<10x32xf32>
    %c3_312 = arith.constant 3 : index
    %c0_313 = arith.constant 0 : index
    %c0_314 = arith.constant 0 : index
    %501 = vector.load %arg25[%c3_312, %c0_313, %c0_314] : memref<4x1x32xf32, #tpu.memory_space<vmem>>, vector<1x1x32xf32>
    %502 = vector.shape_cast %501 : vector<1x1x32xf32> to vector<1x32xf32>
    %c3_315 = arith.constant 3 : index
    %c0_316 = arith.constant 0 : index
    %c0_317 = arith.constant 0 : index
    %503 = vector.load %arg26[%c3_315, %c0_316, %c0_317] : memref<4x1x32xf32, #tpu.memory_space<vmem>>, vector<1x1x32xf32>
    %504 = vector.shape_cast %503 : vector<1x1x32xf32> to vector<1x32xf32>
    %cst_318 = arith.constant dense<0.000000e+00> : vector<10xf32>
    %505 = vector.multi_reduction <add>, %500, %cst_318 [1] : vector<10x32xf32> to vector<10xf32>
    %506 = vector.shape_cast %505 : vector<10xf32> to vector<10x1xf32>
    %cst_319 = arith.constant 3.200000e+01 : f32
    %507 = vector.broadcast %cst_319 : f32 to vector<10x1xf32>
    %508 = arith.divf %506, %507 : vector<10x1xf32>
    %509 = vector.broadcast %508 : vector<10x1xf32> to vector<10x32xf32>
    %510 = arith.subf %500, %509 : vector<10x32xf32>
    %511 = arith.mulf %510, %510 : vector<10x32xf32>
    %cst_320 = arith.constant dense<0.000000e+00> : vector<10xf32>
    %512 = vector.multi_reduction <add>, %511, %cst_320 [1] : vector<10x32xf32> to vector<10xf32>
    %513 = vector.shape_cast %512 : vector<10xf32> to vector<10x1xf32>
    %cst_321 = arith.constant 3.200000e+01 : f32
    %514 = vector.broadcast %cst_321 : f32 to vector<10x1xf32>
    %515 = arith.divf %513, %514 : vector<10x1xf32>
    %cst_322 = arith.constant 9.99999974E-6 : f32
    %516 = vector.broadcast %cst_322 : f32 to vector<10x1xf32>
    %517 = arith.addf %515, %516 : vector<10x1xf32>
    %518 = math.rsqrt %517 : vector<10x1xf32>
    %519 = vector.broadcast %518 : vector<10x1xf32> to vector<10x32xf32>
    %520 = arith.mulf %510, %519 : vector<10x32xf32>
    %521 = vector.broadcast %502 : vector<1x32xf32> to vector<10x32xf32>
    %522 = arith.mulf %520, %521 : vector<10x32xf32>
    %523 = vector.broadcast %504 : vector<1x32xf32> to vector<10x32xf32>
    %524 = arith.addf %522, %523 : vector<10x32xf32>
    %c3_323 = arith.constant 3 : index
    %c0_324 = arith.constant 0 : index
    %c0_325 = arith.constant 0 : index
    %525 = vector.load %arg27[%c3_323, %c0_324, %c0_325] : memref<4x32x128xf32, #tpu.memory_space<vmem>>, vector<1x32x128xf32>
    %526 = vector.shape_cast %525 : vector<1x32x128xf32> to vector<32x128xf32>
    %cst_326 = arith.constant dense<0.000000e+00> : vector<10x128xf32>
    %527 = tpu.matmul %524, %526, %cst_326 {dimension_numbers = #tpu.dot_dimension_numbers<[1], [0], [0], [1], [0, 0, 1, 1], [], []>} : vector<10x32xf32>, vector<32x128xf32>, vector<10x128xf32> -> vector<10x128xf32>
    %c3_327 = arith.constant 3 : index
    %c0_328 = arith.constant 0 : index
    %c0_329 = arith.constant 0 : index
    %528 = vector.load %arg28[%c3_327, %c0_328, %c0_329] : memref<4x1x128xf32, #tpu.memory_space<vmem>>, vector<1x1x128xf32>
    %529 = vector.shape_cast %528 : vector<1x1x128xf32> to vector<1x128xf32>
    %530 = vector.broadcast %529 : vector<1x128xf32> to vector<10x128xf32>
    %531 = arith.addf %527, %530 : vector<10x128xf32>
    %cst_330 = arith.constant -1.702000e+00 : f32
    %532 = vector.broadcast %cst_330 : f32 to vector<10x128xf32>
    %533 = arith.mulf %532, %531 : vector<10x128xf32>
    %534 = math.exp %533 : vector<10x128xf32>
    %cst_331 = arith.constant 1.000000e+00 : f32
    %535 = vector.broadcast %cst_331 : f32 to vector<10x128xf32>
    %536 = arith.addf %535, %534 : vector<10x128xf32>
    %cst_332 = arith.constant 1.000000e+00 : f32
    %537 = vector.broadcast %cst_332 : f32 to vector<10x128xf32>
    %538 = arith.divf %537, %536 : vector<10x128xf32>
    %539 = arith.mulf %531, %538 : vector<10x128xf32>
    %c3_333 = arith.constant 3 : index
    %c0_334 = arith.constant 0 : index
    %c0_335 = arith.constant 0 : index
    %540 = vector.load %arg29[%c3_333, %c0_334, %c0_335] : memref<4x128x32xf32, #tpu.memory_space<vmem>>, vector<1x128x32xf32>
    %541 = vector.shape_cast %540 : vector<1x128x32xf32> to vector<128x32xf32>
    %cst_336 = arith.constant dense<0.000000e+00> : vector<10x32xf32>
    %542 = tpu.matmul %539, %541, %cst_336 {dimension_numbers = #tpu.dot_dimension_numbers<[1], [0], [0], [1], [0, 0, 1, 1], [], []>} : vector<10x128xf32>, vector<128x32xf32>, vector<10x32xf32> -> vector<10x32xf32>
    %543 = arith.addf %500, %542 : vector<10x32xf32>
    %c3_337 = arith.constant 3 : index
    %c0_338 = arith.constant 0 : index
    %c0_339 = arith.constant 0 : index
    %544 = vector.load %arg30[%c3_337, %c0_338, %c0_339] : memref<4x1x32xf32, #tpu.memory_space<vmem>>, vector<1x1x32xf32>
    %545 = vector.shape_cast %544 : vector<1x1x32xf32> to vector<1x32xf32>
    %546 = vector.broadcast %545 : vector<1x32xf32> to vector<10x32xf32>
    %547 = arith.addf %543, %546 : vector<10x32xf32>
    %c0_340 = arith.constant 0 : index
    %c0_341 = arith.constant 0 : index
    %548 = vector.load %arg31[%c0_340, %c0_341] : memref<1x32xf32, #tpu.memory_space<vmem>>, vector<1x32xf32>
    %c0_342 = arith.constant 0 : index
    %c0_343 = arith.constant 0 : index
    %549 = vector.load %arg32[%c0_342, %c0_343] : memref<1x32xf32, #tpu.memory_space<vmem>>, vector<1x32xf32>
    %cst_344 = arith.constant dense<0.000000e+00> : vector<10xf32>
    %550 = vector.multi_reduction <add>, %547, %cst_344 [1] : vector<10x32xf32> to vector<10xf32>
    %551 = vector.shape_cast %550 : vector<10xf32> to vector<10x1xf32>
    %cst_345 = arith.constant 3.200000e+01 : f32
    %552 = vector.broadcast %cst_345 : f32 to vector<10x1xf32>
    %553 = arith.divf %551, %552 : vector<10x1xf32>
    %554 = vector.broadcast %553 : vector<10x1xf32> to vector<10x32xf32>
    %555 = arith.subf %547, %554 : vector<10x32xf32>
    %556 = arith.mulf %555, %555 : vector<10x32xf32>
    %cst_346 = arith.constant dense<0.000000e+00> : vector<10xf32>
    %557 = vector.multi_reduction <add>, %556, %cst_346 [1] : vector<10x32xf32> to vector<10xf32>
    %558 = vector.shape_cast %557 : vector<10xf32> to vector<10x1xf32>
    %cst_347 = arith.constant 3.200000e+01 : f32
    %559 = vector.broadcast %cst_347 : f32 to vector<10x1xf32>
    %560 = arith.divf %558, %559 : vector<10x1xf32>
    %cst_348 = arith.constant 9.99999974E-6 : f32
    %561 = vector.broadcast %cst_348 : f32 to vector<10x1xf32>
    %562 = arith.addf %560, %561 : vector<10x1xf32>
    %563 = math.rsqrt %562 : vector<10x1xf32>
    %564 = vector.broadcast %563 : vector<10x1xf32> to vector<10x32xf32>
    %565 = arith.mulf %555, %564 : vector<10x32xf32>
    %566 = vector.broadcast %548 : vector<1x32xf32> to vector<10x32xf32>
    %567 = arith.mulf %565, %566 : vector<10x32xf32>
    %568 = vector.broadcast %549 : vector<1x32xf32> to vector<10x32xf32>
    %569 = arith.addf %567, %568 : vector<10x32xf32>
    %c0_349 = arith.constant 0 : index
    %c0_350 = arith.constant 0 : index
    %570 = vector.load %arg33[%c0_349, %c0_350] : memref<32x32xf32, #tpu.memory_space<vmem>>, vector<32x32xf32>
    %cst_351 = arith.constant dense<0.000000e+00> : vector<10x32xf32>
    %571 = tpu.matmul %569, %570, %cst_351 {dimension_numbers = #tpu.dot_dimension_numbers<[1], [0], [0], [1], [0, 0, 1, 1], [], []>} : vector<10x32xf32>, vector<32x32xf32>, vector<10x32xf32> -> vector<10x32xf32>
    %572 = arith.mulf %571, %571 : vector<10x32xf32>
    %cst_352 = arith.constant dense<0.000000e+00> : vector<10xf32>
    %573 = vector.multi_reduction <add>, %572, %cst_352 [1] : vector<10x32xf32> to vector<10xf32>
    %574 = vector.shape_cast %573 : vector<10xf32> to vector<10x1xf32>
    %575 = math.sqrt %574 : vector<10x1xf32>
    %576 = vector.broadcast %575 : vector<10x1xf32> to vector<10x32xf32>
    %577 = arith.divf %571, %576 : vector<10x32xf32>
    %cst_353 = arith.constant 0.000000e+00 : f32
    %578 = vector.broadcast %cst_353 : f32 to vector<2x22xf32>
    %579 = tpu.concatenate %308, %578 in 1 : vector<2x10xf32>, vector<2x22xf32> -> vector<2x32xf32>
    %cst_354 = arith.constant 0.000000e+00 : f32
    %580 = vector.broadcast %cst_354 : f32 to vector<8x32xf32>
    %581 = tpu.concatenate %579, %580 in 0 : vector<2x32xf32>, vector<8x32xf32> -> vector<10x32xf32>
    %582 = tpu.concatenate %273, %547, %577, %581 in 1 : vector<10x32xf32>, vector<10x32xf32>, vector<10x32xf32>, vector<10x32xf32> -> vector<10x128xf32>
    %c0_355 = arith.constant 0 : index
    %c0_356 = arith.constant 0 : index
    %583 = vector.load %arg34[%c0_355, %c0_356] : memref<10x128xf32, #tpu.memory_space<vmem>>, vector<10x128xf32>
    tpu.vector_store %arg34[%c0_355, %c0_356], %582 {strides = array<i32>} : memref<10x128xf32, #tpu.memory_space<vmem>>, vector<10x128xf32>,
    return
  }
}

</mosaic_0001>

<llo_original>
// kernel: tile.23
$region0: #{tile.23}
  %s0 = inlined_call_operand.vmem [shape: f32[2,2,5], index: 0, kind: input, shape index: {}]
  %s1 = inlined_call_operand.vmem [shape: f32[2,10], index: 1, kind: output, shape index: {}]
  $region1: #{tile.23} parent=0
    #allocation0 [shape = 'u8[4096]{0}', space=vmem, size = 0x1000, scoped, tag = 'scoped mem for output reshape']
    #allocation1 [shape = 'u8[8192]{0}', space=vmem, size = 0x2000, scoped, tag = 'scoped mem for input reshape']
    %s3 = sshll.u32 1, 2
    %s4 = ssub.s32 %s3, 1
    %s5 = scalar_lea.vmem %s0, 2
    %v6 = vld [vmem:[%s5] sm:%s4]
    %s7 = scalar_lea.vmem [#allocation1], 8
    %8 = vst [vmem:[%s7] sm:%s4] %v6
    %v9 = vld [vmem:[%s0] sm:%s4]
    %10 = vst [vmem:[#allocation1] sm:%s4] %v9
    %s11 = smov 3
    %v12 = vld [vmem:[#allocation1] ss:$8 sm:%s11]
    %vm13 = vcmask 39936
    %14 = vst.msk [vmem:[#allocation0] sm:$0x3] %vm13, %v12
    %s15 = scalar_lea.vmem [#allocation1], 1
    %s16 = smov 3
    %v17 = vld [vmem:[%s15] ss:$8 sm:%s16]
    %18 = vrot.lane.b32.xlu0 %v17, 5
    %v19 = vpop.permute.xlu0 %18
    %vm20 = vcmask 80936
    %21 = vst.msk [vmem:[#allocation0] sm:$0x3] %vm20, %v19
    %s23 = sshll.u32 1, 2
    %s24 = ssub.s32 %s23, 1
    %v26 = vld [vmem:[#allocation0] sm:%s24]
    %s27 = sshll.u32 1, 2
    %s28 = ssub.s32 %s27, 1
    %29 = vst [vmem:[%s1] sm:%s28] %v26

// kernel: tile.18
$region0: #{tile.18}
  %s0 = inlined_call_operand.vmem [shape: f32[2,5,32], index: 0, kind: input, shape index: {}]
  %s1 = inlined_call_operand.vmem [shape: f32[10,32], index: 1, kind: output, shape index: {}]
  %v2 = vld [vmem:[%s0] sm:$0x1f]
  %vm3 = vcmask 261120
  %4 = vst.msk [vmem:[%s1] sm:$0x1f] %vm3, %v2
  %s5 = scalar_lea.vmem %s0, 8
  %v6 = vld [vmem:[%s5] sm:$0x1f]
  %vm7 = vcmask 261120
  %s8 = scalar_lea.vmem %s1, 5
  %9 = vst.msk [vmem:[%s8] sm:$0x1f] %vm7, %v6

// kernel: forward.1
$region0: #{forward.1}
  #allocation0 [shape = 'u32[]', space=smem, size = 0x4, offset = 0x4, fixed_abs, tag = 'smem constant byte address 0x4 - core index']
  #allocation1 [shape = 'u32[144,128]{1,0:T(1,128)}', space=vmem, size = 0x12000, scoped, tag = 'internal scratch']
  %s0 = inlined_call_operand.smem [shape: u32[35], index: -1, kind: input, shape index: {}]
  %s1 = sld [smem:[%s0]]
  %s2 = scalar_lea.smem %s0, 1
  %s3 = sld [smem:[%s2]]
  %s4 = scalar_lea.smem %s0, 2
  %s5 = sld [smem:[%s4]]
  %s6 = scalar_lea.smem %s0, 3
  %s7 = sld [smem:[%s6]]
  %s8 = scalar_lea.smem %s0, 4
  %s9 = sld [smem:[%s8]]
  %s10 = scalar_lea.smem %s0, 5
  %s11 = sld [smem:[%s10]]
  %s12 = scalar_lea.smem %s0, 6
  %s13 = sld [smem:[%s12]]
  %s14 = scalar_lea.smem %s0, 7
  %s15 = sld [smem:[%s14]]
  %s16 = scalar_lea.smem %s0, 8
  %s17 = sld [smem:[%s16]]
  %s18 = scalar_lea.smem %s0, 9
  %s19 = sld [smem:[%s18]]
  %s20 = scalar_lea.smem %s0, 10
  %s21 = sld [smem:[%s20]]
  %s22 = scalar_lea.smem %s0, 11
  %s23 = sld [smem:[%s22]]
  %s24 = scalar_lea.smem %s0, 12
  %s25 = sld [smem:[%s24]]
  %s26 = scalar_lea.smem %s0, 13
  %s27 = sld [smem:[%s26]]
  %s28 = scalar_lea.smem %s0, 14
  %s29 = sld [smem:[%s28]]
  %s30 = scalar_lea.smem %s0, 15
  %s31 = sld [smem:[%s30]]
  %s32 = scalar_lea.smem %s0, 16
  %s33 = sld [smem:[%s32]]
  %s34 = scalar_lea.smem %s0, 17
  %s35 = sld [smem:[%s34]]
  %s36 = scalar_lea.smem %s0, 18
  %s37 = sld [smem:[%s36]]
  %s38 = scalar_lea.smem %s0, 19
  %s39 = sld [smem:[%s38]]
  %s40 = scalar_lea.smem %s0, 20
  %s41 = sld [smem:[%s40]]
  %s42 = scalar_lea.smem %s0, 21
  %s43 = sld [smem:[%s42]]
  %s44 = scalar_lea.smem %s0, 22
  %s45 = sld [smem:[%s44]]
  %s46 = scalar_lea.smem %s0, 23
  %s47 = sld [smem:[%s46]]
  %s48 = scalar_lea.smem %s0, 24
  %s49 = sld [smem:[%s48]]
  %s50 = scalar_lea.smem %s0, 25
  %s51 = sld [smem:[%s50]]
  %s52 = scalar_lea.smem %s0, 26
  %s53 = sld [smem:[%s52]]
  %s54 = scalar_lea.smem %s0, 27
  %s55 = sld [smem:[%s54]]
  %s56 = scalar_lea.smem %s0, 28
  %s57 = sld [smem:[%s56]]
  %s58 = scalar_lea.smem %s0, 29
  %s59 = sld [smem:[%s58]]
  %s60 = scalar_lea.smem %s0, 30
  %s61 = sld [smem:[%s60]]
  %s62 = scalar_lea.smem %s0, 31
  %s63 = sld [smem:[%s62]]
  %s64 = scalar_lea.smem %s0, 32
  %s65 = sld [smem:[%s64]]
  %s66 = scalar_lea.smem %s0, 33
  %s67 = sld [smem:[%s66]]
  %s68 = scalar_lea.smem %s0, 34
  %s69 = sld [smem:[%s68]]
  %s70 = sld [smem:[#allocation0]]
  $region146: #{forward.1} parent=0
    _
  %s72 = ssub.s32 1, %s70
  %s73 = scalar_select 0, %s72, %s70
  // Predicated region
  $region2: #{forward.1} parent=0 // pred_check
    _
  $region3: #{forward.1} parent=0 // pred_check_branch
    %75 = sbr.rel (0) target = $region5
  $region4: #{forward.1} parent=0 // pred_region
    _
  $region5: #{forward.1} parent=0 // pred_fallthru
    _
  // Predicated region
  $region6: #{forward.1} parent=0 // pred_check
    _
  $region7: #{forward.1} parent=0 // pred_check_branch
    %77 = sbr.rel (0) target = $region9
  $region8: #{forward.1} parent=0 // pred_region
    _
  $region9: #{forward.1} parent=0 // pred_fallthru
    _
  // Predicated region
  $region10: #{forward.1} parent=0 // pred_check
    _
  $region11: #{forward.1} parent=0 // pred_check_branch
    %79 = sbr.rel (0) target = $region13
  $region12: #{forward.1} parent=0 // pred_region
    _
  $region13: #{forward.1} parent=0 // pred_fallthru
    _
  // Predicated region
  $region14: #{forward.1} parent=0 // pred_check
    _
  $region15: #{forward.1} parent=0 // pred_check_branch
    %81 = sbr.rel (0) target = $region17
  $region16: #{forward.1} parent=0 // pred_region
    _
  $region17: #{forward.1} parent=0 // pred_fallthru
    _
  // Predicated region
  $region18: #{forward.1} parent=0 // pred_check
    _
  $region19: #{forward.1} parent=0 // pred_check_branch
    %83 = sbr.rel (0) target = $region21
  $region20: #{forward.1} parent=0 // pred_region
    _
  $region21: #{forward.1} parent=0 // pred_fallthru
    _
  // Predicated region
  $region22: #{forward.1} parent=0 // pred_check
    _
  $region23: #{forward.1} parent=0 // pred_check_branch
    %85 = sbr.rel (0) target = $region25
  $region24: #{forward.1} parent=0 // pred_region
    _
  $region25: #{forward.1} parent=0 // pred_fallthru
    _
  // Predicated region
  $region26: #{forward.1} parent=0 // pred_check
    _
  $region27: #{forward.1} parent=0 // pred_check_branch
    %87 = sbr.rel (0) target = $region29
  $region28: #{forward.1} parent=0 // pred_region
    _
  $region29: #{forward.1} parent=0 // pred_fallthru
    _
  // Predicated region
  $region30: #{forward.1} parent=0 // pred_check
    _
  $region31: #{forward.1} parent=0 // pred_check_branch
    %89 = sbr.rel (0) target = $region33
  $region32: #{forward.1} parent=0 // pred_region
    _
  $region33: #{forward.1} parent=0 // pred_fallthru
    _
  // Predicated region
  $region34: #{forward.1} parent=0 // pred_check
    _
  $region35: #{forward.1} parent=0 // pred_check_branch
    %91 = sbr.rel (0) target = $region37
  $region36: #{forward.1} parent=0 // pred_region
    _
  $region37: #{forward.1} parent=0 // pred_fallthru
    _
  // Predicated region
  $region38: #{forward.1} parent=0 // pred_check
    _
  $region39: #{forward.1} parent=0 // pred_check_branch
    %93 = sbr.rel (0) target = $region41
  $region40: #{forward.1} parent=0 // pred_region
    _
  $region41: #{forward.1} parent=0 // pred_fallthru
    _
  // Predicated region
  $region42: #{forward.1} parent=0 // pred_check
    _
  $region43: #{forward.1} parent=0 // pred_check_branch
    %95 = sbr.rel (0) target = $region45
  $region44: #{forward.1} parent=0 // pred_region
    _
  $region45: #{forward.1} parent=0 // pred_fallthru
    _
  // Predicated region
  $region46: #{forward.1} parent=0 // pred_check
    _
  $region47: #{forward.1} parent=0 // pred_check_branch
    %97 = sbr.rel (0) target = $region49
  $region48: #{forward.1} parent=0 // pred_region
    _
  $region49: #{forward.1} parent=0 // pred_fallthru
    _
  // Predicated region
  $region50: #{forward.1} parent=0 // pred_check
    _
  $region51: #{forward.1} parent=0 // pred_check_branch
    %99 = sbr.rel (0) target = $region53
  $region52: #{forward.1} parent=0 // pred_region
    _
  $region53: #{forward.1} parent=0 // pred_fallthru
    _
  // Predicated region
  $region54: #{forward.1} parent=0 // pred_check
    _
  $region55: #{forward.1} parent=0 // pred_check_branch
    %101 = sbr.rel (0) target = $region57
  $region56: #{forward.1} parent=0 // pred_region
    _
  $region57: #{forward.1} parent=0 // pred_fallthru
    _
  // Predicated region
  $region58: #{forward.1} parent=0 // pred_check
    _
  $region59: #{forward.1} parent=0 // pred_check_branch
    %103 = sbr.rel (0) target = $region61
  $region60: #{forward.1} parent=0 // pred_region
    _
  $region61: #{forward.1} parent=0 // pred_fallthru
    _
  // Predicated region
  $region62: #{forward.1} parent=0 // pred_check
    _
  $region63: #{forward.1} parent=0 // pred_check_branch
    %105 = sbr.rel (0) target = $region65
  $region64: #{forward.1} parent=0 // pred_region
    _
  $region65: #{forward.1} parent=0 // pred_fallthru
    _
  // Predicated region
  $region66: #{forward.1} parent=0 // pred_check
    _
  $region67: #{forward.1} parent=0 // pred_check_branch
    %107 = sbr.rel (0) target = $region69
  $region68: #{forward.1} parent=0 // pred_region
    _
  $region69: #{forward.1} parent=0 // pred_fallthru
    _
  // Predicated region
  $region70: #{forward.1} parent=0 // pred_check
    _
  $region71: #{forward.1} parent=0 // pred_check_branch
    %109 = sbr.rel (0) target = $region73
  $region72: #{forward.1} parent=0 // pred_region
    _
  $region73: #{forward.1} parent=0 // pred_fallthru
    _
  // Predicated region
  $region74: #{forward.1} parent=0 // pred_check
    _
  $region75: #{forward.1} parent=0 // pred_check_branch
    %111 = sbr.rel (0) target = $region77
  $region76: #{forward.1} parent=0 // pred_region
    _
  $region77: #{forward.1} parent=0 // pred_fallthru
    _
  // Predicated region
  $region78: #{forward.1} parent=0 // pred_check
    _
  $region79: #{forward.1} parent=0 // pred_check_branch
    %113 = sbr.rel (0) target = $region81
  $region80: #{forward.1} parent=0 // pred_region
    _
  $region81: #{forward.1} parent=0 // pred_fallthru
    _
  // Predicated region
  $region82: #{forward.1} parent=0 // pred_check
    _
  $region83: #{forward.1} parent=0 // pred_check_branch
    %115 = sbr.rel (0) target = $region85
  $region84: #{forward.1} parent=0 // pred_region
    _
  $region85: #{forward.1} parent=0 // pred_fallthru
    _
  // Predicated region
  $region86: #{forward.1} parent=0 // pred_check
    _
  $region87: #{forward.1} parent=0 // pred_check_branch
    %117 = sbr.rel (0) target = $region89
  $region88: #{forward.1} parent=0 // pred_region
    _
  $region89: #{forward.1} parent=0 // pred_fallthru
    _
  // Predicated region
  $region90: #{forward.1} parent=0 // pred_check
    _
  $region91: #{forward.1} parent=0 // pred_check_branch
    %119 = sbr.rel (0) target = $region93
  $region92: #{forward.1} parent=0 // pred_region
    _
  $region93: #{forward.1} parent=0 // pred_fallthru
    _
  // Predicated region
  $region94: #{forward.1} parent=0 // pred_check
    _
  $region95: #{forward.1} parent=0 // pred_check_branch
    %121 = sbr.rel (0) target = $region97
  $region96: #{forward.1} parent=0 // pred_region
    _
  $region97: #{forward.1} parent=0 // pred_fallthru
    _
  // Predicated region
  $region98: #{forward.1} parent=0 // pred_check
    _
  $region99: #{forward.1} parent=0 // pred_check_branch
    %123 = sbr.rel (0) target = $region101
  $region100: #{forward.1} parent=0 // pred_region
    _
  $region101: #{forward.1} parent=0 // pred_fallthru
    _
  // Predicated region
  $region102: #{forward.1} parent=0 // pred_check
    _
  $region103: #{forward.1} parent=0 // pred_check_branch
    %125 = sbr.rel (0) target = $region105
  $region104: #{forward.1} parent=0 // pred_region
    _
  $region105: #{forward.1} parent=0 // pred_fallthru
    _
  // Predicated region
  $region106: #{forward.1} parent=0 // pred_check
    _
  $region107: #{forward.1} parent=0 // pred_check_branch
    %127 = sbr.rel (0) target = $region109
  $region108: #{forward.1} parent=0 // pred_region
    _
  $region109: #{forward.1} parent=0 // pred_fallthru
    _
  // Predicated region
  $region110: #{forward.1} parent=0 // pred_check
    _
  $region111: #{forward.1} parent=0 // pred_check_branch
    %129 = sbr.rel (0) target = $region113
  $region112: #{forward.1} parent=0 // pred_region
    _
  $region113: #{forward.1} parent=0 // pred_fallthru
    _
  // Predicated region
  $region114: #{forward.1} parent=0 // pred_check
    _
  $region115: #{forward.1} parent=0 // pred_check_branch
    %131 = sbr.rel (0) target = $region117
  $region116: #{forward.1} parent=0 // pred_region
    _
  $region117: #{forward.1} parent=0 // pred_fallthru
    _
  // Predicated region
  $region118: #{forward.1} parent=0 // pred_check
    _
  $region119: #{forward.1} parent=0 // pred_check_branch
    %133 = sbr.rel (0) target = $region121
  $region120: #{forward.1} parent=0 // pred_region
    _
  $region121: #{forward.1} parent=0 // pred_fallthru
    _
  // Predicated region
  $region122: #{forward.1} parent=0 // pred_check
    _
  $region123: #{forward.1} parent=0 // pred_check_branch
    %135 = sbr.rel (0) target = $region125
  $region124: #{forward.1} parent=0 // pred_region
    _
  $region125: #{forward.1} parent=0 // pred_fallthru
    _
  // Predicated region
  $region126: #{forward.1} parent=0 // pred_check
    _
  $region127: #{forward.1} parent=0 // pred_check_branch
    %137 = sbr.rel (0) target = $region129
  $region128: #{forward.1} parent=0 // pred_region
    _
  $region129: #{forward.1} parent=0 // pred_fallthru
    _
  // Predicated region
  $region130: #{forward.1} parent=0 // pred_check
    _
  $region131: #{forward.1} parent=0 // pred_check_branch
    %139 = sbr.rel (0) target = $region133
  $region132: #{forward.1} parent=0 // pred_region
    _
  $region133: #{forward.1} parent=0 // pred_fallthru
    _
  // Predicated region
  $region134: #{forward.1} parent=0 // pred_check
    _
  $region135: #{forward.1} parent=0 // pred_check_branch
    %141 = sbr.rel (0) target = $region137
  $region136: #{forward.1} parent=0 // pred_region
    _
  $region137: #{forward.1} parent=0 // pred_fallthru
    _
  %v142 = vld [vmem:[%s1] sm:$0xff]
  %v143 = vld [vmem:[%s1 + $0x8] sm:$0xff]
  %v144 = vld [vmem:[%s1 + $0x10] sm:$0xff]
  %v145 = vld [vmem:[%s1 + $0x18] sm:$0xff]
  %v146 = vld [vmem:[%s1 + $0x20] sm:$0xff]
  %v147 = vld [vmem:[%s1 + $0x28] sm:$0xff]
  %v148 = vld [vmem:[%s1 + $0x30] sm:$0x3]
  %v149 = vld [vmem:[%s1 + $0x38] sm:$0x3]
  %v150 = vld [vmem:[%s1 + $0x40] sm:$0x3]
  %v151 = vld [vmem:[%s1 + $0x48] sm:$0x3]
  %v152 = vld [vmem:[%s1 + $0x50] sm:$0x3]
  %v153 = vld [vmem:[%s1 + $0x58] sm:$0x3]
  %v154 = vld [vmem:[%s3] sm:$0xff]
  %v155 = vld [vmem:[%s3 + $0x8] sm:$0xff]
  %v156 = vld [vmem:[%s3 + $0x10] sm:$0xff]
  %v157 = vld [vmem:[%s3 + $0x18] sm:$0xff]
  %v158 = vld [vmem:[%s3 + $0x20] sm:$0xff]
  %v159 = vld [vmem:[%s3 + $0x28] sm:$0xff]
  %v160 = vld [vmem:[%s3 + $0x30] sm:$0xff]
  %v161 = vld [vmem:[%s3 + $0x38] sm:$0xff]
  %v162 = vld [vmem:[%s3 + $0x40] sm:$0xff]
  %v163 = vld [vmem:[%s3 + $0x48] sm:$0xff]
  %v164 = vld [vmem:[%s3 + $0x50] sm:$0xff]
  %v165 = vld [vmem:[%s3 + $0x58] sm:$0xff]
  %v166 = vld [vmem:[%s3 + $0x60] sm:$0xff]
  %v167 = vld [vmem:[%s3 + $0x68] sm:$0xff]
  %v168 = vld [vmem:[%s3 + $0x70] sm:$0xff]
  %v169 = vld [vmem:[%s3 + $0x78] sm:$0xff]
  %v170 = vld [vmem:[%s3 + $0x80] sm:$0xff]
  %v171 = vld [vmem:[%s3 + $0x88] sm:$0xff]
  %v172 = vld [vmem:[%s3 + $0x90] sm:$0xff]
  %v173 = vld [vmem:[%s3 + $0x98] sm:$0xff]
  %v174 = vld [vmem:[%s3 + $0xa0] sm:$0xff]
  %v175 = vld [vmem:[%s3 + $0xa8] sm:$0xff]
  %v176 = vld [vmem:[%s3 + $0xb0] sm:$0xff]
  %v177 = vld [vmem:[%s3 + $0xb8] sm:$0xff]
  %v178 = vld [vmem:[%s3 + $0xc0] sm:$0xff]
  %v179 = vld [vmem:[%s3 + $0xc8] sm:$0xff]
  %v180 = vld [vmem:[%s3 + $0xd0] sm:$0xff]
  %v181 = vld [vmem:[%s3 + $0xd8] sm:$0xff]
  %v182 = vld [vmem:[%s3 + $0xe0] sm:$0xff]
  %v183 = vld [vmem:[%s3 + $0xe8] sm:$0xff]
  %v184 = vld [vmem:[%s3 + $0xf0] sm:$0xff]
  %v185 = vld [vmem:[%s3 + $0xf8] sm:$0xff]
  %v186 = vld [vmem:[%s3 + $0x100] sm:$0xff]
  %v187 = vld [vmem:[%s3 + $0x108] sm:$0xff]
  %v188 = vld [vmem:[%s3 + $0x110] sm:$0xff]
  %v189 = vld [vmem:[%s3 + $0x118] sm:$0xff]
  %v190 = vld [vmem:[%s3 + $0x120] sm:$0xff]
  %v191 = vld [vmem:[%s3 + $0x128] sm:$0xff]
  %v192 = vld [vmem:[%s3 + $0x130] sm:$0xff]
  %v193 = vld [vmem:[%s3 + $0x138] sm:$0xff]
  %v194 = vld [vmem:[%s3 + $0x140] sm:$0xff]
  %v195 = vld [vmem:[%s3 + $0x148] sm:$0xff]
  %v196 = vld [vmem:[%s3 + $0x150] sm:$0xff]
  %v197 = vld [vmem:[%s3 + $0x158] sm:$0xff]
  %v198 = vld [vmem:[%s3 + $0x160] sm:$0xff]
  %v199 = vld [vmem:[%s3 + $0x168] sm:$0xff]
  %v200 = vld [vmem:[%s3 + $0x170] sm:$0xff]
  %v201 = vld [vmem:[%s3 + $0x178] sm:$0xff]
  %v202 = vld [vmem:[%s3 + $0x180] sm:$0xff]
  %v203 = vld [vmem:[%s3 + $0x188] sm:$0xff]
  %v204 = vld [vmem:[%s3 + $0x190] sm:$0xff]
  %v205 = vld [vmem:[%s3 + $0x198] sm:$0xff]
  %v206 = vld [vmem:[%s3 + $0x1a0] sm:$0xff]
  %v207 = vld [vmem:[%s3 + $0x1a8] sm:$0xff]
  %v208 = vld [vmem:[%s3 + $0x1b0] sm:$0xff]
  %v209 = vld [vmem:[%s3 + $0x1b8] sm:$0xff]
  %v210 = vld [vmem:[%s3 + $0x1c0] sm:$0xff]
  %v211 = vld [vmem:[%s3 + $0x1c8] sm:$0xff]
  %v212 = vld [vmem:[%s3 + $0x1d0] sm:$0xff]
  %v213 = vld [vmem:[%s3 + $0x1d8] sm:$0xff]
  %v214 = vld [vmem:[%s3 + $0x1e0] sm:$0xff]
  %v215 = vld [vmem:[%s3 + $0x1e8] sm:$0xff]
  %v216 = vld [vmem:[%s3 + $0x1f0] sm:$0xff]
  %v217 = vld [vmem:[%s3 + $0x1f8] sm:$0xff]
  %v218 = vld [vmem:[%s3 + $0x200] sm:$0xff]
  %v219 = vld [vmem:[%s3 + $0x208] sm:$0xff]
  %v220 = vld [vmem:[%s3 + $0x210] sm:$0xff]
  %v221 = vld [vmem:[%s3 + $0x218] sm:$0xff]
  %v222 = vld [vmem:[%s3 + $0x220] sm:$0xff]
  %v223 = vld [vmem:[%s3 + $0x228] sm:$0xff]
  %v224 = vld [vmem:[%s3 + $0x230] sm:$0xff]
  %v225 = vld [vmem:[%s3 + $0x238] sm:$0xff]
  %v226 = vld [vmem:[%s3 + $0x240] sm:$0xff]
  %v227 = vld [vmem:[%s3 + $0x248] sm:$0xff]
  %v228 = vld [vmem:[%s3 + $0x250] sm:$0xff]
  %v229 = vld [vmem:[%s3 + $0x258] sm:$0xff]
  %v230 = vld [vmem:[%s3 + $0x260] sm:$0xff]
  %v231 = vld [vmem:[%s3 + $0x268] sm:$0xff]
  %v232 = vld [vmem:[%s3 + $0x270] sm:$0xff]
  %v233 = vld [vmem:[%s3 + $0x278] sm:$0xff]
  %v234 = vld [vmem:[%s3 + $0x280] sm:$0xff]
  %v235 = vld [vmem:[%s3 + $0x288] sm:$0xff]
  %v236 = vld [vmem:[%s3 + $0x290] sm:$0xff]
  %v237 = vld [vmem:[%s3 + $0x298] sm:$0xff]
  %v238 = vld [vmem:[%s3 + $0x2a0] sm:$0xff]
  %v239 = vld [vmem:[%s3 + $0x2a8] sm:$0xff]
  %v240 = vld [vmem:[%s3 + $0x2b0] sm:$0xff]
  %v241 = vld [vmem:[%s3 + $0x2b8] sm:$0xff]
  %v242 = vld [vmem:[%s3 + $0x2c0] sm:$0xff]
  %v243 = vld [vmem:[%s3 + $0x2c8] sm:$0xff]
  %v244 = vld [vmem:[%s3 + $0x2d0] sm:$0xff]
  %v245 = vld [vmem:[%s3 + $0x2d8] sm:$0xff]
  %v246 = vld [vmem:[%s3 + $0x2e0] sm:$0xff]
  %v247 = vld [vmem:[%s3 + $0x2e8] sm:$0xff]
  %v248 = vld [vmem:[%s3 + $0x2f0] sm:$0xff]
  %v249 = vld [vmem:[%s3 + $0x2f8] sm:$0xff]
  %v250 = vld [vmem:[%s5] sm:$0xff]
  %v251 = vld [vmem:[%s5 + $0x8] sm:$0x3]
  %252 = vmatprep.subr.mxu0 0.0
  %253 = vmatpush1.msra.mxu0 %v169
  %254 = vmatprep.subr.mxu0 0.0
  %255 = vmatpush1.msra.mxu0 %v168
  %256 = vmatprep.subr.mxu0 0.0
  %257 = vmatpush1.msra.mxu0 %v167
  %258 = vmatprep.subr.mxu0 0.0
  %259 = vmatpush1.msra.mxu0 %v166
  %260 = vmatprep.subr.mxu0 0.0
  %261 = vmatpush1.msra.mxu0 %v165
  %262 = vmatprep.subr.mxu0 0.0
  %263 = vmatpush1.msra.mxu0 %v164
  %264 = vmatprep.subr.mxu0 0.0
  %265 = vmatpush1.msra.mxu0 %v163
  %266 = vmatprep.subr.mxu0 0.0
  %267 = vmatpush1.msra.mxu0 %v162
  %268 = vmatprep.subr.mxu0 0.0
  %269 = vmatpush1.msra.mxu0 %v161
  %270 = vmatprep.subr.mxu0 0.0
  %271 = vmatpush1.msra.mxu0 %v160
  %272 = vmatprep.subr.mxu0 0.0
  %273 = vmatpush1.msra.mxu0 %v159
  %274 = vmatprep.subr.mxu0 0.0
  %275 = vmatpush1.msra.mxu0 %v158
  %276 = vmatprep.subr.mxu0 0.0
  %277 = vmatpush1.msra.mxu0 %v157
  %278 = vmatprep.subr.mxu0 0.0
  %279 = vmatpush1.msra.mxu0 %v156
  %280 = vmatprep.subr.mxu0 0.0
  %281 = vmatpush1.msra.mxu0 %v155
  %282 = vmatprep.subr.mxu0 0.0
  %283 = vmatpush1.msra.mxu0 %v154
  %284 = vmatprep.subr.mxu0 0.0
  %285 = vmatpush2.msra.mxu0 %v185
  %286 = vmatprep.subr.mxu0 0.0
  %287 = vmatpush2.msra.mxu0 %v184
  %288 = vmatprep.subr.mxu0 0.0
  %289 = vmatpush2.msra.mxu0 %v183
  %290 = vmatprep.subr.mxu0 0.0
  %291 = vmatpush2.msra.mxu0 %v182
  %292 = vmatprep.subr.mxu0 0.0
  %293 = vmatpush2.msra.mxu0 %v181
  %294 = vmatprep.subr.mxu0 0.0
  %295 = vmatpush2.msra.mxu0 %v180
  %296 = vmatprep.subr.mxu0 0.0
  %297 = vmatpush2.msra.mxu0 %v179
  %298 = vmatprep.subr.mxu0 0.0
  %299 = vmatpush2.msra.mxu0 %v178
  %300 = vmatprep.subr.mxu0 0.0
  %301 = vmatpush2.msra.mxu0 %v177
  %302 = vmatprep.subr.mxu0 0.0
  %303 = vmatpush2.msra.mxu0 %v176
  %304 = vmatprep.subr.mxu0 0.0
  %305 = vmatpush2.msra.mxu0 %v175
  %306 = vmatprep.subr.mxu0 0.0
  %307 = vmatpush2.msra.mxu0 %v174
  %308 = vmatprep.subr.mxu0 0.0
  %309 = vmatpush2.msra.mxu0 %v173
  %310 = vmatprep.subr.mxu0 0.0
  %311 = vmatpush2.msra.mxu0 %v172
  %312 = vmatprep.subr.mxu0 0.0
  %313 = vmatpush2.msra.mxu0 %v171
  %314 = vmatprep.subr.mxu0 0.0
  %315 = vmatpush2.msra.mxu0 %v170
  %316 = vmatprep.mubr.f32.mxu0 %v143
  %317 = vmatmul.mubr.f32.gmra.mxu0 %v142
  %v318 = vpop.f32.mrf.mxu0
  %v319 = vadd.f32 %v250, %v318
  %v320 = vpop.f32.mrf.mxu0
  %321 = vmatprep.mubr.f32.mxu0 %v149
  %322 = vmatmul.mubr.f32.gmra.mxu0 %v148
  %v323 = vpop.f32.mrf.mxu0
  %v324 = vadd.f32 %v251, %v323
  %v325 = vpop.f32.mrf.mxu0
  %326 = vdwg.mxu0
  %327 = vmatprep.subr.mxu0 0.0
  %328 = vmatpush1.msra.mxu0 %v201
  %329 = vmatprep.subr.mxu0 0.0
  %330 = vmatpush1.msra.mxu0 %v200
  %331 = vmatprep.subr.mxu0 0.0
  %332 = vmatpush1.msra.mxu0 %v199
  %333 = vmatprep.subr.mxu0 0.0
  %334 = vmatpush1.msra.mxu0 %v198
  %335 = vmatprep.subr.mxu0 0.0
  %336 = vmatpush1.msra.mxu0 %v197
  %337 = vmatprep.subr.mxu0 0.0
  %338 = vmatpush1.msra.mxu0 %v196
  %339 = vmatprep.subr.mxu0 0.0
  %340 = vmatpush1.msra.mxu0 %v195
  %341 = vmatprep.subr.mxu0 0.0
  %342 = vmatpush1.msra.mxu0 %v194
  %343 = vmatprep.subr.mxu0 0.0
  %344 = vmatpush1.msra.mxu0 %v193
  %345 = vmatprep.subr.mxu0 0.0
  %346 = vmatpush1.msra.mxu0 %v192
  %347 = vmatprep.subr.mxu0 0.0
  %348 = vmatpush1.msra.mxu0 %v191
  %349 = vmatprep.subr.mxu0 0.0
  %350 = vmatpush1.msra.mxu0 %v190
  %351 = vmatprep.subr.mxu0 0.0
  %352 = vmatpush1.msra.mxu0 %v189
  %353 = vmatprep.subr.mxu0 0.0
  %354 = vmatpush1.msra.mxu0 %v188
  %355 = vmatprep.subr.mxu0 0.0
  %356 = vmatpush1.msra.mxu0 %v187
  %357 = vmatprep.subr.mxu0 0.0
  %358 = vmatpush1.msra.mxu0 %v186
  %359 = vmatprep.subr.mxu0 0.0
  %360 = vmatpush2.msra.mxu0 %v217
  %361 = vmatprep.subr.mxu0 0.0
  %362 = vmatpush2.msra.mxu0 %v216
  %363 = vmatprep.subr.mxu0 0.0
  %364 = vmatpush2.msra.mxu0 %v215
  %365 = vmatprep.subr.mxu0 0.0
  %366 = vmatpush2.msra.mxu0 %v214
  %367 = vmatprep.subr.mxu0 0.0
  %368 = vmatpush2.msra.mxu0 %v213
  %369 = vmatprep.subr.mxu0 0.0
  %370 = vmatpush2.msra.mxu0 %v212
  %371 = vmatprep.subr.mxu0 0.0
  %372 = vmatpush2.msra.mxu0 %v211
  %373 = vmatprep.subr.mxu0 0.0
  %374 = vmatpush2.msra.mxu0 %v210
  %375 = vmatprep.subr.mxu0 0.0
  %376 = vmatpush2.msra.mxu0 %v209
  %377 = vmatprep.subr.mxu0 0.0
  %378 = vmatpush2.msra.mxu0 %v208
  %379 = vmatprep.subr.mxu0 0.0
  %380 = vmatpush2.msra.mxu0 %v207
  %381 = vmatprep.subr.mxu0 0.0
  %382 = vmatpush2.msra.mxu0 %v206
  %383 = vmatprep.subr.mxu0 0.0
  %384 = vmatpush2.msra.mxu0 %v205
  %385 = vmatprep.subr.mxu0 0.0
  %386 = vmatpush2.msra.mxu0 %v204
  %387 = vmatprep.subr.mxu0 0.0
  %388 = vmatpush2.msra.mxu0 %v203
  %389 = vmatprep.subr.mxu0 0.0
  %390 = vmatpush2.msra.mxu0 %v202
  %391 = vmatprep.mubr.f32.mxu0 %v145
  %392 = vmatmul.mubr.f32.gmra.mxu0 %v144
  %v393 = vpop.f32.mrf.mxu0
  %v394 = vadd.f32 %v319, %v393
  %v395 = vpop.f32.mrf.mxu0
  %396 = vmatprep.mubr.f32.mxu0 %v151
  %397 = vmatmul.mubr.f32.gmra.mxu0 %v150
  %v398 = vpop.f32.mrf.mxu0
  %v399 = vadd.f32 %v324, %v398
  %v400 = vpop.f32.mrf.mxu0
  %401 = vdwg.mxu0
  %402 = vmatprep.subr.mxu0 0.0
  %403 = vmatpush1.msra.mxu0 %v233
  %404 = vmatprep.subr.mxu0 0.0
  %405 = vmatpush1.msra.mxu0 %v232
  %406 = vmatprep.subr.mxu0 0.0
  %407 = vmatpush1.msra.mxu0 %v231
  %408 = vmatprep.subr.mxu0 0.0
  %409 = vmatpush1.msra.mxu0 %v230
  %410 = vmatprep.subr.mxu0 0.0
  %411 = vmatpush1.msra.mxu0 %v229
  %412 = vmatprep.subr.mxu0 0.0
  %413 = vmatpush1.msra.mxu0 %v228
  %414 = vmatprep.subr.mxu0 0.0
  %415 = vmatpush1.msra.mxu0 %v227
  %416 = vmatprep.subr.mxu0 0.0
  %417 = vmatpush1.msra.mxu0 %v226
  %418 = vmatprep.subr.mxu0 0.0
  %419 = vmatpush1.msra.mxu0 %v225
  %420 = vmatprep.subr.mxu0 0.0
  %421 = vmatpush1.msra.mxu0 %v224
  %422 = vmatprep.subr.mxu0 0.0
  %423 = vmatpush1.msra.mxu0 %v223
  %424 = vmatprep.subr.mxu0 0.0
  %425 = vmatpush1.msra.mxu0 %v222
  %426 = vmatprep.subr.mxu0 0.0
  %427 = vmatpush1.msra.mxu0 %v221
  %428 = vmatprep.subr.mxu0 0.0
  %429 = vmatpush1.msra.mxu0 %v220
  %430 = vmatprep.subr.mxu0 0.0
  %431 = vmatpush1.msra.mxu0 %v219
  %432 = vmatprep.subr.mxu0 0.0
  %433 = vmatpush1.msra.mxu0 %v218
  %434 = vmatprep.subr.mxu0 0.0
  %435 = vmatpush2.msra.mxu0 %v249
  %436 = vmatprep.subr.mxu0 0.0
  %437 = vmatpush2.msra.mxu0 %v248
  %438 = vmatprep.subr.mxu0 0.0
  %439 = vmatpush2.msra.mxu0 %v247
  %440 = vmatprep.subr.mxu0 0.0
  %441 = vmatpush2.msra.mxu0 %v246
  %442 = vmatprep.subr.mxu0 0.0
  %443 = vmatpush2.msra.mxu0 %v245
  %444 = vmatprep.subr.mxu0 0.0
  %445 = vmatpush2.msra.mxu0 %v244
  %446 = vmatprep.subr.mxu0 0.0
  %447 = vmatpush2.msra.mxu0 %v243
  %448 = vmatprep.subr.mxu0 0.0
  %449 = vmatpush2.msra.mxu0 %v242
  %450 = vmatprep.subr.mxu0 0.0
  %451 = vmatpush2.msra.mxu0 %v241
  %452 = vmatprep.subr.mxu0 0.0
  %453 = vmatpush2.msra.mxu0 %v240
  %454 = vmatprep.subr.mxu0 0.0
  %455 = vmatpush2.msra.mxu0 %v239
  %456 = vmatprep.subr.mxu0 0.0
  %457 = vmatpush2.msra.mxu0 %v238
  %458 = vmatprep.subr.mxu0 0.0
  %459 = vmatpush2.msra.mxu0 %v237
  %460 = vmatprep.subr.mxu0 0.0
  %461 = vmatpush2.msra.mxu0 %v236
  %462 = vmatprep.subr.mxu0 0.0
  %463 = vmatpush2.msra.mxu0 %v235
  %464 = vmatprep.subr.mxu0 0.0
  %465 = vmatpush2.msra.mxu0 %v234
  %466 = vmatprep.mubr.f32.mxu0 %v147
  %467 = vmatmul.mubr.f32.gmra.mxu0 %v146
  %v468 = vpop.f32.mrf.mxu0
  %v469 = vadd.f32 %v394, %v468
  %v470 = vpop.f32.mrf.mxu0
  %471 = vmatprep.mubr.f32.mxu0 %v153
  %472 = vmatmul.mubr.f32.gmra.mxu0 %v152
  %v473 = vpop.f32.mrf.mxu0
  %v474 = vadd.f32 %v399, %v473
  %v475 = vpop.f32.mrf.mxu0
  %476 = vdwg.mxu0
  %v477 = vld [vmem:[%s7] sm:$0x1]
  %v478 = vld [vmem:[%s9] sm:$0x1]
  %vm479 = vcmask 261120
  %v480 = vsel %vm479, %v469, 0.0
  %481 = vadd.xlane.f32.xlu0 %v480
  %v482 = vpop.xlane.xlu0 %481
  %vm483 = vcmask 254976
  %v484 = vsel %vm483, %v474, 0.0
  %485 = vadd.xlane.f32.xlu0 %v484
  %v486 = vpop.xlane.xlu0 %485
  %v487 = vrcp.pop 32.0
  %v488 = vmul.f32 %v482, %v487
  %v489 = vmul.f32 %v486, %v487
  %v490 = vsub.f32 %v469, %v488
  %v491 = vsub.f32 %v474, %v489
  %v492 = vmul.f32 %v490, %v490
  %v493 = vmul.f32 %v491, %v491
  %v494 = vsel %vm479, %v492, 0.0
  %495 = vadd.xlane.f32.xlu0 %v494
  %v496 = vpop.xlane.xlu0 %495
  %v497 = vsel %vm483, %v493, 0.0
  %498 = vadd.xlane.f32.xlu0 %v497
  %v499 = vpop.xlane.xlu0 %498
  %v500 = vmul.f32 %v496, %v487
  %v501 = vmul.f32 %v499, %v487
  %v502 = vadd.f32 %v500, 1e-05
  %v503 = vadd.f32 %v501, 1e-05
  %v504 = vrsqrt.pop %v502
  %v505 = vrsqrt.pop %v503
  %v506 = vmul.f32 %v490, %v504
  %v507 = vmul.f32 %v491, %v505
  %v509 = vlaneseq
  %v510 = vshrl.u32 %v509, 7
  %v511 = vsub.s32 0, %v510
  %v512 = vrot.slane %v477, %v511
  %v514 = vmul.f32 %v506, %v512
  %v515 = vmul.f32 %v507, %v512
  %v517 = vlaneseq
  %v518 = vshrl.u32 %v517, 7
  %v519 = vsub.s32 0, %v518
  %v520 = vrot.slane %v478, %v519
  %v522 = vadd.f32 %v514, %v520
  %v523 = vadd.f32 %v515, %v520
  %v524 = vld [vmem:[%s11] sm:$0xff]
  %v525 = vld [vmem:[%s11 + $0x8] sm:$0x3]
  %v526 = vld [vmem:[%s13] sm:$0xff]
  %v527 = vld [vmem:[%s13 + $0x8] sm:$0xff]
  %v528 = vld [vmem:[%s15] sm:$0x1]
  %v530 = vlaneseq
  %v531 = vshrl.u32 %v530, 7
  %v532 = vsub.s32 0, %v531
  %v533 = vrot.slane %v528, %v532
  %vm535 = vcmask 130048
  %v537 = vsel %vm535, %v524, 0
  %v540 = vsel %vm535, %v525, 0
  %542 = vmatprep.subr.mxu0 0.0
  %543 = vmatpush1.msra.mxu0 0.0
  %544 = vmatprep.subr.mxu0 0.0
  %545 = vmatpush1.msra.mxu0 0.0
  %546 = vmatprep.subr.mxu0 0.0
  %547 = vmatpush1.msra.mxu0 0.0
  %548 = vmatprep.subr.mxu0 0.0
  %549 = vmatpush1.msra.mxu0 0.0
  %550 = vmatprep.subr.mxu0 0.0
  %551 = vmatpush1.msra.mxu0 0.0
  %552 = vmatprep.subr.mxu0 0.0
  %553 = vmatpush1.msra.mxu0 0.0
  %554 = vmatprep.subr.mxu0 0.0
  %555 = vmatpush1.msra.mxu0 0.0
  %556 = vmatprep.subr.mxu0 0.0
  %557 = vmatpush1.msra.mxu0 0.0
  %558 = vmatprep.subr.mxu0 0.0
  %559 = vmatpush1.msra.mxu0 0.0
  %560 = vmatprep.subr.mxu0 0.0
  %561 = vmatpush1.msra.mxu0 0.0
  %562 = vmatprep.subr.mxu0 0.0
  %563 = vmatpush1.msra.mxu0 0.0
  %564 = vmatprep.subr.mxu0 0.0
  %565 = vmatpush1.msra.mxu0 0.0
  %566 = vmatprep.subr.mxu0 0.0
  %567 = vmatpush1.msra.mxu0 0.0
  %568 = vmatprep.subr.mxu0 0.0
  %569 = vmatpush1.msra.mxu0 0.0
  %570 = vmatprep.subr.mxu0 0.0
  %571 = vmatpush1.msra.mxu0 %v527
  %572 = vmatprep.subr.mxu0 0.0
  %573 = vmatpush1.msra.mxu0 %v526
  %574 = vmatprep.subr.mxu0 0.0
  %575 = vmatpush2.msra.mxu0 0.0
  %576 = vmatprep.subr.mxu0 0.0
  %577 = vmatpush2.msra.mxu0 0.0
  %578 = vmatprep.subr.mxu0 0.0
  %579 = vmatpush2.msra.mxu0 0.0
  %580 = vmatprep.subr.mxu0 0.0
  %581 = vmatpush2.msra.mxu0 0.0
  %582 = vmatprep.subr.mxu0 0.0
  %583 = vmatpush2.msra.mxu0 0.0
  %584 = vmatprep.subr.mxu0 0.0
  %585 = vmatpush2.msra.mxu0 0.0
  %586 = vmatprep.subr.mxu0 0.0
  %587 = vmatpush2.msra.mxu0 0.0
  %588 = vmatprep.subr.mxu0 0.0
  %589 = vmatpush2.msra.mxu0 0.0
  %590 = vmatprep.subr.mxu0 0.0
  %591 = vmatpush2.msra.mxu0 0.0
  %592 = vmatprep.subr.mxu0 0.0
  %593 = vmatpush2.msra.mxu0 0.0
  %594 = vmatprep.subr.mxu0 0.0
  %595 = vmatpush2.msra.mxu0 0.0
  %596 = vmatprep.subr.mxu0 0.0
  %597 = vmatpush2.msra.mxu0 0.0
  %598 = vmatprep.subr.mxu0 0.0
  %599 = vmatpush2.msra.mxu0 0.0
  %600 = vmatprep.subr.mxu0 0.0
  %601 = vmatpush2.msra.mxu0 0.0
  %602 = vmatprep.subr.mxu0 0.0
  %603 = vmatpush2.msra.mxu0 0.0
  %604 = vmatprep.subr.mxu0 0.0
  %605 = vmatpush2.msra.mxu0 0.0
  %606 = vmatprep.mubr.f32.mxu0 0.0
  %607 = vmatmul.mubr.f32.gmra.mxu0 %v537
  %v608 = vpop.f32.mrf.mxu0
  %v609 = vadd.f32 %v533, %v608
  %v610 = vpop.f32.mrf.mxu0
  %611 = vmatprep.mubr.f32.mxu0 0.0
  %612 = vmatmul.mubr.f32.gmra.mxu0 %v540
  %v613 = vpop.f32.mrf.mxu0
  %v614 = vadd.f32 %v533, %v613
  %v615 = vpop.f32.mrf.mxu0
  %616 = vdwg.mxu0
  %v617 = vld [vmem:[%s17] sm:$0xff]
  %v618 = vld [vmem:[%s17 + $0x8] sm:$0x3]
  %v619 = vld [vmem:[%s19] sm:$0xff]
  %v620 = vld [vmem:[%s19 + $0x8] sm:$0xff]
  %v621 = vld [vmem:[%s19 + $0x10] sm:$0xff]
  %v622 = vld [vmem:[%s19 + $0x18] sm:$0xff]
  %v623 = vld [vmem:[%s19 + $0x20] sm:$0xff]
  %v624 = vld [vmem:[%s21] sm:$0xff]
  %v625 = vld [vmem:[%s21 + $0x8] sm:$0xff]
  %v626 = vld [vmem:[%s21 + $0x10] sm:$0xff]
  %v627 = vld [vmem:[%s21 + $0x18] sm:$0xff]
  %v628 = vld [vmem:[%s21 + $0x20] sm:$0xff]
  %v629 = vld [vmem:[%s23] sm:$0xff]
  %v630 = vld [vmem:[%s23 + $0x8] sm:$0x3]
  %v631 = vld [vmem:[%s25] sm:$0xff]
  %v632 = vld [vmem:[%s25 + $0x8] sm:$0xff]
  %v633 = vld [vmem:[%s25 + $0x10] sm:$0xff]
  %v634 = vld [vmem:[%s25 + $0x18] sm:$0xff]
  %v635 = vld [vmem:[%s25 + $0x20] sm:$0xff]
  %v636 = vld [vmem:[%s31] sm:$0x1]
  %v637 = vld [vmem:[%s33] sm:$0x1]
  %v638 = vsel %vm479, %v522, 0.0
  %639 = vadd.xlane.f32.xlu0 %v638
  %v640 = vpop.xlane.xlu0 %639
  %v641 = vsel %vm483, %v523, 0.0
  %642 = vadd.xlane.f32.xlu0 %v641
  %v643 = vpop.xlane.xlu0 %642
  %v644 = vmul.f32 %v640, %v487
  %v645 = vmul.f32 %v643, %v487
  %v646 = vsub.f32 %v522, %v644
  %v647 = vsub.f32 %v523, %v645
  %v648 = vmul.f32 %v646, %v646
  %v649 = vmul.f32 %v647, %v647
  %v650 = vsel %vm479, %v648, 0.0
  %651 = vadd.xlane.f32.xlu0 %v650
  %v652 = vpop.xlane.xlu0 %651
  %v653 = vsel %vm483, %v649, 0.0
  %654 = vadd.xlane.f32.xlu0 %v653
  %v655 = vpop.xlane.xlu0 %654
  %v656 = vmul.f32 %v652, %v487
  %v657 = vmul.f32 %v655, %v487
  %v658 = vadd.f32 %v656, 1e-05
  %v659 = vadd.f32 %v657, 1e-05
  %v660 = vrsqrt.pop %v658
  %v661 = vrsqrt.pop %v659
  %v662 = vmul.f32 %v646, %v660
  %v663 = vmul.f32 %v647, %v661
  %v665 = vlaneseq
  %v666 = vshrl.u32 %v665, 7
  %v667 = vsub.s32 0, %v666
  %v668 = vrot.slane %v636, %v667
  %v670 = vmul.f32 %v662, %v668
  %v671 = vmul.f32 %v663, %v668
  %v673 = vlaneseq
  %v674 = vshrl.u32 %v673, 7
  %v675 = vsub.s32 0, %v674
  %v676 = vrot.slane %v637, %v675
  %v678 = vadd.f32 %v670, %v676
  %v679 = vadd.f32 %v671, %v676
  %vm680 = vcmask 80896
  %v682 = vsel %vm680, %v619, 0
  %v685 = vsel %vm680, %v620, 0
  %v688 = vsel %vm680, %v621, 0
  %v691 = vsel %vm680, %v622, 0
  %v694 = vsel %vm680, %v623, 0
  %vm696 = vcmask 1041408
  %v698 = vsel %vm696, %v679, 0
  %700 = vmatprep.subr.mxu0 0.0
  %701 = vmatpush1.msra.mxu0 0.0
  %702 = vmatprep.subr.mxu0 0.0
  %703 = vmatpush1.msra.mxu0 0.0
  %704 = vmatprep.subr.mxu0 0.0
  %705 = vmatpush1.msra.mxu0 0.0
  %706 = vmatprep.subr.mxu0 0.0
  %707 = vmatpush1.msra.mxu0 0.0
  %708 = vmatprep.subr.mxu0 0.0
  %709 = vmatpush1.msra.mxu0 0.0
  %710 = vmatprep.subr.mxu0 0.0
  %711 = vmatpush1.msra.mxu0 0.0
  %712 = vmatprep.subr.mxu0 0.0
  %713 = vmatpush1.msra.mxu0 0.0
  %714 = vmatprep.subr.mxu0 0.0
  %715 = vmatpush1.msra.mxu0 0.0
  %716 = vmatprep.subr.mxu0 0.0
  %717 = vmatpush1.msra.mxu0 0.0
  %718 = vmatprep.subr.mxu0 0.0
  %719 = vmatpush1.msra.mxu0 0.0
  %720 = vmatprep.subr.mxu0 0.0
  %721 = vmatpush1.msra.mxu0 0.0
  %722 = vmatprep.subr.mxu0 0.0
  %723 = vmatpush1.msra.mxu0 0.0
  %724 = vmatprep.subr.mxu0 0.0
  %725 = vmatpush1.msra.mxu0 0.0
  %726 = vmatprep.subr.mxu0 0.0
  %727 = vmatpush1.msra.mxu0 0.0
  %728 = vmatprep.subr.mxu0 0.0
  %729 = vmatpush1.msra.mxu0 %v698
  %730 = vmatprep.subr.mxu0 0.0
  %731 = vmatpush1.msra.mxu0 %v678
  %732 = vmatprep.subr.mxu0 0.0
  %733 = vmatpush2.msra.mxu0 0.0
  %734 = vmatprep.subr.mxu0 0.0
  %735 = vmatpush2.msra.mxu0 0.0
  %736 = vmatprep.subr.mxu0 0.0
  %737 = vmatpush2.msra.mxu0 0.0
  %738 = vmatprep.subr.mxu0 0.0
  %739 = vmatpush2.msra.mxu0 0.0
  %740 = vmatprep.subr.mxu0 0.0
  %741 = vmatpush2.msra.mxu0 0.0
  %742 = vmatprep.subr.mxu0 0.0
  %743 = vmatpush2.msra.mxu0 0.0
  %744 = vmatprep.subr.mxu0 0.0
  %745 = vmatpush2.msra.mxu0 0.0
  %746 = vmatprep.subr.mxu0 0.0
  %747 = vmatpush2.msra.mxu0 0.0
  %748 = vmatprep.subr.mxu0 0.0
  %749 = vmatpush2.msra.mxu0 0.0
  %750 = vmatprep.subr.mxu0 0.0
  %751 = vmatpush2.msra.mxu0 0.0
  %752 = vmatprep.subr.mxu0 0.0
  %753 = vmatpush2.msra.mxu0 0.0
  %754 = vmatprep.subr.mxu0 0.0
  %755 = vmatpush2.msra.mxu0 0.0
  %756 = vmatprep.subr.mxu0 0.0
  %757 = vmatpush2.msra.mxu0 0.0
  %758 = vmatprep.subr.mxu0 0.0
  %759 = vmatpush2.msra.mxu0 0.0
  %760 = vmatprep.subr.mxu0 0.0
  %761 = vmatpush2.msra.mxu0 0.0
  %762 = vmatprep.subr.mxu0 0.0
  %763 = vmatpush2.msra.mxu0 0.0
  %764 = vmatprep.mubr.f32.mxu0 0.0
  %765 = vmatmul.mubr.f32.gmra.mxu0 %v682
  %v766 = vpop.f32.mrf.mxu0
  %v767 = vadd.f32 0.0, %v766
  %v768 = vpop.f32.mrf.mxu0
  %769 = vmatprep.mubr.f32.mxu0 0.0
  %770 = vmatmul.mubr.f32.gmra.mxu0 %v685
  %v771 = vpop.f32.mrf.mxu0
  %v772 = vadd.f32 0.0, %v771
  %v773 = vpop.f32.mrf.mxu0
  %774 = vmatprep.mubr.f32.mxu0 0.0
  %775 = vmatmul.mubr.f32.gmra.mxu0 %v688
  %v776 = vpop.f32.mrf.mxu0
  %v777 = vadd.f32 0.0, %v776
  %v778 = vpop.f32.mrf.mxu0
  %779 = vmatprep.mubr.f32.mxu0 0.0
  %780 = vmatmul.mubr.f32.gmra.mxu0 %v691
  %v781 = vpop.f32.mrf.mxu0
  %v782 = vadd.f32 0.0, %v781
  %v783 = vpop.f32.mrf.mxu0
  %784 = vmatprep.mubr.f32.mxu0 0.0
  %785 = vmatmul.mubr.f32.gmra.mxu0 %v694
  %v786 = vpop.f32.mrf.mxu0
  %v787 = vadd.f32 0.0, %v786
  %v788 = vpop.f32.mrf.mxu0
  %789 = vdwg.mxu0
  %v790 = vld [vmem:[%s35] sm:$0xff]
  %v791 = vld [vmem:[%s35 + $0x8] sm:$0xff]
  %v792 = vld [vmem:[%s35 + $0x10] sm:$0xff]
  %v793 = vld [vmem:[%s35 + $0x18] sm:$0xff]
  %v794 = vld [vmem:[%s37] sm:$0x1]
  %v796 = vlaneseq
  %v797 = vshrl.u32 %v796, 7
  %v798 = vsub.s32 0, %v797
  %v799 = vrot.slane %v794, %v798
  %v802 = vsel %vm479, %v767, 0
  %v805 = vsel %vm479, %v772, 0
  %v808 = vsel %vm479, %v777, 0
  %v811 = vsel %vm479, %v782, 0
  %v814 = vsel %vm479, %v787, 0
  %816 = vmatprep.subr.mxu0 0.0
  %817 = vmatpush1.msra.mxu0 0.0
  %818 = vmatprep.subr.mxu0 0.0
  %819 = vmatpush1.msra.mxu0 0.0
  %820 = vmatprep.subr.mxu0 0.0
  %821 = vmatpush1.msra.mxu0 0.0
  %822 = vmatprep.subr.mxu0 0.0
  %823 = vmatpush1.msra.mxu0 0.0
  %824 = vmatprep.subr.mxu0 0.0
  %825 = vmatpush1.msra.mxu0 0.0
  %826 = vmatprep.subr.mxu0 0.0
  %827 = vmatpush1.msra.mxu0 0.0
  %828 = vmatprep.subr.mxu0 0.0
  %829 = vmatpush1.msra.mxu0 0.0
  %830 = vmatprep.subr.mxu0 0.0
  %831 = vmatpush1.msra.mxu0 0.0
  %832 = vmatprep.subr.mxu0 0.0
  %833 = vmatpush1.msra.mxu0 0.0
  %834 = vmatprep.subr.mxu0 0.0
  %835 = vmatpush1.msra.mxu0 0.0
  %836 = vmatprep.subr.mxu0 0.0
  %837 = vmatpush1.msra.mxu0 0.0
  %838 = vmatprep.subr.mxu0 0.0
  %839 = vmatpush1.msra.mxu0 0.0
  %840 = vmatprep.subr.mxu0 0.0
  %841 = vmatpush1.msra.mxu0 %v793
  %842 = vmatprep.subr.mxu0 0.0
  %843 = vmatpush1.msra.mxu0 %v792
  %844 = vmatprep.subr.mxu0 0.0
  %845 = vmatpush1.msra.mxu0 %v791
  %846 = vmatprep.subr.mxu0 0.0
  %847 = vmatpush1.msra.mxu0 %v790
  %848 = vmatprep.subr.mxu0 0.0
  %849 = vmatpush2.msra.mxu0 0.0
  %850 = vmatprep.subr.mxu0 0.0
  %851 = vmatpush2.msra.mxu0 0.0
  %852 = vmatprep.subr.mxu0 0.0
  %853 = vmatpush2.msra.mxu0 0.0
  %854 = vmatprep.subr.mxu0 0.0
  %855 = vmatpush2.msra.mxu0 0.0
  %856 = vmatprep.subr.mxu0 0.0
  %857 = vmatpush2.msra.mxu0 0.0
  %858 = vmatprep.subr.mxu0 0.0
  %859 = vmatpush2.msra.mxu0 0.0
  %860 = vmatprep.subr.mxu0 0.0
  %861 = vmatpush2.msra.mxu0 0.0
  %862 = vmatprep.subr.mxu0 0.0
  %863 = vmatpush2.msra.mxu0 0.0
  %864 = vmatprep.subr.mxu0 0.0
  %865 = vmatpush2.msra.mxu0 0.0
  %866 = vmatprep.subr.mxu0 0.0
  %867 = vmatpush2.msra.mxu0 0.0
  %868 = vmatprep.subr.mxu0 0.0
  %869 = vmatpush2.msra.mxu0 0.0
  %870 = vmatprep.subr.mxu0 0.0
  %871 = vmatpush2.msra.mxu0 0.0
  %872 = vmatprep.subr.mxu0 0.0
  %873 = vmatpush2.msra.mxu0 0.0
  %874 = vmatprep.subr.mxu0 0.0
  %875 = vmatpush2.msra.mxu0 0.0
  %876 = vmatprep.subr.mxu0 0.0
  %877 = vmatpush2.msra.mxu0 0.0
  %878 = vmatprep.subr.mxu0 0.0
  %879 = vmatpush2.msra.mxu0 0.0
  %880 = vmatprep.mubr.f32.mxu0 0.0
  %881 = vmatmul.mubr.f32.gmra.mxu0 %v802
  %v882 = vpop.f32.mrf.mxu0
  %v883 = vadd.f32 %v799, %v882
  %v884 = vpop.f32.mrf.mxu0
  %885 = vmatprep.mubr.f32.mxu0 0.0
  %886 = vmatmul.mubr.f32.gmra.mxu0 %v805
  %v887 = vpop.f32.mrf.mxu0
  %v888 = vadd.f32 %v799, %v887
  %v889 = vpop.f32.mrf.mxu0
  %890 = vmatprep.mubr.f32.mxu0 0.0
  %891 = vmatmul.mubr.f32.gmra.mxu0 %v808
  %v892 = vpop.f32.mrf.mxu0
  %v893 = vadd.f32 %v799, %v892
  %v894 = vpop.f32.mrf.mxu0
  %895 = vmatprep.mubr.f32.mxu0 0.0
  %896 = vmatmul.mubr.f32.gmra.mxu0 %v811
  %v897 = vpop.f32.mrf.mxu0
  %v898 = vadd.f32 %v799, %v897
  %v899 = vpop.f32.mrf.mxu0
  %900 = vmatprep.mubr.f32.mxu0 0.0
  %901 = vmatmul.mubr.f32.gmra.mxu0 %v814
  %v902 = vpop.f32.mrf.mxu0
  %v903 = vadd.f32 %v799, %v902
  %v904 = vpop.f32.mrf.mxu0
  %905 = vdwg.mxu0
  %v906 = vmul.f32 %v883, %v624
  %v907 = vmul.f32 %v888, %v625
  %v908 = vmul.f32 %v893, %v626
  %v909 = vmul.f32 %v898, %v627
  %v910 = vmul.f32 %v903, %v628
  %v911 = vld [vmem:[%s39] sm:$0xff]
  %v912 = vld [vmem:[%s39 + $0x8] sm:$0xff]
  %v913 = vld [vmem:[%s39 + $0x10] sm:$0xff]
  %v914 = vld [vmem:[%s39 + $0x18] sm:$0xff]
  %v915 = vld [vmem:[%s41] sm:$0x1]
  %v917 = vlaneseq
  %v918 = vshrl.u32 %v917, 7
  %v919 = vsub.s32 0, %v918
  %v920 = vrot.slane %v915, %v919
  %v923 = vsel %vm479, %v678, 0
  %v925 = vsel %vm479, %v679, 0
  %927 = vmatprep.subr.mxu0 0.0
  %928 = vmatpush1.msra.mxu0 0.0
  %929 = vmatprep.subr.mxu0 0.0
  %930 = vmatpush1.msra.mxu0 0.0
  %931 = vmatprep.subr.mxu0 0.0
  %932 = vmatpush1.msra.mxu0 0.0
  %933 = vmatprep.subr.mxu0 0.0
  %934 = vmatpush1.msra.mxu0 0.0
  %935 = vmatprep.subr.mxu0 0.0
  %936 = vmatpush1.msra.mxu0 0.0
  %937 = vmatprep.subr.mxu0 0.0
  %938 = vmatpush1.msra.mxu0 0.0
  %939 = vmatprep.subr.mxu0 0.0
  %940 = vmatpush1.msra.mxu0 0.0
  %941 = vmatprep.subr.mxu0 0.0
  %942 = vmatpush1.msra.mxu0 0.0
  %943 = vmatprep.subr.mxu0 0.0
  %944 = vmatpush1.msra.mxu0 0.0
  %945 = vmatprep.subr.mxu0 0.0
  %946 = vmatpush1.msra.mxu0 0.0
  %947 = vmatprep.subr.mxu0 0.0
  %948 = vmatpush1.msra.mxu0 0.0
  %949 = vmatprep.subr.mxu0 0.0
  %950 = vmatpush1.msra.mxu0 0.0
  %951 = vmatprep.subr.mxu0 0.0
  %952 = vmatpush1.msra.mxu0 %v914
  %953 = vmatprep.subr.mxu0 0.0
  %954 = vmatpush1.msra.mxu0 %v913
  %955 = vmatprep.subr.mxu0 0.0
  %956 = vmatpush1.msra.mxu0 %v912
  %957 = vmatprep.subr.mxu0 0.0
  %958 = vmatpush1.msra.mxu0 %v911
  %959 = vmatprep.subr.mxu0 0.0
  %960 = vmatpush2.msra.mxu0 0.0
  %961 = vmatprep.subr.mxu0 0.0
  %962 = vmatpush2.msra.mxu0 0.0
  %963 = vmatprep.subr.mxu0 0.0
  %964 = vmatpush2.msra.mxu0 0.0
  %965 = vmatprep.subr.mxu0 0.0
  %966 = vmatpush2.msra.mxu0 0.0
  %967 = vmatprep.subr.mxu0 0.0
  %968 = vmatpush2.msra.mxu0 0.0
  %969 = vmatprep.subr.mxu0 0.0
  %970 = vmatpush2.msra.mxu0 0.0
  %971 = vmatprep.subr.mxu0 0.0
  %972 = vmatpush2.msra.mxu0 0.0
  %973 = vmatprep.subr.mxu0 0.0
  %974 = vmatpush2.msra.mxu0 0.0
  %975 = vmatprep.subr.mxu0 0.0
  %976 = vmatpush2.msra.mxu0 0.0
  %977 = vmatprep.subr.mxu0 0.0
  %978 = vmatpush2.msra.mxu0 0.0
  %979 = vmatprep.subr.mxu0 0.0
  %980 = vmatpush2.msra.mxu0 0.0
  %981 = vmatprep.subr.mxu0 0.0
  %982 = vmatpush2.msra.mxu0 0.0
  %983 = vmatprep.subr.mxu0 0.0
  %984 = vmatpush2.msra.mxu0 0.0
  %985 = vmatprep.subr.mxu0 0.0
  %986 = vmatpush2.msra.mxu0 0.0
  %987 = vmatprep.subr.mxu0 0.0
  %988 = vmatpush2.msra.mxu0 0.0
  %989 = vmatprep.subr.mxu0 0.0
  %990 = vmatpush2.msra.mxu0 0.0
  %991 = vmatprep.mubr.f32.mxu0 0.0
  %992 = vmatmul.mubr.f32.gmra.mxu0 %v923
  %v993 = vpop.f32.mrf.mxu0
  %v994 = vadd.f32 %v920, %v993
  %v995 = vpop.f32.mrf.mxu0
  %996 = vmatprep.mubr.f32.mxu0 0.0
  %997 = vmatmul.mubr.f32.gmra.mxu0 %v925
  %v998 = vpop.f32.mrf.mxu0
  %v999 = vadd.f32 %v920, %v998
  %v1000 = vpop.f32.mrf.mxu0
  %1001 = vdwg.mxu0
  %v1002 = vld [vmem:[%s43] sm:$0xff]
  %v1003 = vld [vmem:[%s43 + $0x8] sm:$0xff]
  %v1004 = vld [vmem:[%s43 + $0x10] sm:$0xff]
  %v1005 = vld [vmem:[%s43 + $0x18] sm:$0xff]
  %v1006 = vld [vmem:[%s45] sm:$0x1]
  %v1008 = vlaneseq
  %v1009 = vshrl.u32 %v1008, 7
  %v1010 = vsub.s32 0, %v1009
  %v1011 = vrot.slane %v1006, %v1010
  %1013 = vmatprep.subr.mxu0 0.0
  %1014 = vmatpush1.msra.mxu0 0.0
  %1015 = vmatprep.subr.mxu0 0.0
  %1016 = vmatpush1.msra.mxu0 0.0
  %1017 = vmatprep.subr.mxu0 0.0
  %1018 = vmatpush1.msra.mxu0 0.0
  %1019 = vmatprep.subr.mxu0 0.0
  %1020 = vmatpush1.msra.mxu0 0.0
  %1021 = vmatprep.subr.mxu0 0.0
  %1022 = vmatpush1.msra.mxu0 0.0
  %1023 = vmatprep.subr.mxu0 0.0
  %1024 = vmatpush1.msra.mxu0 0.0
  %1025 = vmatprep.subr.mxu0 0.0
  %1026 = vmatpush1.msra.mxu0 0.0
  %1027 = vmatprep.subr.mxu0 0.0
  %1028 = vmatpush1.msra.mxu0 0.0
  %1029 = vmatprep.subr.mxu0 0.0
  %1030 = vmatpush1.msra.mxu0 0.0
  %1031 = vmatprep.subr.mxu0 0.0
  %1032 = vmatpush1.msra.mxu0 0.0
  %1033 = vmatprep.subr.mxu0 0.0
  %1034 = vmatpush1.msra.mxu0 0.0
  %1035 = vmatprep.subr.mxu0 0.0
  %1036 = vmatpush1.msra.mxu0 0.0
  %1037 = vmatprep.subr.mxu0 0.0
  %1038 = vmatpush1.msra.mxu0 %v1005
  %1039 = vmatprep.subr.mxu0 0.0
  %1040 = vmatpush1.msra.mxu0 %v1004
  %1041 = vmatprep.subr.mxu0 0.0
  %1042 = vmatpush1.msra.mxu0 %v1003
  %1043 = vmatprep.subr.mxu0 0.0
  %1044 = vmatpush1.msra.mxu0 %v1002
  %1045 = vmatprep.subr.mxu0 0.0
  %1046 = vmatpush2.msra.mxu0 0.0
  %1047 = vmatprep.subr.mxu0 0.0
  %1048 = vmatpush2.msra.mxu0 0.0
  %1049 = vmatprep.subr.mxu0 0.0
  %1050 = vmatpush2.msra.mxu0 0.0
  %1051 = vmatprep.subr.mxu0 0.0
  %1052 = vmatpush2.msra.mxu0 0.0
  %1053 = vmatprep.subr.mxu0 0.0
  %1054 = vmatpush2.msra.mxu0 0.0
  %1055 = vmatprep.subr.mxu0 0.0
  %1056 = vmatpush2.msra.mxu0 0.0
  %1057 = vmatprep.subr.mxu0 0.0
  %1058 = vmatpush2.msra.mxu0 0.0
  %1059 = vmatprep.subr.mxu0 0.0
  %1060 = vmatpush2.msra.mxu0 0.0
  %1061 = vmatprep.subr.mxu0 0.0
  %1062 = vmatpush2.msra.mxu0 0.0
  %1063 = vmatprep.subr.mxu0 0.0
  %1064 = vmatpush2.msra.mxu0 0.0
  %1065 = vmatprep.subr.mxu0 0.0
  %1066 = vmatpush2.msra.mxu0 0.0
  %1067 = vmatprep.subr.mxu0 0.0
  %1068 = vmatpush2.msra.mxu0 0.0
  %1069 = vmatprep.subr.mxu0 0.0
  %1070 = vmatpush2.msra.mxu0 0.0
  %1071 = vmatprep.subr.mxu0 0.0
  %1072 = vmatpush2.msra.mxu0 0.0
  %1073 = vmatprep.subr.mxu0 0.0
  %1074 = vmatpush2.msra.mxu0 0.0
  %1075 = vmatprep.subr.mxu0 0.0
  %1076 = vmatpush2.msra.mxu0 0.0
  %1077 = vmatprep.mubr.f32.mxu0 0.0
  %1078 = vmatmul.mubr.f32.gmra.mxu0 %v923
  %v1079 = vpop.f32.mrf.mxu0
  %v1080 = vadd.f32 %v1011, %v1079
  %v1081 = vpop.f32.mrf.mxu0
  %1082 = vmatprep.mubr.f32.mxu0 0.0
  %1083 = vmatmul.mubr.f32.gmra.mxu0 %v925
  %v1084 = vpop.f32.mrf.mxu0
  %v1085 = vadd.f32 %v1011, %v1084
  %v1086 = vpop.f32.mrf.mxu0
  %1087 = vdwg.mxu0
  %v1089 = vsel %vm479, %v906, 0
  %v1092 = vsel %vm479, %v907, 0
  %v1095 = vsel %vm479, %v908, 0
  %v1098 = vsel %vm479, %v909, 0
  %v1101 = vsel %vm479, %v910, 0
  %v1104 = vsel %vm479, %v994, 0
  %v1107 = vsel %vm479, %v999, 0
  %1109 = vmatprep.subr.mxu0 0.0
  %1110 = vmatpush1.xpose.msra.mxu0 0.0
  %1111 = vmatprep.subr.mxu0 0.0
  %1112 = vmatpush1.xpose.msra.mxu0 0.0
  %1113 = vmatprep.subr.mxu0 0.0
  %1114 = vmatpush1.xpose.msra.mxu0 0.0
  %1115 = vmatprep.subr.mxu0 0.0
  %1116 = vmatpush1.xpose.msra.mxu0 0.0
  %1117 = vmatprep.subr.mxu0 0.0
  %1118 = vmatpush1.xpose.msra.mxu0 0.0
  %1119 = vmatprep.subr.mxu0 0.0
  %1120 = vmatpush1.xpose.msra.mxu0 0.0
  %1121 = vmatprep.subr.mxu0 0.0
  %1122 = vmatpush1.xpose.msra.mxu0 0.0
  %1123 = vmatprep.subr.mxu0 0.0
  %1124 = vmatpush1.xpose.msra.mxu0 0.0
  %1125 = vmatprep.subr.mxu0 0.0
  %1126 = vmatpush1.xpose.msra.mxu0 0.0
  %1127 = vmatprep.subr.mxu0 0.0
  %1128 = vmatpush1.xpose.msra.mxu0 0.0
  %1129 = vmatprep.subr.mxu0 0.0
  %1130 = vmatpush1.xpose.msra.mxu0 0.0
  %1131 = vmatprep.subr.mxu0 0.0
  %1132 = vmatpush1.xpose.msra.mxu0 0.0
  %1133 = vmatprep.subr.mxu0 0.0
  %1134 = vmatpush1.xpose.msra.mxu0 0.0
  %1135 = vmatprep.subr.mxu0 0.0
  %1136 = vmatpush1.xpose.msra.mxu0 0.0
  %1137 = vmatprep.subr.mxu0 0.0
  %1138 = vmatpush1.xpose.msra.mxu0 %v1107
  %1139 = vmatprep.subr.mxu0 0.0
  %1140 = vmatpush1.xpose.msra.mxu0 %v1104
  %1141 = vmatprep.subr.mxu0 0.0
  %1142 = vmatpush2.xpose.msra.mxu0 0.0
  %1143 = vmatprep.subr.mxu0 0.0
  %1144 = vmatpush2.xpose.msra.mxu0 0.0
  %1145 = vmatprep.subr.mxu0 0.0
  %1146 = vmatpush2.xpose.msra.mxu0 0.0
  %1147 = vmatprep.subr.mxu0 0.0
  %1148 = vmatpush2.xpose.msra.mxu0 0.0
  %1149 = vmatprep.subr.mxu0 0.0
  %1150 = vmatpush2.xpose.msra.mxu0 0.0
  %1151 = vmatprep.subr.mxu0 0.0
  %1152 = vmatpush2.xpose.msra.mxu0 0.0
  %1153 = vmatprep.subr.mxu0 0.0
  %1154 = vmatpush2.xpose.msra.mxu0 0.0
  %1155 = vmatprep.subr.mxu0 0.0
  %1156 = vmatpush2.xpose.msra.mxu0 0.0
  %1157 = vmatprep.subr.mxu0 0.0
  %1158 = vmatpush2.xpose.msra.mxu0 0.0
  %1159 = vmatprep.subr.mxu0 0.0
  %1160 = vmatpush2.xpose.msra.mxu0 0.0
  %1161 = vmatprep.subr.mxu0 0.0
  %1162 = vmatpush2.xpose.msra.mxu0 0.0
  %1163 = vmatprep.subr.mxu0 0.0
  %1164 = vmatpush2.xpose.msra.mxu0 0.0
  %1165 = vmatprep.subr.mxu0 0.0
  %1166 = vmatpush2.xpose.msra.mxu0 0.0
  %1167 = vmatprep.subr.mxu0 0.0
  %1168 = vmatpush2.xpose.msra.mxu0 0.0
  %1169 = vmatprep.subr.mxu0 0.0
  %1170 = vmatpush2.xpose.msra.mxu0 0.0
  %1171 = vmatprep.subr.mxu0 0.0
  %1172 = vmatpush2.xpose.msra.mxu0 0.0
  %1173 = vmatprep.mubr.f32.mxu0 0.0
  %1174 = vmatmul.mubr.f32.gmra.mxu0 %v1089
  %v1175 = vpop.f32.mrf.mxu0
  %v1176 = vadd.f32 0.0, %v1175
  %v1177 = vpop.f32.mrf.mxu0
  %1178 = vmatprep.mubr.f32.mxu0 0.0
  %1179 = vmatmul.mubr.f32.gmra.mxu0 %v1092
  %v1180 = vpop.f32.mrf.mxu0
  %v1181 = vadd.f32 0.0, %v1180
  %v1182 = vpop.f32.mrf.mxu0
  %1183 = vmatprep.mubr.f32.mxu0 0.0
  %1184 = vmatmul.mubr.f32.gmra.mxu0 %v1095
  %v1185 = vpop.f32.mrf.mxu0
  %v1186 = vadd.f32 0.0, %v1185
  %v1187 = vpop.f32.mrf.mxu0
  %1188 = vmatprep.mubr.f32.mxu0 0.0
  %1189 = vmatmul.mubr.f32.gmra.mxu0 %v1098
  %v1190 = vpop.f32.mrf.mxu0
  %v1191 = vadd.f32 0.0, %v1190
  %v1192 = vpop.f32.mrf.mxu0
  %1193 = vmatprep.mubr.f32.mxu0 0.0
  %1194 = vmatmul.mubr.f32.gmra.mxu0 %v1101
  %v1195 = vpop.f32.mrf.mxu0
  %v1196 = vadd.f32 0.0, %v1195
  %v1197 = vpop.f32.mrf.mxu0
  %1198 = vdwg.mxu0
  %v1199 = vmul.f32 %v1176, 0.35355338
  %v1200 = vmul.f32 %v1181, 0.35355338
  %v1201 = vmul.f32 %v1186, 0.35355338
  %v1202 = vmul.f32 %v1191, 0.35355338
  %v1203 = vmul.f32 %v1196, 0.35355338
  %v1204 = vadd.f32 %v1199, %v631
  %v1205 = vadd.f32 %v1200, %v632
  %v1206 = vadd.f32 %v1201, %v633
  %v1207 = vadd.f32 %v1202, %v634
  %v1208 = vadd.f32 %v1203, %v635
  %v1209 = vsel %vm680, %v1204, -inf
  %1210 = vmax.xlane.f32.xlu0 %v1209
  %v1211 = vpop.xlane.xlu0 %1210
  %v1212 = vsel %vm680, %v1205, -inf
  %1213 = vmax.xlane.f32.xlu0 %v1212
  %v1214 = vpop.xlane.xlu0 %1213
  %v1215 = vsel %vm680, %v1206, -inf
  %1216 = vmax.xlane.f32.xlu0 %v1215
  %v1217 = vpop.xlane.xlu0 %1216
  %v1218 = vsel %vm680, %v1207, -inf
  %1219 = vmax.xlane.f32.xlu0 %v1218
  %v1220 = vpop.xlane.xlu0 %1219
  %v1221 = vsel %vm680, %v1208, -inf
  %1222 = vmax.xlane.f32.xlu0 %v1221
  %v1223 = vpop.xlane.xlu0 %1222
  %v1224 = vsub.f32 %v1204, %v1211
  %v1225 = vsub.f32 %v1205, %v1214
  %v1226 = vsub.f32 %v1206, %v1217
  %v1227 = vsub.f32 %v1207, %v1220
  %v1228 = vsub.f32 %v1208, %v1223
  %v1229 = vmul.f32 %v1224, 1.442695
  %v1230 = vpow.pop %v1229
  %v1231 = vmul.f32 %v1225, 1.442695
  %v1232 = vpow.pop %v1231
  %v1233 = vmul.f32 %v1226, 1.442695
  %v1234 = vpow.pop %v1233
  %v1235 = vmul.f32 %v1227, 1.442695
  %v1236 = vpow.pop %v1235
  %v1237 = vmul.f32 %v1228, 1.442695
  %v1238 = vpow.pop %v1237
  %v1239 = vsel %vm680, %v1230, 0.0
  %1240 = vadd.xlane.f32.xlu0 %v1239
  %v1241 = vpop.xlane.xlu0 %1240
  %v1242 = vsel %vm680, %v1232, 0.0
  %1243 = vadd.xlane.f32.xlu0 %v1242
  %v1244 = vpop.xlane.xlu0 %1243
  %v1245 = vsel %vm680, %v1234, 0.0
  %1246 = vadd.xlane.f32.xlu0 %v1245
  %v1247 = vpop.xlane.xlu0 %1246
  %v1248 = vsel %vm680, %v1236, 0.0
  %1249 = vadd.xlane.f32.xlu0 %v1248
  %v1250 = vpop.xlane.xlu0 %1249
  %v1251 = vsel %vm680, %v1238, 0.0
  %1252 = vadd.xlane.f32.xlu0 %v1251
  %v1253 = vpop.xlane.xlu0 %1252
  %v1254 = vrcp.pop %v1241
  %v1255 = vmul.f32 %v1230, %v1254
  %v1256 = vrcp.pop %v1244
  %v1257 = vmul.f32 %v1232, %v1256
  %v1258 = vrcp.pop %v1247
  %v1259 = vmul.f32 %v1234, %v1258
  %v1260 = vrcp.pop %v1250
  %v1261 = vmul.f32 %v1236, %v1260
  %v1262 = vrcp.pop %v1253
  %v1263 = vmul.f32 %v1238, %v1262
  %v1265 = vsel %vm680, %v1255, 0
  %v1268 = vsel %vm680, %v1257, 0
  %v1271 = vsel %vm680, %v1259, 0
  %v1274 = vsel %vm680, %v1261, 0
  %v1277 = vsel %vm680, %v1263, 0
  %v1280 = vsel %vm696, %v1085, 0
  %1282 = vmatprep.subr.mxu0 0.0
  %1283 = vmatpush1.msra.mxu0 0.0
  %1284 = vmatprep.subr.mxu0 0.0
  %1285 = vmatpush1.msra.mxu0 0.0
  %1286 = vmatprep.subr.mxu0 0.0
  %1287 = vmatpush1.msra.mxu0 0.0
  %1288 = vmatprep.subr.mxu0 0.0
  %1289 = vmatpush1.msra.mxu0 0.0
  %1290 = vmatprep.subr.mxu0 0.0
  %1291 = vmatpush1.msra.mxu0 0.0
  %1292 = vmatprep.subr.mxu0 0.0
  %1293 = vmatpush1.msra.mxu0 0.0
  %1294 = vmatprep.subr.mxu0 0.0
  %1295 = vmatpush1.msra.mxu0 0.0
  %1296 = vmatprep.subr.mxu0 0.0
  %1297 = vmatpush1.msra.mxu0 0.0
  %1298 = vmatprep.subr.mxu0 0.0
  %1299 = vmatpush1.msra.mxu0 0.0
  %1300 = vmatprep.subr.mxu0 0.0
  %1301 = vmatpush1.msra.mxu0 0.0
  %1302 = vmatprep.subr.mxu0 0.0
  %1303 = vmatpush1.msra.mxu0 0.0
  %1304 = vmatprep.subr.mxu0 0.0
  %1305 = vmatpush1.msra.mxu0 0.0
  %1306 = vmatprep.subr.mxu0 0.0
  %1307 = vmatpush1.msra.mxu0 0.0
  %1308 = vmatprep.subr.mxu0 0.0
  %1309 = vmatpush1.msra.mxu0 0.0
  %1310 = vmatprep.subr.mxu0 0.0
  %1311 = vmatpush1.msra.mxu0 %v1280
  %1312 = vmatprep.subr.mxu0 0.0
  %1313 = vmatpush1.msra.mxu0 %v1080
  %1314 = vmatprep.subr.mxu0 0.0
  %1315 = vmatpush2.msra.mxu0 0.0
  %1316 = vmatprep.subr.mxu0 0.0
  %1317 = vmatpush2.msra.mxu0 0.0
  %1318 = vmatprep.subr.mxu0 0.0
  %1319 = vmatpush2.msra.mxu0 0.0
  %1320 = vmatprep.subr.mxu0 0.0
  %1321 = vmatpush2.msra.mxu0 0.0
  %1322 = vmatprep.subr.mxu0 0.0
  %1323 = vmatpush2.msra.mxu0 0.0
  %1324 = vmatprep.subr.mxu0 0.0
  %1325 = vmatpush2.msra.mxu0 0.0
  %1326 = vmatprep.subr.mxu0 0.0
  %1327 = vmatpush2.msra.mxu0 0.0
  %1328 = vmatprep.subr.mxu0 0.0
  %1329 = vmatpush2.msra.mxu0 0.0
  %1330 = vmatprep.subr.mxu0 0.0
  %1331 = vmatpush2.msra.mxu0 0.0
  %1332 = vmatprep.subr.mxu0 0.0
  %1333 = vmatpush2.msra.mxu0 0.0
  %1334 = vmatprep.subr.mxu0 0.0
  %1335 = vmatpush2.msra.mxu0 0.0
  %1336 = vmatprep.subr.mxu0 0.0
  %1337 = vmatpush2.msra.mxu0 0.0
  %1338 = vmatprep.subr.mxu0 0.0
  %1339 = vmatpush2.msra.mxu0 0.0
  %1340 = vmatprep.subr.mxu0 0.0
  %1341 = vmatpush2.msra.mxu0 0.0
  %1342 = vmatprep.subr.mxu0 0.0
  %1343 = vmatpush2.msra.mxu0 0.0
  %1344 = vmatprep.subr.mxu0 0.0
  %1345 = vmatpush2.msra.mxu0 0.0
  %1346 = vmatprep.mubr.f32.mxu0 0.0
  %1347 = vmatmul.mubr.f32.gmra.mxu0 %v1265
  %v1348 = vpop.f32.mrf.mxu0
  %v1349 = vadd.f32 0.0, %v1348
  %v1350 = vpop.f32.mrf.mxu0
  %1351 = vmatprep.mubr.f32.mxu0 0.0
  %1352 = vmatmul.mubr.f32.gmra.mxu0 %v1268
  %v1353 = vpop.f32.mrf.mxu0
  %v1354 = vadd.f32 0.0, %v1353
  %v1355 = vpop.f32.mrf.mxu0
  %1356 = vmatprep.mubr.f32.mxu0 0.0
  %1357 = vmatmul.mubr.f32.gmra.mxu0 %v1271
  %v1358 = vpop.f32.mrf.mxu0
  %v1359 = vadd.f32 0.0, %v1358
  %v1360 = vpop.f32.mrf.mxu0
  %1361 = vmatprep.mubr.f32.mxu0 0.0
  %1362 = vmatmul.mubr.f32.gmra.mxu0 %v1274
  %v1363 = vpop.f32.mrf.mxu0
  %v1364 = vadd.f32 0.0, %v1363
  %v1365 = vpop.f32.mrf.mxu0
  %1366 = vmatprep.mubr.f32.mxu0 0.0
  %1367 = vmatmul.mubr.f32.gmra.mxu0 %v1277
  %v1368 = vpop.f32.mrf.mxu0
  %v1369 = vadd.f32 0.0, %v1368
  %v1370 = vpop.f32.mrf.mxu0
  %1371 = vdwg.mxu0
  %v1372 = vmul.f32 %v1349, %v624
  %v1373 = vmul.f32 %v1354, %v625
  %v1374 = vmul.f32 %v1359, %v626
  %v1375 = vmul.f32 %v1364, %v627
  %v1376 = vmul.f32 %v1369, %v628
  %vm1377 = vcmask 326656
  %v1379 = vsel %vm1377, %v629, 0
  %v1382 = vsel %vm1377, %v630, 0
  %1384 = vmatprep.subr.mxu0 0.0
  %1385 = vmatpush1.msra.mxu0 0.0
  %1386 = vmatprep.subr.mxu0 0.0
  %1387 = vmatpush1.msra.mxu0 0.0
  %1388 = vmatprep.subr.mxu0 0.0
  %1389 = vmatpush1.msra.mxu0 0.0
  %1390 = vmatprep.subr.mxu0 0.0
  %1391 = vmatpush1.msra.mxu0 0.0
  %1392 = vmatprep.subr.mxu0 0.0
  %1393 = vmatpush1.msra.mxu0 0.0
  %1394 = vmatprep.subr.mxu0 0.0
  %1395 = vmatpush1.msra.mxu0 0.0
  %1396 = vmatprep.subr.mxu0 0.0
  %1397 = vmatpush1.msra.mxu0 0.0
  %1398 = vmatprep.subr.mxu0 0.0
  %1399 = vmatpush1.msra.mxu0 0.0
  %1400 = vmatprep.subr.mxu0 0.0
  %1401 = vmatpush1.msra.mxu0 0.0
  %1402 = vmatprep.subr.mxu0 0.0
  %1403 = vmatpush1.msra.mxu0 0.0
  %1404 = vmatprep.subr.mxu0 0.0
  %1405 = vmatpush1.msra.mxu0 0.0
  %1406 = vmatprep.subr.mxu0 0.0
  %1407 = vmatpush1.msra.mxu0 %v1376
  %1408 = vmatprep.subr.mxu0 0.0
  %1409 = vmatpush1.msra.mxu0 %v1375
  %1410 = vmatprep.subr.mxu0 0.0
  %1411 = vmatpush1.msra.mxu0 %v1374
  %1412 = vmatprep.subr.mxu0 0.0
  %1413 = vmatpush1.msra.mxu0 %v1373
  %1414 = vmatprep.subr.mxu0 0.0
  %1415 = vmatpush1.msra.mxu0 %v1372
  %1416 = vmatprep.subr.mxu0 0.0
  %1417 = vmatpush2.msra.mxu0 0.0
  %1418 = vmatprep.subr.mxu0 0.0
  %1419 = vmatpush2.msra.mxu0 0.0
  %1420 = vmatprep.subr.mxu0 0.0
  %1421 = vmatpush2.msra.mxu0 0.0
  %1422 = vmatprep.subr.mxu0 0.0
  %1423 = vmatpush2.msra.mxu0 0.0
  %1424 = vmatprep.subr.mxu0 0.0
  %1425 = vmatpush2.msra.mxu0 0.0
  %1426 = vmatprep.subr.mxu0 0.0
  %1427 = vmatpush2.msra.mxu0 0.0
  %1428 = vmatprep.subr.mxu0 0.0
  %1429 = vmatpush2.msra.mxu0 0.0
  %1430 = vmatprep.subr.mxu0 0.0
  %1431 = vmatpush2.msra.mxu0 0.0
  %1432 = vmatprep.subr.mxu0 0.0
  %1433 = vmatpush2.msra.mxu0 0.0
  %1434 = vmatprep.subr.mxu0 0.0
  %1435 = vmatpush2.msra.mxu0 0.0
  %1436 = vmatprep.subr.mxu0 0.0
  %1437 = vmatpush2.msra.mxu0 0.0
  %1438 = vmatprep.subr.mxu0 0.0
  %1439 = vmatpush2.msra.mxu0 0.0
  %1440 = vmatprep.subr.mxu0 0.0
  %1441 = vmatpush2.msra.mxu0 0.0
  %1442 = vmatprep.subr.mxu0 0.0
  %1443 = vmatpush2.msra.mxu0 0.0
  %1444 = vmatprep.subr.mxu0 0.0
  %1445 = vmatpush2.msra.mxu0 0.0
  %1446 = vmatprep.subr.mxu0 0.0
  %1447 = vmatpush2.msra.mxu0 0.0
  %1448 = vmatprep.mubr.f32.mxu0 0.0
  %1449 = vmatmul.mubr.f32.gmra.mxu0 %v1379
  %v1450 = vpop.f32.mrf.mxu0
  %v1451 = vadd.f32 0.0, %v1450
  %v1452 = vpop.f32.mrf.mxu0
  %1453 = vmatprep.mubr.f32.mxu0 0.0
  %1454 = vmatmul.mubr.f32.gmra.mxu0 %v1382
  %v1455 = vpop.f32.mrf.mxu0
  %v1456 = vadd.f32 0.0, %v1455
  %v1457 = vpop.f32.mrf.mxu0
  %1458 = vdwg.mxu0
  %v1459 = vld [vmem:[%s47] sm:$0xff]
  %v1460 = vld [vmem:[%s47 + $0x8] sm:$0xff]
  %v1461 = vld [vmem:[%s47 + $0x10] sm:$0xff]
  %v1462 = vld [vmem:[%s47 + $0x18] sm:$0xff]
  %v1464 = vsel %vm479, %v1451, 0
  %v1467 = vsel %vm479, %v1456, 0
  %1469 = vmatprep.subr.mxu0 0.0
  %1470 = vmatpush1.msra.mxu0 0.0
  %1471 = vmatprep.subr.mxu0 0.0
  %1472 = vmatpush1.msra.mxu0 0.0
  %1473 = vmatprep.subr.mxu0 0.0
  %1474 = vmatpush1.msra.mxu0 0.0
  %1475 = vmatprep.subr.mxu0 0.0
  %1476 = vmatpush1.msra.mxu0 0.0
  %1477 = vmatprep.subr.mxu0 0.0
  %1478 = vmatpush1.msra.mxu0 0.0
  %1479 = vmatprep.subr.mxu0 0.0
  %1480 = vmatpush1.msra.mxu0 0.0
  %1481 = vmatprep.subr.mxu0 0.0
  %1482 = vmatpush1.msra.mxu0 0.0
  %1483 = vmatprep.subr.mxu0 0.0
  %1484 = vmatpush1.msra.mxu0 0.0
  %1485 = vmatprep.subr.mxu0 0.0
  %1486 = vmatpush1.msra.mxu0 0.0
  %1487 = vmatprep.subr.mxu0 0.0
  %1488 = vmatpush1.msra.mxu0 0.0
  %1489 = vmatprep.subr.mxu0 0.0
  %1490 = vmatpush1.msra.mxu0 0.0
  %1491 = vmatprep.subr.mxu0 0.0
  %1492 = vmatpush1.msra.mxu0 0.0
  %1493 = vmatprep.subr.mxu0 0.0
  %1494 = vmatpush1.msra.mxu0 %v1462
  %1495 = vmatprep.subr.mxu0 0.0
  %1496 = vmatpush1.msra.mxu0 %v1461
  %1497 = vmatprep.subr.mxu0 0.0
  %1498 = vmatpush1.msra.mxu0 %v1460
  %1499 = vmatprep.subr.mxu0 0.0
  %1500 = vmatpush1.msra.mxu0 %v1459
  %1501 = vmatprep.subr.mxu0 0.0
  %1502 = vmatpush2.msra.mxu0 0.0
  %1503 = vmatprep.subr.mxu0 0.0
  %1504 = vmatpush2.msra.mxu0 0.0
  %1505 = vmatprep.subr.mxu0 0.0
  %1506 = vmatpush2.msra.mxu0 0.0
  %1507 = vmatprep.subr.mxu0 0.0
  %1508 = vmatpush2.msra.mxu0 0.0
  %1509 = vmatprep.subr.mxu0 0.0
  %1510 = vmatpush2.msra.mxu0 0.0
  %1511 = vmatprep.subr.mxu0 0.0
  %1512 = vmatpush2.msra.mxu0 0.0
  %1513 = vmatprep.subr.mxu0 0.0
  %1514 = vmatpush2.msra.mxu0 0.0
  %1515 = vmatprep.subr.mxu0 0.0
  %1516 = vmatpush2.msra.mxu0 0.0
  %1517 = vmatprep.subr.mxu0 0.0
  %1518 = vmatpush2.msra.mxu0 0.0
  %1519 = vmatprep.subr.mxu0 0.0
  %1520 = vmatpush2.msra.mxu0 0.0
  %1521 = vmatprep.subr.mxu0 0.0
  %1522 = vmatpush2.msra.mxu0 0.0
  %1523 = vmatprep.subr.mxu0 0.0
  %1524 = vmatpush2.msra.mxu0 0.0
  %1525 = vmatprep.subr.mxu0 0.0
  %1526 = vmatpush2.msra.mxu0 0.0
  %1527 = vmatprep.subr.mxu0 0.0
  %1528 = vmatpush2.msra.mxu0 0.0
  %1529 = vmatprep.subr.mxu0 0.0
  %1530 = vmatpush2.msra.mxu0 0.0
  %1531 = vmatprep.subr.mxu0 0.0
  %1532 = vmatpush2.msra.mxu0 0.0
  %1533 = vmatprep.mubr.f32.mxu0 0.0
  %1534 = vmatmul.mubr.f32.gmra.mxu0 %v1464
  %v1535 = vpop.f32.mrf.mxu0
  %v1536 = vadd.f32 0.0, %v1535
  %v1537 = vpop.f32.mrf.mxu0
  %1538 = vmatprep.mubr.f32.mxu0 0.0
  %1539 = vmatmul.mubr.f32.gmra.mxu0 %v1467
  %v1540 = vpop.f32.mrf.mxu0
  %v1541 = vadd.f32 0.0, %v1540
  %v1542 = vpop.f32.mrf.mxu0
  %1543 = vdwg.mxu0
  %v1544 = vadd.f32 %v522, %v1536
  %v1545 = vadd.f32 %v523, %v1541
  %v1546 = vld [vmem:[%s49] sm:$0x1]
  %v1548 = vlaneseq
  %v1549 = vshrl.u32 %v1548, 7
  %v1550 = vsub.s32 0, %v1549
  %v1551 = vrot.slane %v1546, %v1550
  %v1553 = vadd.f32 %v1544, %v1551
  %v1554 = vadd.f32 %v1545, %v1551
  %v1555 = vld [vmem:[%s51] sm:$0x1]
  %v1556 = vld [vmem:[%s53] sm:$0x1]
  %v1557 = vsel %vm479, %v1553, 0.0
  %1558 = vadd.xlane.f32.xlu0 %v1557
  %v1559 = vpop.xlane.xlu0 %1558
  %v1560 = vsel %vm483, %v1554, 0.0
  %1561 = vadd.xlane.f32.xlu0 %v1560
  %v1562 = vpop.xlane.xlu0 %1561
  %v1563 = vmul.f32 %v1559, %v487
  %v1564 = vmul.f32 %v1562, %v487
  %v1565 = vsub.f32 %v1553, %v1563
  %v1566 = vsub.f32 %v1554, %v1564
  %v1567 = vmul.f32 %v1565, %v1565
  %v1568 = vmul.f32 %v1566, %v1566
  %v1569 = vsel %vm479, %v1567, 0.0
  %1570 = vadd.xlane.f32.xlu0 %v1569
  %v1571 = vpop.xlane.xlu0 %1570
  %v1572 = vsel %vm483, %v1568, 0.0
  %1573 = vadd.xlane.f32.xlu0 %v1572
  %v1574 = vpop.xlane.xlu0 %1573
  %v1575 = vmul.f32 %v1571, %v487
  %v1576 = vmul.f32 %v1574, %v487
  %v1577 = vadd.f32 %v1575, 1e-05
  %v1578 = vadd.f32 %v1576, 1e-05
  %v1579 = vrsqrt.pop %v1577
  %v1580 = vrsqrt.pop %v1578
  %v1581 = vmul.f32 %v1565, %v1579
  %v1582 = vmul.f32 %v1566, %v1580
  %v1584 = vlaneseq
  %v1585 = vshrl.u32 %v1584, 7
  %v1586 = vsub.s32 0, %v1585
  %v1587 = vrot.slane %v1555, %v1586
  %v1589 = vmul.f32 %v1581, %v1587
  %v1590 = vmul.f32 %v1582, %v1587
  %v1592 = vlaneseq
  %v1593 = vshrl.u32 %v1592, 7
  %v1594 = vsub.s32 0, %v1593
  %v1595 = vrot.slane %v1556, %v1594
  %v1597 = vadd.f32 %v1589, %v1595
  %v1598 = vadd.f32 %v1590, %v1595
  %v1599 = vld [vmem:[%s55] sm:$0xff]
  %v1600 = vld [vmem:[%s55 + $0x8] sm:$0xff]
  %v1601 = vld [vmem:[%s55 + $0x10] sm:$0xff]
  %v1602 = vld [vmem:[%s55 + $0x18] sm:$0xff]
  %v1603 = vld [vmem:[%s57] sm:$0x1]
  %v1605 = vlaneseq
  %v1606 = vshrl.u32 %v1605, 7
  %v1607 = vsub.s32 0, %v1606
  %v1608 = vrot.slane %v1603, %v1607
  %v1611 = vsel %vm479, %v1597, 0
  %v1614 = vsel %vm479, %v1598, 0
  %1616 = vmatprep.subr.mxu0 0.0
  %1617 = vmatpush1.msra.mxu0 0.0
  %1618 = vmatprep.subr.mxu0 0.0
  %1619 = vmatpush1.msra.mxu0 0.0
  %1620 = vmatprep.subr.mxu0 0.0
  %1621 = vmatpush1.msra.mxu0 0.0
  %1622 = vmatprep.subr.mxu0 0.0
  %1623 = vmatpush1.msra.mxu0 0.0
  %1624 = vmatprep.subr.mxu0 0.0
  %1625 = vmatpush1.msra.mxu0 0.0
  %1626 = vmatprep.subr.mxu0 0.0
  %1627 = vmatpush1.msra.mxu0 0.0
  %1628 = vmatprep.subr.mxu0 0.0
  %1629 = vmatpush1.msra.mxu0 0.0
  %1630 = vmatprep.subr.mxu0 0.0
  %1631 = vmatpush1.msra.mxu0 0.0
  %1632 = vmatprep.subr.mxu0 0.0
  %1633 = vmatpush1.msra.mxu0 0.0
  %1634 = vmatprep.subr.mxu0 0.0
  %1635 = vmatpush1.msra.mxu0 0.0
  %1636 = vmatprep.subr.mxu0 0.0
  %1637 = vmatpush1.msra.mxu0 0.0
  %1638 = vmatprep.subr.mxu0 0.0
  %1639 = vmatpush1.msra.mxu0 0.0
  %1640 = vmatprep.subr.mxu0 0.0
  %1641 = vmatpush1.msra.mxu0 %v1602
  %1642 = vmatprep.subr.mxu0 0.0
  %1643 = vmatpush1.msra.mxu0 %v1601
  %1644 = vmatprep.subr.mxu0 0.0
  %1645 = vmatpush1.msra.mxu0 %v1600
  %1646 = vmatprep.subr.mxu0 0.0
  %1647 = vmatpush1.msra.mxu0 %v1599
  %1648 = vmatprep.subr.mxu0 0.0
  %1649 = vmatpush2.msra.mxu0 0.0
  %1650 = vmatprep.subr.mxu0 0.0
  %1651 = vmatpush2.msra.mxu0 0.0
  %1652 = vmatprep.subr.mxu0 0.0
  %1653 = vmatpush2.msra.mxu0 0.0
  %1654 = vmatprep.subr.mxu0 0.0
  %1655 = vmatpush2.msra.mxu0 0.0
  %1656 = vmatprep.subr.mxu0 0.0
  %1657 = vmatpush2.msra.mxu0 0.0
  %1658 = vmatprep.subr.mxu0 0.0
  %1659 = vmatpush2.msra.mxu0 0.0
  %1660 = vmatprep.subr.mxu0 0.0
  %1661 = vmatpush2.msra.mxu0 0.0
  %1662 = vmatprep.subr.mxu0 0.0
  %1663 = vmatpush2.msra.mxu0 0.0
  %1664 = vmatprep.subr.mxu0 0.0
  %1665 = vmatpush2.msra.mxu0 0.0
  %1666 = vmatprep.subr.mxu0 0.0
  %1667 = vmatpush2.msra.mxu0 0.0
  %1668 = vmatprep.subr.mxu0 0.0
  %1669 = vmatpush2.msra.mxu0 0.0
  %1670 = vmatprep.subr.mxu0 0.0
  %1671 = vmatpush2.msra.mxu0 0.0
  %1672 = vmatprep.subr.mxu0 0.0
  %1673 = vmatpush2.msra.mxu0 0.0
  %1674 = vmatprep.subr.mxu0 0.0
  %1675 = vmatpush2.msra.mxu0 0.0
  %1676 = vmatprep.subr.mxu0 0.0
  %1677 = vmatpush2.msra.mxu0 0.0
  %1678 = vmatprep.subr.mxu0 0.0
  %1679 = vmatpush2.msra.mxu0 0.0
  %1680 = vmatprep.mubr.f32.mxu0 0.0
  %1681 = vmatmul.mubr.f32.gmra.mxu0 %v1611
  %v1682 = vpop.f32.mrf.mxu0
  %v1683 = vadd.f32 %v1608, %v1682
  %v1684 = vpop.f32.mrf.mxu0
  %1685 = vmatprep.mubr.f32.mxu0 0.0
  %1686 = vmatmul.mubr.f32.gmra.mxu0 %v1614
  %v1687 = vpop.f32.mrf.mxu0
  %v1688 = vadd.f32 %v1608, %v1687
  %v1689 = vpop.f32.mrf.mxu0
  %1690 = vdwg.mxu0
  %v1691 = vmul.f32 %v1683, -1.702
  %v1692 = vmul.f32 %v1688, -1.702
  %v1693 = vmul.f32 %v1691, 1.442695
  %v1694 = vpow.pop %v1693
  %v1695 = vmul.f32 %v1692, 1.442695
  %v1696 = vpow.pop %v1695
  %v1697 = vadd.f32 %v1694, 1.0
  %v1698 = vadd.f32 %v1696, 1.0
  %v1699 = vrcp.pop %v1697
  %v1700 = vmul.f32 1.0, %v1699
  %v1701 = vrcp.pop %v1698
  %v1702 = vmul.f32 1.0, %v1701
  %v1703 = vmul.f32 %v1683, %v1700
  %v1704 = vmul.f32 %v1688, %v1702
  %v1705 = vld [vmem:[%s59] sm:$0xff]
  %v1706 = vld [vmem:[%s59 + $0x8] sm:$0xff]
  %v1707 = vld [vmem:[%s59 + $0x10] sm:$0xff]
  %v1708 = vld [vmem:[%s59 + $0x18] sm:$0xff]
  %v1709 = vld [vmem:[%s59 + $0x20] sm:$0xff]
  %v1710 = vld [vmem:[%s59 + $0x28] sm:$0xff]
  %v1711 = vld [vmem:[%s59 + $0x30] sm:$0xff]
  %v1712 = vld [vmem:[%s59 + $0x38] sm:$0xff]
  %v1713 = vld [vmem:[%s59 + $0x40] sm:$0xff]
  %v1714 = vld [vmem:[%s59 + $0x48] sm:$0xff]
  %v1715 = vld [vmem:[%s59 + $0x50] sm:$0xff]
  %v1716 = vld [vmem:[%s59 + $0x58] sm:$0xff]
  %v1717 = vld [vmem:[%s59 + $0x60] sm:$0xff]
  %v1718 = vld [vmem:[%s59 + $0x68] sm:$0xff]
  %v1719 = vld [vmem:[%s59 + $0x70] sm:$0xff]
  %v1720 = vld [vmem:[%s59 + $0x78] sm:$0xff]
  %1721 = vmatprep.subr.mxu0 0.0
  %1722 = vmatpush1.msra.mxu0 %v1720
  %1723 = vmatprep.subr.mxu0 0.0
  %1724 = vmatpush1.msra.mxu0 %v1719
  %1725 = vmatprep.subr.mxu0 0.0
  %1726 = vmatpush1.msra.mxu0 %v1718
  %1727 = vmatprep.subr.mxu0 0.0
  %1728 = vmatpush1.msra.mxu0 %v1717
  %1729 = vmatprep.subr.mxu0 0.0
  %1730 = vmatpush1.msra.mxu0 %v1716
  %1731 = vmatprep.subr.mxu0 0.0
  %1732 = vmatpush1.msra.mxu0 %v1715
  %1733 = vmatprep.subr.mxu0 0.0
  %1734 = vmatpush1.msra.mxu0 %v1714
  %1735 = vmatprep.subr.mxu0 0.0
  %1736 = vmatpush1.msra.mxu0 %v1713
  %1737 = vmatprep.subr.mxu0 0.0
  %1738 = vmatpush1.msra.mxu0 %v1712
  %1739 = vmatprep.subr.mxu0 0.0
  %1740 = vmatpush1.msra.mxu0 %v1711
  %1741 = vmatprep.subr.mxu0 0.0
  %1742 = vmatpush1.msra.mxu0 %v1710
  %1743 = vmatprep.subr.mxu0 0.0
  %1744 = vmatpush1.msra.mxu0 %v1709
  %1745 = vmatprep.subr.mxu0 0.0
  %1746 = vmatpush1.msra.mxu0 %v1708
  %1747 = vmatprep.subr.mxu0 0.0
  %1748 = vmatpush1.msra.mxu0 %v1707
  %1749 = vmatprep.subr.mxu0 0.0
  %1750 = vmatpush1.msra.mxu0 %v1706
  %1751 = vmatprep.subr.mxu0 0.0
  %1752 = vmatpush1.msra.mxu0 %v1705
  %1753 = vmatprep.subr.mxu0 0.0
  %1754 = vmatpush2.msra.mxu0 0.0
  %1755 = vmatprep.subr.mxu0 0.0
  %1756 = vmatpush2.msra.mxu0 0.0
  %1757 = vmatprep.subr.mxu0 0.0
  %1758 = vmatpush2.msra.mxu0 0.0
  %1759 = vmatprep.subr.mxu0 0.0
  %1760 = vmatpush2.msra.mxu0 0.0
  %1761 = vmatprep.subr.mxu0 0.0
  %1762 = vmatpush2.msra.mxu0 0.0
  %1763 = vmatprep.subr.mxu0 0.0
  %1764 = vmatpush2.msra.mxu0 0.0
  %1765 = vmatprep.subr.mxu0 0.0
  %1766 = vmatpush2.msra.mxu0 0.0
  %1767 = vmatprep.subr.mxu0 0.0
  %1768 = vmatpush2.msra.mxu0 0.0
  %1769 = vmatprep.subr.mxu0 0.0
  %1770 = vmatpush2.msra.mxu0 0.0
  %1771 = vmatprep.subr.mxu0 0.0
  %1772 = vmatpush2.msra.mxu0 0.0
  %1773 = vmatprep.subr.mxu0 0.0
  %1774 = vmatpush2.msra.mxu0 0.0
  %1775 = vmatprep.subr.mxu0 0.0
  %1776 = vmatpush2.msra.mxu0 0.0
  %1777 = vmatprep.subr.mxu0 0.0
  %1778 = vmatpush2.msra.mxu0 0.0
  %1779 = vmatprep.subr.mxu0 0.0
  %1780 = vmatpush2.msra.mxu0 0.0
  %1781 = vmatprep.subr.mxu0 0.0
  %1782 = vmatpush2.msra.mxu0 0.0
  %1783 = vmatprep.subr.mxu0 0.0
  %1784 = vmatpush2.msra.mxu0 0.0
  %1785 = vmatprep.mubr.f32.mxu0 0.0
  %1786 = vmatmul.mubr.f32.gmra.mxu0 %v1703
  %v1787 = vpop.f32.mrf.mxu0
  %v1788 = vadd.f32 0.0, %v1787
  %v1789 = vpop.f32.mrf.mxu0
  %1790 = vmatprep.mubr.f32.mxu0 0.0
  %1791 = vmatmul.mubr.f32.gmra.mxu0 %v1704
  %v1792 = vpop.f32.mrf.mxu0
  %v1793 = vadd.f32 0.0, %v1792
  %v1794 = vpop.f32.mrf.mxu0
  %1795 = vdwg.mxu0
  %v1796 = vadd.f32 %v1553, %v1788
  %v1797 = vadd.f32 %v1554, %v1793
  %v1798 = vld [vmem:[%s61] sm:$0x1]
  %v1800 = vlaneseq
  %v1801 = vshrl.u32 %v1800, 7
  %v1802 = vsub.s32 0, %v1801
  %v1803 = vrot.slane %v1798, %v1802
  %v1805 = vadd.f32 %v1796, %v1803
  %v1806 = vadd.f32 %v1797, %v1803
  %s1807 = scalar_lea.vmem %s31, 1
  %v1808 = vld [vmem:[%s1807] sm:$0x1]
  %s1809 = scalar_lea.vmem %s33, 1
  %v1810 = vld [vmem:[%s1809] sm:$0x1]
  %v1811 = vsel %vm479, %v1805, 0.0
  %1812 = vadd.xlane.f32.xlu0 %v1811
  %v1813 = vpop.xlane.xlu0 %1812
  %v1814 = vsel %vm483, %v1806, 0.0
  %1815 = vadd.xlane.f32.xlu0 %v1814
  %v1816 = vpop.xlane.xlu0 %1815
  %v1817 = vmul.f32 %v1813, %v487
  %v1818 = vmul.f32 %v1816, %v487
  %v1819 = vsub.f32 %v1805, %v1817
  %v1820 = vsub.f32 %v1806, %v1818
  %v1821 = vmul.f32 %v1819, %v1819
  %v1822 = vmul.f32 %v1820, %v1820
  %v1823 = vsel %vm479, %v1821, 0.0
  %1824 = vadd.xlane.f32.xlu0 %v1823
  %v1825 = vpop.xlane.xlu0 %1824
  %v1826 = vsel %vm483, %v1822, 0.0
  %1827 = vadd.xlane.f32.xlu0 %v1826
  %v1828 = vpop.xlane.xlu0 %1827
  %v1829 = vmul.f32 %v1825, %v487
  %v1830 = vmul.f32 %v1828, %v487
  %v1831 = vadd.f32 %v1829, 1e-05
  %v1832 = vadd.f32 %v1830, 1e-05
  %v1833 = vrsqrt.pop %v1831
  %v1834 = vrsqrt.pop %v1832
  %v1835 = vmul.f32 %v1819, %v1833
  %v1836 = vmul.f32 %v1820, %v1834
  %v1838 = vlaneseq
  %v1839 = vshrl.u32 %v1838, 7
  %v1840 = vsub.s32 0, %v1839
  %v1841 = vrot.slane %v1808, %v1840
  %v1843 = vmul.f32 %v1835, %v1841
  %v1844 = vmul.f32 %v1836, %v1841
  %v1846 = vlaneseq
  %v1847 = vshrl.u32 %v1846, 7
  %v1848 = vsub.s32 0, %v1847
  %v1849 = vrot.slane %v1810, %v1848
  %v1851 = vadd.f32 %v1843, %v1849
  %v1852 = vadd.f32 %v1844, %v1849
  %v1854 = vsel %vm696, %v1852, 0
  %1856 = vmatprep.subr.mxu0 0.0
  %1857 = vmatpush1.msra.mxu0 0.0
  %1858 = vmatprep.subr.mxu0 0.0
  %1859 = vmatpush1.msra.mxu0 0.0
  %1860 = vmatprep.subr.mxu0 0.0
  %1861 = vmatpush1.msra.mxu0 0.0
  %1862 = vmatprep.subr.mxu0 0.0
  %1863 = vmatpush1.msra.mxu0 0.0
  %1864 = vmatprep.subr.mxu0 0.0
  %1865 = vmatpush1.msra.mxu0 0.0
  %1866 = vmatprep.subr.mxu0 0.0
  %1867 = vmatpush1.msra.mxu0 0.0
  %1868 = vmatprep.subr.mxu0 0.0
  %1869 = vmatpush1.msra.mxu0 0.0
  %1870 = vmatprep.subr.mxu0 0.0
  %1871 = vmatpush1.msra.mxu0 0.0
  %1872 = vmatprep.subr.mxu0 0.0
  %1873 = vmatpush1.msra.mxu0 0.0
  %1874 = vmatprep.subr.mxu0 0.0
  %1875 = vmatpush1.msra.mxu0 0.0
  %1876 = vmatprep.subr.mxu0 0.0
  %1877 = vmatpush1.msra.mxu0 0.0
  %1878 = vmatprep.subr.mxu0 0.0
  %1879 = vmatpush1.msra.mxu0 0.0
  %1880 = vmatprep.subr.mxu0 0.0
  %1881 = vmatpush1.msra.mxu0 0.0
  %1882 = vmatprep.subr.mxu0 0.0
  %1883 = vmatpush1.msra.mxu0 0.0
  %1884 = vmatprep.subr.mxu0 0.0
  %1885 = vmatpush1.msra.mxu0 %v1854
  %1886 = vmatprep.subr.mxu0 0.0
  %1887 = vmatpush1.msra.mxu0 %v1851
  %1888 = vmatprep.subr.mxu0 0.0
  %1889 = vmatpush2.msra.mxu0 0.0
  %1890 = vmatprep.subr.mxu0 0.0
  %1891 = vmatpush2.msra.mxu0 0.0
  %1892 = vmatprep.subr.mxu0 0.0
  %1893 = vmatpush2.msra.mxu0 0.0
  %1894 = vmatprep.subr.mxu0 0.0
  %1895 = vmatpush2.msra.mxu0 0.0
  %1896 = vmatprep.subr.mxu0 0.0
  %1897 = vmatpush2.msra.mxu0 0.0
  %1898 = vmatprep.subr.mxu0 0.0
  %1899 = vmatpush2.msra.mxu0 0.0
  %1900 = vmatprep.subr.mxu0 0.0
  %1901 = vmatpush2.msra.mxu0 0.0
  %1902 = vmatprep.subr.mxu0 0.0
  %1903 = vmatpush2.msra.mxu0 0.0
  %1904 = vmatprep.subr.mxu0 0.0
  %1905 = vmatpush2.msra.mxu0 0.0
  %1906 = vmatprep.subr.mxu0 0.0
  %1907 = vmatpush2.msra.mxu0 0.0
  %1908 = vmatprep.subr.mxu0 0.0
  %1909 = vmatpush2.msra.mxu0 0.0
  %1910 = vmatprep.subr.mxu0 0.0
  %1911 = vmatpush2.msra.mxu0 0.0
  %1912 = vmatprep.subr.mxu0 0.0
  %1913 = vmatpush2.msra.mxu0 0.0
  %1914 = vmatprep.subr.mxu0 0.0
  %1915 = vmatpush2.msra.mxu0 0.0
  %1916 = vmatprep.subr.mxu0 0.0
  %1917 = vmatpush2.msra.mxu0 0.0
  %1918 = vmatprep.subr.mxu0 0.0
  %1919 = vmatpush2.msra.mxu0 0.0
  %1920 = vmatprep.mubr.f32.mxu0 0.0
  %1921 = vmatmul.mubr.f32.gmra.mxu0 %v682
  %v1922 = vpop.f32.mrf.mxu0
  %v1923 = vadd.f32 0.0, %v1922
  %v1924 = vpop.f32.mrf.mxu0
  %1925 = vmatprep.mubr.f32.mxu0 0.0
  %1926 = vmatmul.mubr.f32.gmra.mxu0 %v685
  %v1927 = vpop.f32.mrf.mxu0
  %v1928 = vadd.f32 0.0, %v1927
  %v1929 = vpop.f32.mrf.mxu0
  %1930 = vmatprep.mubr.f32.mxu0 0.0
  %1931 = vmatmul.mubr.f32.gmra.mxu0 %v688
  %v1932 = vpop.f32.mrf.mxu0
  %v1933 = vadd.f32 0.0, %v1932
  %v1934 = vpop.f32.mrf.mxu0
  %1935 = vmatprep.mubr.f32.mxu0 0.0
  %1936 = vmatmul.mubr.f32.gmra.mxu0 %v691
  %v1937 = vpop.f32.mrf.mxu0
  %v1938 = vadd.f32 0.0, %v1937
  %v1939 = vpop.f32.mrf.mxu0
  %1940 = vmatprep.mubr.f32.mxu0 0.0
  %1941 = vmatmul.mubr.f32.gmra.mxu0 %v694
  %v1942 = vpop.f32.mrf.mxu0
  %v1943 = vadd.f32 0.0, %v1942
  %v1944 = vpop.f32.mrf.mxu0
  %1945 = vdwg.mxu0
  %s1946 = scalar_lea.vmem %s35, 32
  %v1947 = vld [vmem:[%s1946] sm:$0xff]
  %v1948 = vld [vmem:[%s1946 + $0x8] sm:$0xff]
  %v1949 = vld [vmem:[%s1946 + $0x10] sm:$0xff]
  %v1950 = vld [vmem:[%s1946 + $0x18] sm:$0xff]
  %s1951 = scalar_lea.vmem %s37, 1
  %v1952 = vld [vmem:[%s1951] sm:$0x1]
  %v1954 = vlaneseq
  %v1955 = vshrl.u32 %v1954, 7
  %v1956 = vsub.s32 0, %v1955
  %v1957 = vrot.slane %v1952, %v1956
  %v1960 = vsel %vm479, %v1923, 0
  %v1963 = vsel %vm479, %v1928, 0
  %v1966 = vsel %vm479, %v1933, 0
  %v1969 = vsel %vm479, %v1938, 0
  %v1972 = vsel %vm479, %v1943, 0
  %1974 = vmatprep.subr.mxu0 0.0
  %1975 = vmatpush1.msra.mxu0 0.0
  %1976 = vmatprep.subr.mxu0 0.0
  %1977 = vmatpush1.msra.mxu0 0.0
  %1978 = vmatprep.subr.mxu0 0.0
  %1979 = vmatpush1.msra.mxu0 0.0
  %1980 = vmatprep.subr.mxu0 0.0
  %1981 = vmatpush1.msra.mxu0 0.0
  %1982 = vmatprep.subr.mxu0 0.0
  %1983 = vmatpush1.msra.mxu0 0.0
  %1984 = vmatprep.subr.mxu0 0.0
  %1985 = vmatpush1.msra.mxu0 0.0
  %1986 = vmatprep.subr.mxu0 0.0
  %1987 = vmatpush1.msra.mxu0 0.0
  %1988 = vmatprep.subr.mxu0 0.0
  %1989 = vmatpush1.msra.mxu0 0.0
  %1990 = vmatprep.subr.mxu0 0.0
  %1991 = vmatpush1.msra.mxu0 0.0
  %1992 = vmatprep.subr.mxu0 0.0
  %1993 = vmatpush1.msra.mxu0 0.0
  %1994 = vmatprep.subr.mxu0 0.0
  %1995 = vmatpush1.msra.mxu0 0.0
  %1996 = vmatprep.subr.mxu0 0.0
  %1997 = vmatpush1.msra.mxu0 0.0
  %1998 = vmatprep.subr.mxu0 0.0
  %1999 = vmatpush1.msra.mxu0 %v1950
  %2000 = vmatprep.subr.mxu0 0.0
  %2001 = vmatpush1.msra.mxu0 %v1949
  %2002 = vmatprep.subr.mxu0 0.0
  %2003 = vmatpush1.msra.mxu0 %v1948
  %2004 = vmatprep.subr.mxu0 0.0
  %2005 = vmatpush1.msra.mxu0 %v1947
  %2006 = vmatprep.subr.mxu0 0.0
  %2007 = vmatpush2.msra.mxu0 0.0
  %2008 = vmatprep.subr.mxu0 0.0
  %2009 = vmatpush2.msra.mxu0 0.0
  %2010 = vmatprep.subr.mxu0 0.0
  %2011 = vmatpush2.msra.mxu0 0.0
  %2012 = vmatprep.subr.mxu0 0.0
  %2013 = vmatpush2.msra.mxu0 0.0
  %2014 = vmatprep.subr.mxu0 0.0
  %2015 = vmatpush2.msra.mxu0 0.0
  %2016 = vmatprep.subr.mxu0 0.0
  %2017 = vmatpush2.msra.mxu0 0.0
  %2018 = vmatprep.subr.mxu0 0.0
  %2019 = vmatpush2.msra.mxu0 0.0
  %2020 = vmatprep.subr.mxu0 0.0
  %2021 = vmatpush2.msra.mxu0 0.0
  %2022 = vmatprep.subr.mxu0 0.0
  %2023 = vmatpush2.msra.mxu0 0.0
  %2024 = vmatprep.subr.mxu0 0.0
  %2025 = vmatpush2.msra.mxu0 0.0
  %2026 = vmatprep.subr.mxu0 0.0
  %2027 = vmatpush2.msra.mxu0 0.0
  %2028 = vmatprep.subr.mxu0 0.0
  %2029 = vmatpush2.msra.mxu0 0.0
  %2030 = vmatprep.subr.mxu0 0.0
  %2031 = vmatpush2.msra.mxu0 0.0
  %2032 = vmatprep.subr.mxu0 0.0
  %2033 = vmatpush2.msra.mxu0 0.0
  %2034 = vmatprep.subr.mxu0 0.0
  %2035 = vmatpush2.msra.mxu0 0.0
  %2036 = vmatprep.subr.mxu0 0.0
  %2037 = vmatpush2.msra.mxu0 0.0
  %2038 = vmatprep.mubr.f32.mxu0 0.0
  %2039 = vmatmul.mubr.f32.gmra.mxu0 %v1960
  %v2040 = vpop.f32.mrf.mxu0
  %v2041 = vadd.f32 %v1957, %v2040
  %v2042 = vpop.f32.mrf.mxu0
  %2043 = vmatprep.mubr.f32.mxu0 0.0
  %2044 = vmatmul.mubr.f32.gmra.mxu0 %v1963
  %v2045 = vpop.f32.mrf.mxu0
  %v2046 = vadd.f32 %v1957, %v2045
  %v2047 = vpop.f32.mrf.mxu0
  %2048 = vmatprep.mubr.f32.mxu0 0.0
  %2049 = vmatmul.mubr.f32.gmra.mxu0 %v1966
  %v2050 = vpop.f32.mrf.mxu0
  %v2051 = vadd.f32 %v1957, %v2050
  %v2052 = vpop.f32.mrf.mxu0
  %2053 = vmatprep.mubr.f32.mxu0 0.0
  %2054 = vmatmul.mubr.f32.gmra.mxu0 %v1969
  %v2055 = vpop.f32.mrf.mxu0
  %v2056 = vadd.f32 %v1957, %v2055
  %v2057 = vpop.f32.mrf.mxu0
  %2058 = vmatprep.mubr.f32.mxu0 0.0
  %2059 = vmatmul.mubr.f32.gmra.mxu0 %v1972
  %v2060 = vpop.f32.mrf.mxu0
  %v2061 = vadd.f32 %v1957, %v2060
  %v2062 = vpop.f32.mrf.mxu0
  %2063 = vdwg.mxu0
  %v2064 = vmul.f32 %v2041, %v624
  %v2065 = vmul.f32 %v2046, %v625
  %v2066 = vmul.f32 %v2051, %v626
  %v2067 = vmul.f32 %v2056, %v627
  %v2068 = vmul.f32 %v2061, %v628
  %s2069 = scalar_lea.vmem %s39, 32
  %v2070 = vld [vmem:[%s2069] sm:$0xff]
  %v2071 = vld [vmem:[%s2069 + $0x8] sm:$0xff]
  %v2072 = vld [vmem:[%s2069 + $0x10] sm:$0xff]
  %v2073 = vld [vmem:[%s2069 + $0x18] sm:$0xff]
  %s2074 = scalar_lea.vmem %s41, 1
  %v2075 = vld [vmem:[%s2074] sm:$0x1]
  %v2077 = vlaneseq
  %v2078 = vshrl.u32 %v2077, 7
  %v2079 = vsub.s32 0, %v2078
  %v2080 = vrot.slane %v2075, %v2079
  %v2083 = vsel %vm479, %v1851, 0
  %v2085 = vsel %vm479, %v1852, 0
  %2087 = vmatprep.subr.mxu0 0.0
  %2088 = vmatpush1.msra.mxu0 0.0
  %2089 = vmatprep.subr.mxu0 0.0
  %2090 = vmatpush1.msra.mxu0 0.0
  %2091 = vmatprep.subr.mxu0 0.0
  %2092 = vmatpush1.msra.mxu0 0.0
  %2093 = vmatprep.subr.mxu0 0.0
  %2094 = vmatpush1.msra.mxu0 0.0
  %2095 = vmatprep.subr.mxu0 0.0
  %2096 = vmatpush1.msra.mxu0 0.0
  %2097 = vmatprep.subr.mxu0 0.0
  %2098 = vmatpush1.msra.mxu0 0.0
  %2099 = vmatprep.subr.mxu0 0.0
  %2100 = vmatpush1.msra.mxu0 0.0
  %2101 = vmatprep.subr.mxu0 0.0
  %2102 = vmatpush1.msra.mxu0 0.0
  %2103 = vmatprep.subr.mxu0 0.0
  %2104 = vmatpush1.msra.mxu0 0.0
  %2105 = vmatprep.subr.mxu0 0.0
  %2106 = vmatpush1.msra.mxu0 0.0
  %2107 = vmatprep.subr.mxu0 0.0
  %2108 = vmatpush1.msra.mxu0 0.0
  %2109 = vmatprep.subr.mxu0 0.0
  %2110 = vmatpush1.msra.mxu0 0.0
  %2111 = vmatprep.subr.mxu0 0.0
  %2112 = vmatpush1.msra.mxu0 %v2073
  %2113 = vmatprep.subr.mxu0 0.0
  %2114 = vmatpush1.msra.mxu0 %v2072
  %2115 = vmatprep.subr.mxu0 0.0
  %2116 = vmatpush1.msra.mxu0 %v2071
  %2117 = vmatprep.subr.mxu0 0.0
  %2118 = vmatpush1.msra.mxu0 %v2070
  %2119 = vmatprep.subr.mxu0 0.0
  %2120 = vmatpush2.msra.mxu0 0.0
  %2121 = vmatprep.subr.mxu0 0.0
  %2122 = vmatpush2.msra.mxu0 0.0
  %2123 = vmatprep.subr.mxu0 0.0
  %2124 = vmatpush2.msra.mxu0 0.0
  %2125 = vmatprep.subr.mxu0 0.0
  %2126 = vmatpush2.msra.mxu0 0.0
  %2127 = vmatprep.subr.mxu0 0.0
  %2128 = vmatpush2.msra.mxu0 0.0
  %2129 = vmatprep.subr.mxu0 0.0
  %2130 = vmatpush2.msra.mxu0 0.0
  %2131 = vmatprep.subr.mxu0 0.0
  %2132 = vmatpush2.msra.mxu0 0.0
  %2133 = vmatprep.subr.mxu0 0.0
  %2134 = vmatpush2.msra.mxu0 0.0
  %2135 = vmatprep.subr.mxu0 0.0
  %2136 = vmatpush2.msra.mxu0 0.0
  %2137 = vmatprep.subr.mxu0 0.0
  %2138 = vmatpush2.msra.mxu0 0.0
  %2139 = vmatprep.subr.mxu0 0.0
  %2140 = vmatpush2.msra.mxu0 0.0
  %2141 = vmatprep.subr.mxu0 0.0
  %2142 = vmatpush2.msra.mxu0 0.0
  %2143 = vmatprep.subr.mxu0 0.0
  %2144 = vmatpush2.msra.mxu0 0.0
  %2145 = vmatprep.subr.mxu0 0.0
  %2146 = vmatpush2.msra.mxu0 0.0
  %2147 = vmatprep.subr.mxu0 0.0
  %2148 = vmatpush2.msra.mxu0 0.0
  %2149 = vmatprep.subr.mxu0 0.0
  %2150 = vmatpush2.msra.mxu0 0.0
  %2151 = vmatprep.mubr.f32.mxu0 0.0
  %2152 = vmatmul.mubr.f32.gmra.mxu0 %v2083
  %v2153 = vpop.f32.mrf.mxu0
  %v2154 = vadd.f32 %v2080, %v2153
  %v2155 = vpop.f32.mrf.mxu0
  %2156 = vmatprep.mubr.f32.mxu0 0.0
  %2157 = vmatmul.mubr.f32.gmra.mxu0 %v2085
  %v2158 = vpop.f32.mrf.mxu0
  %v2159 = vadd.f32 %v2080, %v2158
  %v2160 = vpop.f32.mrf.mxu0
  %2161 = vdwg.mxu0
  %s2162 = scalar_lea.vmem %s43, 32
  %v2163 = vld [vmem:[%s2162] sm:$0xff]
  %v2164 = vld [vmem:[%s2162 + $0x8] sm:$0xff]
  %v2165 = vld [vmem:[%s2162 + $0x10] sm:$0xff]
  %v2166 = vld [vmem:[%s2162 + $0x18] sm:$0xff]
  %s2167 = scalar_lea.vmem %s45, 1
  %v2168 = vld [vmem:[%s2167] sm:$0x1]
  %v2170 = vlaneseq
  %v2171 = vshrl.u32 %v2170, 7
  %v2172 = vsub.s32 0, %v2171
  %v2173 = vrot.slane %v2168, %v2172
  %2175 = vmatprep.subr.mxu0 0.0
  %2176 = vmatpush1.msra.mxu0 0.0
  %2177 = vmatprep.subr.mxu0 0.0
  %2178 = vmatpush1.msra.mxu0 0.0
  %2179 = vmatprep.subr.mxu0 0.0
  %2180 = vmatpush1.msra.mxu0 0.0
  %2181 = vmatprep.subr.mxu0 0.0
  %2182 = vmatpush1.msra.mxu0 0.0
  %2183 = vmatprep.subr.mxu0 0.0
  %2184 = vmatpush1.msra.mxu0 0.0
  %2185 = vmatprep.subr.mxu0 0.0
  %2186 = vmatpush1.msra.mxu0 0.0
  %2187 = vmatprep.subr.mxu0 0.0
  %2188 = vmatpush1.msra.mxu0 0.0
  %2189 = vmatprep.subr.mxu0 0.0
  %2190 = vmatpush1.msra.mxu0 0.0
  %2191 = vmatprep.subr.mxu0 0.0
  %2192 = vmatpush1.msra.mxu0 0.0
  %2193 = vmatprep.subr.mxu0 0.0
  %2194 = vmatpush1.msra.mxu0 0.0
  %2195 = vmatprep.subr.mxu0 0.0
  %2196 = vmatpush1.msra.mxu0 0.0
  %2197 = vmatprep.subr.mxu0 0.0
  %2198 = vmatpush1.msra.mxu0 0.0
  %2199 = vmatprep.subr.mxu0 0.0
  %2200 = vmatpush1.msra.mxu0 %v2166
  %2201 = vmatprep.subr.mxu0 0.0
  %2202 = vmatpush1.msra.mxu0 %v2165
  %2203 = vmatprep.subr.mxu0 0.0
  %2204 = vmatpush1.msra.mxu0 %v2164
  %2205 = vmatprep.subr.mxu0 0.0
  %2206 = vmatpush1.msra.mxu0 %v2163
  %2207 = vmatprep.subr.mxu0 0.0
  %2208 = vmatpush2.msra.mxu0 0.0
  %2209 = vmatprep.subr.mxu0 0.0
  %2210 = vmatpush2.msra.mxu0 0.0
  %2211 = vmatprep.subr.mxu0 0.0
  %2212 = vmatpush2.msra.mxu0 0.0
  %2213 = vmatprep.subr.mxu0 0.0
  %2214 = vmatpush2.msra.mxu0 0.0
  %2215 = vmatprep.subr.mxu0 0.0
  %2216 = vmatpush2.msra.mxu0 0.0
  %2217 = vmatprep.subr.mxu0 0.0
  %2218 = vmatpush2.msra.mxu0 0.0
  %2219 = vmatprep.subr.mxu0 0.0
  %2220 = vmatpush2.msra.mxu0 0.0
  %2221 = vmatprep.subr.mxu0 0.0
  %2222 = vmatpush2.msra.mxu0 0.0
  %2223 = vmatprep.subr.mxu0 0.0
  %2224 = vmatpush2.msra.mxu0 0.0
  %2225 = vmatprep.subr.mxu0 0.0
  %2226 = vmatpush2.msra.mxu0 0.0
  %2227 = vmatprep.subr.mxu0 0.0
  %2228 = vmatpush2.msra.mxu0 0.0
  %2229 = vmatprep.subr.mxu0 0.0
  %2230 = vmatpush2.msra.mxu0 0.0
  %2231 = vmatprep.subr.mxu0 0.0
  %2232 = vmatpush2.msra.mxu0 0.0
  %2233 = vmatprep.subr.mxu0 0.0
  %2234 = vmatpush2.msra.mxu0 0.0
  %2235 = vmatprep.subr.mxu0 0.0
  %2236 = vmatpush2.msra.mxu0 0.0
  %2237 = vmatprep.subr.mxu0 0.0
  %2238 = vmatpush2.msra.mxu0 0.0
  %2239 = vmatprep.mubr.f32.mxu0 0.0
  %2240 = vmatmul.mubr.f32.gmra.mxu0 %v2083
  %v2241 = vpop.f32.mrf.mxu0
  %v2242 = vadd.f32 %v2173, %v2241
  %v2243 = vpop.f32.mrf.mxu0
  %2244 = vmatprep.mubr.f32.mxu0 0.0
  %2245 = vmatmul.mubr.f32.gmra.mxu0 %v2085
  %v2246 = vpop.f32.mrf.mxu0
  %v2247 = vadd.f32 %v2173, %v2246
  %v2248 = vpop.f32.mrf.mxu0
  %2249 = vdwg.mxu0
  %v2251 = vsel %vm479, %v2064, 0
  %v2254 = vsel %vm479, %v2065, 0
  %v2257 = vsel %vm479, %v2066, 0
  %v2260 = vsel %vm479, %v2067, 0
  %v2263 = vsel %vm479, %v2068, 0
  %v2266 = vsel %vm479, %v2154, 0
  %v2269 = vsel %vm479, %v2159, 0
  %2271 = vmatprep.subr.mxu0 0.0
  %2272 = vmatpush1.xpose.msra.mxu0 0.0
  %2273 = vmatprep.subr.mxu0 0.0
  %2274 = vmatpush1.xpose.msra.mxu0 0.0
  %2275 = vmatprep.subr.mxu0 0.0
  %2276 = vmatpush1.xpose.msra.mxu0 0.0
  %2277 = vmatprep.subr.mxu0 0.0
  %2278 = vmatpush1.xpose.msra.mxu0 0.0
  %2279 = vmatprep.subr.mxu0 0.0
  %2280 = vmatpush1.xpose.msra.mxu0 0.0
  %2281 = vmatprep.subr.mxu0 0.0
  %2282 = vmatpush1.xpose.msra.mxu0 0.0
  %2283 = vmatprep.subr.mxu0 0.0
  %2284 = vmatpush1.xpose.msra.mxu0 0.0
  %2285 = vmatprep.subr.mxu0 0.0
  %2286 = vmatpush1.xpose.msra.mxu0 0.0
  %2287 = vmatprep.subr.mxu0 0.0
  %2288 = vmatpush1.xpose.msra.mxu0 0.0
  %2289 = vmatprep.subr.mxu0 0.0
  %2290 = vmatpush1.xpose.msra.mxu0 0.0
  %2291 = vmatprep.subr.mxu0 0.0
  %2292 = vmatpush1.xpose.msra.mxu0 0.0
  %2293 = vmatprep.subr.mxu0 0.0
  %2294 = vmatpush1.xpose.msra.mxu0 0.0
  %2295 = vmatprep.subr.mxu0 0.0
  %2296 = vmatpush1.xpose.msra.mxu0 0.0
  %2297 = vmatprep.subr.mxu0 0.0
  %2298 = vmatpush1.xpose.msra.mxu0 0.0
  %2299 = vmatprep.subr.mxu0 0.0
  %2300 = vmatpush1.xpose.msra.mxu0 %v2269
  %2301 = vmatprep.subr.mxu0 0.0
  %2302 = vmatpush1.xpose.msra.mxu0 %v2266
  %2303 = vmatprep.subr.mxu0 0.0
  %2304 = vmatpush2.xpose.msra.mxu0 0.0
  %2305 = vmatprep.subr.mxu0 0.0
  %2306 = vmatpush2.xpose.msra.mxu0 0.0
  %2307 = vmatprep.subr.mxu0 0.0
  %2308 = vmatpush2.xpose.msra.mxu0 0.0
  %2309 = vmatprep.subr.mxu0 0.0
  %2310 = vmatpush2.xpose.msra.mxu0 0.0
  %2311 = vmatprep.subr.mxu0 0.0
  %2312 = vmatpush2.xpose.msra.mxu0 0.0
  %2313 = vmatprep.subr.mxu0 0.0
  %2314 = vmatpush2.xpose.msra.mxu0 0.0
  %2315 = vmatprep.subr.mxu0 0.0
  %2316 = vmatpush2.xpose.msra.mxu0 0.0
  %2317 = vmatprep.subr.mxu0 0.0
  %2318 = vmatpush2.xpose.msra.mxu0 0.0
  %2319 = vmatprep.subr.mxu0 0.0
  %2320 = vmatpush2.xpose.msra.mxu0 0.0
  %2321 = vmatprep.subr.mxu0 0.0
  %2322 = vmatpush2.xpose.msra.mxu0 0.0
  %2323 = vmatprep.subr.mxu0 0.0
  %2324 = vmatpush2.xpose.msra.mxu0 0.0
  %2325 = vmatprep.subr.mxu0 0.0
  %2326 = vmatpush2.xpose.msra.mxu0 0.0
  %2327 = vmatprep.subr.mxu0 0.0
  %2328 = vmatpush2.xpose.msra.mxu0 0.0
  %2329 = vmatprep.subr.mxu0 0.0
  %2330 = vmatpush2.xpose.msra.mxu0 0.0
  %2331 = vmatprep.subr.mxu0 0.0
  %2332 = vmatpush2.xpose.msra.mxu0 0.0
  %2333 = vmatprep.subr.mxu0 0.0
  %2334 = vmatpush2.xpose.msra.mxu0 0.0
  %2335 = vmatprep.mubr.f32.mxu0 0.0
  %2336 = vmatmul.mubr.f32.gmra.mxu0 %v2251
  %v2337 = vpop.f32.mrf.mxu0
  %v2338 = vadd.f32 0.0, %v2337
  %v2339 = vpop.f32.mrf.mxu0
  %2340 = vmatprep.mubr.f32.mxu0 0.0
  %2341 = vmatmul.mubr.f32.gmra.mxu0 %v2254
  %v2342 = vpop.f32.mrf.mxu0
  %v2343 = vadd.f32 0.0, %v2342
  %v2344 = vpop.f32.mrf.mxu0
  %2345 = vmatprep.mubr.f32.mxu0 0.0
  %2346 = vmatmul.mubr.f32.gmra.mxu0 %v2257
  %v2347 = vpop.f32.mrf.mxu0
  %v2348 = vadd.f32 0.0, %v2347
  %v2349 = vpop.f32.mrf.mxu0
  %2350 = vmatprep.mubr.f32.mxu0 0.0
  %2351 = vmatmul.mubr.f32.gmra.mxu0 %v2260
  %v2352 = vpop.f32.mrf.mxu0
  %v2353 = vadd.f32 0.0, %v2352
  %v2354 = vpop.f32.mrf.mxu0
  %2355 = vmatprep.mubr.f32.mxu0 0.0
  %2356 = vmatmul.mubr.f32.gmra.mxu0 %v2263
  %v2357 = vpop.f32.mrf.mxu0
  %v2358 = vadd.f32 0.0, %v2357
  %v2359 = vpop.f32.mrf.mxu0
  %2360 = vdwg.mxu0
  %v2361 = vmul.f32 %v2338, 0.35355338
  %v2362 = vmul.f32 %v2343, 0.35355338
  %v2363 = vmul.f32 %v2348, 0.35355338
  %v2364 = vmul.f32 %v2353, 0.35355338
  %v2365 = vmul.f32 %v2358, 0.35355338
  %v2366 = vadd.f32 %v2361, %v631
  %v2367 = vadd.f32 %v2362, %v632
  %v2368 = vadd.f32 %v2363, %v633
  %v2369 = vadd.f32 %v2364, %v634
  %v2370 = vadd.f32 %v2365, %v635
  %v2371 = vsel %vm680, %v2366, -inf
  %2372 = vmax.xlane.f32.xlu0 %v2371
  %v2373 = vpop.xlane.xlu0 %2372
  %v2374 = vsel %vm680, %v2367, -inf
  %2375 = vmax.xlane.f32.xlu0 %v2374
  %v2376 = vpop.xlane.xlu0 %2375
  %v2377 = vsel %vm680, %v2368, -inf
  %2378 = vmax.xlane.f32.xlu0 %v2377
  %v2379 = vpop.xlane.xlu0 %2378
  %v2380 = vsel %vm680, %v2369, -inf
  %2381 = vmax.xlane.f32.xlu0 %v2380
  %v2382 = vpop.xlane.xlu0 %2381
  %v2383 = vsel %vm680, %v2370, -inf
  %2384 = vmax.xlane.f32.xlu0 %v2383
  %v2385 = vpop.xlane.xlu0 %2384
  %v2386 = vsub.f32 %v2366, %v2373
  %v2387 = vsub.f32 %v2367, %v2376
  %v2388 = vsub.f32 %v2368, %v2379
  %v2389 = vsub.f32 %v2369, %v2382
  %v2390 = vsub.f32 %v2370, %v2385
  %v2391 = vmul.f32 %v2386, 1.442695
  %v2392 = vpow.pop %v2391
  %v2393 = vmul.f32 %v2387, 1.442695
  %v2394 = vpow.pop %v2393
  %v2395 = vmul.f32 %v2388, 1.442695
  %v2396 = vpow.pop %v2395
  %v2397 = vmul.f32 %v2389, 1.442695
  %v2398 = vpow.pop %v2397
  %v2399 = vmul.f32 %v2390, 1.442695
  %v2400 = vpow.pop %v2399
  %v2401 = vsel %vm680, %v2392, 0.0
  %2402 = vadd.xlane.f32.xlu0 %v2401
  %v2403 = vpop.xlane.xlu0 %2402
  %v2404 = vsel %vm680, %v2394, 0.0
  %2405 = vadd.xlane.f32.xlu0 %v2404
  %v2406 = vpop.xlane.xlu0 %2405
  %v2407 = vsel %vm680, %v2396, 0.0
  %2408 = vadd.xlane.f32.xlu0 %v2407
  %v2409 = vpop.xlane.xlu0 %2408
  %v2410 = vsel %vm680, %v2398, 0.0
  %2411 = vadd.xlane.f32.xlu0 %v2410
  %v2412 = vpop.xlane.xlu0 %2411
  %v2413 = vsel %vm680, %v2400, 0.0
  %2414 = vadd.xlane.f32.xlu0 %v2413
  %v2415 = vpop.xlane.xlu0 %2414
  %v2416 = vrcp.pop %v2403
  %v2417 = vmul.f32 %v2392, %v2416
  %v2418 = vrcp.pop %v2406
  %v2419 = vmul.f32 %v2394, %v2418
  %v2420 = vrcp.pop %v2409
  %v2421 = vmul.f32 %v2396, %v2420
  %v2422 = vrcp.pop %v2412
  %v2423 = vmul.f32 %v2398, %v2422
  %v2424 = vrcp.pop %v2415
  %v2425 = vmul.f32 %v2400, %v2424
  %v2427 = vsel %vm680, %v2417, 0
  %v2430 = vsel %vm680, %v2419, 0
  %v2433 = vsel %vm680, %v2421, 0
  %v2436 = vsel %vm680, %v2423, 0
  %v2439 = vsel %vm680, %v2425, 0
  %v2442 = vsel %vm696, %v2247, 0
  %2444 = vmatprep.subr.mxu0 0.0
  %2445 = vmatpush1.msra.mxu0 0.0
  %2446 = vmatprep.subr.mxu0 0.0
  %2447 = vmatpush1.msra.mxu0 0.0
  %2448 = vmatprep.subr.mxu0 0.0
  %2449 = vmatpush1.msra.mxu0 0.0
  %2450 = vmatprep.subr.mxu0 0.0
  %2451 = vmatpush1.msra.mxu0 0.0
  %2452 = vmatprep.subr.mxu0 0.0
  %2453 = vmatpush1.msra.mxu0 0.0
  %2454 = vmatprep.subr.mxu0 0.0
  %2455 = vmatpush1.msra.mxu0 0.0
  %2456 = vmatprep.subr.mxu0 0.0
  %2457 = vmatpush1.msra.mxu0 0.0
  %2458 = vmatprep.subr.mxu0 0.0
  %2459 = vmatpush1.msra.mxu0 0.0
  %2460 = vmatprep.subr.mxu0 0.0
  %2461 = vmatpush1.msra.mxu0 0.0
  %2462 = vmatprep.subr.mxu0 0.0
  %2463 = vmatpush1.msra.mxu0 0.0
  %2464 = vmatprep.subr.mxu0 0.0
  %2465 = vmatpush1.msra.mxu0 0.0
  %2466 = vmatprep.subr.mxu0 0.0
  %2467 = vmatpush1.msra.mxu0 0.0
  %2468 = vmatprep.subr.mxu0 0.0
  %2469 = vmatpush1.msra.mxu0 0.0
  %2470 = vmatprep.subr.mxu0 0.0
  %2471 = vmatpush1.msra.mxu0 0.0
  %2472 = vmatprep.subr.mxu0 0.0
  %2473 = vmatpush1.msra.mxu0 %v2442
  %2474 = vmatprep.subr.mxu0 0.0
  %2475 = vmatpush1.msra.mxu0 %v2242
  %2476 = vmatprep.subr.mxu0 0.0
  %2477 = vmatpush2.msra.mxu0 0.0
  %2478 = vmatprep.subr.mxu0 0.0
  %2479 = vmatpush2.msra.mxu0 0.0
  %2480 = vmatprep.subr.mxu0 0.0
  %2481 = vmatpush2.msra.mxu0 0.0
  %2482 = vmatprep.subr.mxu0 0.0
  %2483 = vmatpush2.msra.mxu0 0.0
  %2484 = vmatprep.subr.mxu0 0.0
  %2485 = vmatpush2.msra.mxu0 0.0
  %2486 = vmatprep.subr.mxu0 0.0
  %2487 = vmatpush2.msra.mxu0 0.0
  %2488 = vmatprep.subr.mxu0 0.0
  %2489 = vmatpush2.msra.mxu0 0.0
  %2490 = vmatprep.subr.mxu0 0.0
  %2491 = vmatpush2.msra.mxu0 0.0
  %2492 = vmatprep.subr.mxu0 0.0
  %2493 = vmatpush2.msra.mxu0 0.0
  %2494 = vmatprep.subr.mxu0 0.0
  %2495 = vmatpush2.msra.mxu0 0.0
  %2496 = vmatprep.subr.mxu0 0.0
  %2497 = vmatpush2.msra.mxu0 0.0
  %2498 = vmatprep.subr.mxu0 0.0
  %2499 = vmatpush2.msra.mxu0 0.0
  %2500 = vmatprep.subr.mxu0 0.0
  %2501 = vmatpush2.msra.mxu0 0.0
  %2502 = vmatprep.subr.mxu0 0.0
  %2503 = vmatpush2.msra.mxu0 0.0
  %2504 = vmatprep.subr.mxu0 0.0
  %2505 = vmatpush2.msra.mxu0 0.0
  %2506 = vmatprep.subr.mxu0 0.0
  %2507 = vmatpush2.msra.mxu0 0.0
  %2508 = vmatprep.mubr.f32.mxu0 0.0
  %2509 = vmatmul.mubr.f32.gmra.mxu0 %v2427
  %v2510 = vpop.f32.mrf.mxu0
  %v2511 = vadd.f32 0.0, %v2510
  %v2512 = vpop.f32.mrf.mxu0
  %2513 = vmatprep.mubr.f32.mxu0 0.0
  %2514 = vmatmul.mubr.f32.gmra.mxu0 %v2430
  %v2515 = vpop.f32.mrf.mxu0
  %v2516 = vadd.f32 0.0, %v2515
  %v2517 = vpop.f32.mrf.mxu0
  %2518 = vmatprep.mubr.f32.mxu0 0.0
  %2519 = vmatmul.mubr.f32.gmra.mxu0 %v2433
  %v2520 = vpop.f32.mrf.mxu0
  %v2521 = vadd.f32 0.0, %v2520
  %v2522 = vpop.f32.mrf.mxu0
  %2523 = vmatprep.mubr.f32.mxu0 0.0
  %2524 = vmatmul.mubr.f32.gmra.mxu0 %v2436
  %v2525 = vpop.f32.mrf.mxu0
  %v2526 = vadd.f32 0.0, %v2525
  %v2527 = vpop.f32.mrf.mxu0
  %2528 = vmatprep.mubr.f32.mxu0 0.0
  %2529 = vmatmul.mubr.f32.gmra.mxu0 %v2439
  %v2530 = vpop.f32.mrf.mxu0
  %v2531 = vadd.f32 0.0, %v2530
  %v2532 = vpop.f32.mrf.mxu0
  %2533 = vdwg.mxu0
  %v2534 = vmul.f32 %v2511, %v624
  %v2535 = vmul.f32 %v2516, %v625
  %v2536 = vmul.f32 %v2521, %v626
  %v2537 = vmul.f32 %v2526, %v627
  %v2538 = vmul.f32 %v2531, %v628
  %2539 = vmatprep.subr.mxu0 0.0
  %2540 = vmatpush1.msra.mxu0 0.0
  %2541 = vmatprep.subr.mxu0 0.0
  %2542 = vmatpush1.msra.mxu0 0.0
  %2543 = vmatprep.subr.mxu0 0.0
  %2544 = vmatpush1.msra.mxu0 0.0
  %2545 = vmatprep.subr.mxu0 0.0
  %2546 = vmatpush1.msra.mxu0 0.0
  %2547 = vmatprep.subr.mxu0 0.0
  %2548 = vmatpush1.msra.mxu0 0.0
  %2549 = vmatprep.subr.mxu0 0.0
  %2550 = vmatpush1.msra.mxu0 0.0
  %2551 = vmatprep.subr.mxu0 0.0
  %2552 = vmatpush1.msra.mxu0 0.0
  %2553 = vmatprep.subr.mxu0 0.0
  %2554 = vmatpush1.msra.mxu0 0.0
  %2555 = vmatprep.subr.mxu0 0.0
  %2556 = vmatpush1.msra.mxu0 0.0
  %2557 = vmatprep.subr.mxu0 0.0
  %2558 = vmatpush1.msra.mxu0 0.0
  %2559 = vmatprep.subr.mxu0 0.0
  %2560 = vmatpush1.msra.mxu0 0.0
  %2561 = vmatprep.subr.mxu0 0.0
  %2562 = vmatpush1.msra.mxu0 %v2538
  %2563 = vmatprep.subr.mxu0 0.0
  %2564 = vmatpush1.msra.mxu0 %v2537
  %2565 = vmatprep.subr.mxu0 0.0
  %2566 = vmatpush1.msra.mxu0 %v2536
  %2567 = vmatprep.subr.mxu0 0.0
  %2568 = vmatpush1.msra.mxu0 %v2535
  %2569 = vmatprep.subr.mxu0 0.0
  %2570 = vmatpush1.msra.mxu0 %v2534
  %2571 = vmatprep.subr.mxu0 0.0
  %2572 = vmatpush2.msra.mxu0 0.0
  %2573 = vmatprep.subr.mxu0 0.0
  %2574 = vmatpush2.msra.mxu0 0.0
  %2575 = vmatprep.subr.mxu0 0.0
  %2576 = vmatpush2.msra.mxu0 0.0
  %2577 = vmatprep.subr.mxu0 0.0
  %2578 = vmatpush2.msra.mxu0 0.0
  %2579 = vmatprep.subr.mxu0 0.0
  %2580 = vmatpush2.msra.mxu0 0.0
  %2581 = vmatprep.subr.mxu0 0.0
  %2582 = vmatpush2.msra.mxu0 0.0
  %2583 = vmatprep.subr.mxu0 0.0
  %2584 = vmatpush2.msra.mxu0 0.0
  %2585 = vmatprep.subr.mxu0 0.0
  %2586 = vmatpush2.msra.mxu0 0.0
  %2587 = vmatprep.subr.mxu0 0.0
  %2588 = vmatpush2.msra.mxu0 0.0
  %2589 = vmatprep.subr.mxu0 0.0
  %2590 = vmatpush2.msra.mxu0 0.0
  %2591 = vmatprep.subr.mxu0 0.0
  %2592 = vmatpush2.msra.mxu0 0.0
  %2593 = vmatprep.subr.mxu0 0.0
  %2594 = vmatpush2.msra.mxu0 0.0
  %2595 = vmatprep.subr.mxu0 0.0
  %2596 = vmatpush2.msra.mxu0 0.0
  %2597 = vmatprep.subr.mxu0 0.0
  %2598 = vmatpush2.msra.mxu0 0.0
  %2599 = vmatprep.subr.mxu0 0.0
  %2600 = vmatpush2.msra.mxu0 0.0
  %2601 = vmatprep.subr.mxu0 0.0
  %2602 = vmatpush2.msra.mxu0 0.0
  %2603 = vmatprep.mubr.f32.mxu0 0.0
  %2604 = vmatmul.mubr.f32.gmra.mxu0 %v1379
  %v2605 = vpop.f32.mrf.mxu0
  %v2606 = vadd.f32 0.0, %v2605
  %v2607 = vpop.f32.mrf.mxu0
  %2608 = vmatprep.mubr.f32.mxu0 0.0
  %2609 = vmatmul.mubr.f32.gmra.mxu0 %v1382
  %v2610 = vpop.f32.mrf.mxu0
  %v2611 = vadd.f32 0.0, %v2610
  %v2612 = vpop.f32.mrf.mxu0
  %2613 = vdwg.mxu0
  %s2614 = scalar_lea.vmem %s47, 32
  %v2615 = vld [vmem:[%s2614] sm:$0xff]
  %v2616 = vld [vmem:[%s2614 + $0x8] sm:$0xff]
  %v2617 = vld [vmem:[%s2614 + $0x10] sm:$0xff]
  %v2618 = vld [vmem:[%s2614 + $0x18] sm:$0xff]
  %v2620 = vsel %vm479, %v2606, 0
  %v2623 = vsel %vm479, %v2611, 0
  %2625 = vmatprep.subr.mxu0 0.0
  %2626 = vmatpush1.msra.mxu0 0.0
  %2627 = vmatprep.subr.mxu0 0.0
  %2628 = vmatpush1.msra.mxu0 0.0
  %2629 = vmatprep.subr.mxu0 0.0
  %2630 = vmatpush1.msra.mxu0 0.0
  %2631 = vmatprep.subr.mxu0 0.0
  %2632 = vmatpush1.msra.mxu0 0.0
  %2633 = vmatprep.subr.mxu0 0.0
  %2634 = vmatpush1.msra.mxu0 0.0
  %2635 = vmatprep.subr.mxu0 0.0
  %2636 = vmatpush1.msra.mxu0 0.0
  %2637 = vmatprep.subr.mxu0 0.0
  %2638 = vmatpush1.msra.mxu0 0.0
  %2639 = vmatprep.subr.mxu0 0.0
  %2640 = vmatpush1.msra.mxu0 0.0
  %2641 = vmatprep.subr.mxu0 0.0
  %2642 = vmatpush1.msra.mxu0 0.0
  %2643 = vmatprep.subr.mxu0 0.0
  %2644 = vmatpush1.msra.mxu0 0.0
  %2645 = vmatprep.subr.mxu0 0.0
  %2646 = vmatpush1.msra.mxu0 0.0
  %2647 = vmatprep.subr.mxu0 0.0
  %2648 = vmatpush1.msra.mxu0 0.0
  %2649 = vmatprep.subr.mxu0 0.0
  %2650 = vmatpush1.msra.mxu0 %v2618
  %2651 = vmatprep.subr.mxu0 0.0
  %2652 = vmatpush1.msra.mxu0 %v2617
  %2653 = vmatprep.subr.mxu0 0.0
  %2654 = vmatpush1.msra.mxu0 %v2616
  %2655 = vmatprep.subr.mxu0 0.0
  %2656 = vmatpush1.msra.mxu0 %v2615
  %2657 = vmatprep.subr.mxu0 0.0
  %2658 = vmatpush2.msra.mxu0 0.0
  %2659 = vmatprep.subr.mxu0 0.0
  %2660 = vmatpush2.msra.mxu0 0.0
  %2661 = vmatprep.subr.mxu0 0.0
  %2662 = vmatpush2.msra.mxu0 0.0
  %2663 = vmatprep.subr.mxu0 0.0
  %2664 = vmatpush2.msra.mxu0 0.0
  %2665 = vmatprep.subr.mxu0 0.0
  %2666 = vmatpush2.msra.mxu0 0.0
  %2667 = vmatprep.subr.mxu0 0.0
  %2668 = vmatpush2.msra.mxu0 0.0
  %2669 = vmatprep.subr.mxu0 0.0
  %2670 = vmatpush2.msra.mxu0 0.0
  %2671 = vmatprep.subr.mxu0 0.0
  %2672 = vmatpush2.msra.mxu0 0.0
  %2673 = vmatprep.subr.mxu0 0.0
  %2674 = vmatpush2.msra.mxu0 0.0
  %2675 = vmatprep.subr.mxu0 0.0
  %2676 = vmatpush2.msra.mxu0 0.0
  %2677 = vmatprep.subr.mxu0 0.0
  %2678 = vmatpush2.msra.mxu0 0.0
  %2679 = vmatprep.subr.mxu0 0.0
  %2680 = vmatpush2.msra.mxu0 0.0
  %2681 = vmatprep.subr.mxu0 0.0
  %2682 = vmatpush2.msra.mxu0 0.0
  %2683 = vmatprep.subr.mxu0 0.0
  %2684 = vmatpush2.msra.mxu0 0.0
  %2685 = vmatprep.subr.mxu0 0.0
  %2686 = vmatpush2.msra.mxu0 0.0
  %2687 = vmatprep.subr.mxu0 0.0
  %2688 = vmatpush2.msra.mxu0 0.0
  %2689 = vmatprep.mubr.f32.mxu0 0.0
  %2690 = vmatmul.mubr.f32.gmra.mxu0 %v2620
  %v2691 = vpop.f32.mrf.mxu0
  %v2692 = vadd.f32 0.0, %v2691
  %v2693 = vpop.f32.mrf.mxu0
  %2694 = vmatprep.mubr.f32.mxu0 0.0
  %2695 = vmatmul.mubr.f32.gmra.mxu0 %v2623
  %v2696 = vpop.f32.mrf.mxu0
  %v2697 = vadd.f32 0.0, %v2696
  %v2698 = vpop.f32.mrf.mxu0
  %2699 = vdwg.mxu0
  %v2700 = vadd.f32 %v1805, %v2692
  %v2701 = vadd.f32 %v1806, %v2697
  %s2702 = scalar_lea.vmem %s49, 1
  %v2703 = vld [vmem:[%s2702] sm:$0x1]
  %v2705 = vlaneseq
  %v2706 = vshrl.u32 %v2705, 7
  %v2707 = vsub.s32 0, %v2706
  %v2708 = vrot.slane %v2703, %v2707
  %v2710 = vadd.f32 %v2700, %v2708
  %v2711 = vadd.f32 %v2701, %v2708
  %s2712 = scalar_lea.vmem %s51, 1
  %v2713 = vld [vmem:[%s2712] sm:$0x1]
  %s2714 = scalar_lea.vmem %s53, 1
  %v2715 = vld [vmem:[%s2714] sm:$0x1]
  %v2716 = vsel %vm479, %v2710, 0.0
  %2717 = vadd.xlane.f32.xlu0 %v2716
  %v2718 = vpop.xlane.xlu0 %2717
  %v2719 = vsel %vm483, %v2711, 0.0
  %2720 = vadd.xlane.f32.xlu0 %v2719
  %v2721 = vpop.xlane.xlu0 %2720
  %v2722 = vmul.f32 %v2718, %v487
  %v2723 = vmul.f32 %v2721, %v487
  %v2724 = vsub.f32 %v2710, %v2722
  %v2725 = vsub.f32 %v2711, %v2723
  %v2726 = vmul.f32 %v2724, %v2724
  %v2727 = vmul.f32 %v2725, %v2725
  %v2728 = vsel %vm479, %v2726, 0.0
  %2729 = vadd.xlane.f32.xlu0 %v2728
  %v2730 = vpop.xlane.xlu0 %2729
  %v2731 = vsel %vm483, %v2727, 0.0
  %2732 = vadd.xlane.f32.xlu0 %v2731
  %v2733 = vpop.xlane.xlu0 %2732
  %v2734 = vmul.f32 %v2730, %v487
  %v2735 = vmul.f32 %v2733, %v487
  %v2736 = vadd.f32 %v2734, 1e-05
  %v2737 = vadd.f32 %v2735, 1e-05
  %v2738 = vrsqrt.pop %v2736
  %v2739 = vrsqrt.pop %v2737
  %v2740 = vmul.f32 %v2724, %v2738
  %v2741 = vmul.f32 %v2725, %v2739
  %v2743 = vlaneseq
  %v2744 = vshrl.u32 %v2743, 7
  %v2745 = vsub.s32 0, %v2744
  %v2746 = vrot.slane %v2713, %v2745
  %v2748 = vmul.f32 %v2740, %v2746
  %v2749 = vmul.f32 %v2741, %v2746
  %v2751 = vlaneseq
  %v2752 = vshrl.u32 %v2751, 7
  %v2753 = vsub.s32 0, %v2752
  %v2754 = vrot.slane %v2715, %v2753
  %v2756 = vadd.f32 %v2748, %v2754
  %v2757 = vadd.f32 %v2749, %v2754
  %s2758 = scalar_lea.vmem %s55, 32
  %v2759 = vld [vmem:[%s2758] sm:$0xff]
  %v2760 = vld [vmem:[%s2758 + $0x8] sm:$0xff]
  %v2761 = vld [vmem:[%s2758 + $0x10] sm:$0xff]
  %v2762 = vld [vmem:[%s2758 + $0x18] sm:$0xff]
  %s2763 = scalar_lea.vmem %s57, 1
  %v2764 = vld [vmem:[%s2763] sm:$0x1]
  %v2766 = vlaneseq
  %v2767 = vshrl.u32 %v2766, 7
  %v2768 = vsub.s32 0, %v2767
  %v2769 = vrot.slane %v2764, %v2768
  %v2772 = vsel %vm479, %v2756, 0
  %v2775 = vsel %vm479, %v2757, 0
  %2777 = vmatprep.subr.mxu0 0.0
  %2778 = vmatpush1.msra.mxu0 0.0
  %2779 = vmatprep.subr.mxu0 0.0
  %2780 = vmatpush1.msra.mxu0 0.0
  %2781 = vmatprep.subr.mxu0 0.0
  %2782 = vmatpush1.msra.mxu0 0.0
  %2783 = vmatprep.subr.mxu0 0.0
  %2784 = vmatpush1.msra.mxu0 0.0
  %2785 = vmatprep.subr.mxu0 0.0
  %2786 = vmatpush1.msra.mxu0 0.0
  %2787 = vmatprep.subr.mxu0 0.0
  %2788 = vmatpush1.msra.mxu0 0.0
  %2789 = vmatprep.subr.mxu0 0.0
  %2790 = vmatpush1.msra.mxu0 0.0
  %2791 = vmatprep.subr.mxu0 0.0
  %2792 = vmatpush1.msra.mxu0 0.0
  %2793 = vmatprep.subr.mxu0 0.0
  %2794 = vmatpush1.msra.mxu0 0.0
  %2795 = vmatprep.subr.mxu0 0.0
  %2796 = vmatpush1.msra.mxu0 0.0
  %2797 = vmatprep.subr.mxu0 0.0
  %2798 = vmatpush1.msra.mxu0 0.0
  %2799 = vmatprep.subr.mxu0 0.0
  %2800 = vmatpush1.msra.mxu0 0.0
  %2801 = vmatprep.subr.mxu0 0.0
  %2802 = vmatpush1.msra.mxu0 %v2762
  %2803 = vmatprep.subr.mxu0 0.0
  %2804 = vmatpush1.msra.mxu0 %v2761
  %2805 = vmatprep.subr.mxu0 0.0
  %2806 = vmatpush1.msra.mxu0 %v2760
  %2807 = vmatprep.subr.mxu0 0.0
  %2808 = vmatpush1.msra.mxu0 %v2759
  %2809 = vmatprep.subr.mxu0 0.0
  %2810 = vmatpush2.msra.mxu0 0.0
  %2811 = vmatprep.subr.mxu0 0.0
  %2812 = vmatpush2.msra.mxu0 0.0
  %2813 = vmatprep.subr.mxu0 0.0
  %2814 = vmatpush2.msra.mxu0 0.0
  %2815 = vmatprep.subr.mxu0 0.0
  %2816 = vmatpush2.msra.mxu0 0.0
  %2817 = vmatprep.subr.mxu0 0.0
  %2818 = vmatpush2.msra.mxu0 0.0
  %2819 = vmatprep.subr.mxu0 0.0
  %2820 = vmatpush2.msra.mxu0 0.0
  %2821 = vmatprep.subr.mxu0 0.0
  %2822 = vmatpush2.msra.mxu0 0.0
  %2823 = vmatprep.subr.mxu0 0.0
  %2824 = vmatpush2.msra.mxu0 0.0
  %2825 = vmatprep.subr.mxu0 0.0
  %2826 = vmatpush2.msra.mxu0 0.0
  %2827 = vmatprep.subr.mxu0 0.0
  %2828 = vmatpush2.msra.mxu0 0.0
  %2829 = vmatprep.subr.mxu0 0.0
  %2830 = vmatpush2.msra.mxu0 0.0
  %2831 = vmatprep.subr.mxu0 0.0
  %2832 = vmatpush2.msra.mxu0 0.0
  %2833 = vmatprep.subr.mxu0 0.0
  %2834 = vmatpush2.msra.mxu0 0.0
  %2835 = vmatprep.subr.mxu0 0.0
  %2836 = vmatpush2.msra.mxu0 0.0
  %2837 = vmatprep.subr.mxu0 0.0
  %2838 = vmatpush2.msra.mxu0 0.0
  %2839 = vmatprep.subr.mxu0 0.0
  %2840 = vmatpush2.msra.mxu0 0.0
  %2841 = vmatprep.mubr.f32.mxu0 0.0
  %2842 = vmatmul.mubr.f32.gmra.mxu0 %v2772
  %v2843 = vpop.f32.mrf.mxu0
  %v2844 = vadd.f32 %v2769, %v2843
  %v2845 = vpop.f32.mrf.mxu0
  %2846 = vmatprep.mubr.f32.mxu0 0.0
  %2847 = vmatmul.mubr.f32.gmra.mxu0 %v2775
  %v2848 = vpop.f32.mrf.mxu0
  %v2849 = vadd.f32 %v2769, %v2848
  %v2850 = vpop.f32.mrf.mxu0
  %2851 = vdwg.mxu0
  %v2852 = vmul.f32 %v2844, -1.702
  %v2853 = vmul.f32 %v2849, -1.702
  %v2854 = vmul.f32 %v2852, 1.442695
  %v2855 = vpow.pop %v2854
  %v2856 = vmul.f32 %v2853, 1.442695
  %v2857 = vpow.pop %v2856
  %v2858 = vadd.f32 %v2855, 1.0
  %v2859 = vadd.f32 %v2857, 1.0
  %v2860 = vrcp.pop %v2858
  %v2861 = vmul.f32 1.0, %v2860
  %v2862 = vrcp.pop %v2859
  %v2863 = vmul.f32 1.0, %v2862
  %v2864 = vmul.f32 %v2844, %v2861
  %v2865 = vmul.f32 %v2849, %v2863
  %s2866 = scalar_lea.vmem %s59, 128
  %v2867 = vld [vmem:[%s2866] sm:$0xff]
  %v2868 = vld [vmem:[%s2866 + $0x8] sm:$0xff]
  %v2869 = vld [vmem:[%s2866 + $0x10] sm:$0xff]
  %v2870 = vld [vmem:[%s2866 + $0x18] sm:$0xff]
  %v2871 = vld [vmem:[%s2866 + $0x20] sm:$0xff]
  %v2872 = vld [vmem:[%s2866 + $0x28] sm:$0xff]
  %v2873 = vld [vmem:[%s2866 + $0x30] sm:$0xff]
  %v2874 = vld [vmem:[%s2866 + $0x38] sm:$0xff]
  %v2875 = vld [vmem:[%s2866 + $0x40] sm:$0xff]
  %v2876 = vld [vmem:[%s2866 + $0x48] sm:$0xff]
  %v2877 = vld [vmem:[%s2866 + $0x50] sm:$0xff]
  %v2878 = vld [vmem:[%s2866 + $0x58] sm:$0xff]
  %v2879 = vld [vmem:[%s2866 + $0x60] sm:$0xff]
  %v2880 = vld [vmem:[%s2866 + $0x68] sm:$0xff]
  %v2881 = vld [vmem:[%s2866 + $0x70] sm:$0xff]
  %v2882 = vld [vmem:[%s2866 + $0x78] sm:$0xff]
  %2883 = vmatprep.subr.mxu0 0.0
  %2884 = vmatpush1.msra.mxu0 %v2882
  %2885 = vmatprep.subr.mxu0 0.0
  %2886 = vmatpush1.msra.mxu0 %v2881
  %2887 = vmatprep.subr.mxu0 0.0
  %2888 = vmatpush1.msra.mxu0 %v2880
  %2889 = vmatprep.subr.mxu0 0.0
  %2890 = vmatpush1.msra.mxu0 %v2879
  %2891 = vmatprep.subr.mxu0 0.0
  %2892 = vmatpush1.msra.mxu0 %v2878
  %2893 = vmatprep.subr.mxu0 0.0
  %2894 = vmatpush1.msra.mxu0 %v2877
  %2895 = vmatprep.subr.mxu0 0.0
  %2896 = vmatpush1.msra.mxu0 %v2876
  %2897 = vmatprep.subr.mxu0 0.0
  %2898 = vmatpush1.msra.mxu0 %v2875
  %2899 = vmatprep.subr.mxu0 0.0
  %2900 = vmatpush1.msra.mxu0 %v2874
  %2901 = vmatprep.subr.mxu0 0.0
  %2902 = vmatpush1.msra.mxu0 %v2873
  %2903 = vmatprep.subr.mxu0 0.0
  %2904 = vmatpush1.msra.mxu0 %v2872
  %2905 = vmatprep.subr.mxu0 0.0
  %2906 = vmatpush1.msra.mxu0 %v2871
  %2907 = vmatprep.subr.mxu0 0.0
  %2908 = vmatpush1.msra.mxu0 %v2870
  %2909 = vmatprep.subr.mxu0 0.0
  %2910 = vmatpush1.msra.mxu0 %v2869
  %2911 = vmatprep.subr.mxu0 0.0
  %2912 = vmatpush1.msra.mxu0 %v2868
  %2913 = vmatprep.subr.mxu0 0.0
  %2914 = vmatpush1.msra.mxu0 %v2867
  %2915 = vmatprep.subr.mxu0 0.0
  %2916 = vmatpush2.msra.mxu0 0.0
  %2917 = vmatprep.subr.mxu0 0.0
  %2918 = vmatpush2.msra.mxu0 0.0
  %2919 = vmatprep.subr.mxu0 0.0
  %2920 = vmatpush2.msra.mxu0 0.0
  %2921 = vmatprep.subr.mxu0 0.0
  %2922 = vmatpush2.msra.mxu0 0.0
  %2923 = vmatprep.subr.mxu0 0.0
  %2924 = vmatpush2.msra.mxu0 0.0
  %2925 = vmatprep.subr.mxu0 0.0
  %2926 = vmatpush2.msra.mxu0 0.0
  %2927 = vmatprep.subr.mxu0 0.0
  %2928 = vmatpush2.msra.mxu0 0.0
  %2929 = vmatprep.subr.mxu0 0.0
  %2930 = vmatpush2.msra.mxu0 0.0
  %2931 = vmatprep.subr.mxu0 0.0
  %2932 = vmatpush2.msra.mxu0 0.0
  %2933 = vmatprep.subr.mxu0 0.0
  %2934 = vmatpush2.msra.mxu0 0.0
  %2935 = vmatprep.subr.mxu0 0.0
  %2936 = vmatpush2.msra.mxu0 0.0
  %2937 = vmatprep.subr.mxu0 0.0
  %2938 = vmatpush2.msra.mxu0 0.0
  %2939 = vmatprep.subr.mxu0 0.0
  %2940 = vmatpush2.msra.mxu0 0.0
  %2941 = vmatprep.subr.mxu0 0.0
  %2942 = vmatpush2.msra.mxu0 0.0
  %2943 = vmatprep.subr.mxu0 0.0
  %2944 = vmatpush2.msra.mxu0 0.0
  %2945 = vmatprep.subr.mxu0 0.0
  %2946 = vmatpush2.msra.mxu0 0.0
  %2947 = vmatprep.mubr.f32.mxu0 0.0
  %2948 = vmatmul.mubr.f32.gmra.mxu0 %v2864
  %v2949 = vpop.f32.mrf.mxu0
  %v2950 = vadd.f32 0.0, %v2949
  %v2951 = vpop.f32.mrf.mxu0
  %2952 = vmatprep.mubr.f32.mxu0 0.0
  %2953 = vmatmul.mubr.f32.gmra.mxu0 %v2865
  %v2954 = vpop.f32.mrf.mxu0
  %v2955 = vadd.f32 0.0, %v2954
  %v2956 = vpop.f32.mrf.mxu0
  %2957 = vdwg.mxu0
  %v2958 = vadd.f32 %v2710, %v2950
  %v2959 = vadd.f32 %v2711, %v2955
  %s2960 = scalar_lea.vmem %s61, 1
  %v2961 = vld [vmem:[%s2960] sm:$0x1]
  %v2963 = vlaneseq
  %v2964 = vshrl.u32 %v2963, 7
  %v2965 = vsub.s32 0, %v2964
  %v2966 = vrot.slane %v2961, %v2965
  %v2968 = vadd.f32 %v2958, %v2966
  %v2969 = vadd.f32 %v2959, %v2966
  %v2970 = vld [vmem:[%s27] sm:$0x3]
  %v2972 = vsel %vm680, %v2970, 0
  %v2975 = vsel %vm696, %v2969, 0
  %2977 = vmatprep.subr.mxu0 0.0
  %2978 = vmatpush1.msra.mxu0 0.0
  %2979 = vmatprep.subr.mxu0 0.0
  %2980 = vmatpush1.msra.mxu0 0.0
  %2981 = vmatprep.subr.mxu0 0.0
  %2982 = vmatpush1.msra.mxu0 0.0
  %2983 = vmatprep.subr.mxu0 0.0
  %2984 = vmatpush1.msra.mxu0 0.0
  %2985 = vmatprep.subr.mxu0 0.0
  %2986 = vmatpush1.msra.mxu0 0.0
  %2987 = vmatprep.subr.mxu0 0.0
  %2988 = vmatpush1.msra.mxu0 0.0
  %2989 = vmatprep.subr.mxu0 0.0
  %2990 = vmatpush1.msra.mxu0 0.0
  %2991 = vmatprep.subr.mxu0 0.0
  %2992 = vmatpush1.msra.mxu0 0.0
  %2993 = vmatprep.subr.mxu0 0.0
  %2994 = vmatpush1.msra.mxu0 0.0
  %2995 = vmatprep.subr.mxu0 0.0
  %2996 = vmatpush1.msra.mxu0 0.0
  %2997 = vmatprep.subr.mxu0 0.0
  %2998 = vmatpush1.msra.mxu0 0.0
  %2999 = vmatprep.subr.mxu0 0.0
  %3000 = vmatpush1.msra.mxu0 0.0
  %3001 = vmatprep.subr.mxu0 0.0
  %3002 = vmatpush1.msra.mxu0 0.0
  %3003 = vmatprep.subr.mxu0 0.0
  %3004 = vmatpush1.msra.mxu0 0.0
  %3005 = vmatprep.subr.mxu0 0.0
  %3006 = vmatpush1.msra.mxu0 %v2975
  %3007 = vmatprep.subr.mxu0 0.0
  %3008 = vmatpush1.msra.mxu0 %v2968
  %3009 = vmatprep.subr.mxu0 0.0
  %3010 = vmatpush2.msra.mxu0 0.0
  %3011 = vmatprep.subr.mxu0 0.0
  %3012 = vmatpush2.msra.mxu0 0.0
  %3013 = vmatprep.subr.mxu0 0.0
  %3014 = vmatpush2.msra.mxu0 0.0
  %3015 = vmatprep.subr.mxu0 0.0
  %3016 = vmatpush2.msra.mxu0 0.0
  %3017 = vmatprep.subr.mxu0 0.0
  %3018 = vmatpush2.msra.mxu0 0.0
  %3019 = vmatprep.subr.mxu0 0.0
  %3020 = vmatpush2.msra.mxu0 0.0
  %3021 = vmatprep.subr.mxu0 0.0
  %3022 = vmatpush2.msra.mxu0 0.0
  %3023 = vmatprep.subr.mxu0 0.0
  %3024 = vmatpush2.msra.mxu0 0.0
  %3025 = vmatprep.subr.mxu0 0.0
  %3026 = vmatpush2.msra.mxu0 0.0
  %3027 = vmatprep.subr.mxu0 0.0
  %3028 = vmatpush2.msra.mxu0 0.0
  %3029 = vmatprep.subr.mxu0 0.0
  %3030 = vmatpush2.msra.mxu0 0.0
  %3031 = vmatprep.subr.mxu0 0.0
  %3032 = vmatpush2.msra.mxu0 0.0
  %3033 = vmatprep.subr.mxu0 0.0
  %3034 = vmatpush2.msra.mxu0 0.0
  %3035 = vmatprep.subr.mxu0 0.0
  %3036 = vmatpush2.msra.mxu0 0.0
  %3037 = vmatprep.subr.mxu0 0.0
  %3038 = vmatpush2.msra.mxu0 0.0
  %3039 = vmatprep.subr.mxu0 0.0
  %3040 = vmatpush2.msra.mxu0 0.0
  %3041 = vmatprep.mubr.f32.mxu0 0.0
  %3042 = vmatmul.mubr.f32.gmra.mxu0 %v2972
  %v3043 = vpop.f32.mrf.mxu0
  %v3044 = vadd.f32 0.0, %v3043
  %v3045 = vpop.f32.mrf.mxu0
  %3046 = vdwg.mxu0
  %v3048 = vsel %vm479, %v3044, 0
  %v3051 = vsel %vm479, %v2968, 0
  %v3053 = vsel %vm479, %v2969, 0
  %3055 = vmatprep.subr.mxu0 0.0
  %3056 = vmatpush1.xpose.msra.mxu0 0.0
  %3057 = vmatprep.subr.mxu0 0.0
  %3058 = vmatpush1.xpose.msra.mxu0 0.0
  %3059 = vmatprep.subr.mxu0 0.0
  %3060 = vmatpush1.xpose.msra.mxu0 0.0
  %3061 = vmatprep.subr.mxu0 0.0
  %3062 = vmatpush1.xpose.msra.mxu0 0.0
  %3063 = vmatprep.subr.mxu0 0.0
  %3064 = vmatpush1.xpose.msra.mxu0 0.0
  %3065 = vmatprep.subr.mxu0 0.0
  %3066 = vmatpush1.xpose.msra.mxu0 0.0
  %3067 = vmatprep.subr.mxu0 0.0
  %3068 = vmatpush1.xpose.msra.mxu0 0.0
  %3069 = vmatprep.subr.mxu0 0.0
  %3070 = vmatpush1.xpose.msra.mxu0 0.0
  %3071 = vmatprep.subr.mxu0 0.0
  %3072 = vmatpush1.xpose.msra.mxu0 0.0
  %3073 = vmatprep.subr.mxu0 0.0
  %3074 = vmatpush1.xpose.msra.mxu0 0.0
  %3075 = vmatprep.subr.mxu0 0.0
  %3076 = vmatpush1.xpose.msra.mxu0 0.0
  %3077 = vmatprep.subr.mxu0 0.0
  %3078 = vmatpush1.xpose.msra.mxu0 0.0
  %3079 = vmatprep.subr.mxu0 0.0
  %3080 = vmatpush1.xpose.msra.mxu0 0.0
  %3081 = vmatprep.subr.mxu0 0.0
  %3082 = vmatpush1.xpose.msra.mxu0 0.0
  %3083 = vmatprep.subr.mxu0 0.0
  %3084 = vmatpush1.xpose.msra.mxu0 %v3053
  %3085 = vmatprep.subr.mxu0 0.0
  %3086 = vmatpush1.xpose.msra.mxu0 %v3051
  %3087 = vmatprep.subr.mxu0 0.0
  %3088 = vmatpush2.xpose.msra.mxu0 0.0
  %3089 = vmatprep.subr.mxu0 0.0
  %3090 = vmatpush2.xpose.msra.mxu0 0.0
  %3091 = vmatprep.subr.mxu0 0.0
  %3092 = vmatpush2.xpose.msra.mxu0 0.0
  %3093 = vmatprep.subr.mxu0 0.0
  %3094 = vmatpush2.xpose.msra.mxu0 0.0
  %3095 = vmatprep.subr.mxu0 0.0
  %3096 = vmatpush2.xpose.msra.mxu0 0.0
  %3097 = vmatprep.subr.mxu0 0.0
  %3098 = vmatpush2.xpose.msra.mxu0 0.0
  %3099 = vmatprep.subr.mxu0 0.0
  %3100 = vmatpush2.xpose.msra.mxu0 0.0
  %3101 = vmatprep.subr.mxu0 0.0
  %3102 = vmatpush2.xpose.msra.mxu0 0.0
  %3103 = vmatprep.subr.mxu0 0.0
  %3104 = vmatpush2.xpose.msra.mxu0 0.0
  %3105 = vmatprep.subr.mxu0 0.0
  %3106 = vmatpush2.xpose.msra.mxu0 0.0
  %3107 = vmatprep.subr.mxu0 0.0
  %3108 = vmatpush2.xpose.msra.mxu0 0.0
  %3109 = vmatprep.subr.mxu0 0.0
  %3110 = vmatpush2.xpose.msra.mxu0 0.0
  %3111 = vmatprep.subr.mxu0 0.0
  %3112 = vmatpush2.xpose.msra.mxu0 0.0
  %3113 = vmatprep.subr.mxu0 0.0
  %3114 = vmatpush2.xpose.msra.mxu0 0.0
  %3115 = vmatprep.subr.mxu0 0.0
  %3116 = vmatpush2.xpose.msra.mxu0 0.0
  %3117 = vmatprep.subr.mxu0 0.0
  %3118 = vmatpush2.xpose.msra.mxu0 0.0
  %3119 = vmatprep.mubr.f32.mxu0 0.0
  %3120 = vmatmul.mubr.f32.gmra.mxu0 %v3048
  %v3121 = vpop.f32.mrf.mxu0
  %v3122 = vadd.f32 0.0, %v3121
  %v3123 = vpop.f32.mrf.mxu0
  %3124 = vdwg.mxu0
  %v3125 = vmul.f32 %v2968, %v2968
  %v3126 = vmul.f32 %v2969, %v2969
  %v3128 = vsel %vm479, 1.0, 0
  %v3131 = vsel %vm479, %v3125, 0
  %v3134 = vsel %vm479, %v3126, 0
  %3136 = vmatprep.subr.mxu0 0.0
  %3137 = vmatpush1.xpose.msra.mxu0 0.0
  %3138 = vmatprep.subr.mxu0 0.0
  %3139 = vmatpush1.xpose.msra.mxu0 0.0
  %3140 = vmatprep.subr.mxu0 0.0
  %3141 = vmatpush1.xpose.msra.mxu0 0.0
  %3142 = vmatprep.subr.mxu0 0.0
  %3143 = vmatpush1.xpose.msra.mxu0 0.0
  %3144 = vmatprep.subr.mxu0 0.0
  %3145 = vmatpush1.xpose.msra.mxu0 0.0
  %3146 = vmatprep.subr.mxu0 0.0
  %3147 = vmatpush1.xpose.msra.mxu0 0.0
  %3148 = vmatprep.subr.mxu0 0.0
  %3149 = vmatpush1.xpose.msra.mxu0 0.0
  %3150 = vmatprep.subr.mxu0 0.0
  %3151 = vmatpush1.xpose.msra.mxu0 0.0
  %3152 = vmatprep.subr.mxu0 0.0
  %3153 = vmatpush1.xpose.msra.mxu0 0.0
  %3154 = vmatprep.subr.mxu0 0.0
  %3155 = vmatpush1.xpose.msra.mxu0 0.0
  %3156 = vmatprep.subr.mxu0 0.0
  %3157 = vmatpush1.xpose.msra.mxu0 0.0
  %3158 = vmatprep.subr.mxu0 0.0
  %3159 = vmatpush1.xpose.msra.mxu0 0.0
  %3160 = vmatprep.subr.mxu0 0.0
  %3161 = vmatpush1.xpose.msra.mxu0 0.0
  %3162 = vmatprep.subr.mxu0 0.0
  %3163 = vmatpush1.xpose.msra.mxu0 0.0
  %3164 = vmatprep.subr.mxu0 0.0
  %3165 = vmatpush1.xpose.msra.mxu0 %v3134
  %3166 = vmatprep.subr.mxu0 0.0
  %3167 = vmatpush1.xpose.msra.mxu0 %v3131
  %3168 = vmatprep.subr.mxu0 0.0
  %3169 = vmatpush2.xpose.msra.mxu0 0.0
  %3170 = vmatprep.subr.mxu0 0.0
  %3171 = vmatpush2.xpose.msra.mxu0 0.0
  %3172 = vmatprep.subr.mxu0 0.0
  %3173 = vmatpush2.xpose.msra.mxu0 0.0
  %3174 = vmatprep.subr.mxu0 0.0
  %3175 = vmatpush2.xpose.msra.mxu0 0.0
  %3176 = vmatprep.subr.mxu0 0.0
  %3177 = vmatpush2.xpose.msra.mxu0 0.0
  %3178 = vmatprep.subr.mxu0 0.0
  %3179 = vmatpush2.xpose.msra.mxu0 0.0
  %3180 = vmatprep.subr.mxu0 0.0
  %3181 = vmatpush2.xpose.msra.mxu0 0.0
  %3182 = vmatprep.subr.mxu0 0.0
  %3183 = vmatpush2.xpose.msra.mxu0 0.0
  %3184 = vmatprep.subr.mxu0 0.0
  %3185 = vmatpush2.xpose.msra.mxu0 0.0
  %3186 = vmatprep.subr.mxu0 0.0
  %3187 = vmatpush2.xpose.msra.mxu0 0.0
  %3188 = vmatprep.subr.mxu0 0.0
  %3189 = vmatpush2.xpose.msra.mxu0 0.0
  %3190 = vmatprep.subr.mxu0 0.0
  %3191 = vmatpush2.xpose.msra.mxu0 0.0
  %3192 = vmatprep.subr.mxu0 0.0
  %3193 = vmatpush2.xpose.msra.mxu0 0.0
  %3194 = vmatprep.subr.mxu0 0.0
  %3195 = vmatpush2.xpose.msra.mxu0 0.0
  %3196 = vmatprep.subr.mxu0 0.0
  %3197 = vmatpush2.xpose.msra.mxu0 0.0
  %3198 = vmatprep.subr.mxu0 0.0
  %3199 = vmatpush2.xpose.msra.mxu0 0.0
  %3200 = vmatprep.mubr.f32.mxu0 0.0
  %3201 = vmatmul.mubr.f32.gmra.mxu0 %v3128
  %v3202 = vpop.f32.mrf.mxu0
  %v3203 = vadd.f32 0.0, %v3202
  %v3204 = vpop.f32.mrf.mxu0
  %3205 = vdwg.mxu0
  %v3206 = vmul.f32 %v3044, %v3044
  %v3207 = vsel %vm483, %v3206, 0.0
  %3208 = vadd.xlane.f32.xlu0 %v3207
  %v3209 = vpop.xlane.xlu0 %3208
  %v3210 = vrsqrt.pop %v3209
  %v3211 = vmul.f32 %v3209, %v3210
  %vm3212 = vcmp.eq.f32.partialorder %v3209, inf
  %v3213 = vsel %vm3212, %v3209, %v3211
  %vm3214 = vcmp.eq.f32.partialorder %v3209, 0.0
  %v3215 = vand.u32 %v3209, 2147483648
  %v3216 = vsel %vm3214, %v3215, %v3213
  %v3217 = vrsqrt.pop %v3203
  %v3218 = vmul.f32 %v3203, %v3217
  %vm3219 = vcmp.eq.f32.partialorder %v3203, inf
  %v3220 = vsel %vm3219, %v3203, %v3218
  %vm3221 = vcmp.eq.f32.partialorder %v3203, 0.0
  %v3222 = vand.u32 %v3203, 2147483648
  %v3223 = vsel %vm3221, %v3222, %v3220
  %v3224 = vlaneseq
  %v3225 = vshrl.u32 %v3224, 7
  %v3226 = vsub.s32 0, %v3225
  %v3227 = vrot.slane %v3223, %v3226
  %v3228 = vmul.f32 %v3227, %v3216
  %v3229 = vadd.f32 %v3228, 1e-07
  %v3230 = vrcp.pop %v3229
  %v3231 = vmul.f32 %v3122, %v3230
  %v3232 = vld [vmem:[%s29] sm:$0x3]
  %vm3233 = vcmp.gt.f32.partialorder %v3232, 0.5
  %v3234 = vsel %vm3233, %v3231, -1e+30
  %vm3235 = vcmask 74752
  %v3236 = vsel %vm3235, %v3234, -inf
  %3237 = vmax.xlane.f32.xlu0 %v3236
  %v3238 = vpop.xlane.xlu0 %3237
  %v3239 = vsel %vm3233, %v3231, 1e+30
  %v3240 = vsel %vm3235, %v3239, inf
  %3241 = vmin.xlane.f32.xlu0 %v3240
  %v3242 = vpop.xlane.xlu0 %3241
  %v3243 = vsub.f32 %v3231, %v3242
  %v3244 = vsub.f32 %v3238, %v3242
  %v3245 = vadd.f32 %v3244, 1e-07
  %v3246 = vrcp.pop %v3245
  %v3247 = vmul.f32 %v3243, %v3246
  %v3248 = vsub.f32 %v609, %v2968
  %v3249 = vsub.f32 %v614, %v2969
  %v3250 = vmul.f32 %v617, %v3248
  %v3251 = vmul.f32 %v618, %v3249
  %v3252 = vadd.f32 %v2968, %v3250
  %v3253 = vadd.f32 %v2969, %v3251
  %s3254 = scalar_lea.vmem %s31, 2
  %v3255 = vld [vmem:[%s3254] sm:$0x1]
  %s3256 = scalar_lea.vmem %s33, 2
  %v3257 = vld [vmem:[%s3256] sm:$0x1]
  %v3258 = vsel %vm479, %v3252, 0.0
  %3259 = vadd.xlane.f32.xlu0 %v3258
  %v3260 = vpop.xlane.xlu0 %3259
  %v3261 = vsel %vm483, %v3253, 0.0
  %3262 = vadd.xlane.f32.xlu0 %v3261
  %v3263 = vpop.xlane.xlu0 %3262
  %v3264 = vmul.f32 %v3260, %v487
  %v3265 = vmul.f32 %v3263, %v487
  %v3266 = vsub.f32 %v3252, %v3264
  %v3267 = vsub.f32 %v3253, %v3265
  %v3268 = vmul.f32 %v3266, %v3266
  %v3269 = vmul.f32 %v3267, %v3267
  %v3270 = vsel %vm479, %v3268, 0.0
  %3271 = vadd.xlane.f32.xlu0 %v3270
  %v3272 = vpop.xlane.xlu0 %3271
  %v3273 = vsel %vm483, %v3269, 0.0
  %3274 = vadd.xlane.f32.xlu0 %v3273
  %v3275 = vpop.xlane.xlu0 %3274
  %v3276 = vmul.f32 %v3272, %v487
  %v3277 = vmul.f32 %v3275, %v487
  %v3278 = vadd.f32 %v3276, 1e-05
  %v3279 = vadd.f32 %v3277, 1e-05
  %v3280 = vrsqrt.pop %v3278
  %v3281 = vrsqrt.pop %v3279
  %v3282 = vmul.f32 %v3266, %v3280
  %v3283 = vmul.f32 %v3267, %v3281
  %v3285 = vlaneseq
  %v3286 = vshrl.u32 %v3285, 7
  %v3287 = vsub.s32 0, %v3286
  %v3288 = vrot.slane %v3255, %v3287
  %v3290 = vmul.f32 %v3282, %v3288
  %v3291 = vmul.f32 %v3283, %v3288
  %v3293 = vlaneseq
  %v3294 = vshrl.u32 %v3293, 7
  %v3295 = vsub.s32 0, %v3294
  %v3296 = vrot.slane %v3257, %v3295
  %v3298 = vadd.f32 %v3290, %v3296
  %v3299 = vadd.f32 %v3291, %v3296
  %v3301 = vsel %vm696, %v3299, 0
  %3303 = vmatprep.subr.mxu0 0.0
  %3304 = vmatpush1.msra.mxu0 0.0
  %3305 = vmatprep.subr.mxu0 0.0
  %3306 = vmatpush1.msra.mxu0 0.0
  %3307 = vmatprep.subr.mxu0 0.0
  %3308 = vmatpush1.msra.mxu0 0.0
  %3309 = vmatprep.subr.mxu0 0.0
  %3310 = vmatpush1.msra.mxu0 0.0
  %3311 = vmatprep.subr.mxu0 0.0
  %3312 = vmatpush1.msra.mxu0 0.0
  %3313 = vmatprep.subr.mxu0 0.0
  %3314 = vmatpush1.msra.mxu0 0.0
  %3315 = vmatprep.subr.mxu0 0.0
  %3316 = vmatpush1.msra.mxu0 0.0
  %3317 = vmatprep.subr.mxu0 0.0
  %3318 = vmatpush1.msra.mxu0 0.0
  %3319 = vmatprep.subr.mxu0 0.0
  %3320 = vmatpush1.msra.mxu0 0.0
  %3321 = vmatprep.subr.mxu0 0.0
  %3322 = vmatpush1.msra.mxu0 0.0
  %3323 = vmatprep.subr.mxu0 0.0
  %3324 = vmatpush1.msra.mxu0 0.0
  %3325 = vmatprep.subr.mxu0 0.0
  %3326 = vmatpush1.msra.mxu0 0.0
  %3327 = vmatprep.subr.mxu0 0.0
  %3328 = vmatpush1.msra.mxu0 0.0
  %3329 = vmatprep.subr.mxu0 0.0
  %3330 = vmatpush1.msra.mxu0 0.0
  %3331 = vmatprep.subr.mxu0 0.0
  %3332 = vmatpush1.msra.mxu0 %v3301
  %3333 = vmatprep.subr.mxu0 0.0
  %3334 = vmatpush1.msra.mxu0 %v3298
  %3335 = vmatprep.subr.mxu0 0.0
  %3336 = vmatpush2.msra.mxu0 0.0
  %3337 = vmatprep.subr.mxu0 0.0
  %3338 = vmatpush2.msra.mxu0 0.0
  %3339 = vmatprep.subr.mxu0 0.0
  %3340 = vmatpush2.msra.mxu0 0.0
  %3341 = vmatprep.subr.mxu0 0.0
  %3342 = vmatpush2.msra.mxu0 0.0
  %3343 = vmatprep.subr.mxu0 0.0
  %3344 = vmatpush2.msra.mxu0 0.0
  %3345 = vmatprep.subr.mxu0 0.0
  %3346 = vmatpush2.msra.mxu0 0.0
  %3347 = vmatprep.subr.mxu0 0.0
  %3348 = vmatpush2.msra.mxu0 0.0
  %3349 = vmatprep.subr.mxu0 0.0
  %3350 = vmatpush2.msra.mxu0 0.0
  %3351 = vmatprep.subr.mxu0 0.0
  %3352 = vmatpush2.msra.mxu0 0.0
  %3353 = vmatprep.subr.mxu0 0.0
  %3354 = vmatpush2.msra.mxu0 0.0
  %3355 = vmatprep.subr.mxu0 0.0
  %3356 = vmatpush2.msra.mxu0 0.0
  %3357 = vmatprep.subr.mxu0 0.0
  %3358 = vmatpush2.msra.mxu0 0.0
  %3359 = vmatprep.subr.mxu0 0.0
  %3360 = vmatpush2.msra.mxu0 0.0
  %3361 = vmatprep.subr.mxu0 0.0
  %3362 = vmatpush2.msra.mxu0 0.0
  %3363 = vmatprep.subr.mxu0 0.0
  %3364 = vmatpush2.msra.mxu0 0.0
  %3365 = vmatprep.subr.mxu0 0.0
  %3366 = vmatpush2.msra.mxu0 0.0
  %3367 = vmatprep.mubr.f32.mxu0 0.0
  %3368 = vmatmul.mubr.f32.gmra.mxu0 %v682
  %v3369 = vpop.f32.mrf.mxu0
  %v3370 = vadd.f32 0.0, %v3369
  %v3371 = vpop.f32.mrf.mxu0
  %3372 = vmatprep.mubr.f32.mxu0 0.0
  %3373 = vmatmul.mubr.f32.gmra.mxu0 %v685
  %v3374 = vpop.f32.mrf.mxu0
  %v3375 = vadd.f32 0.0, %v3374
  %v3376 = vpop.f32.mrf.mxu0
  %3377 = vmatprep.mubr.f32.mxu0 0.0
  %3378 = vmatmul.mubr.f32.gmra.mxu0 %v688
  %v3379 = vpop.f32.mrf.mxu0
  %v3380 = vadd.f32 0.0, %v3379
  %v3381 = vpop.f32.mrf.mxu0
  %3382 = vmatprep.mubr.f32.mxu0 0.0
  %3383 = vmatmul.mubr.f32.gmra.mxu0 %v691
  %v3384 = vpop.f32.mrf.mxu0
  %v3385 = vadd.f32 0.0, %v3384
  %v3386 = vpop.f32.mrf.mxu0
  %3387 = vmatprep.mubr.f32.mxu0 0.0
  %3388 = vmatmul.mubr.f32.gmra.mxu0 %v694
  %v3389 = vpop.f32.mrf.mxu0
  %v3390 = vadd.f32 0.0, %v3389
  %v3391 = vpop.f32.mrf.mxu0
  %3392 = vdwg.mxu0
  %s3393 = scalar_lea.vmem %s35, 64
  %v3394 = vld [vmem:[%s3393] sm:$0xff]
  %v3395 = vld [vmem:[%s3393 + $0x8] sm:$0xff]
  %v3396 = vld [vmem:[%s3393 + $0x10] sm:$0xff]
  %v3397 = vld [vmem:[%s3393 + $0x18] sm:$0xff]
  %s3398 = scalar_lea.vmem %s37, 2
  %v3399 = vld [vmem:[%s3398] sm:$0x1]
  %v3401 = vlaneseq
  %v3402 = vshrl.u32 %v3401, 7
  %v3403 = vsub.s32 0, %v3402
  %v3404 = vrot.slane %v3399, %v3403
  %v3407 = vsel %vm479, %v3370, 0
  %v3410 = vsel %vm479, %v3375, 0
  %v3413 = vsel %vm479, %v3380, 0
  %v3416 = vsel %vm479, %v3385, 0
  %v3419 = vsel %vm479, %v3390, 0
  %3421 = vmatprep.subr.mxu0 0.0
  %3422 = vmatpush1.msra.mxu0 0.0
  %3423 = vmatprep.subr.mxu0 0.0
  %3424 = vmatpush1.msra.mxu0 0.0
  %3425 = vmatprep.subr.mxu0 0.0
  %3426 = vmatpush1.msra.mxu0 0.0
  %3427 = vmatprep.subr.mxu0 0.0
  %3428 = vmatpush1.msra.mxu0 0.0
  %3429 = vmatprep.subr.mxu0 0.0
  %3430 = vmatpush1.msra.mxu0 0.0
  %3431 = vmatprep.subr.mxu0 0.0
  %3432 = vmatpush1.msra.mxu0 0.0
  %3433 = vmatprep.subr.mxu0 0.0
  %3434 = vmatpush1.msra.mxu0 0.0
  %3435 = vmatprep.subr.mxu0 0.0
  %3436 = vmatpush1.msra.mxu0 0.0
  %3437 = vmatprep.subr.mxu0 0.0
  %3438 = vmatpush1.msra.mxu0 0.0
  %3439 = vmatprep.subr.mxu0 0.0
  %3440 = vmatpush1.msra.mxu0 0.0
  %3441 = vmatprep.subr.mxu0 0.0
  %3442 = vmatpush1.msra.mxu0 0.0
  %3443 = vmatprep.subr.mxu0 0.0
  %3444 = vmatpush1.msra.mxu0 0.0
  %3445 = vmatprep.subr.mxu0 0.0
  %3446 = vmatpush1.msra.mxu0 %v3397
  %3447 = vmatprep.subr.mxu0 0.0
  %3448 = vmatpush1.msra.mxu0 %v3396
  %3449 = vmatprep.subr.mxu0 0.0
  %3450 = vmatpush1.msra.mxu0 %v3395
  %3451 = vmatprep.subr.mxu0 0.0
  %3452 = vmatpush1.msra.mxu0 %v3394
  %3453 = vmatprep.subr.mxu0 0.0
  %3454 = vmatpush2.msra.mxu0 0.0
  %3455 = vmatprep.subr.mxu0 0.0
  %3456 = vmatpush2.msra.mxu0 0.0
  %3457 = vmatprep.subr.mxu0 0.0
  %3458 = vmatpush2.msra.mxu0 0.0
  %3459 = vmatprep.subr.mxu0 0.0
  %3460 = vmatpush2.msra.mxu0 0.0
  %3461 = vmatprep.subr.mxu0 0.0
  %3462 = vmatpush2.msra.mxu0 0.0
  %3463 = vmatprep.subr.mxu0 0.0
  %3464 = vmatpush2.msra.mxu0 0.0
  %3465 = vmatprep.subr.mxu0 0.0
  %3466 = vmatpush2.msra.mxu0 0.0
  %3467 = vmatprep.subr.mxu0 0.0
  %3468 = vmatpush2.msra.mxu0 0.0
  %3469 = vmatprep.subr.mxu0 0.0
  %3470 = vmatpush2.msra.mxu0 0.0
  %3471 = vmatprep.subr.mxu0 0.0
  %3472 = vmatpush2.msra.mxu0 0.0
  %3473 = vmatprep.subr.mxu0 0.0
  %3474 = vmatpush2.msra.mxu0 0.0
  %3475 = vmatprep.subr.mxu0 0.0
  %3476 = vmatpush2.msra.mxu0 0.0
  %3477 = vmatprep.subr.mxu0 0.0
  %3478 = vmatpush2.msra.mxu0 0.0
  %3479 = vmatprep.subr.mxu0 0.0
  %3480 = vmatpush2.msra.mxu0 0.0
  %3481 = vmatprep.subr.mxu0 0.0
  %3482 = vmatpush2.msra.mxu0 0.0
  %3483 = vmatprep.subr.mxu0 0.0
  %3484 = vmatpush2.msra.mxu0 0.0
  %3485 = vmatprep.mubr.f32.mxu0 0.0
  %3486 = vmatmul.mubr.f32.gmra.mxu0 %v3407
  %v3487 = vpop.f32.mrf.mxu0
  %v3488 = vadd.f32 %v3404, %v3487
  %v3489 = vpop.f32.mrf.mxu0
  %3490 = vmatprep.mubr.f32.mxu0 0.0
  %3491 = vmatmul.mubr.f32.gmra.mxu0 %v3410
  %v3492 = vpop.f32.mrf.mxu0
  %v3493 = vadd.f32 %v3404, %v3492
  %v3494 = vpop.f32.mrf.mxu0
  %3495 = vmatprep.mubr.f32.mxu0 0.0
  %3496 = vmatmul.mubr.f32.gmra.mxu0 %v3413
  %v3497 = vpop.f32.mrf.mxu0
  %v3498 = vadd.f32 %v3404, %v3497
  %v3499 = vpop.f32.mrf.mxu0
  %3500 = vmatprep.mubr.f32.mxu0 0.0
  %3501 = vmatmul.mubr.f32.gmra.mxu0 %v3416
  %v3502 = vpop.f32.mrf.mxu0
  %v3503 = vadd.f32 %v3404, %v3502
  %v3504 = vpop.f32.mrf.mxu0
  %3505 = vmatprep.mubr.f32.mxu0 0.0
  %3506 = vmatmul.mubr.f32.gmra.mxu0 %v3419
  %v3507 = vpop.f32.mrf.mxu0
  %v3508 = vadd.f32 %v3404, %v3507
  %v3509 = vpop.f32.mrf.mxu0
  %3510 = vdwg.mxu0
  %v3511 = vmul.f32 %v3488, %v624
  %v3512 = vmul.f32 %v3493, %v625
  %v3513 = vmul.f32 %v3498, %v626
  %v3514 = vmul.f32 %v3503, %v627
  %v3515 = vmul.f32 %v3508, %v628
  %s3516 = scalar_lea.vmem %s39, 64
  %v3517 = vld [vmem:[%s3516] sm:$0xff]
  %v3518 = vld [vmem:[%s3516 + $0x8] sm:$0xff]
  %v3519 = vld [vmem:[%s3516 + $0x10] sm:$0xff]
  %v3520 = vld [vmem:[%s3516 + $0x18] sm:$0xff]
  %s3521 = scalar_lea.vmem %s41, 2
  %v3522 = vld [vmem:[%s3521] sm:$0x1]
  %v3524 = vlaneseq
  %v3525 = vshrl.u32 %v3524, 7
  %v3526 = vsub.s32 0, %v3525
  %v3527 = vrot.slane %v3522, %v3526
  %v3530 = vsel %vm479, %v3298, 0
  %v3532 = vsel %vm479, %v3299, 0
  %3534 = vmatprep.subr.mxu0 0.0
  %3535 = vmatpush1.msra.mxu0 0.0
  %3536 = vmatprep.subr.mxu0 0.0
  %3537 = vmatpush1.msra.mxu0 0.0
  %3538 = vmatprep.subr.mxu0 0.0
  %3539 = vmatpush1.msra.mxu0 0.0
  %3540 = vmatprep.subr.mxu0 0.0
  %3541 = vmatpush1.msra.mxu0 0.0
  %3542 = vmatprep.subr.mxu0 0.0
  %3543 = vmatpush1.msra.mxu0 0.0
  %3544 = vmatprep.subr.mxu0 0.0
  %3545 = vmatpush1.msra.mxu0 0.0
  %3546 = vmatprep.subr.mxu0 0.0
  %3547 = vmatpush1.msra.mxu0 0.0
  %3548 = vmatprep.subr.mxu0 0.0
  %3549 = vmatpush1.msra.mxu0 0.0
  %3550 = vmatprep.subr.mxu0 0.0
  %3551 = vmatpush1.msra.mxu0 0.0
  %3552 = vmatprep.subr.mxu0 0.0
  %3553 = vmatpush1.msra.mxu0 0.0
  %3554 = vmatprep.subr.mxu0 0.0
  %3555 = vmatpush1.msra.mxu0 0.0
  %3556 = vmatprep.subr.mxu0 0.0
  %3557 = vmatpush1.msra.mxu0 0.0
  %3558 = vmatprep.subr.mxu0 0.0
  %3559 = vmatpush1.msra.mxu0 %v3520
  %3560 = vmatprep.subr.mxu0 0.0
  %3561 = vmatpush1.msra.mxu0 %v3519
  %3562 = vmatprep.subr.mxu0 0.0
  %3563 = vmatpush1.msra.mxu0 %v3518
  %3564 = vmatprep.subr.mxu0 0.0
  %3565 = vmatpush1.msra.mxu0 %v3517
  %3566 = vmatprep.subr.mxu0 0.0
  %3567 = vmatpush2.msra.mxu0 0.0
  %3568 = vmatprep.subr.mxu0 0.0
  %3569 = vmatpush2.msra.mxu0 0.0
  %3570 = vmatprep.subr.mxu0 0.0
  %3571 = vmatpush2.msra.mxu0 0.0
  %3572 = vmatprep.subr.mxu0 0.0
  %3573 = vmatpush2.msra.mxu0 0.0
  %3574 = vmatprep.subr.mxu0 0.0
  %3575 = vmatpush2.msra.mxu0 0.0
  %3576 = vmatprep.subr.mxu0 0.0
  %3577 = vmatpush2.msra.mxu0 0.0
  %3578 = vmatprep.subr.mxu0 0.0
  %3579 = vmatpush2.msra.mxu0 0.0
  %3580 = vmatprep.subr.mxu0 0.0
  %3581 = vmatpush2.msra.mxu0 0.0
  %3582 = vmatprep.subr.mxu0 0.0
  %3583 = vmatpush2.msra.mxu0 0.0
  %3584 = vmatprep.subr.mxu0 0.0
  %3585 = vmatpush2.msra.mxu0 0.0
  %3586 = vmatprep.subr.mxu0 0.0
  %3587 = vmatpush2.msra.mxu0 0.0
  %3588 = vmatprep.subr.mxu0 0.0
  %3589 = vmatpush2.msra.mxu0 0.0
  %3590 = vmatprep.subr.mxu0 0.0
  %3591 = vmatpush2.msra.mxu0 0.0
  %3592 = vmatprep.subr.mxu0 0.0
  %3593 = vmatpush2.msra.mxu0 0.0
  %3594 = vmatprep.subr.mxu0 0.0
  %3595 = vmatpush2.msra.mxu0 0.0
  %3596 = vmatprep.subr.mxu0 0.0
  %3597 = vmatpush2.msra.mxu0 0.0
  %3598 = vmatprep.mubr.f32.mxu0 0.0
  %3599 = vmatmul.mubr.f32.gmra.mxu0 %v3530
  %v3600 = vpop.f32.mrf.mxu0
  %v3601 = vadd.f32 %v3527, %v3600
  %v3602 = vpop.f32.mrf.mxu0
  %3603 = vmatprep.mubr.f32.mxu0 0.0
  %3604 = vmatmul.mubr.f32.gmra.mxu0 %v3532
  %v3605 = vpop.f32.mrf.mxu0
  %v3606 = vadd.f32 %v3527, %v3605
  %v3607 = vpop.f32.mrf.mxu0
  %3608 = vdwg.mxu0
  %s3609 = scalar_lea.vmem %s43, 64
  %v3610 = vld [vmem:[%s3609] sm:$0xff]
  %v3611 = vld [vmem:[%s3609 + $0x8] sm:$0xff]
  %v3612 = vld [vmem:[%s3609 + $0x10] sm:$0xff]
  %v3613 = vld [vmem:[%s3609 + $0x18] sm:$0xff]
  %s3614 = scalar_lea.vmem %s45, 2
  %v3615 = vld [vmem:[%s3614] sm:$0x1]
  %v3617 = vlaneseq
  %v3618 = vshrl.u32 %v3617, 7
  %v3619 = vsub.s32 0, %v3618
  %v3620 = vrot.slane %v3615, %v3619
  %3622 = vmatprep.subr.mxu0 0.0
  %3623 = vmatpush1.msra.mxu0 0.0
  %3624 = vmatprep.subr.mxu0 0.0
  %3625 = vmatpush1.msra.mxu0 0.0
  %3626 = vmatprep.subr.mxu0 0.0
  %3627 = vmatpush1.msra.mxu0 0.0
  %3628 = vmatprep.subr.mxu0 0.0
  %3629 = vmatpush1.msra.mxu0 0.0
  %3630 = vmatprep.subr.mxu0 0.0
  %3631 = vmatpush1.msra.mxu0 0.0
  %3632 = vmatprep.subr.mxu0 0.0
  %3633 = vmatpush1.msra.mxu0 0.0
  %3634 = vmatprep.subr.mxu0 0.0
  %3635 = vmatpush1.msra.mxu0 0.0
  %3636 = vmatprep.subr.mxu0 0.0
  %3637 = vmatpush1.msra.mxu0 0.0
  %3638 = vmatprep.subr.mxu0 0.0
  %3639 = vmatpush1.msra.mxu0 0.0
  %3640 = vmatprep.subr.mxu0 0.0
  %3641 = vmatpush1.msra.mxu0 0.0
  %3642 = vmatprep.subr.mxu0 0.0
  %3643 = vmatpush1.msra.mxu0 0.0
  %3644 = vmatprep.subr.mxu0 0.0
  %3645 = vmatpush1.msra.mxu0 0.0
  %3646 = vmatprep.subr.mxu0 0.0
  %3647 = vmatpush1.msra.mxu0 %v3613
  %3648 = vmatprep.subr.mxu0 0.0
  %3649 = vmatpush1.msra.mxu0 %v3612
  %3650 = vmatprep.subr.mxu0 0.0
  %3651 = vmatpush1.msra.mxu0 %v3611
  %3652 = vmatprep.subr.mxu0 0.0
  %3653 = vmatpush1.msra.mxu0 %v3610
  %3654 = vmatprep.subr.mxu0 0.0
  %3655 = vmatpush2.msra.mxu0 0.0
  %3656 = vmatprep.subr.mxu0 0.0
  %3657 = vmatpush2.msra.mxu0 0.0
  %3658 = vmatprep.subr.mxu0 0.0
  %3659 = vmatpush2.msra.mxu0 0.0
  %3660 = vmatprep.subr.mxu0 0.0
  %3661 = vmatpush2.msra.mxu0 0.0
  %3662 = vmatprep.subr.mxu0 0.0
  %3663 = vmatpush2.msra.mxu0 0.0
  %3664 = vmatprep.subr.mxu0 0.0
  %3665 = vmatpush2.msra.mxu0 0.0
  %3666 = vmatprep.subr.mxu0 0.0
  %3667 = vmatpush2.msra.mxu0 0.0
  %3668 = vmatprep.subr.mxu0 0.0
  %3669 = vmatpush2.msra.mxu0 0.0
  %3670 = vmatprep.subr.mxu0 0.0
  %3671 = vmatpush2.msra.mxu0 0.0
  %3672 = vmatprep.subr.mxu0 0.0
  %3673 = vmatpush2.msra.mxu0 0.0
  %3674 = vmatprep.subr.mxu0 0.0
  %3675 = vmatpush2.msra.mxu0 0.0
  %3676 = vmatprep.subr.mxu0 0.0
  %3677 = vmatpush2.msra.mxu0 0.0
  %3678 = vmatprep.subr.mxu0 0.0
  %3679 = vmatpush2.msra.mxu0 0.0
  %3680 = vmatprep.subr.mxu0 0.0
  %3681 = vmatpush2.msra.mxu0 0.0
  %3682 = vmatprep.subr.mxu0 0.0
  %3683 = vmatpush2.msra.mxu0 0.0
  %3684 = vmatprep.subr.mxu0 0.0
  %3685 = vmatpush2.msra.mxu0 0.0
  %3686 = vmatprep.mubr.f32.mxu0 0.0
  %3687 = vmatmul.mubr.f32.gmra.mxu0 %v3530
  %v3688 = vpop.f32.mrf.mxu0
  %v3689 = vadd.f32 %v3620, %v3688
  %v3690 = vpop.f32.mrf.mxu0
  %3691 = vmatprep.mubr.f32.mxu0 0.0
  %3692 = vmatmul.mubr.f32.gmra.mxu0 %v3532
  %v3693 = vpop.f32.mrf.mxu0
  %v3694 = vadd.f32 %v3620, %v3693
  %v3695 = vpop.f32.mrf.mxu0
  %3696 = vdwg.mxu0
  %v3698 = vsel %vm479, %v3511, 0
  %v3701 = vsel %vm479, %v3512, 0
  %v3704 = vsel %vm479, %v3513, 0
  %v3707 = vsel %vm479, %v3514, 0
  %v3710 = vsel %vm479, %v3515, 0
  %v3713 = vsel %vm479, %v3601, 0
  %v3716 = vsel %vm479, %v3606, 0
  %3718 = vmatprep.subr.mxu0 0.0
  %3719 = vmatpush1.xpose.msra.mxu0 0.0
  %3720 = vmatprep.subr.mxu0 0.0
  %3721 = vmatpush1.xpose.msra.mxu0 0.0
  %3722 = vmatprep.subr.mxu0 0.0
  %3723 = vmatpush1.xpose.msra.mxu0 0.0
  %3724 = vmatprep.subr.mxu0 0.0
  %3725 = vmatpush1.xpose.msra.mxu0 0.0
  %3726 = vmatprep.subr.mxu0 0.0
  %3727 = vmatpush1.xpose.msra.mxu0 0.0
  %3728 = vmatprep.subr.mxu0 0.0
  %3729 = vmatpush1.xpose.msra.mxu0 0.0
  %3730 = vmatprep.subr.mxu0 0.0
  %3731 = vmatpush1.xpose.msra.mxu0 0.0
  %3732 = vmatprep.subr.mxu0 0.0
  %3733 = vmatpush1.xpose.msra.mxu0 0.0
  %3734 = vmatprep.subr.mxu0 0.0
  %3735 = vmatpush1.xpose.msra.mxu0 0.0
  %3736 = vmatprep.subr.mxu0 0.0
  %3737 = vmatpush1.xpose.msra.mxu0 0.0
  %3738 = vmatprep.subr.mxu0 0.0
  %3739 = vmatpush1.xpose.msra.mxu0 0.0
  %3740 = vmatprep.subr.mxu0 0.0
  %3741 = vmatpush1.xpose.msra.mxu0 0.0
  %3742 = vmatprep.subr.mxu0 0.0
  %3743 = vmatpush1.xpose.msra.mxu0 0.0
  %3744 = vmatprep.subr.mxu0 0.0
  %3745 = vmatpush1.xpose.msra.mxu0 0.0
  %3746 = vmatprep.subr.mxu0 0.0
  %3747 = vmatpush1.xpose.msra.mxu0 %v3716
  %3748 = vmatprep.subr.mxu0 0.0
  %3749 = vmatpush1.xpose.msra.mxu0 %v3713
  %3750 = vmatprep.subr.mxu0 0.0
  %3751 = vmatpush2.xpose.msra.mxu0 0.0
  %3752 = vmatprep.subr.mxu0 0.0
  %3753 = vmatpush2.xpose.msra.mxu0 0.0
  %3754 = vmatprep.subr.mxu0 0.0
  %3755 = vmatpush2.xpose.msra.mxu0 0.0
  %3756 = vmatprep.subr.mxu0 0.0
  %3757 = vmatpush2.xpose.msra.mxu0 0.0
  %3758 = vmatprep.subr.mxu0 0.0
  %3759 = vmatpush2.xpose.msra.mxu0 0.0
  %3760 = vmatprep.subr.mxu0 0.0
  %3761 = vmatpush2.xpose.msra.mxu0 0.0
  %3762 = vmatprep.subr.mxu0 0.0
  %3763 = vmatpush2.xpose.msra.mxu0 0.0
  %3764 = vmatprep.subr.mxu0 0.0
  %3765 = vmatpush2.xpose.msra.mxu0 0.0
  %3766 = vmatprep.subr.mxu0 0.0
  %3767 = vmatpush2.xpose.msra.mxu0 0.0
  %3768 = vmatprep.subr.mxu0 0.0
  %3769 = vmatpush2.xpose.msra.mxu0 0.0
  %3770 = vmatprep.subr.mxu0 0.0
  %3771 = vmatpush2.xpose.msra.mxu0 0.0
  %3772 = vmatprep.subr.mxu0 0.0
  %3773 = vmatpush2.xpose.msra.mxu0 0.0
  %3774 = vmatprep.subr.mxu0 0.0
  %3775 = vmatpush2.xpose.msra.mxu0 0.0
  %3776 = vmatprep.subr.mxu0 0.0
  %3777 = vmatpush2.xpose.msra.mxu0 0.0
  %3778 = vmatprep.subr.mxu0 0.0
  %3779 = vmatpush2.xpose.msra.mxu0 0.0
  %3780 = vmatprep.subr.mxu0 0.0
  %3781 = vmatpush2.xpose.msra.mxu0 0.0
  %3782 = vmatprep.mubr.f32.mxu0 0.0
  %3783 = vmatmul.mubr.f32.gmra.mxu0 %v3698
  %v3784 = vpop.f32.mrf.mxu0
  %v3785 = vadd.f32 0.0, %v3784
  %v3786 = vpop.f32.mrf.mxu0
  %3787 = vmatprep.mubr.f32.mxu0 0.0
  %3788 = vmatmul.mubr.f32.gmra.mxu0 %v3701
  %v3789 = vpop.f32.mrf.mxu0
  %v3790 = vadd.f32 0.0, %v3789
  %v3791 = vpop.f32.mrf.mxu0
  %3792 = vmatprep.mubr.f32.mxu0 0.0
  %3793 = vmatmul.mubr.f32.gmra.mxu0 %v3704
  %v3794 = vpop.f32.mrf.mxu0
  %v3795 = vadd.f32 0.0, %v3794
  %v3796 = vpop.f32.mrf.mxu0
  %3797 = vmatprep.mubr.f32.mxu0 0.0
  %3798 = vmatmul.mubr.f32.gmra.mxu0 %v3707
  %v3799 = vpop.f32.mrf.mxu0
  %v3800 = vadd.f32 0.0, %v3799
  %v3801 = vpop.f32.mrf.mxu0
  %3802 = vmatprep.mubr.f32.mxu0 0.0
  %3803 = vmatmul.mubr.f32.gmra.mxu0 %v3710
  %v3804 = vpop.f32.mrf.mxu0
  %v3805 = vadd.f32 0.0, %v3804
  %v3806 = vpop.f32.mrf.mxu0
  %3807 = vdwg.mxu0
  %v3808 = vmul.f32 %v3785, 0.35355338
  %v3809 = vmul.f32 %v3790, 0.35355338
  %v3810 = vmul.f32 %v3795, 0.35355338
  %v3811 = vmul.f32 %v3800, 0.35355338
  %v3812 = vmul.f32 %v3805, 0.35355338
  %v3813 = vadd.f32 %v3808, %v631
  %v3814 = vadd.f32 %v3809, %v632
  %v3815 = vadd.f32 %v3810, %v633
  %v3816 = vadd.f32 %v3811, %v634
  %v3817 = vadd.f32 %v3812, %v635
  %v3818 = vsel %vm680, %v3813, -inf
  %3819 = vmax.xlane.f32.xlu0 %v3818
  %v3820 = vpop.xlane.xlu0 %3819
  %v3821 = vsel %vm680, %v3814, -inf
  %3822 = vmax.xlane.f32.xlu0 %v3821
  %v3823 = vpop.xlane.xlu0 %3822
  %v3824 = vsel %vm680, %v3815, -inf
  %3825 = vmax.xlane.f32.xlu0 %v3824
  %v3826 = vpop.xlane.xlu0 %3825
  %v3827 = vsel %vm680, %v3816, -inf
  %3828 = vmax.xlane.f32.xlu0 %v3827
  %v3829 = vpop.xlane.xlu0 %3828
  %v3830 = vsel %vm680, %v3817, -inf
  %3831 = vmax.xlane.f32.xlu0 %v3830
  %v3832 = vpop.xlane.xlu0 %3831
  %v3833 = vsub.f32 %v3813, %v3820
  %v3834 = vsub.f32 %v3814, %v3823
  %v3835 = vsub.f32 %v3815, %v3826
  %v3836 = vsub.f32 %v3816, %v3829
  %v3837 = vsub.f32 %v3817, %v3832
  %v3838 = vmul.f32 %v3833, 1.442695
  %v3839 = vpow.pop %v3838
  %v3840 = vmul.f32 %v3834, 1.442695
  %v3841 = vpow.pop %v3840
  %v3842 = vmul.f32 %v3835, 1.442695
  %v3843 = vpow.pop %v3842
  %v3844 = vmul.f32 %v3836, 1.442695
  %v3845 = vpow.pop %v3844
  %v3846 = vmul.f32 %v3837, 1.442695
  %v3847 = vpow.pop %v3846
  %v3848 = vsel %vm680, %v3839, 0.0
  %3849 = vadd.xlane.f32.xlu0 %v3848
  %v3850 = vpop.xlane.xlu0 %3849
  %v3851 = vsel %vm680, %v3841, 0.0
  %3852 = vadd.xlane.f32.xlu0 %v3851
  %v3853 = vpop.xlane.xlu0 %3852
  %v3854 = vsel %vm680, %v3843, 0.0
  %3855 = vadd.xlane.f32.xlu0 %v3854
  %v3856 = vpop.xlane.xlu0 %3855
  %v3857 = vsel %vm680, %v3845, 0.0
  %3858 = vadd.xlane.f32.xlu0 %v3857
  %v3859 = vpop.xlane.xlu0 %3858
  %v3860 = vsel %vm680, %v3847, 0.0
  %3861 = vadd.xlane.f32.xlu0 %v3860
  %v3862 = vpop.xlane.xlu0 %3861
  %v3863 = vrcp.pop %v3850
  %v3864 = vmul.f32 %v3839, %v3863
  %v3865 = vrcp.pop %v3853
  %v3866 = vmul.f32 %v3841, %v3865
  %v3867 = vrcp.pop %v3856
  %v3868 = vmul.f32 %v3843, %v3867
  %v3869 = vrcp.pop %v3859
  %v3870 = vmul.f32 %v3845, %v3869
  %v3871 = vrcp.pop %v3862
  %v3872 = vmul.f32 %v3847, %v3871
  %v3874 = vsel %vm680, %v3864, 0
  %v3877 = vsel %vm680, %v3866, 0
  %v3880 = vsel %vm680, %v3868, 0
  %v3883 = vsel %vm680, %v3870, 0
  %v3886 = vsel %vm680, %v3872, 0
  %v3889 = vsel %vm696, %v3694, 0
  %3891 = vmatprep.subr.mxu0 0.0
  %3892 = vmatpush1.msra.mxu0 0.0
  %3893 = vmatprep.subr.mxu0 0.0
  %3894 = vmatpush1.msra.mxu0 0.0
  %3895 = vmatprep.subr.mxu0 0.0
  %3896 = vmatpush1.msra.mxu0 0.0
  %3897 = vmatprep.subr.mxu0 0.0
  %3898 = vmatpush1.msra.mxu0 0.0
  %3899 = vmatprep.subr.mxu0 0.0
  %3900 = vmatpush1.msra.mxu0 0.0
  %3901 = vmatprep.subr.mxu0 0.0
  %3902 = vmatpush1.msra.mxu0 0.0
  %3903 = vmatprep.subr.mxu0 0.0
  %3904 = vmatpush1.msra.mxu0 0.0
  %3905 = vmatprep.subr.mxu0 0.0
  %3906 = vmatpush1.msra.mxu0 0.0
  %3907 = vmatprep.subr.mxu0 0.0
  %3908 = vmatpush1.msra.mxu0 0.0
  %3909 = vmatprep.subr.mxu0 0.0
  %3910 = vmatpush1.msra.mxu0 0.0
  %3911 = vmatprep.subr.mxu0 0.0
  %3912 = vmatpush1.msra.mxu0 0.0
  %3913 = vmatprep.subr.mxu0 0.0
  %3914 = vmatpush1.msra.mxu0 0.0
  %3915 = vmatprep.subr.mxu0 0.0
  %3916 = vmatpush1.msra.mxu0 0.0
  %3917 = vmatprep.subr.mxu0 0.0
  %3918 = vmatpush1.msra.mxu0 0.0
  %3919 = vmatprep.subr.mxu0 0.0
  %3920 = vmatpush1.msra.mxu0 %v3889
  %3921 = vmatprep.subr.mxu0 0.0
  %3922 = vmatpush1.msra.mxu0 %v3689
  %3923 = vmatprep.subr.mxu0 0.0
  %3924 = vmatpush2.msra.mxu0 0.0
  %3925 = vmatprep.subr.mxu0 0.0
  %3926 = vmatpush2.msra.mxu0 0.0
  %3927 = vmatprep.subr.mxu0 0.0
  %3928 = vmatpush2.msra.mxu0 0.0
  %3929 = vmatprep.subr.mxu0 0.0
  %3930 = vmatpush2.msra.mxu0 0.0
  %3931 = vmatprep.subr.mxu0 0.0
  %3932 = vmatpush2.msra.mxu0 0.0
  %3933 = vmatprep.subr.mxu0 0.0
  %3934 = vmatpush2.msra.mxu0 0.0
  %3935 = vmatprep.subr.mxu0 0.0
  %3936 = vmatpush2.msra.mxu0 0.0
  %3937 = vmatprep.subr.mxu0 0.0
  %3938 = vmatpush2.msra.mxu0 0.0
  %3939 = vmatprep.subr.mxu0 0.0
  %3940 = vmatpush2.msra.mxu0 0.0
  %3941 = vmatprep.subr.mxu0 0.0
  %3942 = vmatpush2.msra.mxu0 0.0
  %3943 = vmatprep.subr.mxu0 0.0
  %3944 = vmatpush2.msra.mxu0 0.0
  %3945 = vmatprep.subr.mxu0 0.0
  %3946 = vmatpush2.msra.mxu0 0.0
  %3947 = vmatprep.subr.mxu0 0.0
  %3948 = vmatpush2.msra.mxu0 0.0
  %3949 = vmatprep.subr.mxu0 0.0
  %3950 = vmatpush2.msra.mxu0 0.0
  %3951 = vmatprep.subr.mxu0 0.0
  %3952 = vmatpush2.msra.mxu0 0.0
  %3953 = vmatprep.subr.mxu0 0.0
  %3954 = vmatpush2.msra.mxu0 0.0
  %3955 = vmatprep.mubr.f32.mxu0 0.0
  %3956 = vmatmul.mubr.f32.gmra.mxu0 %v3874
  %v3957 = vpop.f32.mrf.mxu0
  %v3958 = vadd.f32 0.0, %v3957
  %v3959 = vpop.f32.mrf.mxu0
  %3960 = vmatprep.mubr.f32.mxu0 0.0
  %3961 = vmatmul.mubr.f32.gmra.mxu0 %v3877
  %v3962 = vpop.f32.mrf.mxu0
  %v3963 = vadd.f32 0.0, %v3962
  %v3964 = vpop.f32.mrf.mxu0
  %3965 = vmatprep.mubr.f32.mxu0 0.0
  %3966 = vmatmul.mubr.f32.gmra.mxu0 %v3880
  %v3967 = vpop.f32.mrf.mxu0
  %v3968 = vadd.f32 0.0, %v3967
  %v3969 = vpop.f32.mrf.mxu0
  %3970 = vmatprep.mubr.f32.mxu0 0.0
  %3971 = vmatmul.mubr.f32.gmra.mxu0 %v3883
  %v3972 = vpop.f32.mrf.mxu0
  %v3973 = vadd.f32 0.0, %v3972
  %v3974 = vpop.f32.mrf.mxu0
  %3975 = vmatprep.mubr.f32.mxu0 0.0
  %3976 = vmatmul.mubr.f32.gmra.mxu0 %v3886
  %v3977 = vpop.f32.mrf.mxu0
  %v3978 = vadd.f32 0.0, %v3977
  %v3979 = vpop.f32.mrf.mxu0
  %3980 = vdwg.mxu0
  %v3981 = vmul.f32 %v3958, %v624
  %v3982 = vmul.f32 %v3963, %v625
  %v3983 = vmul.f32 %v3968, %v626
  %v3984 = vmul.f32 %v3973, %v627
  %v3985 = vmul.f32 %v3978, %v628
  %3986 = vmatprep.subr.mxu0 0.0
  %3987 = vmatpush1.msra.mxu0 0.0
  %3988 = vmatprep.subr.mxu0 0.0
  %3989 = vmatpush1.msra.mxu0 0.0
  %3990 = vmatprep.subr.mxu0 0.0
  %3991 = vmatpush1.msra.mxu0 0.0
  %3992 = vmatprep.subr.mxu0 0.0
  %3993 = vmatpush1.msra.mxu0 0.0
  %3994 = vmatprep.subr.mxu0 0.0
  %3995 = vmatpush1.msra.mxu0 0.0
  %3996 = vmatprep.subr.mxu0 0.0
  %3997 = vmatpush1.msra.mxu0 0.0
  %3998 = vmatprep.subr.mxu0 0.0
  %3999 = vmatpush1.msra.mxu0 0.0
  %4000 = vmatprep.subr.mxu0 0.0
  %4001 = vmatpush1.msra.mxu0 0.0
  %4002 = vmatprep.subr.mxu0 0.0
  %4003 = vmatpush1.msra.mxu0 0.0
  %4004 = vmatprep.subr.mxu0 0.0
  %4005 = vmatpush1.msra.mxu0 0.0
  %4006 = vmatprep.subr.mxu0 0.0
  %4007 = vmatpush1.msra.mxu0 0.0
  %4008 = vmatprep.subr.mxu0 0.0
  %4009 = vmatpush1.msra.mxu0 %v3985
  %4010 = vmatprep.subr.mxu0 0.0
  %4011 = vmatpush1.msra.mxu0 %v3984
  %4012 = vmatprep.subr.mxu0 0.0
  %4013 = vmatpush1.msra.mxu0 %v3983
  %4014 = vmatprep.subr.mxu0 0.0
  %4015 = vmatpush1.msra.mxu0 %v3982
  %4016 = vmatprep.subr.mxu0 0.0
  %4017 = vmatpush1.msra.mxu0 %v3981
  %4018 = vmatprep.subr.mxu0 0.0
  %4019 = vmatpush2.msra.mxu0 0.0
  %4020 = vmatprep.subr.mxu0 0.0
  %4021 = vmatpush2.msra.mxu0 0.0
  %4022 = vmatprep.subr.mxu0 0.0
  %4023 = vmatpush2.msra.mxu0 0.0
  %4024 = vmatprep.subr.mxu0 0.0
  %4025 = vmatpush2.msra.mxu0 0.0
  %4026 = vmatprep.subr.mxu0 0.0
  %4027 = vmatpush2.msra.mxu0 0.0
  %4028 = vmatprep.subr.mxu0 0.0
  %4029 = vmatpush2.msra.mxu0 0.0
  %4030 = vmatprep.subr.mxu0 0.0
  %4031 = vmatpush2.msra.mxu0 0.0
  %4032 = vmatprep.subr.mxu0 0.0
  %4033 = vmatpush2.msra.mxu0 0.0
  %4034 = vmatprep.subr.mxu0 0.0
  %4035 = vmatpush2.msra.mxu0 0.0
  %4036 = vmatprep.subr.mxu0 0.0
  %4037 = vmatpush2.msra.mxu0 0.0
  %4038 = vmatprep.subr.mxu0 0.0
  %4039 = vmatpush2.msra.mxu0 0.0
  %4040 = vmatprep.subr.mxu0 0.0
  %4041 = vmatpush2.msra.mxu0 0.0
  %4042 = vmatprep.subr.mxu0 0.0
  %4043 = vmatpush2.msra.mxu0 0.0
  %4044 = vmatprep.subr.mxu0 0.0
  %4045 = vmatpush2.msra.mxu0 0.0
  %4046 = vmatprep.subr.mxu0 0.0
  %4047 = vmatpush2.msra.mxu0 0.0
  %4048 = vmatprep.subr.mxu0 0.0
  %4049 = vmatpush2.msra.mxu0 0.0
  %4050 = vmatprep.mubr.f32.mxu0 0.0
  %4051 = vmatmul.mubr.f32.gmra.mxu0 %v1379
  %v4052 = vpop.f32.mrf.mxu0
  %v4053 = vadd.f32 0.0, %v4052
  %v4054 = vpop.f32.mrf.mxu0
  %4055 = vmatprep.mubr.f32.mxu0 0.0
  %4056 = vmatmul.mubr.f32.gmra.mxu0 %v1382
  %v4057 = vpop.f32.mrf.mxu0
  %v4058 = vadd.f32 0.0, %v4057
  %v4059 = vpop.f32.mrf.mxu0
  %4060 = vdwg.mxu0
  %s4061 = scalar_lea.vmem %s47, 64
  %v4062 = vld [vmem:[%s4061] sm:$0xff]
  %v4063 = vld [vmem:[%s4061 + $0x8] sm:$0xff]
  %v4064 = vld [vmem:[%s4061 + $0x10] sm:$0xff]
  %v4065 = vld [vmem:[%s4061 + $0x18] sm:$0xff]
  %v4067 = vsel %vm479, %v4053, 0
  %v4070 = vsel %vm479, %v4058, 0
  %4072 = vmatprep.subr.mxu0 0.0
  %4073 = vmatpush1.msra.mxu0 0.0
  %4074 = vmatprep.subr.mxu0 0.0
  %4075 = vmatpush1.msra.mxu0 0.0
  %4076 = vmatprep.subr.mxu0 0.0
  %4077 = vmatpush1.msra.mxu0 0.0
  %4078 = vmatprep.subr.mxu0 0.0
  %4079 = vmatpush1.msra.mxu0 0.0
  %4080 = vmatprep.subr.mxu0 0.0
  %4081 = vmatpush1.msra.mxu0 0.0
  %4082 = vmatprep.subr.mxu0 0.0
  %4083 = vmatpush1.msra.mxu0 0.0
  %4084 = vmatprep.subr.mxu0 0.0
  %4085 = vmatpush1.msra.mxu0 0.0
  %4086 = vmatprep.subr.mxu0 0.0
  %4087 = vmatpush1.msra.mxu0 0.0
  %4088 = vmatprep.subr.mxu0 0.0
  %4089 = vmatpush1.msra.mxu0 0.0
  %4090 = vmatprep.subr.mxu0 0.0
  %4091 = vmatpush1.msra.mxu0 0.0
  %4092 = vmatprep.subr.mxu0 0.0
  %4093 = vmatpush1.msra.mxu0 0.0
  %4094 = vmatprep.subr.mxu0 0.0
  %4095 = vmatpush1.msra.mxu0 0.0
  %4096 = vmatprep.subr.mxu0 0.0
  %4097 = vmatpush1.msra.mxu0 %v4065
  %4098 = vmatprep.subr.mxu0 0.0
  %4099 = vmatpush1.msra.mxu0 %v4064
  %4100 = vmatprep.subr.mxu0 0.0
  %4101 = vmatpush1.msra.mxu0 %v4063
  %4102 = vmatprep.subr.mxu0 0.0
  %4103 = vmatpush1.msra.mxu0 %v4062
  %4104 = vmatprep.subr.mxu0 0.0
  %4105 = vmatpush2.msra.mxu0 0.0
  %4106 = vmatprep.subr.mxu0 0.0
  %4107 = vmatpush2.msra.mxu0 0.0
  %4108 = vmatprep.subr.mxu0 0.0
  %4109 = vmatpush2.msra.mxu0 0.0
  %4110 = vmatprep.subr.mxu0 0.0
  %4111 = vmatpush2.msra.mxu0 0.0
  %4112 = vmatprep.subr.mxu0 0.0
  %4113 = vmatpush2.msra.mxu0 0.0
  %4114 = vmatprep.subr.mxu0 0.0
  %4115 = vmatpush2.msra.mxu0 0.0
  %4116 = vmatprep.subr.mxu0 0.0
  %4117 = vmatpush2.msra.mxu0 0.0
  %4118 = vmatprep.subr.mxu0 0.0
  %4119 = vmatpush2.msra.mxu0 0.0
  %4120 = vmatprep.subr.mxu0 0.0
  %4121 = vmatpush2.msra.mxu0 0.0
  %4122 = vmatprep.subr.mxu0 0.0
  %4123 = vmatpush2.msra.mxu0 0.0
  %4124 = vmatprep.subr.mxu0 0.0
  %4125 = vmatpush2.msra.mxu0 0.0
  %4126 = vmatprep.subr.mxu0 0.0
  %4127 = vmatpush2.msra.mxu0 0.0
  %4128 = vmatprep.subr.mxu0 0.0
  %4129 = vmatpush2.msra.mxu0 0.0
  %4130 = vmatprep.subr.mxu0 0.0
  %4131 = vmatpush2.msra.mxu0 0.0
  %4132 = vmatprep.subr.mxu0 0.0
  %4133 = vmatpush2.msra.mxu0 0.0
  %4134 = vmatprep.subr.mxu0 0.0
  %4135 = vmatpush2.msra.mxu0 0.0
  %4136 = vmatprep.mubr.f32.mxu0 0.0
  %4137 = vmatmul.mubr.f32.gmra.mxu0 %v4067
  %v4138 = vpop.f32.mrf.mxu0
  %v4139 = vadd.f32 0.0, %v4138
  %v4140 = vpop.f32.mrf.mxu0
  %4141 = vmatprep.mubr.f32.mxu0 0.0
  %4142 = vmatmul.mubr.f32.gmra.mxu0 %v4070
  %v4143 = vpop.f32.mrf.mxu0
  %v4144 = vadd.f32 0.0, %v4143
  %v4145 = vpop.f32.mrf.mxu0
  %4146 = vdwg.mxu0
  %v4147 = vadd.f32 %v3252, %v4139
  %v4148 = vadd.f32 %v3253, %v4144
  %s4149 = scalar_lea.vmem %s49, 2
  %v4150 = vld [vmem:[%s4149] sm:$0x1]
  %v4152 = vlaneseq
  %v4153 = vshrl.u32 %v4152, 7
  %v4154 = vsub.s32 0, %v4153
  %v4155 = vrot.slane %v4150, %v4154
  %v4157 = vadd.f32 %v4147, %v4155
  %v4158 = vadd.f32 %v4148, %v4155
  %s4159 = scalar_lea.vmem %s51, 2
  %v4160 = vld [vmem:[%s4159] sm:$0x1]
  %s4161 = scalar_lea.vmem %s53, 2
  %v4162 = vld [vmem:[%s4161] sm:$0x1]
  %v4163 = vsel %vm479, %v4157, 0.0
  %4164 = vadd.xlane.f32.xlu0 %v4163
  %v4165 = vpop.xlane.xlu0 %4164
  %v4166 = vsel %vm483, %v4158, 0.0
  %4167 = vadd.xlane.f32.xlu0 %v4166
  %v4168 = vpop.xlane.xlu0 %4167
  %v4169 = vmul.f32 %v4165, %v487
  %v4170 = vmul.f32 %v4168, %v487
  %v4171 = vsub.f32 %v4157, %v4169
  %v4172 = vsub.f32 %v4158, %v4170
  %v4173 = vmul.f32 %v4171, %v4171
  %v4174 = vmul.f32 %v4172, %v4172
  %v4175 = vsel %vm479, %v4173, 0.0
  %4176 = vadd.xlane.f32.xlu0 %v4175
  %v4177 = vpop.xlane.xlu0 %4176
  %v4178 = vsel %vm483, %v4174, 0.0
  %4179 = vadd.xlane.f32.xlu0 %v4178
  %v4180 = vpop.xlane.xlu0 %4179
  %v4181 = vmul.f32 %v4177, %v487
  %v4182 = vmul.f32 %v4180, %v487
  %v4183 = vadd.f32 %v4181, 1e-05
  %v4184 = vadd.f32 %v4182, 1e-05
  %v4185 = vrsqrt.pop %v4183
  %v4186 = vrsqrt.pop %v4184
  %v4187 = vmul.f32 %v4171, %v4185
  %v4188 = vmul.f32 %v4172, %v4186
  %v4190 = vlaneseq
  %v4191 = vshrl.u32 %v4190, 7
  %v4192 = vsub.s32 0, %v4191
  %v4193 = vrot.slane %v4160, %v4192
  %v4195 = vmul.f32 %v4187, %v4193
  %v4196 = vmul.f32 %v4188, %v4193
  %v4198 = vlaneseq
  %v4199 = vshrl.u32 %v4198, 7
  %v4200 = vsub.s32 0, %v4199
  %v4201 = vrot.slane %v4162, %v4200
  %v4203 = vadd.f32 %v4195, %v4201
  %v4204 = vadd.f32 %v4196, %v4201
  %s4205 = scalar_lea.vmem %s55, 64
  %v4206 = vld [vmem:[%s4205] sm:$0xff]
  %v4207 = vld [vmem:[%s4205 + $0x8] sm:$0xff]
  %v4208 = vld [vmem:[%s4205 + $0x10] sm:$0xff]
  %v4209 = vld [vmem:[%s4205 + $0x18] sm:$0xff]
  %s4210 = scalar_lea.vmem %s57, 2
  %v4211 = vld [vmem:[%s4210] sm:$0x1]
  %v4213 = vlaneseq
  %v4214 = vshrl.u32 %v4213, 7
  %v4215 = vsub.s32 0, %v4214
  %v4216 = vrot.slane %v4211, %v4215
  %v4219 = vsel %vm479, %v4203, 0
  %v4222 = vsel %vm479, %v4204, 0
  %4224 = vmatprep.subr.mxu0 0.0
  %4225 = vmatpush1.msra.mxu0 0.0
  %4226 = vmatprep.subr.mxu0 0.0
  %4227 = vmatpush1.msra.mxu0 0.0
  %4228 = vmatprep.subr.mxu0 0.0
  %4229 = vmatpush1.msra.mxu0 0.0
  %4230 = vmatprep.subr.mxu0 0.0
  %4231 = vmatpush1.msra.mxu0 0.0
  %4232 = vmatprep.subr.mxu0 0.0
  %4233 = vmatpush1.msra.mxu0 0.0
  %4234 = vmatprep.subr.mxu0 0.0
  %4235 = vmatpush1.msra.mxu0 0.0
  %4236 = vmatprep.subr.mxu0 0.0
  %4237 = vmatpush1.msra.mxu0 0.0
  %4238 = vmatprep.subr.mxu0 0.0
  %4239 = vmatpush1.msra.mxu0 0.0
  %4240 = vmatprep.subr.mxu0 0.0
  %4241 = vmatpush1.msra.mxu0 0.0
  %4242 = vmatprep.subr.mxu0 0.0
  %4243 = vmatpush1.msra.mxu0 0.0
  %4244 = vmatprep.subr.mxu0 0.0
  %4245 = vmatpush1.msra.mxu0 0.0
  %4246 = vmatprep.subr.mxu0 0.0
  %4247 = vmatpush1.msra.mxu0 0.0
  %4248 = vmatprep.subr.mxu0 0.0
  %4249 = vmatpush1.msra.mxu0 %v4209
  %4250 = vmatprep.subr.mxu0 0.0
  %4251 = vmatpush1.msra.mxu0 %v4208
  %4252 = vmatprep.subr.mxu0 0.0
  %4253 = vmatpush1.msra.mxu0 %v4207
  %4254 = vmatprep.subr.mxu0 0.0
  %4255 = vmatpush1.msra.mxu0 %v4206
  %4256 = vmatprep.subr.mxu0 0.0
  %4257 = vmatpush2.msra.mxu0 0.0
  %4258 = vmatprep.subr.mxu0 0.0
  %4259 = vmatpush2.msra.mxu0 0.0
  %4260 = vmatprep.subr.mxu0 0.0
  %4261 = vmatpush2.msra.mxu0 0.0
  %4262 = vmatprep.subr.mxu0 0.0
  %4263 = vmatpush2.msra.mxu0 0.0
  %4264 = vmatprep.subr.mxu0 0.0
  %4265 = vmatpush2.msra.mxu0 0.0
  %4266 = vmatprep.subr.mxu0 0.0
  %4267 = vmatpush2.msra.mxu0 0.0
  %4268 = vmatprep.subr.mxu0 0.0
  %4269 = vmatpush2.msra.mxu0 0.0
  %4270 = vmatprep.subr.mxu0 0.0
  %4271 = vmatpush2.msra.mxu0 0.0
  %4272 = vmatprep.subr.mxu0 0.0
  %4273 = vmatpush2.msra.mxu0 0.0
  %4274 = vmatprep.subr.mxu0 0.0
  %4275 = vmatpush2.msra.mxu0 0.0
  %4276 = vmatprep.subr.mxu0 0.0
  %4277 = vmatpush2.msra.mxu0 0.0
  %4278 = vmatprep.subr.mxu0 0.0
  %4279 = vmatpush2.msra.mxu0 0.0
  %4280 = vmatprep.subr.mxu0 0.0
  %4281 = vmatpush2.msra.mxu0 0.0
  %4282 = vmatprep.subr.mxu0 0.0
  %4283 = vmatpush2.msra.mxu0 0.0
  %4284 = vmatprep.subr.mxu0 0.0
  %4285 = vmatpush2.msra.mxu0 0.0
  %4286 = vmatprep.subr.mxu0 0.0
  %4287 = vmatpush2.msra.mxu0 0.0
  %4288 = vmatprep.mubr.f32.mxu0 0.0
  %4289 = vmatmul.mubr.f32.gmra.mxu0 %v4219
  %v4290 = vpop.f32.mrf.mxu0
  %v4291 = vadd.f32 %v4216, %v4290
  %v4292 = vpop.f32.mrf.mxu0
  %4293 = vmatprep.mubr.f32.mxu0 0.0
  %4294 = vmatmul.mubr.f32.gmra.mxu0 %v4222
  %v4295 = vpop.f32.mrf.mxu0
  %v4296 = vadd.f32 %v4216, %v4295
  %v4297 = vpop.f32.mrf.mxu0
  %4298 = vdwg.mxu0
  %v4299 = vmul.f32 %v4291, -1.702
  %v4300 = vmul.f32 %v4296, -1.702
  %v4301 = vmul.f32 %v4299, 1.442695
  %v4302 = vpow.pop %v4301
  %v4303 = vmul.f32 %v4300, 1.442695
  %v4304 = vpow.pop %v4303
  %v4305 = vadd.f32 %v4302, 1.0
  %v4306 = vadd.f32 %v4304, 1.0
  %v4307 = vrcp.pop %v4305
  %v4308 = vmul.f32 1.0, %v4307
  %v4309 = vrcp.pop %v4306
  %v4310 = vmul.f32 1.0, %v4309
  %v4311 = vmul.f32 %v4291, %v4308
  %v4312 = vmul.f32 %v4296, %v4310
  %s4313 = scalar_lea.vmem %s59, 256
  %v4314 = vld [vmem:[%s4313] sm:$0xff]
  %v4315 = vld [vmem:[%s4313 + $0x8] sm:$0xff]
  %v4316 = vld [vmem:[%s4313 + $0x10] sm:$0xff]
  %v4317 = vld [vmem:[%s4313 + $0x18] sm:$0xff]
  %v4318 = vld [vmem:[%s4313 + $0x20] sm:$0xff]
  %v4319 = vld [vmem:[%s4313 + $0x28] sm:$0xff]
  %v4320 = vld [vmem:[%s4313 + $0x30] sm:$0xff]
  %v4321 = vld [vmem:[%s4313 + $0x38] sm:$0xff]
  %v4322 = vld [vmem:[%s4313 + $0x40] sm:$0xff]
  %v4323 = vld [vmem:[%s4313 + $0x48] sm:$0xff]
  %v4324 = vld [vmem:[%s4313 + $0x50] sm:$0xff]
  %v4325 = vld [vmem:[%s4313 + $0x58] sm:$0xff]
  %v4326 = vld [vmem:[%s4313 + $0x60] sm:$0xff]
  %v4327 = vld [vmem:[%s4313 + $0x68] sm:$0xff]
  %v4328 = vld [vmem:[%s4313 + $0x70] sm:$0xff]
  %v4329 = vld [vmem:[%s4313 + $0x78] sm:$0xff]
  %4330 = vmatprep.subr.mxu0 0.0
  %4331 = vmatpush1.msra.mxu0 %v4329
  %4332 = vmatprep.subr.mxu0 0.0
  %4333 = vmatpush1.msra.mxu0 %v4328
  %4334 = vmatprep.subr.mxu0 0.0
  %4335 = vmatpush1.msra.mxu0 %v4327
  %4336 = vmatprep.subr.mxu0 0.0
  %4337 = vmatpush1.msra.mxu0 %v4326
  %4338 = vmatprep.subr.mxu0 0.0
  %4339 = vmatpush1.msra.mxu0 %v4325
  %4340 = vmatprep.subr.mxu0 0.0
  %4341 = vmatpush1.msra.mxu0 %v4324
  %4342 = vmatprep.subr.mxu0 0.0
  %4343 = vmatpush1.msra.mxu0 %v4323
  %4344 = vmatprep.subr.mxu0 0.0
  %4345 = vmatpush1.msra.mxu0 %v4322
  %4346 = vmatprep.subr.mxu0 0.0
  %4347 = vmatpush1.msra.mxu0 %v4321
  %4348 = vmatprep.subr.mxu0 0.0
  %4349 = vmatpush1.msra.mxu0 %v4320
  %4350 = vmatprep.subr.mxu0 0.0
  %4351 = vmatpush1.msra.mxu0 %v4319
  %4352 = vmatprep.subr.mxu0 0.0
  %4353 = vmatpush1.msra.mxu0 %v4318
  %4354 = vmatprep.subr.mxu0 0.0
  %4355 = vmatpush1.msra.mxu0 %v4317
  %4356 = vmatprep.subr.mxu0 0.0
  %4357 = vmatpush1.msra.mxu0 %v4316
  %4358 = vmatprep.subr.mxu0 0.0
  %4359 = vmatpush1.msra.mxu0 %v4315
  %4360 = vmatprep.subr.mxu0 0.0
  %4361 = vmatpush1.msra.mxu0 %v4314
  %4362 = vmatprep.subr.mxu0 0.0
  %4363 = vmatpush2.msra.mxu0 0.0
  %4364 = vmatprep.subr.mxu0 0.0
  %4365 = vmatpush2.msra.mxu0 0.0
  %4366 = vmatprep.subr.mxu0 0.0
  %4367 = vmatpush2.msra.mxu0 0.0
  %4368 = vmatprep.subr.mxu0 0.0
  %4369 = vmatpush2.msra.mxu0 0.0
  %4370 = vmatprep.subr.mxu0 0.0
  %4371 = vmatpush2.msra.mxu0 0.0
  %4372 = vmatprep.subr.mxu0 0.0
  %4373 = vmatpush2.msra.mxu0 0.0
  %4374 = vmatprep.subr.mxu0 0.0
  %4375 = vmatpush2.msra.mxu0 0.0
  %4376 = vmatprep.subr.mxu0 0.0
  %4377 = vmatpush2.msra.mxu0 0.0
  %4378 = vmatprep.subr.mxu0 0.0
  %4379 = vmatpush2.msra.mxu0 0.0
  %4380 = vmatprep.subr.mxu0 0.0
  %4381 = vmatpush2.msra.mxu0 0.0
  %4382 = vmatprep.subr.mxu0 0.0
  %4383 = vmatpush2.msra.mxu0 0.0
  %4384 = vmatprep.subr.mxu0 0.0
  %4385 = vmatpush2.msra.mxu0 0.0
  %4386 = vmatprep.subr.mxu0 0.0
  %4387 = vmatpush2.msra.mxu0 0.0
  %4388 = vmatprep.subr.mxu0 0.0
  %4389 = vmatpush2.msra.mxu0 0.0
  %4390 = vmatprep.subr.mxu0 0.0
  %4391 = vmatpush2.msra.mxu0 0.0
  %4392 = vmatprep.subr.mxu0 0.0
  %4393 = vmatpush2.msra.mxu0 0.0
  %4394 = vmatprep.mubr.f32.mxu0 0.0
  %4395 = vmatmul.mubr.f32.gmra.mxu0 %v4311
  %v4396 = vpop.f32.mrf.mxu0
  %v4397 = vadd.f32 0.0, %v4396
  %v4398 = vpop.f32.mrf.mxu0
  %4399 = vmatprep.mubr.f32.mxu0 0.0
  %4400 = vmatmul.mubr.f32.gmra.mxu0 %v4312
  %v4401 = vpop.f32.mrf.mxu0
  %v4402 = vadd.f32 0.0, %v4401
  %v4403 = vpop.f32.mrf.mxu0
  %4404 = vdwg.mxu0
  %v4405 = vadd.f32 %v4157, %v4397
  %v4406 = vadd.f32 %v4158, %v4402
  %s4407 = scalar_lea.vmem %s61, 2
  %v4408 = vld [vmem:[%s4407] sm:$0x1]
  %v4410 = vlaneseq
  %v4411 = vshrl.u32 %v4410, 7
  %v4412 = vsub.s32 0, %v4411
  %v4413 = vrot.slane %v4408, %v4412
  %v4415 = vadd.f32 %v4405, %v4413
  %v4416 = vadd.f32 %v4406, %v4413
  %s4417 = scalar_lea.vmem %s31, 3
  %v4418 = vld [vmem:[%s4417] sm:$0x1]
  %s4419 = scalar_lea.vmem %s33, 3
  %v4420 = vld [vmem:[%s4419] sm:$0x1]
  %v4421 = vsel %vm479, %v4415, 0.0
  %4422 = vadd.xlane.f32.xlu0 %v4421
  %v4423 = vpop.xlane.xlu0 %4422
  %v4424 = vsel %vm483, %v4416, 0.0
  %4425 = vadd.xlane.f32.xlu0 %v4424
  %v4426 = vpop.xlane.xlu0 %4425
  %v4427 = vmul.f32 %v4423, %v487
  %v4428 = vmul.f32 %v4426, %v487
  %v4429 = vsub.f32 %v4415, %v4427
  %v4430 = vsub.f32 %v4416, %v4428
  %v4431 = vmul.f32 %v4429, %v4429
  %v4432 = vmul.f32 %v4430, %v4430
  %v4433 = vsel %vm479, %v4431, 0.0
  %4434 = vadd.xlane.f32.xlu0 %v4433
  %v4435 = vpop.xlane.xlu0 %4434
  %v4436 = vsel %vm483, %v4432, 0.0
  %4437 = vadd.xlane.f32.xlu0 %v4436
  %v4438 = vpop.xlane.xlu0 %4437
  %v4439 = vmul.f32 %v4435, %v487
  %v4440 = vmul.f32 %v4438, %v487
  %v4441 = vadd.f32 %v4439, 1e-05
  %v4442 = vadd.f32 %v4440, 1e-05
  %v4443 = vrsqrt.pop %v4441
  %v4444 = vrsqrt.pop %v4442
  %v4445 = vmul.f32 %v4429, %v4443
  %v4446 = vmul.f32 %v4430, %v4444
  %v4448 = vlaneseq
  %v4449 = vshrl.u32 %v4448, 7
  %v4450 = vsub.s32 0, %v4449
  %v4451 = vrot.slane %v4418, %v4450
  %v4453 = vmul.f32 %v4445, %v4451
  %v4454 = vmul.f32 %v4446, %v4451
  %v4456 = vlaneseq
  %v4457 = vshrl.u32 %v4456, 7
  %v4458 = vsub.s32 0, %v4457
  %v4459 = vrot.slane %v4420, %v4458
  %v4461 = vadd.f32 %v4453, %v4459
  %v4462 = vadd.f32 %v4454, %v4459
  %v4464 = vsel %vm696, %v4462, 0
  %4466 = vmatprep.subr.mxu0 0.0
  %4467 = vmatpush1.msra.mxu0 0.0
  %4468 = vmatprep.subr.mxu0 0.0
  %4469 = vmatpush1.msra.mxu0 0.0
  %4470 = vmatprep.subr.mxu0 0.0
  %4471 = vmatpush1.msra.mxu0 0.0
  %4472 = vmatprep.subr.mxu0 0.0
  %4473 = vmatpush1.msra.mxu0 0.0
  %4474 = vmatprep.subr.mxu0 0.0
  %4475 = vmatpush1.msra.mxu0 0.0
  %4476 = vmatprep.subr.mxu0 0.0
  %4477 = vmatpush1.msra.mxu0 0.0
  %4478 = vmatprep.subr.mxu0 0.0
  %4479 = vmatpush1.msra.mxu0 0.0
  %4480 = vmatprep.subr.mxu0 0.0
  %4481 = vmatpush1.msra.mxu0 0.0
  %4482 = vmatprep.subr.mxu0 0.0
  %4483 = vmatpush1.msra.mxu0 0.0
  %4484 = vmatprep.subr.mxu0 0.0
  %4485 = vmatpush1.msra.mxu0 0.0
  %4486 = vmatprep.subr.mxu0 0.0
  %4487 = vmatpush1.msra.mxu0 0.0
  %4488 = vmatprep.subr.mxu0 0.0
  %4489 = vmatpush1.msra.mxu0 0.0
  %4490 = vmatprep.subr.mxu0 0.0
  %4491 = vmatpush1.msra.mxu0 0.0
  %4492 = vmatprep.subr.mxu0 0.0
  %4493 = vmatpush1.msra.mxu0 0.0
  %4494 = vmatprep.subr.mxu0 0.0
  %4495 = vmatpush1.msra.mxu0 %v4464
  %4496 = vmatprep.subr.mxu0 0.0
  %4497 = vmatpush1.msra.mxu0 %v4461
  %4498 = vmatprep.subr.mxu0 0.0
  %4499 = vmatpush2.msra.mxu0 0.0
  %4500 = vmatprep.subr.mxu0 0.0
  %4501 = vmatpush2.msra.mxu0 0.0
  %4502 = vmatprep.subr.mxu0 0.0
  %4503 = vmatpush2.msra.mxu0 0.0
  %4504 = vmatprep.subr.mxu0 0.0
  %4505 = vmatpush2.msra.mxu0 0.0
  %4506 = vmatprep.subr.mxu0 0.0
  %4507 = vmatpush2.msra.mxu0 0.0
  %4508 = vmatprep.subr.mxu0 0.0
  %4509 = vmatpush2.msra.mxu0 0.0
  %4510 = vmatprep.subr.mxu0 0.0
  %4511 = vmatpush2.msra.mxu0 0.0
  %4512 = vmatprep.subr.mxu0 0.0
  %4513 = vmatpush2.msra.mxu0 0.0
  %4514 = vmatprep.subr.mxu0 0.0
  %4515 = vmatpush2.msra.mxu0 0.0
  %4516 = vmatprep.subr.mxu0 0.0
  %4517 = vmatpush2.msra.mxu0 0.0
  %4518 = vmatprep.subr.mxu0 0.0
  %4519 = vmatpush2.msra.mxu0 0.0
  %4520 = vmatprep.subr.mxu0 0.0
  %4521 = vmatpush2.msra.mxu0 0.0
  %4522 = vmatprep.subr.mxu0 0.0
  %4523 = vmatpush2.msra.mxu0 0.0
  %4524 = vmatprep.subr.mxu0 0.0
  %4525 = vmatpush2.msra.mxu0 0.0
  %4526 = vmatprep.subr.mxu0 0.0
  %4527 = vmatpush2.msra.mxu0 0.0
  %4528 = vmatprep.subr.mxu0 0.0
  %4529 = vmatpush2.msra.mxu0 0.0
  %4530 = vmatprep.mubr.f32.mxu0 0.0
  %4531 = vmatmul.mubr.f32.gmra.mxu0 %v682
  %v4532 = vpop.f32.mrf.mxu0
  %v4533 = vadd.f32 0.0, %v4532
  %v4534 = vpop.f32.mrf.mxu0
  %4535 = vmatprep.mubr.f32.mxu0 0.0
  %4536 = vmatmul.mubr.f32.gmra.mxu0 %v685
  %v4537 = vpop.f32.mrf.mxu0
  %v4538 = vadd.f32 0.0, %v4537
  %v4539 = vpop.f32.mrf.mxu0
  %4540 = vmatprep.mubr.f32.mxu0 0.0
  %4541 = vmatmul.mubr.f32.gmra.mxu0 %v688
  %v4542 = vpop.f32.mrf.mxu0
  %v4543 = vadd.f32 0.0, %v4542
  %v4544 = vpop.f32.mrf.mxu0
  %4545 = vmatprep.mubr.f32.mxu0 0.0
  %4546 = vmatmul.mubr.f32.gmra.mxu0 %v691
  %v4547 = vpop.f32.mrf.mxu0
  %v4548 = vadd.f32 0.0, %v4547
  %v4549 = vpop.f32.mrf.mxu0
  %4550 = vmatprep.mubr.f32.mxu0 0.0
  %4551 = vmatmul.mubr.f32.gmra.mxu0 %v694
  %v4552 = vpop.f32.mrf.mxu0
  %v4553 = vadd.f32 0.0, %v4552
  %v4554 = vpop.f32.mrf.mxu0
  %4555 = vdwg.mxu0
  %s4556 = scalar_lea.vmem %s35, 96
  %v4557 = vld [vmem:[%s4556] sm:$0xff]
  %v4558 = vld [vmem:[%s4556 + $0x8] sm:$0xff]
  %v4559 = vld [vmem:[%s4556 + $0x10] sm:$0xff]
  %v4560 = vld [vmem:[%s4556 + $0x18] sm:$0xff]
  %s4561 = scalar_lea.vmem %s37, 3
  %v4562 = vld [vmem:[%s4561] sm:$0x1]
  %v4564 = vlaneseq
  %v4565 = vshrl.u32 %v4564, 7
  %v4566 = vsub.s32 0, %v4565
  %v4567 = vrot.slane %v4562, %v4566
  %v4570 = vsel %vm479, %v4533, 0
  %v4573 = vsel %vm479, %v4538, 0
  %v4576 = vsel %vm479, %v4543, 0
  %v4579 = vsel %vm479, %v4548, 0
  %v4582 = vsel %vm479, %v4553, 0
  %4584 = vmatprep.subr.mxu0 0.0
  %4585 = vmatpush1.msra.mxu0 0.0
  %4586 = vmatprep.subr.mxu0 0.0
  %4587 = vmatpush1.msra.mxu0 0.0
  %4588 = vmatprep.subr.mxu0 0.0
  %4589 = vmatpush1.msra.mxu0 0.0
  %4590 = vmatprep.subr.mxu0 0.0
  %4591 = vmatpush1.msra.mxu0 0.0
  %4592 = vmatprep.subr.mxu0 0.0
  %4593 = vmatpush1.msra.mxu0 0.0
  %4594 = vmatprep.subr.mxu0 0.0
  %4595 = vmatpush1.msra.mxu0 0.0
  %4596 = vmatprep.subr.mxu0 0.0
  %4597 = vmatpush1.msra.mxu0 0.0
  %4598 = vmatprep.subr.mxu0 0.0
  %4599 = vmatpush1.msra.mxu0 0.0
  %4600 = vmatprep.subr.mxu0 0.0
  %4601 = vmatpush1.msra.mxu0 0.0
  %4602 = vmatprep.subr.mxu0 0.0
  %4603 = vmatpush1.msra.mxu0 0.0
  %4604 = vmatprep.subr.mxu0 0.0
  %4605 = vmatpush1.msra.mxu0 0.0
  %4606 = vmatprep.subr.mxu0 0.0
  %4607 = vmatpush1.msra.mxu0 0.0
  %4608 = vmatprep.subr.mxu0 0.0
  %4609 = vmatpush1.msra.mxu0 %v4560
  %4610 = vmatprep.subr.mxu0 0.0
  %4611 = vmatpush1.msra.mxu0 %v4559
  %4612 = vmatprep.subr.mxu0 0.0
  %4613 = vmatpush1.msra.mxu0 %v4558
  %4614 = vmatprep.subr.mxu0 0.0
  %4615 = vmatpush1.msra.mxu0 %v4557
  %4616 = vmatprep.subr.mxu0 0.0
  %4617 = vmatpush2.msra.mxu0 0.0
  %4618 = vmatprep.subr.mxu0 0.0
  %4619 = vmatpush2.msra.mxu0 0.0
  %4620 = vmatprep.subr.mxu0 0.0
  %4621 = vmatpush2.msra.mxu0 0.0
  %4622 = vmatprep.subr.mxu0 0.0
  %4623 = vmatpush2.msra.mxu0 0.0
  %4624 = vmatprep.subr.mxu0 0.0
  %4625 = vmatpush2.msra.mxu0 0.0
  %4626 = vmatprep.subr.mxu0 0.0
  %4627 = vmatpush2.msra.mxu0 0.0
  %4628 = vmatprep.subr.mxu0 0.0
  %4629 = vmatpush2.msra.mxu0 0.0
  %4630 = vmatprep.subr.mxu0 0.0
  %4631 = vmatpush2.msra.mxu0 0.0
  %4632 = vmatprep.subr.mxu0 0.0
  %4633 = vmatpush2.msra.mxu0 0.0
  %4634 = vmatprep.subr.mxu0 0.0
  %4635 = vmatpush2.msra.mxu0 0.0
  %4636 = vmatprep.subr.mxu0 0.0
  %4637 = vmatpush2.msra.mxu0 0.0
  %4638 = vmatprep.subr.mxu0 0.0
  %4639 = vmatpush2.msra.mxu0 0.0
  %4640 = vmatprep.subr.mxu0 0.0
  %4641 = vmatpush2.msra.mxu0 0.0
  %4642 = vmatprep.subr.mxu0 0.0
  %4643 = vmatpush2.msra.mxu0 0.0
  %4644 = vmatprep.subr.mxu0 0.0
  %4645 = vmatpush2.msra.mxu0 0.0
  %4646 = vmatprep.subr.mxu0 0.0
  %4647 = vmatpush2.msra.mxu0 0.0
  %4648 = vmatprep.mubr.f32.mxu0 0.0
  %4649 = vmatmul.mubr.f32.gmra.mxu0 %v4570
  %v4650 = vpop.f32.mrf.mxu0
  %v4651 = vadd.f32 %v4567, %v4650
  %v4652 = vpop.f32.mrf.mxu0
  %4653 = vmatprep.mubr.f32.mxu0 0.0
  %4654 = vmatmul.mubr.f32.gmra.mxu0 %v4573
  %v4655 = vpop.f32.mrf.mxu0
  %v4656 = vadd.f32 %v4567, %v4655
  %v4657 = vpop.f32.mrf.mxu0
  %4658 = vmatprep.mubr.f32.mxu0 0.0
  %4659 = vmatmul.mubr.f32.gmra.mxu0 %v4576
  %v4660 = vpop.f32.mrf.mxu0
  %v4661 = vadd.f32 %v4567, %v4660
  %v4662 = vpop.f32.mrf.mxu0
  %4663 = vmatprep.mubr.f32.mxu0 0.0
  %4664 = vmatmul.mubr.f32.gmra.mxu0 %v4579
  %v4665 = vpop.f32.mrf.mxu0
  %v4666 = vadd.f32 %v4567, %v4665
  %v4667 = vpop.f32.mrf.mxu0
  %4668 = vmatprep.mubr.f32.mxu0 0.0
  %4669 = vmatmul.mubr.f32.gmra.mxu0 %v4582
  %v4670 = vpop.f32.mrf.mxu0
  %v4671 = vadd.f32 %v4567, %v4670
  %v4672 = vpop.f32.mrf.mxu0
  %4673 = vdwg.mxu0
  %v4674 = vmul.f32 %v4651, %v624
  %v4675 = vmul.f32 %v4656, %v625
  %v4676 = vmul.f32 %v4661, %v626
  %v4677 = vmul.f32 %v4666, %v627
  %v4678 = vmul.f32 %v4671, %v628
  %s4679 = scalar_lea.vmem %s39, 96
  %v4680 = vld [vmem:[%s4679] sm:$0xff]
  %v4681 = vld [vmem:[%s4679 + $0x8] sm:$0xff]
  %v4682 = vld [vmem:[%s4679 + $0x10] sm:$0xff]
  %v4683 = vld [vmem:[%s4679 + $0x18] sm:$0xff]
  %s4684 = scalar_lea.vmem %s41, 3
  %v4685 = vld [vmem:[%s4684] sm:$0x1]
  %v4687 = vlaneseq
  %v4688 = vshrl.u32 %v4687, 7
  %v4689 = vsub.s32 0, %v4688
  %v4690 = vrot.slane %v4685, %v4689
  %v4693 = vsel %vm479, %v4461, 0
  %v4695 = vsel %vm479, %v4462, 0
  %4697 = vmatprep.subr.mxu0 0.0
  %4698 = vmatpush1.msra.mxu0 0.0
  %4699 = vmatprep.subr.mxu0 0.0
  %4700 = vmatpush1.msra.mxu0 0.0
  %4701 = vmatprep.subr.mxu0 0.0
  %4702 = vmatpush1.msra.mxu0 0.0
  %4703 = vmatprep.subr.mxu0 0.0
  %4704 = vmatpush1.msra.mxu0 0.0
  %4705 = vmatprep.subr.mxu0 0.0
  %4706 = vmatpush1.msra.mxu0 0.0
  %4707 = vmatprep.subr.mxu0 0.0
  %4708 = vmatpush1.msra.mxu0 0.0
  %4709 = vmatprep.subr.mxu0 0.0
  %4710 = vmatpush1.msra.mxu0 0.0
  %4711 = vmatprep.subr.mxu0 0.0
  %4712 = vmatpush1.msra.mxu0 0.0
  %4713 = vmatprep.subr.mxu0 0.0
  %4714 = vmatpush1.msra.mxu0 0.0
  %4715 = vmatprep.subr.mxu0 0.0
  %4716 = vmatpush1.msra.mxu0 0.0
  %4717 = vmatprep.subr.mxu0 0.0
  %4718 = vmatpush1.msra.mxu0 0.0
  %4719 = vmatprep.subr.mxu0 0.0
  %4720 = vmatpush1.msra.mxu0 0.0
  %4721 = vmatprep.subr.mxu0 0.0
  %4722 = vmatpush1.msra.mxu0 %v4683
  %4723 = vmatprep.subr.mxu0 0.0
  %4724 = vmatpush1.msra.mxu0 %v4682
  %4725 = vmatprep.subr.mxu0 0.0
  %4726 = vmatpush1.msra.mxu0 %v4681
  %4727 = vmatprep.subr.mxu0 0.0
  %4728 = vmatpush1.msra.mxu0 %v4680
  %4729 = vmatprep.subr.mxu0 0.0
  %4730 = vmatpush2.msra.mxu0 0.0
  %4731 = vmatprep.subr.mxu0 0.0
  %4732 = vmatpush2.msra.mxu0 0.0
  %4733 = vmatprep.subr.mxu0 0.0
  %4734 = vmatpush2.msra.mxu0 0.0
  %4735 = vmatprep.subr.mxu0 0.0
  %4736 = vmatpush2.msra.mxu0 0.0
  %4737 = vmatprep.subr.mxu0 0.0
  %4738 = vmatpush2.msra.mxu0 0.0
  %4739 = vmatprep.subr.mxu0 0.0
  %4740 = vmatpush2.msra.mxu0 0.0
  %4741 = vmatprep.subr.mxu0 0.0
  %4742 = vmatpush2.msra.mxu0 0.0
  %4743 = vmatprep.subr.mxu0 0.0
  %4744 = vmatpush2.msra.mxu0 0.0
  %4745 = vmatprep.subr.mxu0 0.0
  %4746 = vmatpush2.msra.mxu0 0.0
  %4747 = vmatprep.subr.mxu0 0.0
  %4748 = vmatpush2.msra.mxu0 0.0
  %4749 = vmatprep.subr.mxu0 0.0
  %4750 = vmatpush2.msra.mxu0 0.0
  %4751 = vmatprep.subr.mxu0 0.0
  %4752 = vmatpush2.msra.mxu0 0.0
  %4753 = vmatprep.subr.mxu0 0.0
  %4754 = vmatpush2.msra.mxu0 0.0
  %4755 = vmatprep.subr.mxu0 0.0
  %4756 = vmatpush2.msra.mxu0 0.0
  %4757 = vmatprep.subr.mxu0 0.0
  %4758 = vmatpush2.msra.mxu0 0.0
  %4759 = vmatprep.subr.mxu0 0.0
  %4760 = vmatpush2.msra.mxu0 0.0
  %4761 = vmatprep.mubr.f32.mxu0 0.0
  %4762 = vmatmul.mubr.f32.gmra.mxu0 %v4693
  %v4763 = vpop.f32.mrf.mxu0
  %v4764 = vadd.f32 %v4690, %v4763
  %v4765 = vpop.f32.mrf.mxu0
  %4766 = vmatprep.mubr.f32.mxu0 0.0
  %4767 = vmatmul.mubr.f32.gmra.mxu0 %v4695
  %v4768 = vpop.f32.mrf.mxu0
  %v4769 = vadd.f32 %v4690, %v4768
  %v4770 = vpop.f32.mrf.mxu0
  %4771 = vdwg.mxu0
  %s4772 = scalar_lea.vmem %s43, 96
  %v4773 = vld [vmem:[%s4772] sm:$0xff]
  %v4774 = vld [vmem:[%s4772 + $0x8] sm:$0xff]
  %v4775 = vld [vmem:[%s4772 + $0x10] sm:$0xff]
  %v4776 = vld [vmem:[%s4772 + $0x18] sm:$0xff]
  %s4777 = scalar_lea.vmem %s45, 3
  %v4778 = vld [vmem:[%s4777] sm:$0x1]
  %v4780 = vlaneseq
  %v4781 = vshrl.u32 %v4780, 7
  %v4782 = vsub.s32 0, %v4781
  %v4783 = vrot.slane %v4778, %v4782
  %4785 = vmatprep.subr.mxu0 0.0
  %4786 = vmatpush1.msra.mxu0 0.0
  %4787 = vmatprep.subr.mxu0 0.0
  %4788 = vmatpush1.msra.mxu0 0.0
  %4789 = vmatprep.subr.mxu0 0.0
  %4790 = vmatpush1.msra.mxu0 0.0
  %4791 = vmatprep.subr.mxu0 0.0
  %4792 = vmatpush1.msra.mxu0 0.0
  %4793 = vmatprep.subr.mxu0 0.0
  %4794 = vmatpush1.msra.mxu0 0.0
  %4795 = vmatprep.subr.mxu0 0.0
  %4796 = vmatpush1.msra.mxu0 0.0
  %4797 = vmatprep.subr.mxu0 0.0
  %4798 = vmatpush1.msra.mxu0 0.0
  %4799 = vmatprep.subr.mxu0 0.0
  %4800 = vmatpush1.msra.mxu0 0.0
  %4801 = vmatprep.subr.mxu0 0.0
  %4802 = vmatpush1.msra.mxu0 0.0
  %4803 = vmatprep.subr.mxu0 0.0
  %4804 = vmatpush1.msra.mxu0 0.0
  %4805 = vmatprep.subr.mxu0 0.0
  %4806 = vmatpush1.msra.mxu0 0.0
  %4807 = vmatprep.subr.mxu0 0.0
  %4808 = vmatpush1.msra.mxu0 0.0
  %4809 = vmatprep.subr.mxu0 0.0
  %4810 = vmatpush1.msra.mxu0 %v4776
  %4811 = vmatprep.subr.mxu0 0.0
  %4812 = vmatpush1.msra.mxu0 %v4775
  %4813 = vmatprep.subr.mxu0 0.0
  %4814 = vmatpush1.msra.mxu0 %v4774
  %4815 = vmatprep.subr.mxu0 0.0
  %4816 = vmatpush1.msra.mxu0 %v4773
  %4817 = vmatprep.subr.mxu0 0.0
  %4818 = vmatpush2.msra.mxu0 0.0
  %4819 = vmatprep.subr.mxu0 0.0
  %4820 = vmatpush2.msra.mxu0 0.0
  %4821 = vmatprep.subr.mxu0 0.0
  %4822 = vmatpush2.msra.mxu0 0.0
  %4823 = vmatprep.subr.mxu0 0.0
  %4824 = vmatpush2.msra.mxu0 0.0
  %4825 = vmatprep.subr.mxu0 0.0
  %4826 = vmatpush2.msra.mxu0 0.0
  %4827 = vmatprep.subr.mxu0 0.0
  %4828 = vmatpush2.msra.mxu0 0.0
  %4829 = vmatprep.subr.mxu0 0.0
  %4830 = vmatpush2.msra.mxu0 0.0
  %4831 = vmatprep.subr.mxu0 0.0
  %4832 = vmatpush2.msra.mxu0 0.0
  %4833 = vmatprep.subr.mxu0 0.0
  %4834 = vmatpush2.msra.mxu0 0.0
  %4835 = vmatprep.subr.mxu0 0.0
  %4836 = vmatpush2.msra.mxu0 0.0
  %4837 = vmatprep.subr.mxu0 0.0
  %4838 = vmatpush2.msra.mxu0 0.0
  %4839 = vmatprep.subr.mxu0 0.0
  %4840 = vmatpush2.msra.mxu0 0.0
  %4841 = vmatprep.subr.mxu0 0.0
  %4842 = vmatpush2.msra.mxu0 0.0
  %4843 = vmatprep.subr.mxu0 0.0
  %4844 = vmatpush2.msra.mxu0 0.0
  %4845 = vmatprep.subr.mxu0 0.0
  %4846 = vmatpush2.msra.mxu0 0.0
  %4847 = vmatprep.subr.mxu0 0.0
  %4848 = vmatpush2.msra.mxu0 0.0
  %4849 = vmatprep.mubr.f32.mxu0 0.0
  %4850 = vmatmul.mubr.f32.gmra.mxu0 %v4693
  %v4851 = vpop.f32.mrf.mxu0
  %v4852 = vadd.f32 %v4783, %v4851
  %v4853 = vpop.f32.mrf.mxu0
  %4854 = vmatprep.mubr.f32.mxu0 0.0
  %4855 = vmatmul.mubr.f32.gmra.mxu0 %v4695
  %v4856 = vpop.f32.mrf.mxu0
  %v4857 = vadd.f32 %v4783, %v4856
  %v4858 = vpop.f32.mrf.mxu0
  %4859 = vdwg.mxu0
  %v4861 = vsel %vm479, %v4674, 0
  %v4864 = vsel %vm479, %v4675, 0
  %v4867 = vsel %vm479, %v4676, 0
  %v4870 = vsel %vm479, %v4677, 0
  %v4873 = vsel %vm479, %v4678, 0
  %v4876 = vsel %vm479, %v4764, 0
  %v4879 = vsel %vm479, %v4769, 0
  %4881 = vmatprep.subr.mxu0 0.0
  %4882 = vmatpush1.xpose.msra.mxu0 0.0
  %4883 = vmatprep.subr.mxu0 0.0
  %4884 = vmatpush1.xpose.msra.mxu0 0.0
  %4885 = vmatprep.subr.mxu0 0.0
  %4886 = vmatpush1.xpose.msra.mxu0 0.0
  %4887 = vmatprep.subr.mxu0 0.0
  %4888 = vmatpush1.xpose.msra.mxu0 0.0
  %4889 = vmatprep.subr.mxu0 0.0
  %4890 = vmatpush1.xpose.msra.mxu0 0.0
  %4891 = vmatprep.subr.mxu0 0.0
  %4892 = vmatpush1.xpose.msra.mxu0 0.0
  %4893 = vmatprep.subr.mxu0 0.0
  %4894 = vmatpush1.xpose.msra.mxu0 0.0
  %4895 = vmatprep.subr.mxu0 0.0
  %4896 = vmatpush1.xpose.msra.mxu0 0.0
  %4897 = vmatprep.subr.mxu0 0.0
  %4898 = vmatpush1.xpose.msra.mxu0 0.0
  %4899 = vmatprep.subr.mxu0 0.0
  %4900 = vmatpush1.xpose.msra.mxu0 0.0
  %4901 = vmatprep.subr.mxu0 0.0
  %4902 = vmatpush1.xpose.msra.mxu0 0.0
  %4903 = vmatprep.subr.mxu0 0.0
  %4904 = vmatpush1.xpose.msra.mxu0 0.0
  %4905 = vmatprep.subr.mxu0 0.0
  %4906 = vmatpush1.xpose.msra.mxu0 0.0
  %4907 = vmatprep.subr.mxu0 0.0
  %4908 = vmatpush1.xpose.msra.mxu0 0.0
  %4909 = vmatprep.subr.mxu0 0.0
  %4910 = vmatpush1.xpose.msra.mxu0 %v4879
  %4911 = vmatprep.subr.mxu0 0.0
  %4912 = vmatpush1.xpose.msra.mxu0 %v4876
  %4913 = vmatprep.subr.mxu0 0.0
  %4914 = vmatpush2.xpose.msra.mxu0 0.0
  %4915 = vmatprep.subr.mxu0 0.0
  %4916 = vmatpush2.xpose.msra.mxu0 0.0
  %4917 = vmatprep.subr.mxu0 0.0
  %4918 = vmatpush2.xpose.msra.mxu0 0.0
  %4919 = vmatprep.subr.mxu0 0.0
  %4920 = vmatpush2.xpose.msra.mxu0 0.0
  %4921 = vmatprep.subr.mxu0 0.0
  %4922 = vmatpush2.xpose.msra.mxu0 0.0
  %4923 = vmatprep.subr.mxu0 0.0
  %4924 = vmatpush2.xpose.msra.mxu0 0.0
  %4925 = vmatprep.subr.mxu0 0.0
  %4926 = vmatpush2.xpose.msra.mxu0 0.0
  %4927 = vmatprep.subr.mxu0 0.0
  %4928 = vmatpush2.xpose.msra.mxu0 0.0
  %4929 = vmatprep.subr.mxu0 0.0
  %4930 = vmatpush2.xpose.msra.mxu0 0.0
  %4931 = vmatprep.subr.mxu0 0.0
  %4932 = vmatpush2.xpose.msra.mxu0 0.0
  %4933 = vmatprep.subr.mxu0 0.0
  %4934 = vmatpush2.xpose.msra.mxu0 0.0
  %4935 = vmatprep.subr.mxu0 0.0
  %4936 = vmatpush2.xpose.msra.mxu0 0.0
  %4937 = vmatprep.subr.mxu0 0.0
  %4938 = vmatpush2.xpose.msra.mxu0 0.0
  %4939 = vmatprep.subr.mxu0 0.0
  %4940 = vmatpush2.xpose.msra.mxu0 0.0
  %4941 = vmatprep.subr.mxu0 0.0
  %4942 = vmatpush2.xpose.msra.mxu0 0.0
  %4943 = vmatprep.subr.mxu0 0.0
  %4944 = vmatpush2.xpose.msra.mxu0 0.0
  %4945 = vmatprep.mubr.f32.mxu0 0.0
  %4946 = vmatmul.mubr.f32.gmra.mxu0 %v4861
  %v4947 = vpop.f32.mrf.mxu0
  %v4948 = vadd.f32 0.0, %v4947
  %v4949 = vpop.f32.mrf.mxu0
  %4950 = vmatprep.mubr.f32.mxu0 0.0
  %4951 = vmatmul.mubr.f32.gmra.mxu0 %v4864
  %v4952 = vpop.f32.mrf.mxu0
  %v4953 = vadd.f32 0.0, %v4952
  %v4954 = vpop.f32.mrf.mxu0
  %4955 = vmatprep.mubr.f32.mxu0 0.0
  %4956 = vmatmul.mubr.f32.gmra.mxu0 %v4867
  %v4957 = vpop.f32.mrf.mxu0
  %v4958 = vadd.f32 0.0, %v4957
  %v4959 = vpop.f32.mrf.mxu0
  %4960 = vmatprep.mubr.f32.mxu0 0.0
  %4961 = vmatmul.mubr.f32.gmra.mxu0 %v4870
  %v4962 = vpop.f32.mrf.mxu0
  %v4963 = vadd.f32 0.0, %v4962
  %v4964 = vpop.f32.mrf.mxu0
  %4965 = vmatprep.mubr.f32.mxu0 0.0
  %4966 = vmatmul.mubr.f32.gmra.mxu0 %v4873
  %v4967 = vpop.f32.mrf.mxu0
  %v4968 = vadd.f32 0.0, %v4967
  %v4969 = vpop.f32.mrf.mxu0
  %4970 = vdwg.mxu0
  %v4971 = vmul.f32 %v4948, 0.35355338
  %v4972 = vmul.f32 %v4953, 0.35355338
  %v4973 = vmul.f32 %v4958, 0.35355338
  %v4974 = vmul.f32 %v4963, 0.35355338
  %v4975 = vmul.f32 %v4968, 0.35355338
  %v4976 = vadd.f32 %v4971, %v631
  %v4977 = vadd.f32 %v4972, %v632
  %v4978 = vadd.f32 %v4973, %v633
  %v4979 = vadd.f32 %v4974, %v634
  %v4980 = vadd.f32 %v4975, %v635
  %v4981 = vsel %vm680, %v4976, -inf
  %4982 = vmax.xlane.f32.xlu0 %v4981
  %v4983 = vpop.xlane.xlu0 %4982
  %v4984 = vsel %vm680, %v4977, -inf
  %4985 = vmax.xlane.f32.xlu0 %v4984
  %v4986 = vpop.xlane.xlu0 %4985
  %v4987 = vsel %vm680, %v4978, -inf
  %4988 = vmax.xlane.f32.xlu0 %v4987
  %v4989 = vpop.xlane.xlu0 %4988
  %v4990 = vsel %vm680, %v4979, -inf
  %4991 = vmax.xlane.f32.xlu0 %v4990
  %v4992 = vpop.xlane.xlu0 %4991
  %v4993 = vsel %vm680, %v4980, -inf
  %4994 = vmax.xlane.f32.xlu0 %v4993
  %v4995 = vpop.xlane.xlu0 %4994
  %v4996 = vsub.f32 %v4976, %v4983
  %v4997 = vsub.f32 %v4977, %v4986
  %v4998 = vsub.f32 %v4978, %v4989
  %v4999 = vsub.f32 %v4979, %v4992
  %v5000 = vsub.f32 %v4980, %v4995
  %v5001 = vmul.f32 %v4996, 1.442695
  %v5002 = vpow.pop %v5001
  %v5003 = vmul.f32 %v4997, 1.442695
  %v5004 = vpow.pop %v5003
  %v5005 = vmul.f32 %v4998, 1.442695
  %v5006 = vpow.pop %v5005
  %v5007 = vmul.f32 %v4999, 1.442695
  %v5008 = vpow.pop %v5007
  %v5009 = vmul.f32 %v5000, 1.442695
  %v5010 = vpow.pop %v5009
  %v5011 = vsel %vm680, %v5002, 0.0
  %5012 = vadd.xlane.f32.xlu0 %v5011
  %v5013 = vpop.xlane.xlu0 %5012
  %v5014 = vsel %vm680, %v5004, 0.0
  %5015 = vadd.xlane.f32.xlu0 %v5014
  %v5016 = vpop.xlane.xlu0 %5015
  %v5017 = vsel %vm680, %v5006, 0.0
  %5018 = vadd.xlane.f32.xlu0 %v5017
  %v5019 = vpop.xlane.xlu0 %5018
  %v5020 = vsel %vm680, %v5008, 0.0
  %5021 = vadd.xlane.f32.xlu0 %v5020
  %v5022 = vpop.xlane.xlu0 %5021
  %v5023 = vsel %vm680, %v5010, 0.0
  %5024 = vadd.xlane.f32.xlu0 %v5023
  %v5025 = vpop.xlane.xlu0 %5024
  %v5026 = vrcp.pop %v5013
  %v5027 = vmul.f32 %v5002, %v5026
  %v5028 = vrcp.pop %v5016
  %v5029 = vmul.f32 %v5004, %v5028
  %v5030 = vrcp.pop %v5019
  %v5031 = vmul.f32 %v5006, %v5030
  %v5032 = vrcp.pop %v5022
  %v5033 = vmul.f32 %v5008, %v5032
  %v5034 = vrcp.pop %v5025
  %v5035 = vmul.f32 %v5010, %v5034
  %v5037 = vsel %vm680, %v5027, 0
  %v5040 = vsel %vm680, %v5029, 0
  %v5043 = vsel %vm680, %v5031, 0
  %v5046 = vsel %vm680, %v5033, 0
  %v5049 = vsel %vm680, %v5035, 0
  %v5052 = vsel %vm696, %v4857, 0
  %5054 = vmatprep.subr.mxu0 0.0
  %5055 = vmatpush1.msra.mxu0 0.0
  %5056 = vmatprep.subr.mxu0 0.0
  %5057 = vmatpush1.msra.mxu0 0.0
  %5058 = vmatprep.subr.mxu0 0.0
  %5059 = vmatpush1.msra.mxu0 0.0
  %5060 = vmatprep.subr.mxu0 0.0
  %5061 = vmatpush1.msra.mxu0 0.0
  %5062 = vmatprep.subr.mxu0 0.0
  %5063 = vmatpush1.msra.mxu0 0.0
  %5064 = vmatprep.subr.mxu0 0.0
  %5065 = vmatpush1.msra.mxu0 0.0
  %5066 = vmatprep.subr.mxu0 0.0
  %5067 = vmatpush1.msra.mxu0 0.0
  %5068 = vmatprep.subr.mxu0 0.0
  %5069 = vmatpush1.msra.mxu0 0.0
  %5070 = vmatprep.subr.mxu0 0.0
  %5071 = vmatpush1.msra.mxu0 0.0
  %5072 = vmatprep.subr.mxu0 0.0
  %5073 = vmatpush1.msra.mxu0 0.0
  %5074 = vmatprep.subr.mxu0 0.0
  %5075 = vmatpush1.msra.mxu0 0.0
  %5076 = vmatprep.subr.mxu0 0.0
  %5077 = vmatpush1.msra.mxu0 0.0
  %5078 = vmatprep.subr.mxu0 0.0
  %5079 = vmatpush1.msra.mxu0 0.0
  %5080 = vmatprep.subr.mxu0 0.0
  %5081 = vmatpush1.msra.mxu0 0.0
  %5082 = vmatprep.subr.mxu0 0.0
  %5083 = vmatpush1.msra.mxu0 %v5052
  %5084 = vmatprep.subr.mxu0 0.0
  %5085 = vmatpush1.msra.mxu0 %v4852
  %5086 = vmatprep.subr.mxu0 0.0
  %5087 = vmatpush2.msra.mxu0 0.0
  %5088 = vmatprep.subr.mxu0 0.0
  %5089 = vmatpush2.msra.mxu0 0.0
  %5090 = vmatprep.subr.mxu0 0.0
  %5091 = vmatpush2.msra.mxu0 0.0
  %5092 = vmatprep.subr.mxu0 0.0
  %5093 = vmatpush2.msra.mxu0 0.0
  %5094 = vmatprep.subr.mxu0 0.0
  %5095 = vmatpush2.msra.mxu0 0.0
  %5096 = vmatprep.subr.mxu0 0.0
  %5097 = vmatpush2.msra.mxu0 0.0
  %5098 = vmatprep.subr.mxu0 0.0
  %5099 = vmatpush2.msra.mxu0 0.0
  %5100 = vmatprep.subr.mxu0 0.0
  %5101 = vmatpush2.msra.mxu0 0.0
  %5102 = vmatprep.subr.mxu0 0.0
  %5103 = vmatpush2.msra.mxu0 0.0
  %5104 = vmatprep.subr.mxu0 0.0
  %5105 = vmatpush2.msra.mxu0 0.0
  %5106 = vmatprep.subr.mxu0 0.0
  %5107 = vmatpush2.msra.mxu0 0.0
  %5108 = vmatprep.subr.mxu0 0.0
  %5109 = vmatpush2.msra.mxu0 0.0
  %5110 = vmatprep.subr.mxu0 0.0
  %5111 = vmatpush2.msra.mxu0 0.0
  %5112 = vmatprep.subr.mxu0 0.0
  %5113 = vmatpush2.msra.mxu0 0.0
  %5114 = vmatprep.subr.mxu0 0.0
  %5115 = vmatpush2.msra.mxu0 0.0
  %5116 = vmatprep.subr.mxu0 0.0
  %5117 = vmatpush2.msra.mxu0 0.0
  %5118 = vmatprep.mubr.f32.mxu0 0.0
  %5119 = vmatmul.mubr.f32.gmra.mxu0 %v5037
  %v5120 = vpop.f32.mrf.mxu0
  %v5121 = vadd.f32 0.0, %v5120
  %v5122 = vpop.f32.mrf.mxu0
  %5123 = vmatprep.mubr.f32.mxu0 0.0
  %5124 = vmatmul.mubr.f32.gmra.mxu0 %v5040
  %v5125 = vpop.f32.mrf.mxu0
  %v5126 = vadd.f32 0.0, %v5125
  %v5127 = vpop.f32.mrf.mxu0
  %5128 = vmatprep.mubr.f32.mxu0 0.0
  %5129 = vmatmul.mubr.f32.gmra.mxu0 %v5043
  %v5130 = vpop.f32.mrf.mxu0
  %v5131 = vadd.f32 0.0, %v5130
  %v5132 = vpop.f32.mrf.mxu0
  %5133 = vmatprep.mubr.f32.mxu0 0.0
  %5134 = vmatmul.mubr.f32.gmra.mxu0 %v5046
  %v5135 = vpop.f32.mrf.mxu0
  %v5136 = vadd.f32 0.0, %v5135
  %v5137 = vpop.f32.mrf.mxu0
  %5138 = vmatprep.mubr.f32.mxu0 0.0
  %5139 = vmatmul.mubr.f32.gmra.mxu0 %v5049
  %v5140 = vpop.f32.mrf.mxu0
  %v5141 = vadd.f32 0.0, %v5140
  %v5142 = vpop.f32.mrf.mxu0
  %5143 = vdwg.mxu0
  %v5144 = vmul.f32 %v5121, %v624
  %v5145 = vmul.f32 %v5126, %v625
  %v5146 = vmul.f32 %v5131, %v626
  %v5147 = vmul.f32 %v5136, %v627
  %v5148 = vmul.f32 %v5141, %v628
  %5149 = vmatprep.subr.mxu0 0.0
  %5150 = vmatpush1.msra.mxu0 0.0
  %5151 = vmatprep.subr.mxu0 0.0
  %5152 = vmatpush1.msra.mxu0 0.0
  %5153 = vmatprep.subr.mxu0 0.0
  %5154 = vmatpush1.msra.mxu0 0.0
  %5155 = vmatprep.subr.mxu0 0.0
  %5156 = vmatpush1.msra.mxu0 0.0
  %5157 = vmatprep.subr.mxu0 0.0
  %5158 = vmatpush1.msra.mxu0 0.0
  %5159 = vmatprep.subr.mxu0 0.0
  %5160 = vmatpush1.msra.mxu0 0.0
  %5161 = vmatprep.subr.mxu0 0.0
  %5162 = vmatpush1.msra.mxu0 0.0
  %5163 = vmatprep.subr.mxu0 0.0
  %5164 = vmatpush1.msra.mxu0 0.0
  %5165 = vmatprep.subr.mxu0 0.0
  %5166 = vmatpush1.msra.mxu0 0.0
  %5167 = vmatprep.subr.mxu0 0.0
  %5168 = vmatpush1.msra.mxu0 0.0
  %5169 = vmatprep.subr.mxu0 0.0
  %5170 = vmatpush1.msra.mxu0 0.0
  %5171 = vmatprep.subr.mxu0 0.0
  %5172 = vmatpush1.msra.mxu0 %v5148
  %5173 = vmatprep.subr.mxu0 0.0
  %5174 = vmatpush1.msra.mxu0 %v5147
  %5175 = vmatprep.subr.mxu0 0.0
  %5176 = vmatpush1.msra.mxu0 %v5146
  %5177 = vmatprep.subr.mxu0 0.0
  %5178 = vmatpush1.msra.mxu0 %v5145
  %5179 = vmatprep.subr.mxu0 0.0
  %5180 = vmatpush1.msra.mxu0 %v5144
  %5181 = vmatprep.subr.mxu0 0.0
  %5182 = vmatpush2.msra.mxu0 0.0
  %5183 = vmatprep.subr.mxu0 0.0
  %5184 = vmatpush2.msra.mxu0 0.0
  %5185 = vmatprep.subr.mxu0 0.0
  %5186 = vmatpush2.msra.mxu0 0.0
  %5187 = vmatprep.subr.mxu0 0.0
  %5188 = vmatpush2.msra.mxu0 0.0
  %5189 = vmatprep.subr.mxu0 0.0
  %5190 = vmatpush2.msra.mxu0 0.0
  %5191 = vmatprep.subr.mxu0 0.0
  %5192 = vmatpush2.msra.mxu0 0.0
  %5193 = vmatprep.subr.mxu0 0.0
  %5194 = vmatpush2.msra.mxu0 0.0
  %5195 = vmatprep.subr.mxu0 0.0
  %5196 = vmatpush2.msra.mxu0 0.0
  %5197 = vmatprep.subr.mxu0 0.0
  %5198 = vmatpush2.msra.mxu0 0.0
  %5199 = vmatprep.subr.mxu0 0.0
  %5200 = vmatpush2.msra.mxu0 0.0
  %5201 = vmatprep.subr.mxu0 0.0
  %5202 = vmatpush2.msra.mxu0 0.0
  %5203 = vmatprep.subr.mxu0 0.0
  %5204 = vmatpush2.msra.mxu0 0.0
  %5205 = vmatprep.subr.mxu0 0.0
  %5206 = vmatpush2.msra.mxu0 0.0
  %5207 = vmatprep.subr.mxu0 0.0
  %5208 = vmatpush2.msra.mxu0 0.0
  %5209 = vmatprep.subr.mxu0 0.0
  %5210 = vmatpush2.msra.mxu0 0.0
  %5211 = vmatprep.subr.mxu0 0.0
  %5212 = vmatpush2.msra.mxu0 0.0
  %5213 = vmatprep.mubr.f32.mxu0 0.0
  %5214 = vmatmul.mubr.f32.gmra.mxu0 %v1379
  %v5215 = vpop.f32.mrf.mxu0
  %v5216 = vadd.f32 0.0, %v5215
  %v5217 = vpop.f32.mrf.mxu0
  %5218 = vmatprep.mubr.f32.mxu0 0.0
  %5219 = vmatmul.mubr.f32.gmra.mxu0 %v1382
  %v5220 = vpop.f32.mrf.mxu0
  %v5221 = vadd.f32 0.0, %v5220
  %v5222 = vpop.f32.mrf.mxu0
  %5223 = vdwg.mxu0
  %s5224 = scalar_lea.vmem %s47, 96
  %v5225 = vld [vmem:[%s5224] sm:$0xff]
  %v5226 = vld [vmem:[%s5224 + $0x8] sm:$0xff]
  %v5227 = vld [vmem:[%s5224 + $0x10] sm:$0xff]
  %v5228 = vld [vmem:[%s5224 + $0x18] sm:$0xff]
  %v5230 = vsel %vm479, %v5216, 0
  %v5233 = vsel %vm479, %v5221, 0
  %5235 = vmatprep.subr.mxu0 0.0
  %5236 = vmatpush1.msra.mxu0 0.0
  %5237 = vmatprep.subr.mxu0 0.0
  %5238 = vmatpush1.msra.mxu0 0.0
  %5239 = vmatprep.subr.mxu0 0.0
  %5240 = vmatpush1.msra.mxu0 0.0
  %5241 = vmatprep.subr.mxu0 0.0
  %5242 = vmatpush1.msra.mxu0 0.0
  %5243 = vmatprep.subr.mxu0 0.0
  %5244 = vmatpush1.msra.mxu0 0.0
  %5245 = vmatprep.subr.mxu0 0.0
  %5246 = vmatpush1.msra.mxu0 0.0
  %5247 = vmatprep.subr.mxu0 0.0
  %5248 = vmatpush1.msra.mxu0 0.0
  %5249 = vmatprep.subr.mxu0 0.0
  %5250 = vmatpush1.msra.mxu0 0.0
  %5251 = vmatprep.subr.mxu0 0.0
  %5252 = vmatpush1.msra.mxu0 0.0
  %5253 = vmatprep.subr.mxu0 0.0
  %5254 = vmatpush1.msra.mxu0 0.0
  %5255 = vmatprep.subr.mxu0 0.0
  %5256 = vmatpush1.msra.mxu0 0.0
  %5257 = vmatprep.subr.mxu0 0.0
  %5258 = vmatpush1.msra.mxu0 0.0
  %5259 = vmatprep.subr.mxu0 0.0
  %5260 = vmatpush1.msra.mxu0 %v5228
  %5261 = vmatprep.subr.mxu0 0.0
  %5262 = vmatpush1.msra.mxu0 %v5227
  %5263 = vmatprep.subr.mxu0 0.0
  %5264 = vmatpush1.msra.mxu0 %v5226
  %5265 = vmatprep.subr.mxu0 0.0
  %5266 = vmatpush1.msra.mxu0 %v5225
  %5267 = vmatprep.subr.mxu0 0.0
  %5268 = vmatpush2.msra.mxu0 0.0
  %5269 = vmatprep.subr.mxu0 0.0
  %5270 = vmatpush2.msra.mxu0 0.0
  %5271 = vmatprep.subr.mxu0 0.0
  %5272 = vmatpush2.msra.mxu0 0.0
  %5273 = vmatprep.subr.mxu0 0.0
  %5274 = vmatpush2.msra.mxu0 0.0
  %5275 = vmatprep.subr.mxu0 0.0
  %5276 = vmatpush2.msra.mxu0 0.0
  %5277 = vmatprep.subr.mxu0 0.0
  %5278 = vmatpush2.msra.mxu0 0.0
  %5279 = vmatprep.subr.mxu0 0.0
  %5280 = vmatpush2.msra.mxu0 0.0
  %5281 = vmatprep.subr.mxu0 0.0
  %5282 = vmatpush2.msra.mxu0 0.0
  %5283 = vmatprep.subr.mxu0 0.0
  %5284 = vmatpush2.msra.mxu0 0.0
  %5285 = vmatprep.subr.mxu0 0.0
  %5286 = vmatpush2.msra.mxu0 0.0
  %5287 = vmatprep.subr.mxu0 0.0
  %5288 = vmatpush2.msra.mxu0 0.0
  %5289 = vmatprep.subr.mxu0 0.0
  %5290 = vmatpush2.msra.mxu0 0.0
  %5291 = vmatprep.subr.mxu0 0.0
  %5292 = vmatpush2.msra.mxu0 0.0
  %5293 = vmatprep.subr.mxu0 0.0
  %5294 = vmatpush2.msra.mxu0 0.0
  %5295 = vmatprep.subr.mxu0 0.0
  %5296 = vmatpush2.msra.mxu0 0.0
  %5297 = vmatprep.subr.mxu0 0.0
  %5298 = vmatpush2.msra.mxu0 0.0
  %5299 = vmatprep.mubr.f32.mxu0 0.0
  %5300 = vmatmul.mubr.f32.gmra.mxu0 %v5230
  %v5301 = vpop.f32.mrf.mxu0
  %v5302 = vadd.f32 0.0, %v5301
  %v5303 = vpop.f32.mrf.mxu0
  %5304 = vmatprep.mubr.f32.mxu0 0.0
  %5305 = vmatmul.mubr.f32.gmra.mxu0 %v5233
  %v5306 = vpop.f32.mrf.mxu0
  %v5307 = vadd.f32 0.0, %v5306
  %v5308 = vpop.f32.mrf.mxu0
  %5309 = vdwg.mxu0
  %v5310 = vadd.f32 %v4415, %v5302
  %v5311 = vadd.f32 %v4416, %v5307
  %s5312 = scalar_lea.vmem %s49, 3
  %v5313 = vld [vmem:[%s5312] sm:$0x1]
  %v5315 = vlaneseq
  %v5316 = vshrl.u32 %v5315, 7
  %v5317 = vsub.s32 0, %v5316
  %v5318 = vrot.slane %v5313, %v5317
  %v5320 = vadd.f32 %v5310, %v5318
  %v5321 = vadd.f32 %v5311, %v5318
  %s5322 = scalar_lea.vmem %s51, 3
  %v5323 = vld [vmem:[%s5322] sm:$0x1]
  %s5324 = scalar_lea.vmem %s53, 3
  %v5325 = vld [vmem:[%s5324] sm:$0x1]
  %v5326 = vsel %vm479, %v5320, 0.0
  %5327 = vadd.xlane.f32.xlu0 %v5326
  %v5328 = vpop.xlane.xlu0 %5327
  %v5329 = vsel %vm483, %v5321, 0.0
  %5330 = vadd.xlane.f32.xlu0 %v5329
  %v5331 = vpop.xlane.xlu0 %5330
  %v5332 = vmul.f32 %v5328, %v487
  %v5333 = vmul.f32 %v5331, %v487
  %v5334 = vsub.f32 %v5320, %v5332
  %v5335 = vsub.f32 %v5321, %v5333
  %v5336 = vmul.f32 %v5334, %v5334
  %v5337 = vmul.f32 %v5335, %v5335
  %v5338 = vsel %vm479, %v5336, 0.0
  %5339 = vadd.xlane.f32.xlu0 %v5338
  %v5340 = vpop.xlane.xlu0 %5339
  %v5341 = vsel %vm483, %v5337, 0.0
  %5342 = vadd.xlane.f32.xlu0 %v5341
  %v5343 = vpop.xlane.xlu0 %5342
  %v5344 = vmul.f32 %v5340, %v487
  %v5345 = vmul.f32 %v5343, %v487
  %v5346 = vadd.f32 %v5344, 1e-05
  %v5347 = vadd.f32 %v5345, 1e-05
  %v5348 = vrsqrt.pop %v5346
  %v5349 = vrsqrt.pop %v5347
  %v5350 = vmul.f32 %v5334, %v5348
  %v5351 = vmul.f32 %v5335, %v5349
  %v5353 = vlaneseq
  %v5354 = vshrl.u32 %v5353, 7
  %v5355 = vsub.s32 0, %v5354
  %v5356 = vrot.slane %v5323, %v5355
  %v5358 = vmul.f32 %v5350, %v5356
  %v5359 = vmul.f32 %v5351, %v5356
  %v5361 = vlaneseq
  %v5362 = vshrl.u32 %v5361, 7
  %v5363 = vsub.s32 0, %v5362
  %v5364 = vrot.slane %v5325, %v5363
  %v5366 = vadd.f32 %v5358, %v5364
  %v5367 = vadd.f32 %v5359, %v5364
  %s5368 = scalar_lea.vmem %s55, 96
  %v5369 = vld [vmem:[%s5368] sm:$0xff]
  %v5370 = vld [vmem:[%s5368 + $0x8] sm:$0xff]
  %v5371 = vld [vmem:[%s5368 + $0x10] sm:$0xff]
  %v5372 = vld [vmem:[%s5368 + $0x18] sm:$0xff]
  %s5373 = scalar_lea.vmem %s57, 3
  %v5374 = vld [vmem:[%s5373] sm:$0x1]
  %v5376 = vlaneseq
  %v5377 = vshrl.u32 %v5376, 7
  %v5378 = vsub.s32 0, %v5377
  %v5379 = vrot.slane %v5374, %v5378
  %v5382 = vsel %vm479, %v5366, 0
  %v5385 = vsel %vm479, %v5367, 0
  %5387 = vmatprep.subr.mxu0 0.0
  %5388 = vmatpush1.msra.mxu0 0.0
  %5389 = vmatprep.subr.mxu0 0.0
  %5390 = vmatpush1.msra.mxu0 0.0
  %5391 = vmatprep.subr.mxu0 0.0
  %5392 = vmatpush1.msra.mxu0 0.0
  %5393 = vmatprep.subr.mxu0 0.0
  %5394 = vmatpush1.msra.mxu0 0.0
  %5395 = vmatprep.subr.mxu0 0.0
  %5396 = vmatpush1.msra.mxu0 0.0
  %5397 = vmatprep.subr.mxu0 0.0
  %5398 = vmatpush1.msra.mxu0 0.0
  %5399 = vmatprep.subr.mxu0 0.0
  %5400 = vmatpush1.msra.mxu0 0.0
  %5401 = vmatprep.subr.mxu0 0.0
  %5402 = vmatpush1.msra.mxu0 0.0
  %5403 = vmatprep.subr.mxu0 0.0
  %5404 = vmatpush1.msra.mxu0 0.0
  %5405 = vmatprep.subr.mxu0 0.0
  %5406 = vmatpush1.msra.mxu0 0.0
  %5407 = vmatprep.subr.mxu0 0.0
  %5408 = vmatpush1.msra.mxu0 0.0
  %5409 = vmatprep.subr.mxu0 0.0
  %5410 = vmatpush1.msra.mxu0 0.0
  %5411 = vmatprep.subr.mxu0 0.0
  %5412 = vmatpush1.msra.mxu0 %v5372
  %5413 = vmatprep.subr.mxu0 0.0
  %5414 = vmatpush1.msra.mxu0 %v5371
  %5415 = vmatprep.subr.mxu0 0.0
  %5416 = vmatpush1.msra.mxu0 %v5370
  %5417 = vmatprep.subr.mxu0 0.0
  %5418 = vmatpush1.msra.mxu0 %v5369
  %5419 = vmatprep.subr.mxu0 0.0
  %5420 = vmatpush2.msra.mxu0 0.0
  %5421 = vmatprep.subr.mxu0 0.0
  %5422 = vmatpush2.msra.mxu0 0.0
  %5423 = vmatprep.subr.mxu0 0.0
  %5424 = vmatpush2.msra.mxu0 0.0
  %5425 = vmatprep.subr.mxu0 0.0
  %5426 = vmatpush2.msra.mxu0 0.0
  %5427 = vmatprep.subr.mxu0 0.0
  %5428 = vmatpush2.msra.mxu0 0.0
  %5429 = vmatprep.subr.mxu0 0.0
  %5430 = vmatpush2.msra.mxu0 0.0
  %5431 = vmatprep.subr.mxu0 0.0
  %5432 = vmatpush2.msra.mxu0 0.0
  %5433 = vmatprep.subr.mxu0 0.0
  %5434 = vmatpush2.msra.mxu0 0.0
  %5435 = vmatprep.subr.mxu0 0.0
  %5436 = vmatpush2.msra.mxu0 0.0
  %5437 = vmatprep.subr.mxu0 0.0
  %5438 = vmatpush2.msra.mxu0 0.0
  %5439 = vmatprep.subr.mxu0 0.0
  %5440 = vmatpush2.msra.mxu0 0.0
  %5441 = vmatprep.subr.mxu0 0.0
  %5442 = vmatpush2.msra.mxu0 0.0
  %5443 = vmatprep.subr.mxu0 0.0
  %5444 = vmatpush2.msra.mxu0 0.0
  %5445 = vmatprep.subr.mxu0 0.0
  %5446 = vmatpush2.msra.mxu0 0.0
  %5447 = vmatprep.subr.mxu0 0.0
  %5448 = vmatpush2.msra.mxu0 0.0
  %5449 = vmatprep.subr.mxu0 0.0
  %5450 = vmatpush2.msra.mxu0 0.0
  %5451 = vmatprep.mubr.f32.mxu0 0.0
  %5452 = vmatmul.mubr.f32.gmra.mxu0 %v5382
  %v5453 = vpop.f32.mrf.mxu0
  %v5454 = vadd.f32 %v5379, %v5453
  %v5455 = vpop.f32.mrf.mxu0
  %5456 = vmatprep.mubr.f32.mxu0 0.0
  %5457 = vmatmul.mubr.f32.gmra.mxu0 %v5385
  %v5458 = vpop.f32.mrf.mxu0
  %v5459 = vadd.f32 %v5379, %v5458
  %v5460 = vpop.f32.mrf.mxu0
  %5461 = vdwg.mxu0
  %v5462 = vmul.f32 %v5454, -1.702
  %v5463 = vmul.f32 %v5459, -1.702
  %v5464 = vmul.f32 %v5462, 1.442695
  %v5465 = vpow.pop %v5464
  %v5466 = vmul.f32 %v5463, 1.442695
  %v5467 = vpow.pop %v5466
  %v5468 = vadd.f32 %v5465, 1.0
  %v5469 = vadd.f32 %v5467, 1.0
  %v5470 = vrcp.pop %v5468
  %v5471 = vmul.f32 1.0, %v5470
  %v5472 = vrcp.pop %v5469
  %v5473 = vmul.f32 1.0, %v5472
  %v5474 = vmul.f32 %v5454, %v5471
  %v5475 = vmul.f32 %v5459, %v5473
  %s5476 = scalar_lea.vmem %s59, 384
  %v5477 = vld [vmem:[%s5476] sm:$0xff]
  %v5478 = vld [vmem:[%s5476 + $0x8] sm:$0xff]
  %v5479 = vld [vmem:[%s5476 + $0x10] sm:$0xff]
  %v5480 = vld [vmem:[%s5476 + $0x18] sm:$0xff]
  %v5481 = vld [vmem:[%s5476 + $0x20] sm:$0xff]
  %v5482 = vld [vmem:[%s5476 + $0x28] sm:$0xff]
  %v5483 = vld [vmem:[%s5476 + $0x30] sm:$0xff]
  %v5484 = vld [vmem:[%s5476 + $0x38] sm:$0xff]
  %v5485 = vld [vmem:[%s5476 + $0x40] sm:$0xff]
  %v5486 = vld [vmem:[%s5476 + $0x48] sm:$0xff]
  %v5487 = vld [vmem:[%s5476 + $0x50] sm:$0xff]
  %v5488 = vld [vmem:[%s5476 + $0x58] sm:$0xff]
  %v5489 = vld [vmem:[%s5476 + $0x60] sm:$0xff]
  %v5490 = vld [vmem:[%s5476 + $0x68] sm:$0xff]
  %v5491 = vld [vmem:[%s5476 + $0x70] sm:$0xff]
  %v5492 = vld [vmem:[%s5476 + $0x78] sm:$0xff]
  %5493 = vmatprep.subr.mxu0 0.0
  %5494 = vmatpush1.msra.mxu0 %v5492
  %5495 = vmatprep.subr.mxu0 0.0
  %5496 = vmatpush1.msra.mxu0 %v5491
  %5497 = vmatprep.subr.mxu0 0.0
  %5498 = vmatpush1.msra.mxu0 %v5490
  %5499 = vmatprep.subr.mxu0 0.0
  %5500 = vmatpush1.msra.mxu0 %v5489
  %5501 = vmatprep.subr.mxu0 0.0
  %5502 = vmatpush1.msra.mxu0 %v5488
  %5503 = vmatprep.subr.mxu0 0.0
  %5504 = vmatpush1.msra.mxu0 %v5487
  %5505 = vmatprep.subr.mxu0 0.0
  %5506 = vmatpush1.msra.mxu0 %v5486
  %5507 = vmatprep.subr.mxu0 0.0
  %5508 = vmatpush1.msra.mxu0 %v5485
  %5509 = vmatprep.subr.mxu0 0.0
  %5510 = vmatpush1.msra.mxu0 %v5484
  %5511 = vmatprep.subr.mxu0 0.0
  %5512 = vmatpush1.msra.mxu0 %v5483
  %5513 = vmatprep.subr.mxu0 0.0
  %5514 = vmatpush1.msra.mxu0 %v5482
  %5515 = vmatprep.subr.mxu0 0.0
  %5516 = vmatpush1.msra.mxu0 %v5481
  %5517 = vmatprep.subr.mxu0 0.0
  %5518 = vmatpush1.msra.mxu0 %v5480
  %5519 = vmatprep.subr.mxu0 0.0
  %5520 = vmatpush1.msra.mxu0 %v5479
  %5521 = vmatprep.subr.mxu0 0.0
  %5522 = vmatpush1.msra.mxu0 %v5478
  %5523 = vmatprep.subr.mxu0 0.0
  %5524 = vmatpush1.msra.mxu0 %v5477
  %5525 = vmatprep.subr.mxu0 0.0
  %5526 = vmatpush2.msra.mxu0 0.0
  %5527 = vmatprep.subr.mxu0 0.0
  %5528 = vmatpush2.msra.mxu0 0.0
  %5529 = vmatprep.subr.mxu0 0.0
  %5530 = vmatpush2.msra.mxu0 0.0
  %5531 = vmatprep.subr.mxu0 0.0
  %5532 = vmatpush2.msra.mxu0 0.0
  %5533 = vmatprep.subr.mxu0 0.0
  %5534 = vmatpush2.msra.mxu0 0.0
  %5535 = vmatprep.subr.mxu0 0.0
  %5536 = vmatpush2.msra.mxu0 0.0
  %5537 = vmatprep.subr.mxu0 0.0
  %5538 = vmatpush2.msra.mxu0 0.0
  %5539 = vmatprep.subr.mxu0 0.0
  %5540 = vmatpush2.msra.mxu0 0.0
  %5541 = vmatprep.subr.mxu0 0.0
  %5542 = vmatpush2.msra.mxu0 0.0
  %5543 = vmatprep.subr.mxu0 0.0
  %5544 = vmatpush2.msra.mxu0 0.0
  %5545 = vmatprep.subr.mxu0 0.0
  %5546 = vmatpush2.msra.mxu0 0.0
  %5547 = vmatprep.subr.mxu0 0.0
  %5548 = vmatpush2.msra.mxu0 0.0
  %5549 = vmatprep.subr.mxu0 0.0
  %5550 = vmatpush2.msra.mxu0 0.0
  %5551 = vmatprep.subr.mxu0 0.0
  %5552 = vmatpush2.msra.mxu0 0.0
  %5553 = vmatprep.subr.mxu0 0.0
  %5554 = vmatpush2.msra.mxu0 0.0
  %5555 = vmatprep.subr.mxu0 0.0
  %5556 = vmatpush2.msra.mxu0 0.0
  %5557 = vmatprep.mubr.f32.mxu0 0.0
  %5558 = vmatmul.mubr.f32.gmra.mxu0 %v5474
  %v5559 = vpop.f32.mrf.mxu0
  %v5560 = vadd.f32 0.0, %v5559
  %v5561 = vpop.f32.mrf.mxu0
  %5562 = vmatprep.mubr.f32.mxu0 0.0
  %5563 = vmatmul.mubr.f32.gmra.mxu0 %v5475
  %v5564 = vpop.f32.mrf.mxu0
  %v5565 = vadd.f32 0.0, %v5564
  %v5566 = vpop.f32.mrf.mxu0
  %5567 = vdwg.mxu0
  %v5568 = vadd.f32 %v5320, %v5560
  %v5569 = vadd.f32 %v5321, %v5565
  %s5570 = scalar_lea.vmem %s61, 3
  %v5571 = vld [vmem:[%s5570] sm:$0x1]
  %v5573 = vlaneseq
  %v5574 = vshrl.u32 %v5573, 7
  %v5575 = vsub.s32 0, %v5574
  %v5576 = vrot.slane %v5571, %v5575
  %v5578 = vadd.f32 %v5568, %v5576
  %v5579 = vadd.f32 %v5569, %v5576
  %v5580 = vld [vmem:[%s63] sm:$0x1]
  %v5581 = vld [vmem:[%s65] sm:$0x1]
  %v5582 = vsel %vm479, %v5578, 0.0
  %5583 = vadd.xlane.f32.xlu0 %v5582
  %v5584 = vpop.xlane.xlu0 %5583
  %v5585 = vsel %vm483, %v5579, 0.0
  %5586 = vadd.xlane.f32.xlu0 %v5585
  %v5587 = vpop.xlane.xlu0 %5586
  %v5588 = vmul.f32 %v5584, %v487
  %v5589 = vmul.f32 %v5587, %v487
  %v5590 = vsub.f32 %v5578, %v5588
  %v5591 = vsub.f32 %v5579, %v5589
  %v5592 = vmul.f32 %v5590, %v5590
  %v5593 = vmul.f32 %v5591, %v5591
  %v5594 = vsel %vm479, %v5592, 0.0
  %5595 = vadd.xlane.f32.xlu0 %v5594
  %v5596 = vpop.xlane.xlu0 %5595
  %v5597 = vsel %vm483, %v5593, 0.0
  %5598 = vadd.xlane.f32.xlu0 %v5597
  %v5599 = vpop.xlane.xlu0 %5598
  %v5600 = vmul.f32 %v5596, %v487
  %v5601 = vmul.f32 %v5599, %v487
  %v5602 = vadd.f32 %v5600, 1e-05
  %v5603 = vadd.f32 %v5601, 1e-05
  %v5604 = vrsqrt.pop %v5602
  %v5605 = vrsqrt.pop %v5603
  %v5606 = vmul.f32 %v5590, %v5604
  %v5607 = vmul.f32 %v5591, %v5605
  %v5609 = vlaneseq
  %v5610 = vshrl.u32 %v5609, 7
  %v5611 = vsub.s32 0, %v5610
  %v5612 = vrot.slane %v5580, %v5611
  %v5614 = vmul.f32 %v5606, %v5612
  %v5615 = vmul.f32 %v5607, %v5612
  %v5617 = vlaneseq
  %v5618 = vshrl.u32 %v5617, 7
  %v5619 = vsub.s32 0, %v5618
  %v5620 = vrot.slane %v5581, %v5619
  %v5622 = vadd.f32 %v5614, %v5620
  %v5623 = vadd.f32 %v5615, %v5620
  %v5624 = vld [vmem:[%s67] sm:$0xff]
  %v5625 = vld [vmem:[%s67 + $0x8] sm:$0xff]
  %v5626 = vld [vmem:[%s67 + $0x10] sm:$0xff]
  %v5627 = vld [vmem:[%s67 + $0x18] sm:$0xff]
  %v5629 = vsel %vm479, %v5622, 0
  %v5632 = vsel %vm479, %v5623, 0
  %5634 = vmatprep.subr.mxu0 0.0
  %5635 = vmatpush1.msra.mxu0 0.0
  %5636 = vmatprep.subr.mxu0 0.0
  %5637 = vmatpush1.msra.mxu0 0.0
  %5638 = vmatprep.subr.mxu0 0.0
  %5639 = vmatpush1.msra.mxu0 0.0
  %5640 = vmatprep.subr.mxu0 0.0
  %5641 = vmatpush1.msra.mxu0 0.0
  %5642 = vmatprep.subr.mxu0 0.0
  %5643 = vmatpush1.msra.mxu0 0.0
  %5644 = vmatprep.subr.mxu0 0.0
  %5645 = vmatpush1.msra.mxu0 0.0
  %5646 = vmatprep.subr.mxu0 0.0
  %5647 = vmatpush1.msra.mxu0 0.0
  %5648 = vmatprep.subr.mxu0 0.0
  %5649 = vmatpush1.msra.mxu0 0.0
  %5650 = vmatprep.subr.mxu0 0.0
  %5651 = vmatpush1.msra.mxu0 0.0
  %5652 = vmatprep.subr.mxu0 0.0
  %5653 = vmatpush1.msra.mxu0 0.0
  %5654 = vmatprep.subr.mxu0 0.0
  %5655 = vmatpush1.msra.mxu0 0.0
  %5656 = vmatprep.subr.mxu0 0.0
  %5657 = vmatpush1.msra.mxu0 0.0
  %5658 = vmatprep.subr.mxu0 0.0
  %5659 = vmatpush1.msra.mxu0 %v5627
  %5660 = vmatprep.subr.mxu0 0.0
  %5661 = vmatpush1.msra.mxu0 %v5626
  %5662 = vmatprep.subr.mxu0 0.0
  %5663 = vmatpush1.msra.mxu0 %v5625
  %5664 = vmatprep.subr.mxu0 0.0
  %5665 = vmatpush1.msra.mxu0 %v5624
  %5666 = vmatprep.subr.mxu0 0.0
  %5667 = vmatpush2.msra.mxu0 0.0
  %5668 = vmatprep.subr.mxu0 0.0
  %5669 = vmatpush2.msra.mxu0 0.0
  %5670 = vmatprep.subr.mxu0 0.0
  %5671 = vmatpush2.msra.mxu0 0.0
  %5672 = vmatprep.subr.mxu0 0.0
  %5673 = vmatpush2.msra.mxu0 0.0
  %5674 = vmatprep.subr.mxu0 0.0
  %5675 = vmatpush2.msra.mxu0 0.0
  %5676 = vmatprep.subr.mxu0 0.0
  %5677 = vmatpush2.msra.mxu0 0.0
  %5678 = vmatprep.subr.mxu0 0.0
  %5679 = vmatpush2.msra.mxu0 0.0
  %5680 = vmatprep.subr.mxu0 0.0
  %5681 = vmatpush2.msra.mxu0 0.0
  %5682 = vmatprep.subr.mxu0 0.0
  %5683 = vmatpush2.msra.mxu0 0.0
  %5684 = vmatprep.subr.mxu0 0.0
  %5685 = vmatpush2.msra.mxu0 0.0
  %5686 = vmatprep.subr.mxu0 0.0
  %5687 = vmatpush2.msra.mxu0 0.0
  %5688 = vmatprep.subr.mxu0 0.0
  %5689 = vmatpush2.msra.mxu0 0.0
  %5690 = vmatprep.subr.mxu0 0.0
  %5691 = vmatpush2.msra.mxu0 0.0
  %5692 = vmatprep.subr.mxu0 0.0
  %5693 = vmatpush2.msra.mxu0 0.0
  %5694 = vmatprep.subr.mxu0 0.0
  %5695 = vmatpush2.msra.mxu0 0.0
  %5696 = vmatprep.subr.mxu0 0.0
  %5697 = vmatpush2.msra.mxu0 0.0
  %5698 = vmatprep.mubr.f32.mxu0 0.0
  %5699 = vmatmul.mubr.f32.gmra.mxu0 %v5629
  %v5700 = vpop.f32.mrf.mxu0
  %v5701 = vadd.f32 0.0, %v5700
  %v5702 = vpop.f32.mrf.mxu0
  %5703 = vmatprep.mubr.f32.mxu0 0.0
  %5704 = vmatmul.mubr.f32.gmra.mxu0 %v5632
  %v5705 = vpop.f32.mrf.mxu0
  %v5706 = vadd.f32 0.0, %v5705
  %v5707 = vpop.f32.mrf.mxu0
  %5708 = vdwg.mxu0
  %v5709 = vmul.f32 %v5701, %v5701
  %v5710 = vmul.f32 %v5706, %v5706
  %v5711 = vsel %vm479, %v5709, 0.0
  %5712 = vadd.xlane.f32.xlu0 %v5711
  %v5713 = vpop.xlane.xlu0 %5712
  %v5714 = vsel %vm483, %v5710, 0.0
  %5715 = vadd.xlane.f32.xlu0 %v5714
  %v5716 = vpop.xlane.xlu0 %5715
  %v5717 = vrsqrt.pop %v5713
  %v5718 = vmul.f32 %v5713, %v5717
  %vm5719 = vcmp.eq.f32.partialorder %v5713, inf
  %v5720 = vsel %vm5719, %v5713, %v5718
  %vm5721 = vcmp.eq.f32.partialorder %v5713, 0.0
  %v5722 = vand.u32 %v5713, 2147483648
  %v5723 = vsel %vm5721, %v5722, %v5720
  %v5724 = vrsqrt.pop %v5716
  %v5725 = vmul.f32 %v5716, %v5724
  %vm5726 = vcmp.eq.f32.partialorder %v5716, inf
  %v5727 = vsel %vm5726, %v5716, %v5725
  %vm5728 = vcmp.eq.f32.partialorder %v5716, 0.0
  %v5729 = vand.u32 %v5716, 2147483648
  %v5730 = vsel %vm5728, %v5729, %v5727
  %v5731 = vrcp.pop %v5723
  %v5732 = vmul.f32 %v5701, %v5731
  %v5733 = vrcp.pop %v5730
  %v5734 = vmul.f32 %v5706, %v5733
  %v5735 = vsel %vm680, %v3247, 0.0
  %v5736 = vsel %vm696, %v5735, 0.0
  %5739 = vrot.lane.b32.xlu0 %v5578, 32
  %v5740 = vpop.permute.xlu0 %5739
  %5741 = vrot.lane.b32.xlu0 %v5579, 32
  %v5742 = vpop.permute.xlu0 %5741
  %5747 = vrot.lane.b32.xlu0 %v5732, 64
  %v5748 = vpop.permute.xlu0 %5747
  %5749 = vrot.lane.b32.xlu0 %v5734, 64
  %v5750 = vpop.permute.xlu0 %5749
  %5755 = vrot.lane.b32.xlu0 %v5736, 96
  %v5756 = vpop.permute.xlu0 %5755
  %5757 = vrot.lane.b32.xlu0 0.0, 96
  %v5758 = vpop.permute.xlu0 %5757
  %v5761 = vsel %vm479, %v2968, %v5740
  %v5762 = vsel %vm479, %v2969, %v5742
  %vm5763 = vcmask 523264
  %v5764 = vsel %vm5763, %v5761, %v5748
  %v5765 = vsel %vm5763, %v5762, %v5750
  %vm5766 = vcmask 785408
  %v5767 = vsel %vm5766, %v5764, %v5756
  %v5768 = vsel %vm5766, %v5765, %v5758
  %5769 = vst [vmem:[%s69] sm:$0xff] %v5767
  %5770 = vst [vmem:[%s69 + $0x8] sm:$0x3] %v5768
  // Predicated region
  $region138: #{forward.1} parent=0 // pred_check
    _
  $region139: #{forward.1} parent=0 // pred_check_branch
    %5772 = sbr.rel (0) target = $region141
  $region140: #{forward.1} parent=0 // pred_region
    _
  $region141: #{forward.1} parent=0 // pred_fallthru
    _
  // Predicated region
  $region142: #{forward.1} parent=0 // pred_check
    _
  $region143: #{forward.1} parent=0 // pred_check_branch
    %5774 = sbr.rel (0) target = $region145
  $region144: #{forward.1} parent=0 // pred_region
    _
  $region145: #{forward.1} parent=0 // pred_fallthru
    _

</llo_original>
